<compile_context>
chip_gen: v7x
topology: tpu7x:2x2x1
jax: 0.10.0
libtpu: 0.0.40
codegen_flags: <defaults>
</compile_context>

<pallas_src>
import functools

import numpy as np
import jax
import jax.numpy as jnp
from jax import lax
from jax.experimental import pallas as pl
from jax.experimental.pallas import tpu as pltpu

NEG_SLOPE = 0.01  # nn.LeakyReLU default negative_slope


def _leaky(x):
    return jnp.where(x >= 0, x, NEG_SLOPE * x)


def _round_up(x, m):
    return ((x + m - 1) // m) * m


# --------------------------------------------------------------------------
# Pallas kernel 1: dilated 11x11 conv as a grid reduction over the 11 row taps
# --------------------------------------------------------------------------
def _conv_tap_kernel(x_ref, w_ref, o_ref, acc_ref):
    # x_ref: (1, 33, Tc) column-pre-shifted pixels, shifted along the flat
    #        pixel axis by the row tap via the index_map.
    # w_ref: (32, 33) weights of one row tap.
    ki = pl.program_id(2)

    @pl.when(ki == 0)
    def _():
        acc_ref[...] = jnp.zeros_like(acc_ref)

    acc_ref[...] += jnp.dot(w_ref[...], x_ref[0],
                            preferred_element_type=jnp.float32)

    @pl.when(ki == pl.num_programs(2) - 1)
    def _():
        o_ref[0] = acc_ref[...]


def conv11x11_dilated(x, w11):
    """Dilated (d=3) 11x11 conv, stride 1, pad 5, no bias.

    x: (B,3,H,W) f32, w11: (32,3,11,11).  Returns (B,32,H-20,W-20)."""
    B, C, H, W = x.shape
    H2, W2 = H - 20, W - 20            # k=11, dilation=3, padding=5, stride=1
    H2r = _round_up(H2, 3)             # output rows padded so row taps land on
    Hp = H2r + 30                      # whole 3-row blocks of the flat axis
    W2p = _round_up(W2, 128)           # lane-dense output width
    Tc = 3 * W2p                       # conv tile = 3 output rows x W2p lanes

    # zero-pad 5 each side (+ extra bottom rows for the 3-row divisibility)
    xp = jnp.pad(x, ((0, 0), (0, 0), (5, 5 + (H2r - H2)), (5, 5)))
    # column taps pre-shifted in XLA: only 11x a 3-channel image (~= one
    # 33-channel feature map), NOT the 121x im2col tensor.
    xc = jnp.stack([xp[:, :, :, 3 * kj:3 * kj + W2] for kj in range(11)],
                   axis=1)                                   # (B,11,3,Hp,W2)
    xc = xc.reshape(B, 33, Hp, W2)
    xc = jnp.pad(xc, ((0, 0), (0, 0), (0, 0), (0, W2p - W2)))
    xc = xc.reshape(B, 33, Hp * W2p)

    # per-row-tap weights: wk[ki, o, kj*3 + c] = w11[o, c, ki, kj]
    wk = jnp.transpose(w11, (2, 0, 3, 1)).reshape(11, 32, 33)

    grid_t = H2r // 3
    out = pl.pallas_call(
        _conv_tap_kernel,
        out_shape=jax.ShapeDtypeStruct((B, 32, H2r * W2p), jnp.float32),
        grid_spec=pltpu.PrefetchScalarGridSpec(
            num_scalar_prefetch=0,
            grid=(B, grid_t, 11),
            in_specs=[
                # row tap ki == shift of ki blocks (3 padded rows each) along
                # the flat pixel axis
                pl.BlockSpec((1, 33, Tc), lambda b, t, ki: (b, 0, t + ki)),
                pl.BlockSpec((None, 32, 33), lambda b, t, ki: (ki, 0, 0)),
            ],
            out_specs=pl.BlockSpec((1, 32, Tc), lambda b, t, ki: (b, 0, t)),
            scratch_shapes=[pltpu.VMEM((32, Tc), jnp.float32)],
        ),
        compiler_params=pltpu.CompilerParams(
            dimension_semantics=("parallel", "parallel", "arbitrary")),
    )(xc, wk)
    return out.reshape(B, 32, H2r, W2p)[:, :, :H2, :W2]


# --------------------------------------------------------------------------
# bilinear upsample, align_corners=True, as 2-tap gather+lerp  (plain-JAX glue)
# --------------------------------------------------------------------------
def _interp_1d(out_size, in_size):
    if out_size == 1:
        src = np.zeros((1,), np.float64)
    else:
        src = np.arange(out_size, dtype=np.float64) * (in_size - 1) / (out_size - 1)
    i0 = np.clip(np.floor(src).astype(np.int32), 0, in_size - 1)
    i1 = np.minimum(i0 + 1, in_size - 1)
    w = (src - i0).astype(np.float32)
    return jnp.asarray(i0), jnp.asarray(i1), jnp.asarray(w)


def upsample_bilinear_ac(c, out_h, out_w):
    """c: (B, C, H2, W2) -> (B, C, out_h, out_w), align_corners=True."""
    i0, i1, wh = _interp_1d(out_h, c.shape[2])
    j0, j1, ww = _interp_1d(out_w, c.shape[3])
    r = (jnp.take(c, i0, axis=2) * (1.0 - wh)[None, None, :, None]
         + jnp.take(c, i1, axis=2) * wh[None, None, :, None])
    u = (jnp.take(r, j0, axis=3) * (1.0 - ww)
         + jnp.take(r, j1, axis=3) * ww)
    return u


# interp matrices used only by the pure-JAX reference below
def _interp_matrix(out_size, in_size):
    if out_size == 1:
        src = jnp.zeros((1,), jnp.float32)
    else:
        src = jnp.arange(out_size, dtype=jnp.float32) * (in_size - 1) / (out_size - 1)
    i0 = jnp.clip(jnp.floor(src).astype(jnp.int32), 0, in_size - 1)
    i1 = jnp.clip(i0 + 1, 0, in_size - 1)
    w = src - i0.astype(jnp.float32)
    A = jnp.zeros((out_size, in_size), jnp.float32)
    A = A.at[jnp.arange(out_size), i0].add(1.0 - w)
    A = A.at[jnp.arange(out_size), i1].add(w)
    return A


# --------------------------------------------------------------------------
# Pallas kernel 2: fused per-pixel Siamese head + quadratic-form score + sum
# --------------------------------------------------------------------------
def _cd_head_kernel(x_ref, y_ref, xu_ref, yu_ref,
                    w1_ref, wm1a_ref, wm1b_ref, wm2_ref, wm3_ref, m_ref,
                    out_ref, acc_ref, *, total_pix, tile):
    t = pl.program_id(1)

    @pl.when(t == 0)
    def _():
        acc_ref[...] = jnp.zeros_like(acc_ref)

    dot = functools.partial(jnp.dot, preferred_element_type=jnp.float32)

    def branch(pix, up):
        # pix: (3, T) raw image pixels, up: (32, T) upsampled conv11x11 feats.
        a = _leaky(dot(w1_ref[...], pix))                    # conv1x1 branch
        b = _leaky(up)                                       # conv11x11 branch
        # conv_m1 on the (virtual) 64-channel concat == split-weight sum,
        # avoiding any in-kernel sublane concat.
        h = _leaky(dot(wm1a_ref[...], a) + dot(wm1b_ref[...], b))   # (32, T)
        h = _leaky(dot(wm2_ref[...], h))                            # (16, T)
        return dot(wm3_ref[...], h)                                 # (12, T)

    ox = branch(x_ref[0], xu_ref[0])
    oy = branch(y_ref[0], yu_ref[0])

    d = jnp.abs(ox - oy)                                      # (12, T)
    q = jnp.sum(d * dot(m_ref[...], d), axis=0, keepdims=True)  # d^T M d (1,T)
    score = jnp.sqrt(1e-8 + q)                                # (1, T)

    # pad-lane mask generated in-kernel (no HBM mask stream, no input padding)
    valid = lax.broadcasted_iota(jnp.int32, (1, tile), 1) < (total_pix - t * tile)
    acc_ref[...] += jnp.sum(jnp.where(valid, score, 0.0), axis=1, keepdims=True)

    @pl.when(t == pl.num_programs(1) - 1)
    def _():
        out_ref[0] = acc_ref[...]


# --------------------------------------------------------------------------
# Wrapper == CDNetLoss.forward
# --------------------------------------------------------------------------
def cdnet_loss(img1, img2, params, loss_weight, *, tile=2048):
    B, C, H, W = img1.shape
    assert C == 3 and H > 20 and W > 20
    w1 = params["conv1x1"]
    wm1, wm2, wm3 = params["conv_m1"], params["conv_m2"], params["conv_m3"]
    cube = params["cube"]

    # matrix = abs(cube); matrix = (matrix.T + matrix)/2
    m_abs = jnp.abs(cube)
    m_sym = (m_abs.T + m_abs) * 0.5
    wm1a, wm1b = wm1[:, :32], wm1[:, 32:]     # split to avoid sublane concat

    def branch2(img):
        c = conv11x11_dilated(img, params["conv11x11"])       # (B,32,H-20,W-20)
        return upsample_bilinear_ac(c, H, W).reshape(B, 32, H * W)

    xu, yu = branch2(img1), branch2(img2)

    P = H * W
    T = min(_round_up(tile, 128), _round_up(P, 128))          # lane tile
    xf = img1.reshape(B, 3, P)
    yf = img2.reshape(B, 3, P)

    kern = functools.partial(_cd_head_kernel, total_pix=P, tile=T)
    sums = pl.pallas_call(
        kern,
        out_shape=jax.ShapeDtypeStruct((B, 1, 1), jnp.float32),
        grid_spec=pltpu.PrefetchScalarGridSpec(
            num_scalar_prefetch=0,
            grid=(B, pl.cdiv(P, T)),
            in_specs=[pl.BlockSpec((1, 3, T), lambda b, t: (b, 0, t)),
                      pl.BlockSpec((1, 3, T), lambda b, t: (b, 0, t)),
                      pl.BlockSpec((1, 32, T), lambda b, t: (b, 0, t)),
                      pl.BlockSpec((1, 32, T), lambda b, t: (b, 0, t)),
                      pl.BlockSpec((32, 3), lambda b, t: (0, 0)),
                      pl.BlockSpec((32, 32), lambda b, t: (0, 0)),
                      pl.BlockSpec((32, 32), lambda b, t: (0, 0)),
                      pl.BlockSpec((16, 32), lambda b, t: (0, 0)),
                      pl.BlockSpec((12, 16), lambda b, t: (0, 0)),
                      pl.BlockSpec((12, 12), lambda b, t: (0, 0))],
            out_specs=pl.BlockSpec((1, 1, 1), lambda b, t: (b, 0, 0)),
            scratch_shapes=[pltpu.VMEM((1, 1), jnp.float32)],
        ),
        compiler_params=pltpu.CompilerParams(
            dimension_semantics=("parallel", "arbitrary")),
    )(xf, yf, xu, yu, w1, wm1a, wm1b, wm2, wm3, m_sym)

    return loss_weight * (sums[:, 0, 0] / P)   # mean over pixels, shape (B,)


# --------------------------------------------------------------------------
# Pure-JAX reference (for correctness check)
# --------------------------------------------------------------------------
def reference_cdnet_loss(img1, img2, params, loss_weight):
    B, C, H, W = img1.shape
    w1, w11 = params["conv1x1"], params["conv11x11"]
    wm1, wm2, wm3 = params["conv_m1"], params["conv_m2"], params["conv_m3"]
    m = jnp.abs(params["cube"])
    m = (m.T + m) * 0.5
    Ah = _interp_matrix(H, H - 20)
    Aw = _interp_matrix(W, W - 20)

    def fwd_once(x):
        x1 = jnp.einsum('oc,bchw->bohw', w1, x, precision='highest')
        x2 = lax.conv_general_dilated(
            x, w11, window_strides=(1, 1), padding=((5, 5), (5, 5)),
            rhs_dilation=(3, 3), dimension_numbers=('NCHW', 'OIHW', 'NCHW'),
            precision=lax.Precision.HIGHEST)
        x2u = jnp.einsum('oh,bchw,pw->bcop', Ah, x2, Aw, precision='highest')
        h = jnp.concatenate([x1, x2u], axis=1)
        h = jnp.einsum('oc,bchw->bohw', wm1, _leaky(h), precision='highest')
        h = jnp.einsum('oc,bchw->bohw', wm2, _leaky(h), precision='highest')
        h = jnp.einsum('oc,bchw->bohw', wm3, _leaky(h), precision='highest')
        return h

    ox, oy = fwd_once(img1), fwd_once(img2)
    d = jnp.abs(ox - oy).reshape(B, 12, H * W).transpose(0, 2, 1)   # (B,N,12)
    q = jnp.einsum('bni,ij,bnj->bn', d, m, d, precision='highest')
    score = jnp.sqrt(1e-8 + q)
    return loss_weight * jnp.mean(score, axis=1)


if __name__ == "__main__":
    key = jax.random.PRNGKey(0)
    ks = jax.random.split(key, 8)
    B, H, W = 2, 32, 32      # H, W must exceed 20 for the dilated 11x11 conv
    loss_weight = 0.5

    params = {
        "conv1x1":   0.10 * jax.random.normal(ks[0], (32, 3), jnp.float32),
        "conv11x11": 0.02 * jax.random.normal(ks[1], (32, 3, 11, 11), jnp.float32),
        "conv_m1":   0.10 * jax.random.normal(ks[2], (32, 64), jnp.float32),
        "conv_m2":   0.10 * jax.random.normal(ks[3], (16, 32), jnp.float32),
        "conv_m3":   0.10 * jax.random.normal(ks[4], (12, 16), jnp.float32),
        "cube":             jax.random.normal(ks[5], (12, 12), jnp.float32),
    }
    img1 = jax.random.uniform(ks[6], (B, 3, H, W), jnp.float32)
    img2 = jax.random.uniform(ks[7], (B, 3, H, W), jnp.float32)

    fn = jax.jit(functools.partial(cdnet_loss, loss_weight=loss_weight))
    out = jax.block_until_ready(fn(img1, img2, params))

    ref = reference_cdnet_loss(img1, img2, params, loss_weight)
    np.testing.assert_allclose(np.asarray(out), np.asarray(ref),
                               rtol=5e-3, atol=1e-4)
    print("KERNEL_OK")
</pallas_src>

<mosaic_0001>
module attributes {stable_mosaic.version = 11 : i64} {
  func.func @_conv_tap_kernel(%arg0: i32, %arg1: i32, %arg2: i32, %arg3: memref<1x33x384xf32, #tpu.memory_space<vmem>>, %arg4: memref<1x32x33xf32, #tpu.memory_space<vmem>>, %arg5: memref<1x32x384xf32, #tpu.memory_space<vmem>>, %arg6: memref<32x384xf32, #tpu.memory_space<vmem>>) attributes {dimension_semantics = [#tpu.dimension_semantics<parallel>, #tpu.dimension_semantics<parallel>, #tpu.dimension_semantics<arbitrary>], iteration_bounds = array<i64: 2, 4, 11>, scalar_prefetch = 0 : i64, scratch_operands = 1 : i64, tpu.core_type = #tpu.core_type<tc>, window_params = [{transform_indices = @transform_0, window_bounds = array<i64: 1, 33, 384>}, {transform_indices = @transform_1, window_bounds = array<i64: 1, 32, 33>}, {transform_indices = @transform_2, window_bounds = array<i64: 1, 32, 384>}]} {
    %c0_i32 = arith.constant 0 : i32
    %0 = arith.cmpi eq, %arg2, %c0_i32 : i32
    %1 = arith.extui %0 : i1 to i32
    %c0_i32_0 = arith.constant 0 : i32
    %2 = arith.cmpi ne, %1, %c0_i32_0 : i32
    scf.if %2 {
      %cst_11 = arith.constant 0.000000e+00 : f32
      %14 = vector.broadcast %cst_11 : f32 to vector<32x384xf32>
      %c0_12 = arith.constant 0 : index
      %c0_13 = arith.constant 0 : index
      %15 = vector.load %arg6[%c0_12, %c0_13] : memref<32x384xf32, #tpu.memory_space<vmem>>, vector<32x384xf32>
      tpu.vector_store %arg6[%c0_12, %c0_13], %14 {strides = array<i32>} : memref<32x384xf32, #tpu.memory_space<vmem>>, vector<32x384xf32>,
    } else {
    }
    %c0 = arith.constant 0 : index
    %c0_1 = arith.constant 0 : index
    %3 = vector.load %arg6[%c0, %c0_1] : memref<32x384xf32, #tpu.memory_space<vmem>>, vector<32x384xf32>
    %c0_2 = arith.constant 0 : index
    %c0_3 = arith.constant 0 : index
    %c0_4 = arith.constant 0 : index
    %4 = vector.load %arg4[%c0_2, %c0_3, %c0_4] : memref<1x32x33xf32, #tpu.memory_space<vmem>>, vector<1x32x33xf32>
    %5 = vector.shape_cast %4 : vector<1x32x33xf32> to vector<32x33xf32>
    %c0_5 = arith.constant 0 : index
    %c0_6 = arith.constant 0 : index
    %c0_7 = arith.constant 0 : index
    %6 = vector.load %arg3[%c0_5, %c0_6, %c0_7] : memref<1x33x384xf32, #tpu.memory_space<vmem>>, vector<1x33x384xf32>
    %7 = vector.shape_cast %6 : vector<1x33x384xf32> to vector<33x384xf32>
    %cst = arith.constant dense<0.000000e+00> : vector<32x384xf32>
    %8 = tpu.matmul %5, %7, %cst {dimension_numbers = #tpu.dot_dimension_numbers<[1], [0], [0], [1], [0, 0, 1, 1], [], []>} : vector<32x33xf32>, vector<33x384xf32>, vector<32x384xf32> -> vector<32x384xf32>
    %9 = arith.addf %3, %8 : vector<32x384xf32>
    %c0_8 = arith.constant 0 : index
    %c0_9 = arith.constant 0 : index
    %10 = vector.load %arg6[%c0_8, %c0_9] : memref<32x384xf32, #tpu.memory_space<vmem>>, vector<32x384xf32>
    tpu.vector_store %arg6[%c0_8, %c0_9], %9 {strides = array<i32>} : memref<32x384xf32, #tpu.memory_space<vmem>>, vector<32x384xf32>,
    %c10_i32 = arith.constant 10 : i32
    %11 = arith.cmpi eq, %arg2, %c10_i32 : i32
    %12 = arith.extui %11 : i1 to i32
    %c0_i32_10 = arith.constant 0 : i32
    %13 = arith.cmpi ne, %12, %c0_i32_10 : i32
    scf.if %13 {
      %c0_11 = arith.constant 0 : index
      %c0_12 = arith.constant 0 : index
      %14 = vector.load %arg6[%c0_11, %c0_12] : memref<32x384xf32, #tpu.memory_space<vmem>>, vector<32x384xf32>
      %c0_13 = arith.constant 0 : index
      %c0_14 = arith.constant 0 : index
      %c0_15 = arith.constant 0 : index
      %15 = vector.load %arg5[%c0_13, %c0_14, %c0_15] : memref<1x32x384xf32, #tpu.memory_space<vmem>>, vector<1x32x384xf32>
      %16 = vector.shape_cast %15 : vector<1x32x384xf32> to vector<32x384xf32>
      %17 = vector.shape_cast %14 : vector<32x384xf32> to vector<1x32x384xf32>
      tpu.vector_store %arg5[%c0_13, %c0_14, %c0_15], %17 {strides = array<i32>} : memref<1x32x384xf32, #tpu.memory_space<vmem>>, vector<1x32x384xf32>,
    } else {
    }
    return
  }
  func.func @transform_0(%arg0: i32, %arg1: i32, %arg2: i32) -> (i32, i32, i32) {
    %0 = arith.addi %arg1, %arg2 : i32
    %c0_i32 = arith.constant 0 : i32
    %c0_i32_0 = arith.constant 0 : i32
    return %arg0, %c0_i32, %0 : i32, i32, i32
  }
  func.func @transform_1(%arg0: i32, %arg1: i32, %arg2: i32) -> (i32, i32, i32) {
    %c0_i32 = arith.constant 0 : i32
    %c0_i32_0 = arith.constant 0 : i32
    %c0_i32_1 = arith.constant 0 : i32
    return %arg2, %c0_i32, %c0_i32_0 : i32, i32, i32
  }
  func.func @transform_2(%arg0: i32, %arg1: i32, %arg2: i32) -> (i32, i32, i32) {
    %c0_i32 = arith.constant 0 : i32
    %c0_i32_0 = arith.constant 0 : i32
    return %arg0, %c0_i32, %arg1 : i32, i32, i32
  }
}

module attributes {stable_mosaic.version = 11 : i64} {
  func.func @_cd_head_kernel(%arg0: i32, %arg1: i32, %arg2: memref<1x3x1024xf32, #tpu.memory_space<vmem>>, %arg3: memref<1x3x1024xf32, #tpu.memory_space<vmem>>, %arg4: memref<1x32x1024xf32, #tpu.memory_space<vmem>>, %arg5: memref<1x32x1024xf32, #tpu.memory_space<vmem>>, %arg6: memref<32x3xf32, #tpu.memory_space<vmem>>, %arg7: memref<32x32xf32, #tpu.memory_space<vmem>>, %arg8: memref<32x32xf32, #tpu.memory_space<vmem>>, %arg9: memref<16x32xf32, #tpu.memory_space<vmem>>, %arg10: memref<12x16xf32, #tpu.memory_space<vmem>>, %arg11: memref<12x12xf32, #tpu.memory_space<vmem>>, %arg12: memref<1x1x1xf32, #tpu.memory_space<vmem>>, %arg13: memref<1x1xf32, #tpu.memory_space<vmem>>) attributes {dimension_semantics = [#tpu.dimension_semantics<parallel>, #tpu.dimension_semantics<arbitrary>], iteration_bounds = array<i64: 2, 1>, scalar_prefetch = 0 : i64, scratch_operands = 1 : i64, tpu.core_type = #tpu.core_type<tc>, window_params = [{transform_indices = @transform_0, window_bounds = array<i64: 1, 3, 1024>}, {transform_indices = @transform_1, window_bounds = array<i64: 1, 3, 1024>}, {transform_indices = @transform_2, window_bounds = array<i64: 1, 32, 1024>}, {transform_indices = @transform_3, window_bounds = array<i64: 1, 32, 1024>}, {pipeline_mode = #tpu.pipeline_mode<synchronous>, transform_indices = @transform_4, window_bounds = array<i64: 32, 3>}, {pipeline_mode = #tpu.pipeline_mode<synchronous>, transform_indices = @transform_5, window_bounds = array<i64: 32, 32>}, {pipeline_mode = #tpu.pipeline_mode<synchronous>, transform_indices = @transform_6, window_bounds = array<i64: 32, 32>}, {pipeline_mode = #tpu.pipeline_mode<synchronous>, transform_indices = @transform_7, window_bounds = array<i64: 16, 32>}, {pipeline_mode = #tpu.pipeline_mode<synchronous>, transform_indices = @transform_8, window_bounds = array<i64: 12, 16>}, {pipeline_mode = #tpu.pipeline_mode<synchronous>, transform_indices = @transform_9, window_bounds = array<i64: 12, 12>}, {transform_indices = @transform_10, window_bounds = array<i64: 1, 1, 1>}]} {
    %c0_i32 = arith.constant 0 : i32
    %0 = arith.cmpi eq, %arg1, %c0_i32 : i32
    %1 = arith.extui %0 : i1 to i32
    %c0_i32_0 = arith.constant 0 : i32
    %2 = arith.cmpi ne, %1, %c0_i32_0 : i32
    scf.if %2 {
      %cst_71 = arith.constant 0.000000e+00 : f32
      %98 = vector.broadcast %cst_71 : f32 to vector<1x1xf32>
      %c0_72 = arith.constant 0 : index
      %c0_73 = arith.constant 0 : index
      %99 = vector.load %arg13[%c0_72, %c0_73] : memref<1x1xf32, #tpu.memory_space<vmem>>, vector<1x1xf32>
      tpu.vector_store %arg13[%c0_72, %c0_73], %98 {strides = array<i32>} : memref<1x1xf32, #tpu.memory_space<vmem>>, vector<1x1xf32>,
    } else {
    }
    %c0 = arith.constant 0 : index
    %c0_1 = arith.constant 0 : index
    %c0_2 = arith.constant 0 : index
    %3 = vector.load %arg2[%c0, %c0_1, %c0_2] : memref<1x3x1024xf32, #tpu.memory_space<vmem>>, vector<1x3x1024xf32>
    %4 = vector.shape_cast %3 : vector<1x3x1024xf32> to vector<3x1024xf32>
    %c0_3 = arith.constant 0 : index
    %c0_4 = arith.constant 0 : index
    %c0_5 = arith.constant 0 : index
    %5 = vector.load %arg4[%c0_3, %c0_4, %c0_5] : memref<1x32x1024xf32, #tpu.memory_space<vmem>>, vector<1x32x1024xf32>
    %6 = vector.shape_cast %5 : vector<1x32x1024xf32> to vector<32x1024xf32>
    %c0_6 = arith.constant 0 : index
    %c0_7 = arith.constant 0 : index
    %7 = vector.load %arg6[%c0_6, %c0_7] : memref<32x3xf32, #tpu.memory_space<vmem>>, vector<32x3xf32>
    %cst = arith.constant dense<0.000000e+00> : vector<32x1024xf32>
    %8 = tpu.matmul %7, %4, %cst {dimension_numbers = #tpu.dot_dimension_numbers<[1], [0], [0], [1], [0, 0, 1, 1], [], []>} : vector<32x3xf32>, vector<3x1024xf32>, vector<32x1024xf32> -> vector<32x1024xf32>
    %cst_8 = arith.constant 0.000000e+00 : f32
    %9 = vector.broadcast %cst_8 : f32 to vector<32x1024xf32>
    %10 = arith.cmpf oge, %8, %9 : vector<32x1024xf32>
    %cst_9 = arith.constant 0.00999999977 : f32
    %11 = vector.broadcast %cst_9 : f32 to vector<32x1024xf32>
    %12 = arith.mulf %11, %8 : vector<32x1024xf32>
    %13 = arith.select %10, %8, %12 : vector<32x1024xi1>, vector<32x1024xf32>
    %cst_10 = arith.constant 0.000000e+00 : f32
    %14 = vector.broadcast %cst_10 : f32 to vector<32x1024xf32>
    %15 = arith.cmpf oge, %6, %14 : vector<32x1024xf32>
    %cst_11 = arith.constant 0.00999999977 : f32
    %16 = vector.broadcast %cst_11 : f32 to vector<32x1024xf32>
    %17 = arith.mulf %16, %6 : vector<32x1024xf32>
    %18 = arith.select %15, %6, %17 : vector<32x1024xi1>, vector<32x1024xf32>
    %c0_12 = arith.constant 0 : index
    %c0_13 = arith.constant 0 : index
    %19 = vector.load %arg7[%c0_12, %c0_13] : memref<32x32xf32, #tpu.memory_space<vmem>>, vector<32x32xf32>
    %cst_14 = arith.constant dense<0.000000e+00> : vector<32x1024xf32>
    %20 = tpu.matmul %19, %13, %cst_14 {dimension_numbers = #tpu.dot_dimension_numbers<[1], [0], [0], [1], [0, 0, 1, 1], [], []>} : vector<32x32xf32>, vector<32x1024xf32>, vector<32x1024xf32> -> vector<32x1024xf32>
    %c0_15 = arith.constant 0 : index
    %c0_16 = arith.constant 0 : index
    %21 = vector.load %arg8[%c0_15, %c0_16] : memref<32x32xf32, #tpu.memory_space<vmem>>, vector<32x32xf32>
    %cst_17 = arith.constant dense<0.000000e+00> : vector<32x1024xf32>
    %22 = tpu.matmul %21, %18, %cst_17 {dimension_numbers = #tpu.dot_dimension_numbers<[1], [0], [0], [1], [0, 0, 1, 1], [], []>} : vector<32x32xf32>, vector<32x1024xf32>, vector<32x1024xf32> -> vector<32x1024xf32>
    %23 = arith.addf %20, %22 : vector<32x1024xf32>
    %cst_18 = arith.constant 0.000000e+00 : f32
    %24 = vector.broadcast %cst_18 : f32 to vector<32x1024xf32>
    %25 = arith.cmpf oge, %23, %24 : vector<32x1024xf32>
    %cst_19 = arith.constant 0.00999999977 : f32
    %26 = vector.broadcast %cst_19 : f32 to vector<32x1024xf32>
    %27 = arith.mulf %26, %23 : vector<32x1024xf32>
    %28 = arith.select %25, %23, %27 : vector<32x1024xi1>, vector<32x1024xf32>
    %c0_20 = arith.constant 0 : index
    %c0_21 = arith.constant 0 : index
    %29 = vector.load %arg9[%c0_20, %c0_21] : memref<16x32xf32, #tpu.memory_space<vmem>>, vector<16x32xf32>
    %cst_22 = arith.constant dense<0.000000e+00> : vector<16x1024xf32>
    %30 = tpu.matmul %29, %28, %cst_22 {dimension_numbers = #tpu.dot_dimension_numbers<[1], [0], [0], [1], [0, 0, 1, 1], [], []>} : vector<16x32xf32>, vector<32x1024xf32>, vector<16x1024xf32> -> vector<16x1024xf32>
    %cst_23 = arith.constant 0.000000e+00 : f32
    %31 = vector.broadcast %cst_23 : f32 to vector<16x1024xf32>
    %32 = arith.cmpf oge, %30, %31 : vector<16x1024xf32>
    %cst_24 = arith.constant 0.00999999977 : f32
    %33 = vector.broadcast %cst_24 : f32 to vector<16x1024xf32>
    %34 = arith.mulf %33, %30 : vector<16x1024xf32>
    %35 = arith.select %32, %30, %34 : vector<16x1024xi1>, vector<16x1024xf32>
    %c0_25 = arith.constant 0 : index
    %c0_26 = arith.constant 0 : index
    %36 = vector.load %arg10[%c0_25, %c0_26] : memref<12x16xf32, #tpu.memory_space<vmem>>, vector<12x16xf32>
    %cst_27 = arith.constant dense<0.000000e+00> : vector<12x1024xf32>
    %37 = tpu.matmul %36, %35, %cst_27 {dimension_numbers = #tpu.dot_dimension_numbers<[1], [0], [0], [1], [0, 0, 1, 1], [], []>} : vector<12x16xf32>, vector<16x1024xf32>, vector<12x1024xf32> -> vector<12x1024xf32>
    %c0_28 = arith.constant 0 : index
    %c0_29 = arith.constant 0 : index
    %c0_30 = arith.constant 0 : index
    %38 = vector.load %arg3[%c0_28, %c0_29, %c0_30] : memref<1x3x1024xf32, #tpu.memory_space<vmem>>, vector<1x3x1024xf32>
    %39 = vector.shape_cast %38 : vector<1x3x1024xf32> to vector<3x1024xf32>
    %c0_31 = arith.constant 0 : index
    %c0_32 = arith.constant 0 : index
    %c0_33 = arith.constant 0 : index
    %40 = vector.load %arg5[%c0_31, %c0_32, %c0_33] : memref<1x32x1024xf32, #tpu.memory_space<vmem>>, vector<1x32x1024xf32>
    %41 = vector.shape_cast %40 : vector<1x32x1024xf32> to vector<32x1024xf32>
    %c0_34 = arith.constant 0 : index
    %c0_35 = arith.constant 0 : index
    %42 = vector.load %arg6[%c0_34, %c0_35] : memref<32x3xf32, #tpu.memory_space<vmem>>, vector<32x3xf32>
    %cst_36 = arith.constant dense<0.000000e+00> : vector<32x1024xf32>
    %43 = tpu.matmul %42, %39, %cst_36 {dimension_numbers = #tpu.dot_dimension_numbers<[1], [0], [0], [1], [0, 0, 1, 1], [], []>} : vector<32x3xf32>, vector<3x1024xf32>, vector<32x1024xf32> -> vector<32x1024xf32>
    %cst_37 = arith.constant 0.000000e+00 : f32
    %44 = vector.broadcast %cst_37 : f32 to vector<32x1024xf32>
    %45 = arith.cmpf oge, %43, %44 : vector<32x1024xf32>
    %cst_38 = arith.constant 0.00999999977 : f32
    %46 = vector.broadcast %cst_38 : f32 to vector<32x1024xf32>
    %47 = arith.mulf %46, %43 : vector<32x1024xf32>
    %48 = arith.select %45, %43, %47 : vector<32x1024xi1>, vector<32x1024xf32>
    %cst_39 = arith.constant 0.000000e+00 : f32
    %49 = vector.broadcast %cst_39 : f32 to vector<32x1024xf32>
    %50 = arith.cmpf oge, %41, %49 : vector<32x1024xf32>
    %cst_40 = arith.constant 0.00999999977 : f32
    %51 = vector.broadcast %cst_40 : f32 to vector<32x1024xf32>
    %52 = arith.mulf %51, %41 : vector<32x1024xf32>
    %53 = arith.select %50, %41, %52 : vector<32x1024xi1>, vector<32x1024xf32>
    %c0_41 = arith.constant 0 : index
    %c0_42 = arith.constant 0 : index
    %54 = vector.load %arg7[%c0_41, %c0_42] : memref<32x32xf32, #tpu.memory_space<vmem>>, vector<32x32xf32>
    %cst_43 = arith.constant dense<0.000000e+00> : vector<32x1024xf32>
    %55 = tpu.matmul %54, %48, %cst_43 {dimension_numbers = #tpu.dot_dimension_numbers<[1], [0], [0], [1], [0, 0, 1, 1], [], []>} : vector<32x32xf32>, vector<32x1024xf32>, vector<32x1024xf32> -> vector<32x1024xf32>
    %c0_44 = arith.constant 0 : index
    %c0_45 = arith.constant 0 : index
    %56 = vector.load %arg8[%c0_44, %c0_45] : memref<32x32xf32, #tpu.memory_space<vmem>>, vector<32x32xf32>
    %cst_46 = arith.constant dense<0.000000e+00> : vector<32x1024xf32>
    %57 = tpu.matmul %56, %53, %cst_46 {dimension_numbers = #tpu.dot_dimension_numbers<[1], [0], [0], [1], [0, 0, 1, 1], [], []>} : vector<32x32xf32>, vector<32x1024xf32>, vector<32x1024xf32> -> vector<32x1024xf32>
    %58 = arith.addf %55, %57 : vector<32x1024xf32>
    %cst_47 = arith.constant 0.000000e+00 : f32
    %59 = vector.broadcast %cst_47 : f32 to vector<32x1024xf32>
    %60 = arith.cmpf oge, %58, %59 : vector<32x1024xf32>
    %cst_48 = arith.constant 0.00999999977 : f32
    %61 = vector.broadcast %cst_48 : f32 to vector<32x1024xf32>
    %62 = arith.mulf %61, %58 : vector<32x1024xf32>
    %63 = arith.select %60, %58, %62 : vector<32x1024xi1>, vector<32x1024xf32>
    %c0_49 = arith.constant 0 : index
    %c0_50 = arith.constant 0 : index
    %64 = vector.load %arg9[%c0_49, %c0_50] : memref<16x32xf32, #tpu.memory_space<vmem>>, vector<16x32xf32>
    %cst_51 = arith.constant dense<0.000000e+00> : vector<16x1024xf32>
    %65 = tpu.matmul %64, %63, %cst_51 {dimension_numbers = #tpu.dot_dimension_numbers<[1], [0], [0], [1], [0, 0, 1, 1], [], []>} : vector<16x32xf32>, vector<32x1024xf32>, vector<16x1024xf32> -> vector<16x1024xf32>
    %cst_52 = arith.constant 0.000000e+00 : f32
    %66 = vector.broadcast %cst_52 : f32 to vector<16x1024xf32>
    %67 = arith.cmpf oge, %65, %66 : vector<16x1024xf32>
    %cst_53 = arith.constant 0.00999999977 : f32
    %68 = vector.broadcast %cst_53 : f32 to vector<16x1024xf32>
    %69 = arith.mulf %68, %65 : vector<16x1024xf32>
    %70 = arith.select %67, %65, %69 : vector<16x1024xi1>, vector<16x1024xf32>
    %c0_54 = arith.constant 0 : index
    %c0_55 = arith.constant 0 : index
    %71 = vector.load %arg10[%c0_54, %c0_55] : memref<12x16xf32, #tpu.memory_space<vmem>>, vector<12x16xf32>
    %cst_56 = arith.constant dense<0.000000e+00> : vector<12x1024xf32>
    %72 = tpu.matmul %71, %70, %cst_56 {dimension_numbers = #tpu.dot_dimension_numbers<[1], [0], [0], [1], [0, 0, 1, 1], [], []>} : vector<12x16xf32>, vector<16x1024xf32>, vector<12x1024xf32> -> vector<12x1024xf32>
    %73 = arith.subf %37, %72 : vector<12x1024xf32>
    %74 = math.absf %73 : vector<12x1024xf32>
    %c0_57 = arith.constant 0 : index
    %c0_58 = arith.constant 0 : index
    %75 = vector.load %arg11[%c0_57, %c0_58] : memref<12x12xf32, #tpu.memory_space<vmem>>, vector<12x12xf32>
    %cst_59 = arith.constant dense<0.000000e+00> : vector<12x1024xf32>
    %76 = tpu.matmul %75, %74, %cst_59 {dimension_numbers = #tpu.dot_dimension_numbers<[1], [0], [0], [1], [0, 0, 1, 1], [], []>} : vector<12x12xf32>, vector<12x1024xf32>, vector<12x1024xf32> -> vector<12x1024xf32>
    %77 = arith.mulf %74, %76 : vector<12x1024xf32>
    %cst_60 = arith.constant dense<0.000000e+00> : vector<1024xf32>
    %78 = vector.multi_reduction <add>, %77, %cst_60 [0] : vector<12x1024xf32> to vector<1024xf32>
    %79 = vector.shape_cast %78 : vector<1024xf32> to vector<1x1024xf32>
    %cst_61 = arith.constant 9.99999993E-9 : f32
    %80 = vector.broadcast %cst_61 : f32 to vector<1x1024xf32>
    %81 = arith.addf %80, %79 : vector<1x1024xf32>
    %82 = math.sqrt %81 : vector<1x1024xf32>
    %83 = tpu.iota {dimensions = array<i32: 1>} : vector<1x1024xi32>
    %c1024_i32 = arith.constant 1024 : i32
    %84 = arith.muli %arg1, %c1024_i32 : i32
    %c1024_i32_62 = arith.constant 1024 : i32
    %85 = arith.subi %c1024_i32_62, %84 : i32
    %86 = vector.broadcast %85 : i32 to vector<1x1024xi32>
    %87 = arith.cmpi slt, %83, %86 : vector<1x1024xi32>
    %c0_63 = arith.constant 0 : index
    %c0_64 = arith.constant 0 : index
    %88 = vector.load %arg13[%c0_63, %c0_64] : memref<1x1xf32, #tpu.memory_space<vmem>>, vector<1x1xf32>
    %cst_65 = arith.constant 0.000000e+00 : f32
    %89 = vector.broadcast %cst_65 : f32 to vector<1x1024xf32>
    %90 = arith.select %87, %82, %89 : vector<1x1024xi1>, vector<1x1024xf32>
    %cst_66 = arith.constant dense<0.000000e+00> : vector<1xf32>
    %91 = vector.multi_reduction <add>, %90, %cst_66 [1] : vector<1x1024xf32> to vector<1xf32>
    %92 = vector.shape_cast %91 : vector<1xf32> to vector<1x1xf32>
    %93 = arith.addf %88, %92 : vector<1x1xf32>
    %c0_67 = arith.constant 0 : index
    %c0_68 = arith.constant 0 : index
    %94 = vector.load %arg13[%c0_67, %c0_68] : memref<1x1xf32, #tpu.memory_space<vmem>>, vector<1x1xf32>
    tpu.vector_store %arg13[%c0_67, %c0_68], %93 {strides = array<i32>} : memref<1x1xf32, #tpu.memory_space<vmem>>, vector<1x1xf32>,
    %c0_i32_69 = arith.constant 0 : i32
    %95 = arith.cmpi eq, %arg1, %c0_i32_69 : i32
    %96 = arith.extui %95 : i1 to i32
    %c0_i32_70 = arith.constant 0 : i32
    %97 = arith.cmpi ne, %96, %c0_i32_70 : i32
    scf.if %97 {
      %c0_71 = arith.constant 0 : index
      %c0_72 = arith.constant 0 : index
      %98 = vector.load %arg13[%c0_71, %c0_72] : memref<1x1xf32, #tpu.memory_space<vmem>>, vector<1x1xf32>
      %c0_73 = arith.constant 0 : index
      %c0_74 = arith.constant 0 : index
      %c0_75 = arith.constant 0 : index
      %99 = vector.load %arg12[%c0_73, %c0_74, %c0_75] : memref<1x1x1xf32, #tpu.memory_space<vmem>>, vector<1x1x1xf32>
      %100 = vector.shape_cast %99 : vector<1x1x1xf32> to vector<1x1xf32>
      %101 = vector.shape_cast %98 : vector<1x1xf32> to vector<1x1x1xf32>
      tpu.vector_store %arg12[%c0_73, %c0_74, %c0_75], %101 {strides = array<i32>} : memref<1x1x1xf32, #tpu.memory_space<vmem>>, vector<1x1x1xf32>,
    } else {
    }
    return
  }
  func.func @transform_0(%arg0: i32, %arg1: i32) -> (i32, i32, i32) {
    %c0_i32 = arith.constant 0 : i32
    %c0_i32_0 = arith.constant 0 : i32
    return %arg0, %c0_i32, %arg1 : i32, i32, i32
  }
  func.func @transform_1(%arg0: i32, %arg1: i32) -> (i32, i32, i32) {
    %c0_i32 = arith.constant 0 : i32
    %c0_i32_0 = arith.constant 0 : i32
    return %arg0, %c0_i32, %arg1 : i32, i32, i32
  }
  func.func @transform_2(%arg0: i32, %arg1: i32) -> (i32, i32, i32) {
    %c0_i32 = arith.constant 0 : i32
    %c0_i32_0 = arith.constant 0 : i32
    return %arg0, %c0_i32, %arg1 : i32, i32, i32
  }
  func.func @transform_3(%arg0: i32, %arg1: i32) -> (i32, i32, i32) {
    %c0_i32 = arith.constant 0 : i32
    %c0_i32_0 = arith.constant 0 : i32
    return %arg0, %c0_i32, %arg1 : i32, i32, i32
  }
  func.func @transform_4(%arg0: i32, %arg1: i32) -> (i32, i32) {
    %c0_i32 = arith.constant 0 : i32
    %c0_i32_0 = arith.constant 0 : i32
    %c0_i32_1 = arith.constant 0 : i32
    return %c0_i32, %c0_i32_0 : i32, i32
  }
  func.func @transform_5(%arg0: i32, %arg1: i32) -> (i32, i32) {
    %c0_i32 = arith.constant 0 : i32
    %c0_i32_0 = arith.constant 0 : i32
    %c0_i32_1 = arith.constant 0 : i32
    return %c0_i32, %c0_i32_0 : i32, i32
  }
  func.func @transform_6(%arg0: i32, %arg1: i32) -> (i32, i32) {
    %c0_i32 = arith.constant 0 : i32
    %c0_i32_0 = arith.constant 0 : i32
    %c0_i32_1 = arith.constant 0 : i32
    return %c0_i32, %c0_i32_0 : i32, i32
  }
  func.func @transform_7(%arg0: i32, %arg1: i32) -> (i32, i32) {
    %c0_i32 = arith.constant 0 : i32
    %c0_i32_0 = arith.constant 0 : i32
    %c0_i32_1 = arith.constant 0 : i32
    return %c0_i32, %c0_i32_0 : i32, i32
  }
  func.func @transform_8(%arg0: i32, %arg1: i32) -> (i32, i32) {
    %c0_i32 = arith.constant 0 : i32
    %c0_i32_0 = arith.constant 0 : i32
    %c0_i32_1 = arith.constant 0 : i32
    return %c0_i32, %c0_i32_0 : i32, i32
  }
  func.func @transform_9(%arg0: i32, %arg1: i32) -> (i32, i32) {
    %c0_i32 = arith.constant 0 : i32
    %c0_i32_0 = arith.constant 0 : i32
    %c0_i32_1 = arith.constant 0 : i32
    return %c0_i32, %c0_i32_0 : i32, i32
  }
  func.func @transform_10(%arg0: i32, %arg1: i32) -> (i32, i32, i32) {
    %c0_i32 = arith.constant 0 : i32
    %c0_i32_0 = arith.constant 0 : i32
    %c0_i32_1 = arith.constant 0 : i32
    return %arg0, %c0_i32, %c0_i32_0 : i32, i32, i32
  }
}

</mosaic_0001>

<llo_original>
// kernel: cdnet_loss.3
$region0: #{cdnet_loss.3}
  #allocation0 [shape = 'u32[]', space=smem, size = 0x4, offset = 0x4, fixed_abs, tag = 'smem constant byte address 0x4 - core index']
  #allocation1 [shape = 'u32[144,128]{1,0:T(1,128)}', space=vmem, size = 0x12000, scoped, tag = 'internal scratch']
  #allocation2 [shape = 'f32[32,384]{1,0:T(8,128)}', space=vmem, size = 0xc000, scoped, tag = 'scratch operand']
  %s0 = inlined_call_operand.vmem [shape: f32[2,33,5376], index: 0, kind: input, shape index: {}]
  %s1 = inlined_call_operand.vmem [shape: f32[11,32,33], index: 1, kind: input, shape index: {}]
  %s2 = inlined_call_operand.vmem [shape: f32[2,32,1536], index: 2, kind: output, shape index: {}]
  %s3 = sld [smem:[#allocation0]]
  $region91: #{cdnet_loss.3} parent=0
    _
  %s5 = ssub.s32 1, %s3
  %s6 = scalar_select 0, %s5, %s3
  $region1: #{cdnet_loss.3} parent=0
    #allocation3 [shape = 'u8[122880]{0}', space=vmem, size = 0x1e000, scoped, tag = 'input window, operand 0']
    #allocation4 [shape = 'u8[98304]{0}', space=vmem, size = 0x18000, scoped, tag = 'output window, operand 0']
    loop: start=0, step=1, limit=90
    $region2: #{cdnet_loss.3} parent=1 // loop_pre_header
      _
    $region3: #{cdnet_loss.3} parent=1 // loop_header
      %s8 = sphi 0, %s12
      %p9 = scmp.ge.s32.totalorder %s8, 90
      %s15 = sphi 0, %s34
      %s16 = sphi 0, %s30
      %s17 = sphi 0, %s26
      %s18 = sphi 0, %s15
      %s19 = sphi 0, %s16
      %s20 = sphi 0, %s17
      %s21 = sphi 0, %s18
      %s22 = sphi 0, %s19
      %s23 = sphi 0, %s20
      %s41 = sphi 0, %s43
      %s44 = sphi 0, %s41
      %s45 = sphi 0, %s44
      %s61 = sphi 0, %s45
      %s67 = sphi 0, %s69
      %s70 = sphi 0, %s67
      %s71 = sphi 0, %s70
      %s87 = sphi 0, %s71
      %s95 = sphi 0, %s97
      %s98 = sphi 0, %s95
      %s99 = sphi 0, %s98
      %s115 = sphi 0, %s99
    $region4: #{cdnet_loss.3} parent=1 // loop_header_branch
      %11 = sbr.rel (%p9) target = $region8
    $region5: #{cdnet_loss.3} parent=1 // loop_body
      %s13 = ssub.s32 %s8, 1
      %s14 = ssub.s32 %s8, 2
      %s24 = sadd.s32 1, %s17
      %p25 = scmp.ge.s32.totalorder %s24, 11
      %s26 = scalar_select %p25, 0, %s24
      %s27 = sadd.s32 1, %s16
      %s28 = scalar_select %p25, %s27, %s16
      %p29 = scmp.ge.s32.totalorder %s28, 4
      %s30 = scalar_select %p29, 0, %s28
      %s31 = sadd.s32 1, %s15
      %s32 = scalar_select %p29, %s31, %s15
      %p33 = scmp.ge.s32.totalorder %s32, 2
      %s34 = scalar_select %p33, 0, %s32
      %s35 = sadd.s32 %s16, %s17
      %s36 = sadd.s32 %s30, %s26
      %s37 = ssub.s32 %s15, %s34
      %s38 = ssub.s32 %s35, %s36
      %s39 = sor.u32 %s37, %s38
      %p40 = scmp.eq.s32.totalorder %s39, 0
      %s42 = sadd.s32 %s41, 1
      %s43 = scalar_select %p40, %s41, %s42
      %p46 = pneg %p40
      %p47 = scmp.eq.s32.totalorder %s8, 87
      %p48 = por %p46, %p47
      %p49 = scmp.ne.s32.totalorder %s41, %s44
      %p50 = scmp.eq.s32.totalorder %s8, 0
      %p51 = por %p49, %p50
      %p52 = scmp.ne.s32.totalorder %s41, %s44
      %p53 = scmp.eq.s32.totalorder %s13, 87
      %p54 = por %p52, %p53
      %p55 = scmp.ne.s32.totalorder %s44, %s45
      %p56 = scmp.eq.s32.totalorder %s13, 0
      %p57 = por %p55, %p56
      %p58 = scmp.ne.s32.totalorder %s44, %s45
      %p59 = scmp.eq.s32.totalorder %s14, 87
      %p60 = por %p58, %p59
      %p62 = scmp.ne.s32.totalorder %s45, %s61
      %p63 = scmp.eq.s32.totalorder %s14, 0
      %p64 = por %p62, %p63
      %s65 = ssub.s32 %s17, %s26
      %p66 = scmp.eq.s32.totalorder %s65, 0
      %s68 = sadd.s32 %s67, 1
      %s69 = scalar_select %p66, %s67, %s68
      %p72 = pneg %p66
      %p73 = scmp.eq.s32.totalorder %s8, 87
      %p74 = por %p72, %p73
      %p75 = scmp.ne.s32.totalorder %s67, %s70
      %p76 = scmp.eq.s32.totalorder %s8, 0
      %p77 = por %p75, %p76
      %p78 = scmp.ne.s32.totalorder %s67, %s70
      %p79 = scmp.eq.s32.totalorder %s13, 87
      %p80 = por %p78, %p79
      %p81 = scmp.ne.s32.totalorder %s70, %s71
      %p82 = scmp.eq.s32.totalorder %s13, 0
      %p83 = por %p81, %p82
      %p84 = scmp.ne.s32.totalorder %s70, %s71
      %p85 = scmp.eq.s32.totalorder %s14, 87
      %p86 = por %p84, %p85
      %p88 = scmp.ne.s32.totalorder %s71, %s87
      %p89 = scmp.eq.s32.totalorder %s14, 0
      %p90 = por %p88, %p89
      %s91 = ssub.s32 %s15, %s34
      %s92 = ssub.s32 %s16, %s30
      %s93 = sor.u32 %s91, %s92
      %p94 = scmp.eq.s32.totalorder %s93, 0
      %s96 = sadd.s32 %s95, 1
      %s97 = scalar_select %p94, %s95, %s96
      %p100 = pneg %p94
      %p101 = scmp.eq.s32.totalorder %s8, 87
      %p102 = por %p100, %p101
      %p103 = scmp.ne.s32.totalorder %s95, %s98
      %p104 = scmp.eq.s32.totalorder %s8, 0
      %p105 = por %p103, %p104
      %p106 = scmp.ne.s32.totalorder %s95, %s98
      %p107 = scmp.eq.s32.totalorder %s13, 87
      %p108 = por %p106, %p107
      %p109 = scmp.ne.s32.totalorder %s98, %s99
      %p110 = scmp.eq.s32.totalorder %s13, 0
      %p111 = por %p109, %p110
      %p112 = scmp.ne.s32.totalorder %s98, %s99
      %p113 = scmp.eq.s32.totalorder %s14, 87
      %p114 = por %p112, %p113
      %p116 = scmp.ne.s32.totalorder %s99, %s115
      %p117 = scmp.eq.s32.totalorder %s14, 0
      %p118 = por %p116, %p117
      %p119 = scmp.le.s32.totalorder 1, %s8
      %p120 = scmp.lt.s32.totalorder %s8, 89
      %p121 = pnand %p119, %p120
      %p122 = pneg %p121
      // Predicated region
      $region9: #{cdnet_loss.3} parent=5 // pred_check
        _
      $region10: #{cdnet_loss.3} parent=5 // pred_check_branch
        %124 = sbr.rel (%p121) target = $region12
      $region11: #{cdnet_loss.3} parent=5 // pred_region
        %s125 = ssub.s32 %s8, 1
      $region12: #{cdnet_loss.3} parent=5 // pred_fallthru
        _
      %p126 = scmp.lt.s32.totalorder %s8, 88
      // Predicated region
      $region13: #{cdnet_loss.3} parent=5 // pred_check
        %p127 = pneg %p126
      $region14: #{cdnet_loss.3} parent=5 // pred_check_branch
        %129 = sbr.rel (%p127) target = $region16
      $region15: #{cdnet_loss.3} parent=5 // pred_region
        // Predicated region
        $region17: #{cdnet_loss.3} parent=15 // pred_check
          %p130 = pneg %p51
        $region18: #{cdnet_loss.3} parent=15 // pred_check_branch
          %132 = sbr.rel (%p130) target = $region20
        $region19: #{cdnet_loss.3} parent=15 // pred_region
          %s133 = sand.u32 %s41, 1
          %s134 = sand.u32 %s41, 1
          %s135 = smul.addr %s134, 120
          %s136 = scalar_lea.vmem [#allocation3], %s135
          %s137 = sadd.s32 %s16, %s17
          %s138 = smul.u32 3, %s137
          %s139 = smul.addr %s15, 210
          %s140 = sadd.s32 %s138, %s139
          %s141 = smul.addr %s140, 8
          %s142 = scalar_lea.vmem %s0, %s141
          // Predicated region
          $region21: #{cdnet_loss.3} parent=19 // pred_check
            _
          $region22: #{cdnet_loss.3} parent=19 // pred_check_branch
            %144 = sbr.rel (0) target = $region24
          $region23: #{cdnet_loss.3} parent=19 // pred_region
            // Predicated region
            $region25: #{cdnet_loss.3} parent=23 // pred_check
              _
            $region26: #{cdnet_loss.3} parent=23 // pred_check_branch
              %146 = sbr.rel (0) target = $region28
            $region27: #{cdnet_loss.3} parent=23 // pred_region
              loop: start=0, step=1, limit=1
              $region29: #{cdnet_loss.3} parent=27 // loop_pre_header
                _
              $region30: #{cdnet_loss.3} parent=27 // loop_header
                %s148 = sphi 0, %s152
                %p149 = scmp.ge.s32.totalorder %s148, 1
                %s153 = sphi %s142, %s142
                %s154 = sphi %s136, %s136
              $region31: #{cdnet_loss.3} parent=27 // loop_header_branch
                %151 = sbr.rel (%p149) target = $region35
              $region32: #{cdnet_loss.3} parent=27 // loop_body
                %v155 = vld [vmem:[%s153] sm:$0xff]
                %156 = vst [vmem:[%s154] sm:$0xff] %v155
                %v157 = vld [vmem:[%s153 + $0x8] sm:$0xff]
                %158 = vst [vmem:[%s154 + $0x8] sm:$0xff] %v157
                %v159 = vld [vmem:[%s153 + $0x10] sm:$0xff]
                %160 = vst [vmem:[%s154 + $0x10] sm:$0xff] %v159
                %v161 = vld [vmem:[%s153 + $0x150] sm:$0xff]
                %162 = vst [vmem:[%s154 + $0x18] sm:$0xff] %v161
                %v163 = vld [vmem:[%s153 + $0x158] sm:$0xff]
                %164 = vst [vmem:[%s154 + $0x20] sm:$0xff] %v163
                %v165 = vld [vmem:[%s153 + $0x160] sm:$0xff]
                %166 = vst [vmem:[%s154 + $0x28] sm:$0xff] %v165
                %v167 = vld [vmem:[%s153 + $0x2a0] sm:$0xff]
                %168 = vst [vmem:[%s154 + $0x30] sm:$0xff] %v167
                %v169 = vld [vmem:[%s153 + $0x2a8] sm:$0xff]
                %170 = vst [vmem:[%s154 + $0x38] sm:$0xff] %v169
                %v171 = vld [vmem:[%s153 + $0x2b0] sm:$0xff]
                %172 = vst [vmem:[%s154 + $0x40] sm:$0xff] %v171
                %v173 = vld [vmem:[%s153 + $0x3f0] sm:$0xff]
                %174 = vst [vmem:[%s154 + $0x48] sm:$0xff] %v173
                %v175 = vld [vmem:[%s153 + $0x3f8] sm:$0xff]
                %176 = vst [vmem:[%s154 + $0x50] sm:$0xff] %v175
                %v177 = vld [vmem:[%s153 + $0x400] sm:$0xff]
                %178 = vst [vmem:[%s154 + $0x58] sm:$0xff] %v177
                %v179 = vld [vmem:[%s153 + $0x540] sm:$0xff]
                %180 = vst [vmem:[%s154 + $0x60] sm:$0xff] %v179
                %v181 = vld [vmem:[%s153 + $0x548] sm:$0xff]
                %182 = vst [vmem:[%s154 + $0x68] sm:$0xff] %v181
                %v183 = vld [vmem:[%s153 + $0x550] sm:$0xff]
                %184 = vst [vmem:[%s154 + $0x70] sm:$0xff] %v183
              $region33: #{cdnet_loss.3} parent=27 // loop_footer
                %s152 = sadd.s32 1, %s148
              $region34: #{cdnet_loss.3} parent=27 // loop_footer_branch
                %147 = sbr.rel target = $region30
              $region35: #{cdnet_loss.3} parent=27 // loop_exit
                _
            $region28: #{cdnet_loss.3} parent=23 // pred_fallthru
              _
            // Predicated region
            $region36: #{cdnet_loss.3} parent=23 // pred_check
              _
            $region37: #{cdnet_loss.3} parent=23 // pred_check_branch
              %186 = sbr.rel target = $region39
            $region38: #{cdnet_loss.3} parent=23 // pred_region
              _
            $region39: #{cdnet_loss.3} parent=23 // pred_fallthru
              _
          $region24: #{cdnet_loss.3} parent=19 // pred_fallthru
            _
          %187 = vnop
        $region20: #{cdnet_loss.3} parent=15 // pred_fallthru
          _
        // Predicated region
        $region40: #{cdnet_loss.3} parent=15 // pred_check
          %p188 = pneg %p77
        $region41: #{cdnet_loss.3} parent=15 // pred_check_branch
          %190 = sbr.rel (%p188) target = $region43
        $region42: #{cdnet_loss.3} parent=15 // pred_region
          %p191 = scmp.lt.s32.totalorder %s17, 10
          %s192 = scalar_select %p191, %s17, 10
          %s193 = smul.addr %s192, 4
          %s194 = smul.addr %s193, 8
          %s195 = scalar_lea.vmem %s1, %s194
        $region43: #{cdnet_loss.3} parent=15 // pred_fallthru
          _
      $region16: #{cdnet_loss.3} parent=5 // pred_fallthru
        _
      %p196 = scmp.le.s32.totalorder 1, %s8
      %p197 = scmp.lt.s32.totalorder %s8, 89
      %p198 = pnand %p196, %p197
      %p199 = pneg %p198
      // Predicated region
      $region44: #{cdnet_loss.3} parent=5 // pred_check
        _
      $region45: #{cdnet_loss.3} parent=5 // pred_check_branch
        %201 = sbr.rel (%p198) target = $region47
      $region46: #{cdnet_loss.3} parent=5 // pred_region
        %s202 = ssub.s32 %s8, 1
        %s203 = sand.u32 %s44, 1
        %s204 = sand.u32 %s44, 1
        %s205 = smul.addr %s204, 120
        %s206 = scalar_lea.vmem [#allocation3], %s205
        // Predicated region
        $region48: #{cdnet_loss.3} parent=46 // pred_check
          %p207 = pneg %p57
        $region49: #{cdnet_loss.3} parent=46 // pred_check_branch
          %209 = sbr.rel (%p207) target = $region51
        $region50: #{cdnet_loss.3} parent=46 // pred_region
          _
        $region51: #{cdnet_loss.3} parent=46 // pred_fallthru
          _
        %s210 = sand.u32 %s44, 1
        %s211 = sand.u32 %s44, 1
        %s212 = smul.addr %s211, 120
        %s213 = scalar_lea.vmem [#allocation3], %s212
        %p214 = pneg %p57
        %p215 = pneg %p54
        %p216 = scmp.lt.s32.totalorder %s20, 10
        %s217 = scalar_select %p216, %s20, 10
        %s218 = smul.addr %s217, 4
        %s219 = smul.addr %s218, 8
        %s220 = scalar_lea.vmem %s1, %s219
        %p221 = pneg %p83
        %p222 = pneg %p80
        %p223 = pneg %p111
        %p224 = pneg %p108
        %s225 = sand.u32 %s98, 1
        %s226 = sand.u32 %s98, 1
        %s227 = smul.addr %s226, 96
        %s228 = scalar_lea.vmem [#allocation4], %s227
        %s229 = sadd.s32 %s19, %s20
        %s230 = smul.u32 3, %s229
        %p231 = scmp.lt.s32.totalorder %s20, 10
        %s232 = scalar_select %p231, %s20, 10
        %s233 = smul.addr %s232, 4
        %s234 = smul.addr %s233, 8
        %s235 = scalar_lea.vmem %s1, %s234
        %s236 = smul.u32 3, %s19
        %p237 = scmp.eq.s32.totalorder %s20, 0
        // Predicated region
        $region52: #{cdnet_loss.3} parent=46 // pred_check
          %p238 = pneg %p237
        $region53: #{cdnet_loss.3} parent=46 // pred_check_branch
          %240 = sbr.rel (%p238) target = $region55
        $region54: #{cdnet_loss.3} parent=46 // pred_region
          %241 = vst [vmem:[#allocation2] sm:$0xff] 0.0
          %242 = vst [vmem:[#allocation2 + $0x8] sm:$0xff] 0.0
          %243 = vst [vmem:[#allocation2 + $0x10] sm:$0xff] 0.0
          %244 = vst [vmem:[#allocation2 + $0x18] sm:$0xff] 0.0
          %245 = vst [vmem:[#allocation2 + $0x20] sm:$0xff] 0.0
          %246 = vst [vmem:[#allocation2 + $0x28] sm:$0xff] 0.0
          %247 = vst [vmem:[#allocation2 + $0x30] sm:$0xff] 0.0
          %248 = vst [vmem:[#allocation2 + $0x38] sm:$0xff] 0.0
          %249 = vst [vmem:[#allocation2 + $0x40] sm:$0xff] 0.0
          %250 = vst [vmem:[#allocation2 + $0x48] sm:$0xff] 0.0
          %251 = vst [vmem:[#allocation2 + $0x50] sm:$0xff] 0.0
          %252 = vst [vmem:[#allocation2 + $0x58] sm:$0xff] 0.0
        $region55: #{cdnet_loss.3} parent=46 // pred_fallthru
          _
        %v253 = vld [vmem:[#allocation2] sm:$0xff]
        %v254 = vld [vmem:[#allocation2 + $0x8] sm:$0xff]
        %v255 = vld [vmem:[#allocation2 + $0x10] sm:$0xff]
        %v256 = vld [vmem:[#allocation2 + $0x18] sm:$0xff]
        %v257 = vld [vmem:[#allocation2 + $0x20] sm:$0xff]
        %v258 = vld [vmem:[#allocation2 + $0x28] sm:$0xff]
        %v259 = vld [vmem:[#allocation2 + $0x30] sm:$0xff]
        %v260 = vld [vmem:[#allocation2 + $0x38] sm:$0xff]
        %v261 = vld [vmem:[#allocation2 + $0x40] sm:$0xff]
        %v262 = vld [vmem:[#allocation2 + $0x48] sm:$0xff]
        %v263 = vld [vmem:[#allocation2 + $0x50] sm:$0xff]
        %v264 = vld [vmem:[#allocation2 + $0x58] sm:$0xff]
        %v265 = vld [vmem:[%s235] sm:$0xff]
        %v266 = vld [vmem:[%s235 + $0x8] sm:$0xff]
        %v267 = vld [vmem:[%s235 + $0x10] sm:$0xff]
        %v268 = vld [vmem:[%s235 + $0x18] sm:$0xff]
        %v269 = vld [vmem:[%s206] sm:$0xff]
        %v270 = vld [vmem:[%s206 + $0x8] sm:$0xff]
        %v271 = vld [vmem:[%s206 + $0x10] sm:$0xff]
        %v272 = vld [vmem:[%s206 + $0x18] sm:$0xff]
        %v273 = vld [vmem:[%s206 + $0x20] sm:$0xff]
        %v274 = vld [vmem:[%s206 + $0x28] sm:$0xff]
        %v275 = vld [vmem:[%s206 + $0x30] sm:$0xff]
        %v276 = vld [vmem:[%s206 + $0x38] sm:$0xff]
        %v277 = vld [vmem:[%s206 + $0x40] sm:$0xff]
        %v278 = vld [vmem:[%s206 + $0x48] sm:$0xff]
        %v279 = vld [vmem:[%s206 + $0x50] sm:$0xff]
        %v280 = vld [vmem:[%s206 + $0x58] sm:$0xff]
        %v281 = vld [vmem:[%s206 + $0x60] sm:$0x1]
        %v282 = vld [vmem:[%s206 + $0x68] sm:$0x1]
        %v283 = vld [vmem:[%s206 + $0x70] sm:$0x1]
        %vm284 = vcmask 269312
        %v286 = vsel %vm284, %v265, 0
        %v289 = vsel %vm284, %v266, 0
        %v292 = vsel %vm284, %v267, 0
        %v295 = vsel %vm284, %v268, 0
        %vm297 = vcmask 1040384
        %v299 = vsel %vm297, %v281, 0
        %v302 = vsel %vm297, %v282, 0
        %v305 = vsel %vm297, %v283, 0
        %307 = vmatprep.subr.mxu0 %v270
        %308 = vmatpush1.msra.mxu0 %v269
        %309 = vmatprep.subr.mxu0 %v273
        %310 = vmatpush1.msra.mxu0 %v272
        %311 = vmatprep.subr.mxu0 %v276
        %312 = vmatpush1.msra.mxu0 %v275
        %313 = vmatprep.subr.mxu0 %v279
        %314 = vmatpush1.msra.mxu0 %v278
        %315 = vmatprep.subr.mxu0 %v302
        %316 = vmatpush1.msra.mxu0 %v299
        %317 = vmatprep.subr.mxu0 0.0
        %318 = vmatpush1.msra.mxu0 0.0
        %319 = vmatprep.subr.mxu0 0.0
        %320 = vmatpush1.msra.mxu0 0.0
        %321 = vmatprep.subr.mxu0 0.0
        %322 = vmatpush1.msra.mxu0 0.0
        %323 = vmatprep.subr.mxu0 0.0
        %324 = vmatpush1.msra.mxu0 0.0
        %325 = vmatprep.subr.mxu0 0.0
        %326 = vmatpush1.msra.mxu0 0.0
        %327 = vmatprep.subr.mxu0 0.0
        %328 = vmatpush1.msra.mxu0 0.0
        %329 = vmatprep.subr.mxu0 0.0
        %330 = vmatpush1.msra.mxu0 0.0
        %331 = vmatprep.subr.mxu0 0.0
        %332 = vmatpush1.msra.mxu0 0.0
        %333 = vmatprep.subr.mxu0 0.0
        %334 = vmatpush1.msra.mxu0 0.0
        %335 = vmatprep.subr.mxu0 0.0
        %336 = vmatpush1.msra.mxu0 0.0
        %337 = vmatprep.subr.mxu0 0.0
        %338 = vmatpush1.msra.mxu0 0.0
        %339 = vmatprep.subr.mxu0 0.0
        %340 = vmatpush1.msra.mxu0 0.0
        %341 = vmatprep.subr.mxu0 0.0
        %342 = vmatpush1.msra.mxu0 0.0
        %343 = vmatprep.subr.mxu0 0.0
        %344 = vmatpush1.msra.mxu0 0.0
        %345 = vmatprep.subr.mxu0 0.0
        %346 = vmatpush1.msra.mxu0 0.0
        %347 = vmatprep.subr.mxu0 0.0
        %348 = vmatpush1.msra.mxu0 0.0
        %349 = vmatprep.subr.mxu0 0.0
        %350 = vmatpush1.msra.mxu0 0.0
        %351 = vmatprep.subr.mxu0 0.0
        %352 = vmatpush1.msra.mxu0 0.0
        %353 = vmatprep.subr.mxu0 0.0
        %354 = vmatpush1.msra.mxu0 0.0
        %355 = vmatprep.subr.mxu0 0.0
        %356 = vmatpush1.msra.mxu0 0.0
        %357 = vmatprep.subr.mxu0 0.0
        %358 = vmatpush1.msra.mxu0 0.0
        %359 = vmatprep.subr.mxu0 0.0
        %360 = vmatpush1.msra.mxu0 0.0
        %361 = vmatprep.subr.mxu0 0.0
        %362 = vmatpush1.msra.mxu0 0.0
        %363 = vmatprep.subr.mxu0 0.0
        %364 = vmatpush1.msra.mxu0 0.0
        %365 = vmatprep.subr.mxu0 0.0
        %366 = vmatpush1.msra.mxu0 0.0
        %367 = vmatprep.subr.mxu0 0.0
        %368 = vmatpush1.msra.mxu0 0.0
        %369 = vmatprep.subr.mxu0 0.0
        %370 = vmatpush1.msra.mxu0 0.0
        %371 = vmatprep.mubr.f32.mxu0 0.0
        %372 = vmatmul.mubr.f32.gmra.mrb[0].mxu0 %v286
        %v373 = vpop.f32.mrb[0].mxu0
        %v374 = vadd.f32 0.0, %v373
        %v375 = vpop.f32.mrb[0].mxu0
        %v376 = vadd.f32 0.0, %v375
        %377 = vmatprep.mubr.f32.mxu0 0.0
        %378 = vmatmul.mubr.f32.gmra.mrb[0].mxu0 %v289
        %v379 = vpop.f32.mrb[0].mxu0
        %v380 = vadd.f32 0.0, %v379
        %v381 = vpop.f32.mrb[0].mxu0
        %v382 = vadd.f32 0.0, %v381
        %383 = vmatprep.mubr.f32.mxu0 0.0
        %384 = vmatmul.mubr.f32.gmra.mrb[0].mxu0 %v292
        %v385 = vpop.f32.mrb[0].mxu0
        %v386 = vadd.f32 0.0, %v385
        %v387 = vpop.f32.mrb[0].mxu0
        %v388 = vadd.f32 0.0, %v387
        %389 = vmatprep.mubr.f32.mxu0 0.0
        %390 = vmatmul.mubr.f32.gmra.mrb[0].mxu0 %v295
        %v391 = vpop.f32.mrb[0].mxu0
        %v392 = vadd.f32 0.0, %v391
        %v393 = vpop.f32.mrb[0].mxu0
        %v394 = vadd.f32 0.0, %v393
        %395 = vdwg.mxu0
        %396 = vmatprep.subr.mxu0 0.0
        %397 = vmatpush1.msra.mxu0 %v271
        %398 = vmatprep.subr.mxu0 0.0
        %399 = vmatpush1.msra.mxu0 %v274
        %400 = vmatprep.subr.mxu0 0.0
        %401 = vmatpush1.msra.mxu0 %v277
        %402 = vmatprep.subr.mxu0 0.0
        %403 = vmatpush1.msra.mxu0 %v280
        %404 = vmatprep.subr.mxu0 0.0
        %405 = vmatpush1.msra.mxu0 %v305
        %406 = vmatprep.subr.mxu0 0.0
        %407 = vmatpush1.msra.mxu0 0.0
        %408 = vmatprep.subr.mxu0 0.0
        %409 = vmatpush1.msra.mxu0 0.0
        %410 = vmatprep.subr.mxu0 0.0
        %411 = vmatpush1.msra.mxu0 0.0
        %412 = vmatprep.subr.mxu0 0.0
        %413 = vmatpush1.msra.mxu0 0.0
        %414 = vmatprep.subr.mxu0 0.0
        %415 = vmatpush1.msra.mxu0 0.0
        %416 = vmatprep.subr.mxu0 0.0
        %417 = vmatpush1.msra.mxu0 0.0
        %418 = vmatprep.subr.mxu0 0.0
        %419 = vmatpush1.msra.mxu0 0.0
        %420 = vmatprep.subr.mxu0 0.0
        %421 = vmatpush1.msra.mxu0 0.0
        %422 = vmatprep.subr.mxu0 0.0
        %423 = vmatpush1.msra.mxu0 0.0
        %424 = vmatprep.subr.mxu0 0.0
        %425 = vmatpush1.msra.mxu0 0.0
        %426 = vmatprep.subr.mxu0 0.0
        %427 = vmatpush1.msra.mxu0 0.0
        %428 = vmatprep.subr.mxu0 0.0
        %429 = vmatpush1.msra.mxu0 0.0
        %430 = vmatprep.subr.mxu0 0.0
        %431 = vmatpush1.msra.mxu0 0.0
        %432 = vmatprep.subr.mxu0 0.0
        %433 = vmatpush1.msra.mxu0 0.0
        %434 = vmatprep.subr.mxu0 0.0
        %435 = vmatpush1.msra.mxu0 0.0
        %436 = vmatprep.subr.mxu0 0.0
        %437 = vmatpush1.msra.mxu0 0.0
        %438 = vmatprep.subr.mxu0 0.0
        %439 = vmatpush1.msra.mxu0 0.0
        %440 = vmatprep.subr.mxu0 0.0
        %441 = vmatpush1.msra.mxu0 0.0
        %442 = vmatprep.subr.mxu0 0.0
        %443 = vmatpush1.msra.mxu0 0.0
        %444 = vmatprep.subr.mxu0 0.0
        %445 = vmatpush1.msra.mxu0 0.0
        %446 = vmatprep.subr.mxu0 0.0
        %447 = vmatpush1.msra.mxu0 0.0
        %448 = vmatprep.subr.mxu0 0.0
        %449 = vmatpush1.msra.mxu0 0.0
        %450 = vmatprep.subr.mxu0 0.0
        %451 = vmatpush1.msra.mxu0 0.0
        %452 = vmatprep.subr.mxu0 0.0
        %453 = vmatpush1.msra.mxu0 0.0
        %454 = vmatprep.subr.mxu0 0.0
        %455 = vmatpush1.msra.mxu0 0.0
        %456 = vmatprep.subr.mxu0 0.0
        %457 = vmatpush1.msra.mxu0 0.0
        %458 = vmatprep.subr.mxu0 0.0
        %459 = vmatpush1.msra.mxu0 0.0
        %460 = vmatprep.mubr.f32.mxu0 0.0
        %461 = vmatmul.mubr.f32.gmra.mrb[0].mxu0 %v286
        %v462 = vpop.f32.mrb[0].mxu0
        %v463 = vadd.f32 0.0, %v462
        %v464 = vpop.f32.mrb[0].mxu0
        %465 = vmatprep.mubr.f32.mxu0 0.0
        %466 = vmatmul.mubr.f32.gmra.mrb[0].mxu0 %v289
        %v467 = vpop.f32.mrb[0].mxu0
        %v468 = vadd.f32 0.0, %v467
        %v469 = vpop.f32.mrb[0].mxu0
        %470 = vmatprep.mubr.f32.mxu0 0.0
        %471 = vmatmul.mubr.f32.gmra.mrb[0].mxu0 %v292
        %v472 = vpop.f32.mrb[0].mxu0
        %v473 = vadd.f32 0.0, %v472
        %v474 = vpop.f32.mrb[0].mxu0
        %475 = vmatprep.mubr.f32.mxu0 0.0
        %476 = vmatmul.mubr.f32.gmra.mrb[0].mxu0 %v295
        %v477 = vpop.f32.mrb[0].mxu0
        %v478 = vadd.f32 0.0, %v477
        %v479 = vpop.f32.mrb[0].mxu0
        %480 = vdwg.mxu0
        %v481 = vadd.f32 %v253, %v374
        %v482 = vadd.f32 %v254, %v376
        %v483 = vadd.f32 %v255, %v463
        %v484 = vadd.f32 %v256, %v380
        %v485 = vadd.f32 %v257, %v382
        %v486 = vadd.f32 %v258, %v468
        %v487 = vadd.f32 %v259, %v386
        %v488 = vadd.f32 %v260, %v388
        %v489 = vadd.f32 %v261, %v473
        %v490 = vadd.f32 %v262, %v392
        %v491 = vadd.f32 %v263, %v394
        %v492 = vadd.f32 %v264, %v478
        %493 = vst [vmem:[#allocation2] sm:$0xff] %v481
        %494 = vst [vmem:[#allocation2 + $0x8] sm:$0xff] %v482
        %495 = vst [vmem:[#allocation2 + $0x10] sm:$0xff] %v483
        %496 = vst [vmem:[#allocation2 + $0x18] sm:$0xff] %v484
        %497 = vst [vmem:[#allocation2 + $0x20] sm:$0xff] %v485
        %498 = vst [vmem:[#allocation2 + $0x28] sm:$0xff] %v486
        %499 = vst [vmem:[#allocation2 + $0x30] sm:$0xff] %v487
        %500 = vst [vmem:[#allocation2 + $0x38] sm:$0xff] %v488
        %501 = vst [vmem:[#allocation2 + $0x40] sm:$0xff] %v489
        %502 = vst [vmem:[#allocation2 + $0x48] sm:$0xff] %v490
        %503 = vst [vmem:[#allocation2 + $0x50] sm:$0xff] %v491
        %504 = vst [vmem:[#allocation2 + $0x58] sm:$0xff] %v492
        %p505 = scmp.eq.s32.totalorder %s20, 10
        // Predicated region
        $region56: #{cdnet_loss.3} parent=46 // pred_check
          %p506 = pneg %p505
        $region57: #{cdnet_loss.3} parent=46 // pred_check_branch
          %508 = sbr.rel (%p506) target = $region59
        $region58: #{cdnet_loss.3} parent=46 // pred_region
          %v509 = vld [vmem:[#allocation2] sm:$0xff]
          %v510 = vld [vmem:[#allocation2 + $0x8] sm:$0xff]
          %v511 = vld [vmem:[#allocation2 + $0x10] sm:$0xff]
          %v512 = vld [vmem:[#allocation2 + $0x18] sm:$0xff]
          %v513 = vld [vmem:[#allocation2 + $0x20] sm:$0xff]
          %v514 = vld [vmem:[#allocation2 + $0x28] sm:$0xff]
          %v515 = vld [vmem:[#allocation2 + $0x30] sm:$0xff]
          %v516 = vld [vmem:[#allocation2 + $0x38] sm:$0xff]
          %v517 = vld [vmem:[#allocation2 + $0x40] sm:$0xff]
          %v518 = vld [vmem:[#allocation2 + $0x48] sm:$0xff]
          %v519 = vld [vmem:[#allocation2 + $0x50] sm:$0xff]
          %v520 = vld [vmem:[#allocation2 + $0x58] sm:$0xff]
          %521 = vst [vmem:[%s228] sm:$0xff] %v509
          %522 = vst [vmem:[%s228 + $0x8] sm:$0xff] %v510
          %523 = vst [vmem:[%s228 + $0x10] sm:$0xff] %v511
          %524 = vst [vmem:[%s228 + $0x18] sm:$0xff] %v512
          %525 = vst [vmem:[%s228 + $0x20] sm:$0xff] %v513
          %526 = vst [vmem:[%s228 + $0x28] sm:$0xff] %v514
          %527 = vst [vmem:[%s228 + $0x30] sm:$0xff] %v515
          %528 = vst [vmem:[%s228 + $0x38] sm:$0xff] %v516
          %529 = vst [vmem:[%s228 + $0x40] sm:$0xff] %v517
          %530 = vst [vmem:[%s228 + $0x48] sm:$0xff] %v518
          %531 = vst [vmem:[%s228 + $0x50] sm:$0xff] %v519
          %532 = vst [vmem:[%s228 + $0x58] sm:$0xff] %v520
        $region59: #{cdnet_loss.3} parent=46 // pred_fallthru
          _
        %s533 = sand.u32 %s98, 1
        %s534 = sand.u32 %s98, 1
        %s535 = smul.addr %s534, 96
        %s536 = scalar_lea.vmem [#allocation4], %s535
        // Predicated region
        $region60: #{cdnet_loss.3} parent=46 // pred_check
          %p537 = pneg %p108
        $region61: #{cdnet_loss.3} parent=46 // pred_check_branch
          %539 = sbr.rel (%p537) target = $region63
        $region62: #{cdnet_loss.3} parent=46 // pred_region
          %s540 = smul.u32 3, %s19
          %s541 = smul.addr %s18, 48
          %s542 = sadd.s32 %s540, %s541
          %s543 = smul.addr %s542, 8
          %s544 = scalar_lea.vmem %s2, %s543
          // Predicated region
          $region64: #{cdnet_loss.3} parent=62 // pred_check
            _
          $region65: #{cdnet_loss.3} parent=62 // pred_check_branch
            %546 = sbr.rel (0) target = $region67
          $region66: #{cdnet_loss.3} parent=62 // pred_region
            // Predicated region
            $region68: #{cdnet_loss.3} parent=66 // pred_check
              _
            $region69: #{cdnet_loss.3} parent=66 // pred_check_branch
              %548 = sbr.rel (0) target = $region71
            $region70: #{cdnet_loss.3} parent=66 // pred_region
              loop: start=0, step=1, limit=1
              $region72: #{cdnet_loss.3} parent=70 // loop_pre_header
                _
              $region73: #{cdnet_loss.3} parent=70 // loop_header
                %s550 = sphi 0, %s554
                %p551 = scmp.ge.s32.totalorder %s550, 1
                %s555 = sphi %s536, %s536
                %s556 = sphi %s544, %s544
              $region74: #{cdnet_loss.3} parent=70 // loop_header_branch
                %553 = sbr.rel (%p551) target = $region78
              $region75: #{cdnet_loss.3} parent=70 // loop_body
                %v557 = vld [vmem:[%s555] sm:$0xff]
                %558 = vst [vmem:[%s556] sm:$0xff] %v557
                %v559 = vld [vmem:[%s555 + $0x8] sm:$0xff]
                %560 = vst [vmem:[%s556 + $0x8] sm:$0xff] %v559
                %v561 = vld [vmem:[%s555 + $0x10] sm:$0xff]
                %562 = vst [vmem:[%s556 + $0x10] sm:$0xff] %v561
                %v563 = vld [vmem:[%s555 + $0x18] sm:$0xff]
                %564 = vst [vmem:[%s556 + $0x60] sm:$0xff] %v563
                %v565 = vld [vmem:[%s555 + $0x20] sm:$0xff]
                %566 = vst [vmem:[%s556 + $0x68] sm:$0xff] %v565
                %v567 = vld [vmem:[%s555 + $0x28] sm:$0xff]
                %568 = vst [vmem:[%s556 + $0x70] sm:$0xff] %v567
                %v569 = vld [vmem:[%s555 + $0x30] sm:$0xff]
                %570 = vst [vmem:[%s556 + $0xc0] sm:$0xff] %v569
                %v571 = vld [vmem:[%s555 + $0x38] sm:$0xff]
                %572 = vst [vmem:[%s556 + $0xc8] sm:$0xff] %v571
                %v573 = vld [vmem:[%s555 + $0x40] sm:$0xff]
                %574 = vst [vmem:[%s556 + $0xd0] sm:$0xff] %v573
                %v575 = vld [vmem:[%s555 + $0x48] sm:$0xff]
                %576 = vst [vmem:[%s556 + $0x120] sm:$0xff] %v575
                %v577 = vld [vmem:[%s555 + $0x50] sm:$0xff]
                %578 = vst [vmem:[%s556 + $0x128] sm:$0xff] %v577
                %v579 = vld [vmem:[%s555 + $0x58] sm:$0xff]
                %580 = vst [vmem:[%s556 + $0x130] sm:$0xff] %v579
              $region76: #{cdnet_loss.3} parent=70 // loop_footer
                %s554 = sadd.s32 1, %s550
              $region77: #{cdnet_loss.3} parent=70 // loop_footer_branch
                %549 = sbr.rel target = $region73
              $region78: #{cdnet_loss.3} parent=70 // loop_exit
                _
            $region71: #{cdnet_loss.3} parent=66 // pred_fallthru
              _
            // Predicated region
            $region79: #{cdnet_loss.3} parent=66 // pred_check
              _
            $region80: #{cdnet_loss.3} parent=66 // pred_check_branch
              %582 = sbr.rel target = $region82
            $region81: #{cdnet_loss.3} parent=66 // pred_region
              _
            $region82: #{cdnet_loss.3} parent=66 // pred_fallthru
              _
          $region67: #{cdnet_loss.3} parent=62 // pred_fallthru
            _
          %583 = vnop
        $region63: #{cdnet_loss.3} parent=46 // pred_fallthru
          _
      $region47: #{cdnet_loss.3} parent=5 // pred_fallthru
        _
      %p584 = scmp.le.s32.totalorder 2, %s8
      // Predicated region
      $region83: #{cdnet_loss.3} parent=5 // pred_check
        %p585 = pneg %p584
      $region84: #{cdnet_loss.3} parent=5 // pred_check_branch
        %587 = sbr.rel (%p585) target = $region86
      $region85: #{cdnet_loss.3} parent=5 // pred_region
        %s588 = ssub.s32 %s8, 2
        // Predicated region
        $region87: #{cdnet_loss.3} parent=85 // pred_check
          %p589 = pneg %p114
        $region88: #{cdnet_loss.3} parent=85 // pred_check_branch
          %591 = sbr.rel (%p589) target = $region90
        $region89: #{cdnet_loss.3} parent=85 // pred_region
          %s592 = sand.u32 %s99, 1
          %s593 = sand.u32 %s99, 1
          %s594 = smul.addr %s593, 96
          %s595 = scalar_lea.vmem [#allocation4], %s594
        $region90: #{cdnet_loss.3} parent=85 // pred_fallthru
          _
      $region86: #{cdnet_loss.3} parent=5 // pred_fallthru
        _
    $region6: #{cdnet_loss.3} parent=1 // loop_footer
      %s12 = sadd.s32 1, %s8
    $region7: #{cdnet_loss.3} parent=1 // loop_footer_branch
      %7 = sbr.rel target = $region3
    $region8: #{cdnet_loss.3} parent=1 // loop_exit
      _

// kernel: cdnet_loss.5
$region0: #{cdnet_loss.5}
  #allocation0 [shape = 'u32[]', space=smem, size = 0x4, offset = 0x4, fixed_abs, tag = 'smem constant byte address 0x4 - core index']
  #allocation1 [shape = 'u32[144,128]{1,0:T(1,128)}', space=vmem, size = 0x12000, scoped, tag = 'internal scratch']
  #allocation2 [shape = 'f32[1,1]{1,0:T(1,128)}', space=vmem, size = 0x200, scoped, tag = 'scratch operand']
  %s0 = inlined_call_operand.vmem [shape: f32[2,3,1024], index: 0, kind: input, shape index: {}]
  %s1 = inlined_call_operand.vmem [shape: f32[2,3,1024], index: 1, kind: input, shape index: {}]
  %s2 = inlined_call_operand.vmem [shape: f32[2,32,1024], index: 2, kind: input, shape index: {}]
  %s3 = inlined_call_operand.vmem [shape: f32[2,32,1024], index: 3, kind: input, shape index: {}]
  %s4 = inlined_call_operand.vmem [shape: f32[32,3], index: 4, kind: input, shape index: {}]
  %s5 = inlined_call_operand.vmem [shape: f32[32,32], index: 5, kind: input, shape index: {}]
  %s6 = inlined_call_operand.vmem [shape: f32[32,32], index: 6, kind: input, shape index: {}]
  %s7 = inlined_call_operand.vmem [shape: f32[16,32], index: 7, kind: input, shape index: {}]
  %s8 = inlined_call_operand.vmem [shape: f32[12,16], index: 8, kind: input, shape index: {}]
  %s9 = inlined_call_operand.vmem [shape: f32[12,12], index: 9, kind: input, shape index: {}]
  %s10 = inlined_call_operand.vmem [shape: f32[2,1,1], index: 10, kind: output, shape index: {}]
  %s11 = sld [smem:[#allocation0]]
  $region81: #{cdnet_loss.5} parent=0
    _
  %s13 = ssub.s32 1, %s11
  %s14 = scalar_select 0, %s13, %s11
  loop: start=0, step=1, limit=4
  $region2: #{cdnet_loss.5} parent=0 // loop_pre_header
    _
  $region3: #{cdnet_loss.5} parent=0 // loop_header
    %s16 = sphi 0, %s20
    %p17 = scmp.ge.s32.totalorder %s16, 4
    %s23 = sphi 0, %s35
    %s24 = sphi 0, %s31
    %s25 = sphi 0, %s23
    %s26 = sphi 0, %s24
    %s27 = sphi 0, %s25
    %s28 = sphi 0, %s26
    %s40 = sphi 0, %s42
    %s43 = sphi 0, %s40
    %s44 = sphi 0, %s43
    %s60 = sphi 0, %s44
    %s68 = sphi 0, %s70
    %s71 = sphi 0, %s68
    %s72 = sphi 0, %s71
    %s88 = sphi 0, %s72
    %s96 = sphi 0, %s98
    %s99 = sphi 0, %s96
    %s100 = sphi 0, %s99
    %s116 = sphi 0, %s100
    %s124 = sphi 0, %s126
    %s127 = sphi 0, %s124
    %s128 = sphi 0, %s127
    %s144 = sphi 0, %s128
    %s148 = sphi 0, %s148
    %s150 = sphi 0, %s148
    %s151 = sphi 0, %s150
    %s165 = sphi 0, %s151
    %s169 = sphi 0, %s169
    %s171 = sphi 0, %s169
    %s172 = sphi 0, %s171
    %s186 = sphi 0, %s172
    %s190 = sphi 0, %s190
    %s192 = sphi 0, %s190
    %s193 = sphi 0, %s192
    %s207 = sphi 0, %s193
    %s211 = sphi 0, %s211
    %s213 = sphi 0, %s211
    %s214 = sphi 0, %s213
    %s228 = sphi 0, %s214
    %s232 = sphi 0, %s232
    %s234 = sphi 0, %s232
    %s235 = sphi 0, %s234
    %s249 = sphi 0, %s235
    %s253 = sphi 0, %s253
    %s255 = sphi 0, %s253
    %s256 = sphi 0, %s255
    %s270 = sphi 0, %s256
    %s276 = sphi 0, %s278
    %s279 = sphi 0, %s276
    %s280 = sphi 0, %s279
    %s296 = sphi 0, %s280
  $region4: #{cdnet_loss.5} parent=0 // loop_header_branch
    %19 = sbr.rel (%p17) target = $region8
  $region5: #{cdnet_loss.5} parent=0 // loop_body
    %s21 = ssub.s32 %s16, 1
    %s22 = ssub.s32 %s16, 2
    %s29 = sadd.s32 1, %s24
    %p30 = scmp.ge.s32.totalorder %s29, 1
    %s31 = scalar_select %p30, 0, %s29
    %s32 = sadd.s32 1, %s23
    %s33 = scalar_select %p30, %s32, %s23
    %p34 = scmp.ge.s32.totalorder %s33, 2
    %s35 = scalar_select %p34, 0, %s33
    %s36 = ssub.s32 %s23, %s35
    %s37 = ssub.s32 %s24, %s31
    %s38 = sor.u32 %s36, %s37
    %p39 = scmp.eq.s32.totalorder %s38, 0
    %s41 = sadd.s32 %s40, 1
    %s42 = scalar_select %p39, %s40, %s41
    %p45 = pneg %p39
    %p46 = scmp.eq.s32.totalorder %s16, 1
    %p47 = por %p45, %p46
    %p48 = scmp.ne.s32.totalorder %s40, %s43
    %p49 = scmp.eq.s32.totalorder %s16, 0
    %p50 = por %p48, %p49
    %p51 = scmp.ne.s32.totalorder %s40, %s43
    %p52 = scmp.eq.s32.totalorder %s21, 1
    %p53 = por %p51, %p52
    %p54 = scmp.ne.s32.totalorder %s43, %s44
    %p55 = scmp.eq.s32.totalorder %s21, 0
    %p56 = por %p54, %p55
    %p57 = scmp.ne.s32.totalorder %s43, %s44
    %p58 = scmp.eq.s32.totalorder %s22, 1
    %p59 = por %p57, %p58
    %p61 = scmp.ne.s32.totalorder %s44, %s60
    %p62 = scmp.eq.s32.totalorder %s22, 0
    %p63 = por %p61, %p62
    %s64 = ssub.s32 %s23, %s35
    %s65 = ssub.s32 %s24, %s31
    %s66 = sor.u32 %s64, %s65
    %p67 = scmp.eq.s32.totalorder %s66, 0
    %s69 = sadd.s32 %s68, 1
    %s70 = scalar_select %p67, %s68, %s69
    %p73 = pneg %p67
    %p74 = scmp.eq.s32.totalorder %s16, 1
    %p75 = por %p73, %p74
    %p76 = scmp.ne.s32.totalorder %s68, %s71
    %p77 = scmp.eq.s32.totalorder %s16, 0
    %p78 = por %p76, %p77
    %p79 = scmp.ne.s32.totalorder %s68, %s71
    %p80 = scmp.eq.s32.totalorder %s21, 1
    %p81 = por %p79, %p80
    %p82 = scmp.ne.s32.totalorder %s71, %s72
    %p83 = scmp.eq.s32.totalorder %s21, 0
    %p84 = por %p82, %p83
    %p85 = scmp.ne.s32.totalorder %s71, %s72
    %p86 = scmp.eq.s32.totalorder %s22, 1
    %p87 = por %p85, %p86
    %p89 = scmp.ne.s32.totalorder %s72, %s88
    %p90 = scmp.eq.s32.totalorder %s22, 0
    %p91 = por %p89, %p90
    %s92 = ssub.s32 %s23, %s35
    %s93 = ssub.s32 %s24, %s31
    %s94 = sor.u32 %s92, %s93
    %p95 = scmp.eq.s32.totalorder %s94, 0
    %s97 = sadd.s32 %s96, 1
    %s98 = scalar_select %p95, %s96, %s97
    %p101 = pneg %p95
    %p102 = scmp.eq.s32.totalorder %s16, 1
    %p103 = por %p101, %p102
    %p104 = scmp.ne.s32.totalorder %s96, %s99
    %p105 = scmp.eq.s32.totalorder %s16, 0
    %p106 = por %p104, %p105
    %p107 = scmp.ne.s32.totalorder %s96, %s99
    %p108 = scmp.eq.s32.totalorder %s21, 1
    %p109 = por %p107, %p108
    %p110 = scmp.ne.s32.totalorder %s99, %s100
    %p111 = scmp.eq.s32.totalorder %s21, 0
    %p112 = por %p110, %p111
    %p113 = scmp.ne.s32.totalorder %s99, %s100
    %p114 = scmp.eq.s32.totalorder %s22, 1
    %p115 = por %p113, %p114
    %p117 = scmp.ne.s32.totalorder %s100, %s116
    %p118 = scmp.eq.s32.totalorder %s22, 0
    %p119 = por %p117, %p118
    %s120 = ssub.s32 %s23, %s35
    %s121 = ssub.s32 %s24, %s31
    %s122 = sor.u32 %s120, %s121
    %p123 = scmp.eq.s32.totalorder %s122, 0
    %s125 = sadd.s32 %s124, 1
    %s126 = scalar_select %p123, %s124, %s125
    %p129 = pneg %p123
    %p130 = scmp.eq.s32.totalorder %s16, 1
    %p131 = por %p129, %p130
    %p132 = scmp.ne.s32.totalorder %s124, %s127
    %p133 = scmp.eq.s32.totalorder %s16, 0
    %p134 = por %p132, %p133
    %p135 = scmp.ne.s32.totalorder %s124, %s127
    %p136 = scmp.eq.s32.totalorder %s21, 1
    %p137 = por %p135, %p136
    %p138 = scmp.ne.s32.totalorder %s127, %s128
    %p139 = scmp.eq.s32.totalorder %s21, 0
    %p140 = por %p138, %p139
    %p141 = scmp.ne.s32.totalorder %s127, %s128
    %p142 = scmp.eq.s32.totalorder %s22, 1
    %p143 = por %p141, %p142
    %p145 = scmp.ne.s32.totalorder %s128, %s144
    %p146 = scmp.eq.s32.totalorder %s22, 0
    %p147 = por %p145, %p146
    %s149 = sadd.s32 %s148, 1
    %p152 = scmp.eq.s32.totalorder %s16, 1
    %p153 = scmp.ne.s32.totalorder %s148, %s150
    %p154 = scmp.eq.s32.totalorder %s16, 0
    %p155 = por %p153, %p154
    %p156 = scmp.ne.s32.totalorder %s148, %s150
    %p157 = scmp.eq.s32.totalorder %s21, 1
    %p158 = por %p156, %p157
    %p159 = scmp.ne.s32.totalorder %s150, %s151
    %p160 = scmp.eq.s32.totalorder %s21, 0
    %p161 = por %p159, %p160
    %p162 = scmp.ne.s32.totalorder %s150, %s151
    %p163 = scmp.eq.s32.totalorder %s22, 1
    %p164 = por %p162, %p163
    %p166 = scmp.ne.s32.totalorder %s151, %s165
    %p167 = scmp.eq.s32.totalorder %s22, 0
    %p168 = por %p166, %p167
    %s170 = sadd.s32 %s169, 1
    %p173 = scmp.eq.s32.totalorder %s16, 1
    %p174 = scmp.ne.s32.totalorder %s169, %s171
    %p175 = scmp.eq.s32.totalorder %s16, 0
    %p176 = por %p174, %p175
    %p177 = scmp.ne.s32.totalorder %s169, %s171
    %p178 = scmp.eq.s32.totalorder %s21, 1
    %p179 = por %p177, %p178
    %p180 = scmp.ne.s32.totalorder %s171, %s172
    %p181 = scmp.eq.s32.totalorder %s21, 0
    %p182 = por %p180, %p181
    %p183 = scmp.ne.s32.totalorder %s171, %s172
    %p184 = scmp.eq.s32.totalorder %s22, 1
    %p185 = por %p183, %p184
    %p187 = scmp.ne.s32.totalorder %s172, %s186
    %p188 = scmp.eq.s32.totalorder %s22, 0
    %p189 = por %p187, %p188
    %s191 = sadd.s32 %s190, 1
    %p194 = scmp.eq.s32.totalorder %s16, 1
    %p195 = scmp.ne.s32.totalorder %s190, %s192
    %p196 = scmp.eq.s32.totalorder %s16, 0
    %p197 = por %p195, %p196
    %p198 = scmp.ne.s32.totalorder %s190, %s192
    %p199 = scmp.eq.s32.totalorder %s21, 1
    %p200 = por %p198, %p199
    %p201 = scmp.ne.s32.totalorder %s192, %s193
    %p202 = scmp.eq.s32.totalorder %s21, 0
    %p203 = por %p201, %p202
    %p204 = scmp.ne.s32.totalorder %s192, %s193
    %p205 = scmp.eq.s32.totalorder %s22, 1
    %p206 = por %p204, %p205
    %p208 = scmp.ne.s32.totalorder %s193, %s207
    %p209 = scmp.eq.s32.totalorder %s22, 0
    %p210 = por %p208, %p209
    %s212 = sadd.s32 %s211, 1
    %p215 = scmp.eq.s32.totalorder %s16, 1
    %p216 = scmp.ne.s32.totalorder %s211, %s213
    %p217 = scmp.eq.s32.totalorder %s16, 0
    %p218 = por %p216, %p217
    %p219 = scmp.ne.s32.totalorder %s211, %s213
    %p220 = scmp.eq.s32.totalorder %s21, 1
    %p221 = por %p219, %p220
    %p222 = scmp.ne.s32.totalorder %s213, %s214
    %p223 = scmp.eq.s32.totalorder %s21, 0
    %p224 = por %p222, %p223
    %p225 = scmp.ne.s32.totalorder %s213, %s214
    %p226 = scmp.eq.s32.totalorder %s22, 1
    %p227 = por %p225, %p226
    %p229 = scmp.ne.s32.totalorder %s214, %s228
    %p230 = scmp.eq.s32.totalorder %s22, 0
    %p231 = por %p229, %p230
    %s233 = sadd.s32 %s232, 1
    %p236 = scmp.eq.s32.totalorder %s16, 1
    %p237 = scmp.ne.s32.totalorder %s232, %s234
    %p238 = scmp.eq.s32.totalorder %s16, 0
    %p239 = por %p237, %p238
    %p240 = scmp.ne.s32.totalorder %s232, %s234
    %p241 = scmp.eq.s32.totalorder %s21, 1
    %p242 = por %p240, %p241
    %p243 = scmp.ne.s32.totalorder %s234, %s235
    %p244 = scmp.eq.s32.totalorder %s21, 0
    %p245 = por %p243, %p244
    %p246 = scmp.ne.s32.totalorder %s234, %s235
    %p247 = scmp.eq.s32.totalorder %s22, 1
    %p248 = por %p246, %p247
    %p250 = scmp.ne.s32.totalorder %s235, %s249
    %p251 = scmp.eq.s32.totalorder %s22, 0
    %p252 = por %p250, %p251
    %s254 = sadd.s32 %s253, 1
    %p257 = scmp.eq.s32.totalorder %s16, 1
    %p258 = scmp.ne.s32.totalorder %s253, %s255
    %p259 = scmp.eq.s32.totalorder %s16, 0
    %p260 = por %p258, %p259
    %p261 = scmp.ne.s32.totalorder %s253, %s255
    %p262 = scmp.eq.s32.totalorder %s21, 1
    %p263 = por %p261, %p262
    %p264 = scmp.ne.s32.totalorder %s255, %s256
    %p265 = scmp.eq.s32.totalorder %s21, 0
    %p266 = por %p264, %p265
    %p267 = scmp.ne.s32.totalorder %s255, %s256
    %p268 = scmp.eq.s32.totalorder %s22, 1
    %p269 = por %p267, %p268
    %p271 = scmp.ne.s32.totalorder %s256, %s270
    %p272 = scmp.eq.s32.totalorder %s22, 0
    %p273 = por %p271, %p272
    %s274 = ssub.s32 %s23, %s35
    %p275 = scmp.eq.s32.totalorder %s274, 0
    %s277 = sadd.s32 %s276, 1
    %s278 = scalar_select %p275, %s276, %s277
    %p281 = pneg %p275
    %p282 = scmp.eq.s32.totalorder %s16, 1
    %p283 = por %p281, %p282
    %p284 = scmp.ne.s32.totalorder %s276, %s279
    %p285 = scmp.eq.s32.totalorder %s16, 0
    %p286 = por %p284, %p285
    %p287 = scmp.ne.s32.totalorder %s276, %s279
    %p288 = scmp.eq.s32.totalorder %s21, 1
    %p289 = por %p287, %p288
    %p290 = scmp.ne.s32.totalorder %s279, %s280
    %p291 = scmp.eq.s32.totalorder %s21, 0
    %p292 = por %p290, %p291
    %p293 = scmp.ne.s32.totalorder %s279, %s280
    %p294 = scmp.eq.s32.totalorder %s22, 1
    %p295 = por %p293, %p294
    %p297 = scmp.ne.s32.totalorder %s280, %s296
    %p298 = scmp.eq.s32.totalorder %s22, 0
    %p299 = por %p297, %p298
    %p300 = scmp.le.s32.totalorder 1, %s16
    %p301 = scmp.lt.s32.totalorder %s16, 3
    %p302 = pnand %p300, %p301
    %p303 = pneg %p302
    // Predicated region
    $region9: #{cdnet_loss.5} parent=5 // pred_check
      _
    $region10: #{cdnet_loss.5} parent=5 // pred_check_branch
      %305 = sbr.rel (%p302) target = $region12
    $region11: #{cdnet_loss.5} parent=5 // pred_region
      %s306 = ssub.s32 %s16, 1
      // Predicated region
      $region13: #{cdnet_loss.5} parent=11 // pred_check
        %p307 = pneg %p161
      $region14: #{cdnet_loss.5} parent=11 // pred_check_branch
        %309 = sbr.rel (%p307) target = $region16
      $region15: #{cdnet_loss.5} parent=11 // pred_region
        _
      $region16: #{cdnet_loss.5} parent=11 // pred_fallthru
        _
      // Predicated region
      $region17: #{cdnet_loss.5} parent=11 // pred_check
        %p310 = pneg %p182
      $region18: #{cdnet_loss.5} parent=11 // pred_check_branch
        %312 = sbr.rel (%p310) target = $region20
      $region19: #{cdnet_loss.5} parent=11 // pred_region
        _
      $region20: #{cdnet_loss.5} parent=11 // pred_fallthru
        _
      // Predicated region
      $region21: #{cdnet_loss.5} parent=11 // pred_check
        %p313 = pneg %p203
      $region22: #{cdnet_loss.5} parent=11 // pred_check_branch
        %315 = sbr.rel (%p313) target = $region24
      $region23: #{cdnet_loss.5} parent=11 // pred_region
        _
      $region24: #{cdnet_loss.5} parent=11 // pred_fallthru
        _
      // Predicated region
      $region25: #{cdnet_loss.5} parent=11 // pred_check
        %p316 = pneg %p224
      $region26: #{cdnet_loss.5} parent=11 // pred_check_branch
        %318 = sbr.rel (%p316) target = $region28
      $region27: #{cdnet_loss.5} parent=11 // pred_region
        _
      $region28: #{cdnet_loss.5} parent=11 // pred_fallthru
        _
      // Predicated region
      $region29: #{cdnet_loss.5} parent=11 // pred_check
        %p319 = pneg %p245
      $region30: #{cdnet_loss.5} parent=11 // pred_check_branch
        %321 = sbr.rel (%p319) target = $region32
      $region31: #{cdnet_loss.5} parent=11 // pred_region
        _
      $region32: #{cdnet_loss.5} parent=11 // pred_fallthru
        _
      // Predicated region
      $region33: #{cdnet_loss.5} parent=11 // pred_check
        %p322 = pneg %p266
      $region34: #{cdnet_loss.5} parent=11 // pred_check_branch
        %324 = sbr.rel (%p322) target = $region36
      $region35: #{cdnet_loss.5} parent=11 // pred_region
        _
      $region36: #{cdnet_loss.5} parent=11 // pred_fallthru
        _
    $region12: #{cdnet_loss.5} parent=5 // pred_fallthru
      _
    %p325 = scmp.lt.s32.totalorder %s16, 2
    // Predicated region
    $region37: #{cdnet_loss.5} parent=5 // pred_check
      %p326 = pneg %p325
    $region38: #{cdnet_loss.5} parent=5 // pred_check_branch
      %328 = sbr.rel (%p326) target = $region40
    $region39: #{cdnet_loss.5} parent=5 // pred_region
      // Predicated region
      $region41: #{cdnet_loss.5} parent=39 // pred_check
        %p329 = pneg %p50
      $region42: #{cdnet_loss.5} parent=39 // pred_check_branch
        %331 = sbr.rel (%p329) target = $region44
      $region43: #{cdnet_loss.5} parent=39 // pred_region
        %s332 = smul.u32 8, %s24
        %p333 = scmp.lt.s32.totalorder %s23, 1
        %s334 = scalar_select %p333, %s23, 1
        %p335 = scmp.lt.s32.totalorder %s332, 7
        %s336 = scalar_select %p335, %s332, 7
        %s337 = smul.addr %s334, 8
        %s338 = sadd.s32 %s336, %s337
        %s339 = smul.addr %s338, 4
        %s340 = scalar_lea.vmem %s0, %s339
        %s341 = smul.u32 8, %s24
      $region44: #{cdnet_loss.5} parent=39 // pred_fallthru
        _
      // Predicated region
      $region45: #{cdnet_loss.5} parent=39 // pred_check
        %p342 = pneg %p78
      $region46: #{cdnet_loss.5} parent=39 // pred_check_branch
        %344 = sbr.rel (%p342) target = $region48
      $region47: #{cdnet_loss.5} parent=39 // pred_region
        %s345 = smul.u32 8, %s24
        %p346 = scmp.lt.s32.totalorder %s23, 1
        %s347 = scalar_select %p346, %s23, 1
        %p348 = scmp.lt.s32.totalorder %s345, 7
        %s349 = scalar_select %p348, %s345, 7
        %s350 = smul.addr %s347, 8
        %s351 = sadd.s32 %s349, %s350
        %s352 = smul.addr %s351, 4
        %s353 = scalar_lea.vmem %s1, %s352
        %s354 = smul.u32 8, %s24
      $region48: #{cdnet_loss.5} parent=39 // pred_fallthru
        _
      // Predicated region
      $region49: #{cdnet_loss.5} parent=39 // pred_check
        %p355 = pneg %p106
      $region50: #{cdnet_loss.5} parent=39 // pred_check_branch
        %357 = sbr.rel (%p355) target = $region52
      $region51: #{cdnet_loss.5} parent=39 // pred_region
        %s358 = smul.u32 8, %s24
        %p359 = scmp.lt.s32.totalorder %s23, 1
        %s360 = scalar_select %p359, %s23, 1
        %p361 = scmp.lt.s32.totalorder %s358, 7
        %s362 = scalar_select %p361, %s358, 7
        %s363 = smul.addr %s360, 32
        %s364 = sadd.s32 %s362, %s363
        %s365 = smul.addr %s364, 8
        %s366 = scalar_lea.vmem %s2, %s365
        %s367 = smul.u32 8, %s24
      $region52: #{cdnet_loss.5} parent=39 // pred_fallthru
        _
      // Predicated region
      $region53: #{cdnet_loss.5} parent=39 // pred_check
        %p368 = pneg %p134
      $region54: #{cdnet_loss.5} parent=39 // pred_check_branch
        %370 = sbr.rel (%p368) target = $region56
      $region55: #{cdnet_loss.5} parent=39 // pred_region
        %s371 = smul.u32 8, %s24
        %p372 = scmp.lt.s32.totalorder %s23, 1
        %s373 = scalar_select %p372, %s23, 1
        %p374 = scmp.lt.s32.totalorder %s371, 7
        %s375 = scalar_select %p374, %s371, 7
        %s376 = smul.addr %s373, 32
        %s377 = sadd.s32 %s375, %s376
        %s378 = smul.addr %s377, 8
        %s379 = scalar_lea.vmem %s3, %s378
        %s380 = smul.u32 8, %s24
      $region56: #{cdnet_loss.5} parent=39 // pred_fallthru
        _
    $region40: #{cdnet_loss.5} parent=5 // pred_fallthru
      _
    %p381 = scmp.le.s32.totalorder 1, %s16
    %p382 = scmp.lt.s32.totalorder %s16, 3
    %p383 = pnand %p381, %p382
    %p384 = pneg %p383
    // Predicated region
    $region57: #{cdnet_loss.5} parent=5 // pred_check
      _
    $region58: #{cdnet_loss.5} parent=5 // pred_check_branch
      %386 = sbr.rel (%p383) target = $region60
    $region59: #{cdnet_loss.5} parent=5 // pred_region
      %s387 = ssub.s32 %s16, 1
      %s388 = smul.u32 8, %s26
      %p389 = scmp.lt.s32.totalorder %s25, 1
      %s390 = scalar_select %p389, %s25, 1
      %p391 = scmp.lt.s32.totalorder %s388, 7
      %s392 = scalar_select %p391, %s388, 7
      %s393 = smul.addr %s390, 8
      %s394 = sadd.s32 %s392, %s393
      %s395 = smul.addr %s394, 4
      %s396 = scalar_lea.vmem %s0, %s395
      %p397 = pneg %p56
      %p398 = pneg %p53
      %s399 = smul.u32 8, %s26
      %p400 = scmp.lt.s32.totalorder %s25, 1
      %s401 = scalar_select %p400, %s25, 1
      %p402 = scmp.lt.s32.totalorder %s399, 7
      %s403 = scalar_select %p402, %s399, 7
      %s404 = smul.addr %s401, 8
      %s405 = sadd.s32 %s403, %s404
      %s406 = smul.addr %s405, 4
      %s407 = scalar_lea.vmem %s1, %s406
      %p408 = pneg %p84
      %p409 = pneg %p81
      %s410 = smul.u32 8, %s26
      %p411 = scmp.lt.s32.totalorder %s25, 1
      %s412 = scalar_select %p411, %s25, 1
      %p413 = scmp.lt.s32.totalorder %s410, 7
      %s414 = scalar_select %p413, %s410, 7
      %s415 = smul.addr %s412, 32
      %s416 = sadd.s32 %s414, %s415
      %s417 = smul.addr %s416, 8
      %s418 = scalar_lea.vmem %s2, %s417
      %p419 = pneg %p112
      %p420 = pneg %p109
      %s421 = smul.u32 8, %s26
      %p422 = scmp.lt.s32.totalorder %s25, 1
      %s423 = scalar_select %p422, %s25, 1
      %p424 = scmp.lt.s32.totalorder %s421, 7
      %s425 = scalar_select %p424, %s421, 7
      %s426 = smul.addr %s423, 32
      %s427 = sadd.s32 %s425, %s426
      %s428 = smul.addr %s427, 8
      %s429 = scalar_lea.vmem %s3, %s428
      %p430 = pneg %p140
      %p431 = pneg %p137
      %p432 = pneg %p161
      %p433 = pneg %p158
      %p434 = pneg %p182
      %p435 = pneg %p179
      %p436 = pneg %p203
      %p437 = pneg %p200
      %p438 = pneg %p224
      %p439 = pneg %p221
      %p440 = pneg %p245
      %p441 = pneg %p242
      %p442 = pneg %p266
      %p443 = pneg %p263
      %p444 = pneg %p292
      %p445 = pneg %p289
      %p446 = scmp.lt.s32.totalorder %s25, 1
      %s447 = scalar_select %p446, %s25, 1
      %s448 = scalar_lea.vmem %s10, %s447
      %s449 = smul.u32 8, %s26
      %p450 = scmp.lt.s32.totalorder %s25, 1
      %s451 = scalar_select %p450, %s25, 1
      %p452 = scmp.lt.s32.totalorder %s449, 7
      %s453 = scalar_select %p452, %s449, 7
      %s454 = smul.addr %s451, 8
      %s455 = sadd.s32 %s453, %s454
      %s456 = smul.addr %s455, 4
      %s457 = scalar_lea.vmem %s0, %s456
      %s458 = smul.u32 8, %s26
      %s459 = smul.u32 8, %s26
      %p460 = scmp.lt.s32.totalorder %s25, 1
      %s461 = scalar_select %p460, %s25, 1
      %p462 = scmp.lt.s32.totalorder %s459, 7
      %s463 = scalar_select %p462, %s459, 7
      %s464 = smul.addr %s461, 8
      %s465 = sadd.s32 %s463, %s464
      %s466 = smul.addr %s465, 4
      %s467 = scalar_lea.vmem %s1, %s466
      %s468 = smul.u32 8, %s26
      %s469 = smul.u32 8, %s26
      %p470 = scmp.lt.s32.totalorder %s25, 1
      %s471 = scalar_select %p470, %s25, 1
      %p472 = scmp.lt.s32.totalorder %s469, 7
      %s473 = scalar_select %p472, %s469, 7
      %s474 = smul.addr %s471, 32
      %s475 = sadd.s32 %s473, %s474
      %s476 = smul.addr %s475, 8
      %s477 = scalar_lea.vmem %s2, %s476
      %s478 = smul.u32 8, %s26
      %s479 = smul.u32 8, %s26
      %p480 = scmp.lt.s32.totalorder %s25, 1
      %s481 = scalar_select %p480, %s25, 1
      %p482 = scmp.lt.s32.totalorder %s479, 7
      %s483 = scalar_select %p482, %s479, 7
      %s484 = smul.addr %s481, 32
      %s485 = sadd.s32 %s483, %s484
      %s486 = smul.addr %s485, 8
      %s487 = scalar_lea.vmem %s3, %s486
      %s488 = smul.u32 8, %s26
      %p489 = scmp.lt.s32.totalorder %s25, 1
      %s490 = scalar_select %p489, %s25, 1
      %s491 = scalar_lea.vmem %s10, %s490
      %p492 = scmp.eq.s32.totalorder %s26, 0
      // Predicated region
      $region61: #{cdnet_loss.5} parent=59 // pred_check
        %p493 = pneg %p492
      $region62: #{cdnet_loss.5} parent=59 // pred_check_branch
        %495 = sbr.rel (%p493) target = $region64
      $region63: #{cdnet_loss.5} parent=59 // pred_region
        %vm496 = vcmask 0
        %497 = vst.msk [vmem:[#allocation2] sm:$0x1] %vm496, 0.0
      $region64: #{cdnet_loss.5} parent=59 // pred_fallthru
        _
      %v498 = vld [vmem:[%s457] sm:$0x77]
      %v499 = vld [vmem:[%s457 + $0x8] sm:$0x77]
      %v500 = vld [vmem:[%s457 + $0x10] sm:$0x77]
      %v501 = vld [vmem:[%s457 + $0x18] sm:$0x77]
      %v502 = vld [vmem:[%s477] sm:$0xff]
      %v503 = vld [vmem:[%s477 + $0x8] sm:$0xff]
      %v504 = vld [vmem:[%s477 + $0x10] sm:$0xff]
      %v505 = vld [vmem:[%s477 + $0x18] sm:$0xff]
      %v506 = vld [vmem:[%s477 + $0x20] sm:$0xff]
      %v507 = vld [vmem:[%s477 + $0x28] sm:$0xff]
      %v508 = vld [vmem:[%s477 + $0x30] sm:$0xff]
      %v509 = vld [vmem:[%s477 + $0x38] sm:$0xff]
      %v510 = vld [vmem:[%s477 + $0x40] sm:$0xff]
      %v511 = vld [vmem:[%s477 + $0x48] sm:$0xff]
      %v512 = vld [vmem:[%s477 + $0x50] sm:$0xff]
      %v513 = vld [vmem:[%s477 + $0x58] sm:$0xff]
      %v514 = vld [vmem:[%s477 + $0x60] sm:$0xff]
      %v515 = vld [vmem:[%s477 + $0x68] sm:$0xff]
      %v516 = vld [vmem:[%s477 + $0x70] sm:$0xff]
      %v517 = vld [vmem:[%s477 + $0x78] sm:$0xff]
      %v518 = vld [vmem:[%s477 + $0x80] sm:$0xff]
      %v519 = vld [vmem:[%s477 + $0x88] sm:$0xff]
      %v520 = vld [vmem:[%s477 + $0x90] sm:$0xff]
      %v521 = vld [vmem:[%s477 + $0x98] sm:$0xff]
      %v522 = vld [vmem:[%s477 + $0xa0] sm:$0xff]
      %v523 = vld [vmem:[%s477 + $0xa8] sm:$0xff]
      %v524 = vld [vmem:[%s477 + $0xb0] sm:$0xff]
      %v525 = vld [vmem:[%s477 + $0xb8] sm:$0xff]
      %v526 = vld [vmem:[%s477 + $0xc0] sm:$0xff]
      %v527 = vld [vmem:[%s477 + $0xc8] sm:$0xff]
      %v528 = vld [vmem:[%s477 + $0xd0] sm:$0xff]
      %v529 = vld [vmem:[%s477 + $0xd8] sm:$0xff]
      %v530 = vld [vmem:[%s477 + $0xe0] sm:$0xff]
      %v531 = vld [vmem:[%s477 + $0xe8] sm:$0xff]
      %v532 = vld [vmem:[%s477 + $0xf0] sm:$0xff]
      %v533 = vld [vmem:[%s477 + $0xf8] sm:$0xff]
      %v534 = vld [vmem:[%s4] sm:$0xff]
      %v535 = vld [vmem:[%s4 + $0x8] sm:$0xff]
      %v536 = vld [vmem:[%s4 + $0x10] sm:$0xff]
      %v537 = vld [vmem:[%s4 + $0x18] sm:$0xff]
      %v542 = vcombine.high %v498, %v498
      %v543 = vcombine.high %v499, %v499
      %v544 = vcombine.high %v500, %v500
      %v545 = vcombine.high %v501, %v501
      %vm546 = vcmask 23552
      %v548 = vsel %vm546, %v534, 0
      %v551 = vsel %vm546, %v535, 0
      %v554 = vsel %vm546, %v536, 0
      %v557 = vsel %vm546, %v537, 0
      %vm559 = vcmask 1042432
      %v560 = vsel %vm559, %v498, 0
      %v562 = vsel %vm559, %v542, 0
      %v564 = vsel %vm559, %v499, 0
      %v566 = vsel %vm559, %v543, 0
      %v568 = vsel %vm559, %v500, 0
      %v570 = vsel %vm559, %v544, 0
      %v572 = vsel %vm559, %v501, 0
      %v574 = vsel %vm559, %v545, 0
      %576 = vmatprep.subr.mxu0 %v562
      %577 = vmatpush1.msra.mxu0 %v560
      %578 = vmatprep.subr.mxu0 0.0
      %579 = vmatpush1.msra.mxu0 0.0
      %580 = vmatprep.subr.mxu0 0.0
      %581 = vmatpush1.msra.mxu0 0.0
      %582 = vmatprep.subr.mxu0 0.0
      %583 = vmatpush1.msra.mxu0 0.0
      %584 = vmatprep.subr.mxu0 0.0
      %585 = vmatpush1.msra.mxu0 0.0
      %586 = vmatprep.subr.mxu0 0.0
      %587 = vmatpush1.msra.mxu0 0.0
      %588 = vmatprep.subr.mxu0 0.0
      %589 = vmatpush1.msra.mxu0 0.0
      %590 = vmatprep.subr.mxu0 0.0
      %591 = vmatpush1.msra.mxu0 0.0
      %592 = vmatprep.subr.mxu0 0.0
      %593 = vmatpush1.msra.mxu0 0.0
      %594 = vmatprep.subr.mxu0 0.0
      %595 = vmatpush1.msra.mxu0 0.0
      %596 = vmatprep.subr.mxu0 0.0
      %597 = vmatpush1.msra.mxu0 0.0
      %598 = vmatprep.subr.mxu0 0.0
      %599 = vmatpush1.msra.mxu0 0.0
      %600 = vmatprep.subr.mxu0 0.0
      %601 = vmatpush1.msra.mxu0 0.0
      %602 = vmatprep.subr.mxu0 0.0
      %603 = vmatpush1.msra.mxu0 0.0
      %604 = vmatprep.subr.mxu0 0.0
      %605 = vmatpush1.msra.mxu0 0.0
      %606 = vmatprep.subr.mxu0 0.0
      %607 = vmatpush1.msra.mxu0 0.0
      %608 = vmatprep.subr.mxu0 0.0
      %609 = vmatpush1.msra.mxu0 0.0
      %610 = vmatprep.subr.mxu0 0.0
      %611 = vmatpush1.msra.mxu0 0.0
      %612 = vmatprep.subr.mxu0 0.0
      %613 = vmatpush1.msra.mxu0 0.0
      %614 = vmatprep.subr.mxu0 0.0
      %615 = vmatpush1.msra.mxu0 0.0
      %616 = vmatprep.subr.mxu0 0.0
      %617 = vmatpush1.msra.mxu0 0.0
      %618 = vmatprep.subr.mxu0 0.0
      %619 = vmatpush1.msra.mxu0 0.0
      %620 = vmatprep.subr.mxu0 0.0
      %621 = vmatpush1.msra.mxu0 0.0
      %622 = vmatprep.subr.mxu0 0.0
      %623 = vmatpush1.msra.mxu0 0.0
      %624 = vmatprep.subr.mxu0 0.0
      %625 = vmatpush1.msra.mxu0 0.0
      %626 = vmatprep.subr.mxu0 0.0
      %627 = vmatpush1.msra.mxu0 0.0
      %628 = vmatprep.subr.mxu0 0.0
      %629 = vmatpush1.msra.mxu0 0.0
      %630 = vmatprep.subr.mxu0 0.0
      %631 = vmatpush1.msra.mxu0 0.0
      %632 = vmatprep.subr.mxu0 0.0
      %633 = vmatpush1.msra.mxu0 0.0
      %634 = vmatprep.subr.mxu0 0.0
      %635 = vmatpush1.msra.mxu0 0.0
      %636 = vmatprep.subr.mxu0 0.0
      %637 = vmatpush1.msra.mxu0 0.0
      %638 = vmatprep.subr.mxu0 0.0
      %639 = vmatpush1.msra.mxu0 0.0
      %640 = vmatprep.mubr.f32.mxu0 0.0
      %641 = vmatmul.mubr.f32.gmra.mrb[0].mxu0 %v548
      %v642 = vpop.f32.mrb[0].mxu0
      %v643 = vadd.f32 0.0, %v642
      %v644 = vpop.f32.mrb[0].mxu0
      %v645 = vadd.f32 0.0, %v644
      %646 = vmatprep.mubr.f32.mxu0 0.0
      %647 = vmatmul.mubr.f32.gmra.mrb[0].mxu0 %v551
      %v648 = vpop.f32.mrb[0].mxu0
      %v649 = vadd.f32 0.0, %v648
      %v650 = vpop.f32.mrb[0].mxu0
      %v651 = vadd.f32 0.0, %v650
      %652 = vmatprep.mubr.f32.mxu0 0.0
      %653 = vmatmul.mubr.f32.gmra.mrb[0].mxu0 %v554
      %v654 = vpop.f32.mrb[0].mxu0
      %v655 = vadd.f32 0.0, %v654
      %v656 = vpop.f32.mrb[0].mxu0
      %v657 = vadd.f32 0.0, %v656
      %658 = vmatprep.mubr.f32.mxu0 0.0
      %659 = vmatmul.mubr.f32.gmra.mrb[0].mxu0 %v557
      %v660 = vpop.f32.mrb[0].mxu0
      %v661 = vadd.f32 0.0, %v660
      %v662 = vpop.f32.mrb[0].mxu0
      %v663 = vadd.f32 0.0, %v662
      %664 = vdwg.mxu0
      %665 = vmatprep.subr.mxu0 %v566
      %666 = vmatpush1.msra.mxu0 %v564
      %667 = vmatprep.subr.mxu0 0.0
      %668 = vmatpush1.msra.mxu0 0.0
      %669 = vmatprep.subr.mxu0 0.0
      %670 = vmatpush1.msra.mxu0 0.0
      %671 = vmatprep.subr.mxu0 0.0
      %672 = vmatpush1.msra.mxu0 0.0
      %673 = vmatprep.subr.mxu0 0.0
      %674 = vmatpush1.msra.mxu0 0.0
      %675 = vmatprep.subr.mxu0 0.0
      %676 = vmatpush1.msra.mxu0 0.0
      %677 = vmatprep.subr.mxu0 0.0
      %678 = vmatpush1.msra.mxu0 0.0
      %679 = vmatprep.subr.mxu0 0.0
      %680 = vmatpush1.msra.mxu0 0.0
      %681 = vmatprep.subr.mxu0 0.0
      %682 = vmatpush1.msra.mxu0 0.0
      %683 = vmatprep.subr.mxu0 0.0
      %684 = vmatpush1.msra.mxu0 0.0
      %685 = vmatprep.subr.mxu0 0.0
      %686 = vmatpush1.msra.mxu0 0.0
      %687 = vmatprep.subr.mxu0 0.0
      %688 = vmatpush1.msra.mxu0 0.0
      %689 = vmatprep.subr.mxu0 0.0
      %690 = vmatpush1.msra.mxu0 0.0
      %691 = vmatprep.subr.mxu0 0.0
      %692 = vmatpush1.msra.mxu0 0.0
      %693 = vmatprep.subr.mxu0 0.0
      %694 = vmatpush1.msra.mxu0 0.0
      %695 = vmatprep.subr.mxu0 0.0
      %696 = vmatpush1.msra.mxu0 0.0
      %697 = vmatprep.subr.mxu0 0.0
      %698 = vmatpush1.msra.mxu0 0.0
      %699 = vmatprep.subr.mxu0 0.0
      %700 = vmatpush1.msra.mxu0 0.0
      %701 = vmatprep.subr.mxu0 0.0
      %702 = vmatpush1.msra.mxu0 0.0
      %703 = vmatprep.subr.mxu0 0.0
      %704 = vmatpush1.msra.mxu0 0.0
      %705 = vmatprep.subr.mxu0 0.0
      %706 = vmatpush1.msra.mxu0 0.0
      %707 = vmatprep.subr.mxu0 0.0
      %708 = vmatpush1.msra.mxu0 0.0
      %709 = vmatprep.subr.mxu0 0.0
      %710 = vmatpush1.msra.mxu0 0.0
      %711 = vmatprep.subr.mxu0 0.0
      %712 = vmatpush1.msra.mxu0 0.0
      %713 = vmatprep.subr.mxu0 0.0
      %714 = vmatpush1.msra.mxu0 0.0
      %715 = vmatprep.subr.mxu0 0.0
      %716 = vmatpush1.msra.mxu0 0.0
      %717 = vmatprep.subr.mxu0 0.0
      %718 = vmatpush1.msra.mxu0 0.0
      %719 = vmatprep.subr.mxu0 0.0
      %720 = vmatpush1.msra.mxu0 0.0
      %721 = vmatprep.subr.mxu0 0.0
      %722 = vmatpush1.msra.mxu0 0.0
      %723 = vmatprep.subr.mxu0 0.0
      %724 = vmatpush1.msra.mxu0 0.0
      %725 = vmatprep.subr.mxu0 0.0
      %726 = vmatpush1.msra.mxu0 0.0
      %727 = vmatprep.subr.mxu0 0.0
      %728 = vmatpush1.msra.mxu0 0.0
      %729 = vmatprep.mubr.f32.mxu0 0.0
      %730 = vmatmul.mubr.f32.gmra.mrb[0].mxu0 %v548
      %v731 = vpop.f32.mrb[0].mxu0
      %v732 = vadd.f32 0.0, %v731
      %v733 = vpop.f32.mrb[0].mxu0
      %v734 = vadd.f32 0.0, %v733
      %735 = vmatprep.mubr.f32.mxu0 0.0
      %736 = vmatmul.mubr.f32.gmra.mrb[0].mxu0 %v551
      %v737 = vpop.f32.mrb[0].mxu0
      %v738 = vadd.f32 0.0, %v737
      %v739 = vpop.f32.mrb[0].mxu0
      %v740 = vadd.f32 0.0, %v739
      %741 = vmatprep.mubr.f32.mxu0 0.0
      %742 = vmatmul.mubr.f32.gmra.mrb[0].mxu0 %v554
      %v743 = vpop.f32.mrb[0].mxu0
      %v744 = vadd.f32 0.0, %v743
      %v745 = vpop.f32.mrb[0].mxu0
      %v746 = vadd.f32 0.0, %v745
      %747 = vmatprep.mubr.f32.mxu0 0.0
      %748 = vmatmul.mubr.f32.gmra.mrb[0].mxu0 %v557
      %v749 = vpop.f32.mrb[0].mxu0
      %v750 = vadd.f32 0.0, %v749
      %v751 = vpop.f32.mrb[0].mxu0
      %v752 = vadd.f32 0.0, %v751
      %753 = vdwg.mxu0
      %754 = vmatprep.subr.mxu0 %v570
      %755 = vmatpush1.msra.mxu0 %v568
      %756 = vmatprep.subr.mxu0 0.0
      %757 = vmatpush1.msra.mxu0 0.0
      %758 = vmatprep.subr.mxu0 0.0
      %759 = vmatpush1.msra.mxu0 0.0
      %760 = vmatprep.subr.mxu0 0.0
      %761 = vmatpush1.msra.mxu0 0.0
      %762 = vmatprep.subr.mxu0 0.0
      %763 = vmatpush1.msra.mxu0 0.0
      %764 = vmatprep.subr.mxu0 0.0
      %765 = vmatpush1.msra.mxu0 0.0
      %766 = vmatprep.subr.mxu0 0.0
      %767 = vmatpush1.msra.mxu0 0.0
      %768 = vmatprep.subr.mxu0 0.0
      %769 = vmatpush1.msra.mxu0 0.0
      %770 = vmatprep.subr.mxu0 0.0
      %771 = vmatpush1.msra.mxu0 0.0
      %772 = vmatprep.subr.mxu0 0.0
      %773 = vmatpush1.msra.mxu0 0.0
      %774 = vmatprep.subr.mxu0 0.0
      %775 = vmatpush1.msra.mxu0 0.0
      %776 = vmatprep.subr.mxu0 0.0
      %777 = vmatpush1.msra.mxu0 0.0
      %778 = vmatprep.subr.mxu0 0.0
      %779 = vmatpush1.msra.mxu0 0.0
      %780 = vmatprep.subr.mxu0 0.0
      %781 = vmatpush1.msra.mxu0 0.0
      %782 = vmatprep.subr.mxu0 0.0
      %783 = vmatpush1.msra.mxu0 0.0
      %784 = vmatprep.subr.mxu0 0.0
      %785 = vmatpush1.msra.mxu0 0.0
      %786 = vmatprep.subr.mxu0 0.0
      %787 = vmatpush1.msra.mxu0 0.0
      %788 = vmatprep.subr.mxu0 0.0
      %789 = vmatpush1.msra.mxu0 0.0
      %790 = vmatprep.subr.mxu0 0.0
      %791 = vmatpush1.msra.mxu0 0.0
      %792 = vmatprep.subr.mxu0 0.0
      %793 = vmatpush1.msra.mxu0 0.0
      %794 = vmatprep.subr.mxu0 0.0
      %795 = vmatpush1.msra.mxu0 0.0
      %796 = vmatprep.subr.mxu0 0.0
      %797 = vmatpush1.msra.mxu0 0.0
      %798 = vmatprep.subr.mxu0 0.0
      %799 = vmatpush1.msra.mxu0 0.0
      %800 = vmatprep.subr.mxu0 0.0
      %801 = vmatpush1.msra.mxu0 0.0
      %802 = vmatprep.subr.mxu0 0.0
      %803 = vmatpush1.msra.mxu0 0.0
      %804 = vmatprep.subr.mxu0 0.0
      %805 = vmatpush1.msra.mxu0 0.0
      %806 = vmatprep.subr.mxu0 0.0
      %807 = vmatpush1.msra.mxu0 0.0
      %808 = vmatprep.subr.mxu0 0.0
      %809 = vmatpush1.msra.mxu0 0.0
      %810 = vmatprep.subr.mxu0 0.0
      %811 = vmatpush1.msra.mxu0 0.0
      %812 = vmatprep.subr.mxu0 0.0
      %813 = vmatpush1.msra.mxu0 0.0
      %814 = vmatprep.subr.mxu0 0.0
      %815 = vmatpush1.msra.mxu0 0.0
      %816 = vmatprep.subr.mxu0 0.0
      %817 = vmatpush1.msra.mxu0 0.0
      %818 = vmatprep.mubr.f32.mxu0 0.0
      %819 = vmatmul.mubr.f32.gmra.mrb[0].mxu0 %v548
      %v820 = vpop.f32.mrb[0].mxu0
      %v821 = vadd.f32 0.0, %v820
      %v822 = vpop.f32.mrb[0].mxu0
      %v823 = vadd.f32 0.0, %v822
      %824 = vmatprep.mubr.f32.mxu0 0.0
      %825 = vmatmul.mubr.f32.gmra.mrb[0].mxu0 %v551
      %v826 = vpop.f32.mrb[0].mxu0
      %v827 = vadd.f32 0.0, %v826
      %v828 = vpop.f32.mrb[0].mxu0
      %v829 = vadd.f32 0.0, %v828
      %830 = vmatprep.mubr.f32.mxu0 0.0
      %831 = vmatmul.mubr.f32.gmra.mrb[0].mxu0 %v554
      %v832 = vpop.f32.mrb[0].mxu0
      %v833 = vadd.f32 0.0, %v832
      %v834 = vpop.f32.mrb[0].mxu0
      %v835 = vadd.f32 0.0, %v834
      %836 = vmatprep.mubr.f32.mxu0 0.0
      %837 = vmatmul.mubr.f32.gmra.mrb[0].mxu0 %v557
      %v838 = vpop.f32.mrb[0].mxu0
      %v839 = vadd.f32 0.0, %v838
      %v840 = vpop.f32.mrb[0].mxu0
      %v841 = vadd.f32 0.0, %v840
      %842 = vdwg.mxu0
      %843 = vmatprep.subr.mxu0 %v574
      %844 = vmatpush1.msra.mxu0 %v572
      %845 = vmatprep.subr.mxu0 0.0
      %846 = vmatpush1.msra.mxu0 0.0
      %847 = vmatprep.subr.mxu0 0.0
      %848 = vmatpush1.msra.mxu0 0.0
      %849 = vmatprep.subr.mxu0 0.0
      %850 = vmatpush1.msra.mxu0 0.0
      %851 = vmatprep.subr.mxu0 0.0
      %852 = vmatpush1.msra.mxu0 0.0
      %853 = vmatprep.subr.mxu0 0.0
      %854 = vmatpush1.msra.mxu0 0.0
      %855 = vmatprep.subr.mxu0 0.0
      %856 = vmatpush1.msra.mxu0 0.0
      %857 = vmatprep.subr.mxu0 0.0
      %858 = vmatpush1.msra.mxu0 0.0
      %859 = vmatprep.subr.mxu0 0.0
      %860 = vmatpush1.msra.mxu0 0.0
      %861 = vmatprep.subr.mxu0 0.0
      %862 = vmatpush1.msra.mxu0 0.0
      %863 = vmatprep.subr.mxu0 0.0
      %864 = vmatpush1.msra.mxu0 0.0
      %865 = vmatprep.subr.mxu0 0.0
      %866 = vmatpush1.msra.mxu0 0.0
      %867 = vmatprep.subr.mxu0 0.0
      %868 = vmatpush1.msra.mxu0 0.0
      %869 = vmatprep.subr.mxu0 0.0
      %870 = vmatpush1.msra.mxu0 0.0
      %871 = vmatprep.subr.mxu0 0.0
      %872 = vmatpush1.msra.mxu0 0.0
      %873 = vmatprep.subr.mxu0 0.0
      %874 = vmatpush1.msra.mxu0 0.0
      %875 = vmatprep.subr.mxu0 0.0
      %876 = vmatpush1.msra.mxu0 0.0
      %877 = vmatprep.subr.mxu0 0.0
      %878 = vmatpush1.msra.mxu0 0.0
      %879 = vmatprep.subr.mxu0 0.0
      %880 = vmatpush1.msra.mxu0 0.0
      %881 = vmatprep.subr.mxu0 0.0
      %882 = vmatpush1.msra.mxu0 0.0
      %883 = vmatprep.subr.mxu0 0.0
      %884 = vmatpush1.msra.mxu0 0.0
      %885 = vmatprep.subr.mxu0 0.0
      %886 = vmatpush1.msra.mxu0 0.0
      %887 = vmatprep.subr.mxu0 0.0
      %888 = vmatpush1.msra.mxu0 0.0
      %889 = vmatprep.subr.mxu0 0.0
      %890 = vmatpush1.msra.mxu0 0.0
      %891 = vmatprep.subr.mxu0 0.0
      %892 = vmatpush1.msra.mxu0 0.0
      %893 = vmatprep.subr.mxu0 0.0
      %894 = vmatpush1.msra.mxu0 0.0
      %895 = vmatprep.subr.mxu0 0.0
      %896 = vmatpush1.msra.mxu0 0.0
      %897 = vmatprep.subr.mxu0 0.0
      %898 = vmatpush1.msra.mxu0 0.0
      %899 = vmatprep.subr.mxu0 0.0
      %900 = vmatpush1.msra.mxu0 0.0
      %901 = vmatprep.subr.mxu0 0.0
      %902 = vmatpush1.msra.mxu0 0.0
      %903 = vmatprep.subr.mxu0 0.0
      %904 = vmatpush1.msra.mxu0 0.0
      %905 = vmatprep.subr.mxu0 0.0
      %906 = vmatpush1.msra.mxu0 0.0
      %907 = vmatprep.mubr.f32.mxu0 0.0
      %908 = vmatmul.mubr.f32.gmra.mrb[0].mxu0 %v548
      %v909 = vpop.f32.mrb[0].mxu0
      %v910 = vadd.f32 0.0, %v909
      %v911 = vpop.f32.mrb[0].mxu0
      %v912 = vadd.f32 0.0, %v911
      %913 = vmatprep.mubr.f32.mxu0 0.0
      %914 = vmatmul.mubr.f32.gmra.mrb[0].mxu0 %v551
      %v915 = vpop.f32.mrb[0].mxu0
      %v916 = vadd.f32 0.0, %v915
      %v917 = vpop.f32.mrb[0].mxu0
      %v918 = vadd.f32 0.0, %v917
      %919 = vmatprep.mubr.f32.mxu0 0.0
      %920 = vmatmul.mubr.f32.gmra.mrb[0].mxu0 %v554
      %v921 = vpop.f32.mrb[0].mxu0
      %v922 = vadd.f32 0.0, %v921
      %v923 = vpop.f32.mrb[0].mxu0
      %v924 = vadd.f32 0.0, %v923
      %925 = vmatprep.mubr.f32.mxu0 0.0
      %926 = vmatmul.mubr.f32.gmra.mrb[0].mxu0 %v557
      %v927 = vpop.f32.mrb[0].mxu0
      %v928 = vadd.f32 0.0, %v927
      %v929 = vpop.f32.mrb[0].mxu0
      %v930 = vadd.f32 0.0, %v929
      %931 = vdwg.mxu0
      %vm932 = vcmp.ge.f32.partialorder %v643, 0.0
      %vm933 = vcmp.ge.f32.partialorder %v645, 0.0
      %vm934 = vcmp.ge.f32.partialorder %v732, 0.0
      %vm935 = vcmp.ge.f32.partialorder %v734, 0.0
      %vm936 = vcmp.ge.f32.partialorder %v821, 0.0
      %vm937 = vcmp.ge.f32.partialorder %v823, 0.0
      %vm938 = vcmp.ge.f32.partialorder %v910, 0.0
      %vm939 = vcmp.ge.f32.partialorder %v912, 0.0
      %vm940 = vcmp.ge.f32.partialorder %v649, 0.0
      %vm941 = vcmp.ge.f32.partialorder %v651, 0.0
      %vm942 = vcmp.ge.f32.partialorder %v738, 0.0
      %vm943 = vcmp.ge.f32.partialorder %v740, 0.0
      %vm944 = vcmp.ge.f32.partialorder %v827, 0.0
      %vm945 = vcmp.ge.f32.partialorder %v829, 0.0
      %vm946 = vcmp.ge.f32.partialorder %v916, 0.0
      %vm947 = vcmp.ge.f32.partialorder %v918, 0.0
      %vm948 = vcmp.ge.f32.partialorder %v655, 0.0
      %vm949 = vcmp.ge.f32.partialorder %v657, 0.0
      %vm950 = vcmp.ge.f32.partialorder %v744, 0.0
      %vm951 = vcmp.ge.f32.partialorder %v746, 0.0
      %vm952 = vcmp.ge.f32.partialorder %v833, 0.0
      %vm953 = vcmp.ge.f32.partialorder %v835, 0.0
      %vm954 = vcmp.ge.f32.partialorder %v922, 0.0
      %vm955 = vcmp.ge.f32.partialorder %v924, 0.0
      %vm956 = vcmp.ge.f32.partialorder %v661, 0.0
      %vm957 = vcmp.ge.f32.partialorder %v663, 0.0
      %vm958 = vcmp.ge.f32.partialorder %v750, 0.0
      %vm959 = vcmp.ge.f32.partialorder %v752, 0.0
      %vm960 = vcmp.ge.f32.partialorder %v839, 0.0
      %vm961 = vcmp.ge.f32.partialorder %v841, 0.0
      %vm962 = vcmp.ge.f32.partialorder %v928, 0.0
      %vm963 = vcmp.ge.f32.partialorder %v930, 0.0
      %v964 = vmul.f32 %v643, 0.01
      %v965 = vmul.f32 %v645, 0.01
      %v966 = vmul.f32 %v732, 0.01
      %v967 = vmul.f32 %v734, 0.01
      %v968 = vmul.f32 %v821, 0.01
      %v969 = vmul.f32 %v823, 0.01
      %v970 = vmul.f32 %v910, 0.01
      %v971 = vmul.f32 %v912, 0.01
      %v972 = vmul.f32 %v649, 0.01
      %v973 = vmul.f32 %v651, 0.01
      %v974 = vmul.f32 %v738, 0.01
      %v975 = vmul.f32 %v740, 0.01
      %v976 = vmul.f32 %v827, 0.01
      %v977 = vmul.f32 %v829, 0.01
      %v978 = vmul.f32 %v916, 0.01
      %v979 = vmul.f32 %v918, 0.01
      %v980 = vmul.f32 %v655, 0.01
      %v981 = vmul.f32 %v657, 0.01
      %v982 = vmul.f32 %v744, 0.01
      %v983 = vmul.f32 %v746, 0.01
      %v984 = vmul.f32 %v833, 0.01
      %v985 = vmul.f32 %v835, 0.01
      %v986 = vmul.f32 %v922, 0.01
      %v987 = vmul.f32 %v924, 0.01
      %v988 = vmul.f32 %v661, 0.01
      %v989 = vmul.f32 %v663, 0.01
      %v990 = vmul.f32 %v750, 0.01
      %v991 = vmul.f32 %v752, 0.01
      %v992 = vmul.f32 %v839, 0.01
      %v993 = vmul.f32 %v841, 0.01
      %v994 = vmul.f32 %v928, 0.01
      %v995 = vmul.f32 %v930, 0.01
      %v996 = vsel %vm932, %v643, %v964
      %v997 = vsel %vm933, %v645, %v965
      %v998 = vsel %vm934, %v732, %v966
      %v999 = vsel %vm935, %v734, %v967
      %v1000 = vsel %vm936, %v821, %v968
      %v1001 = vsel %vm937, %v823, %v969
      %v1002 = vsel %vm938, %v910, %v970
      %v1003 = vsel %vm939, %v912, %v971
      %v1004 = vsel %vm940, %v649, %v972
      %v1005 = vsel %vm941, %v651, %v973
      %v1006 = vsel %vm942, %v738, %v974
      %v1007 = vsel %vm943, %v740, %v975
      %v1008 = vsel %vm944, %v827, %v976
      %v1009 = vsel %vm945, %v829, %v977
      %v1010 = vsel %vm946, %v916, %v978
      %v1011 = vsel %vm947, %v918, %v979
      %v1012 = vsel %vm948, %v655, %v980
      %v1013 = vsel %vm949, %v657, %v981
      %v1014 = vsel %vm950, %v744, %v982
      %v1015 = vsel %vm951, %v746, %v983
      %v1016 = vsel %vm952, %v833, %v984
      %v1017 = vsel %vm953, %v835, %v985
      %v1018 = vsel %vm954, %v922, %v986
      %v1019 = vsel %vm955, %v924, %v987
      %v1020 = vsel %vm956, %v661, %v988
      %v1021 = vsel %vm957, %v663, %v989
      %v1022 = vsel %vm958, %v750, %v990
      %v1023 = vsel %vm959, %v752, %v991
      %v1024 = vsel %vm960, %v839, %v992
      %v1025 = vsel %vm961, %v841, %v993
      %v1026 = vsel %vm962, %v928, %v994
      %v1027 = vsel %vm963, %v930, %v995
      %vm1028 = vcmp.ge.f32.partialorder %v502, 0.0
      %vm1029 = vcmp.ge.f32.partialorder %v503, 0.0
      %vm1030 = vcmp.ge.f32.partialorder %v504, 0.0
      %vm1031 = vcmp.ge.f32.partialorder %v505, 0.0
      %vm1032 = vcmp.ge.f32.partialorder %v506, 0.0
      %vm1033 = vcmp.ge.f32.partialorder %v507, 0.0
      %vm1034 = vcmp.ge.f32.partialorder %v508, 0.0
      %vm1035 = vcmp.ge.f32.partialorder %v509, 0.0
      %vm1036 = vcmp.ge.f32.partialorder %v510, 0.0
      %vm1037 = vcmp.ge.f32.partialorder %v511, 0.0
      %vm1038 = vcmp.ge.f32.partialorder %v512, 0.0
      %vm1039 = vcmp.ge.f32.partialorder %v513, 0.0
      %vm1040 = vcmp.ge.f32.partialorder %v514, 0.0
      %vm1041 = vcmp.ge.f32.partialorder %v515, 0.0
      %vm1042 = vcmp.ge.f32.partialorder %v516, 0.0
      %vm1043 = vcmp.ge.f32.partialorder %v517, 0.0
      %vm1044 = vcmp.ge.f32.partialorder %v518, 0.0
      %vm1045 = vcmp.ge.f32.partialorder %v519, 0.0
      %vm1046 = vcmp.ge.f32.partialorder %v520, 0.0
      %vm1047 = vcmp.ge.f32.partialorder %v521, 0.0
      %vm1048 = vcmp.ge.f32.partialorder %v522, 0.0
      %vm1049 = vcmp.ge.f32.partialorder %v523, 0.0
      %vm1050 = vcmp.ge.f32.partialorder %v524, 0.0
      %vm1051 = vcmp.ge.f32.partialorder %v525, 0.0
      %vm1052 = vcmp.ge.f32.partialorder %v526, 0.0
      %vm1053 = vcmp.ge.f32.partialorder %v527, 0.0
      %vm1054 = vcmp.ge.f32.partialorder %v528, 0.0
      %vm1055 = vcmp.ge.f32.partialorder %v529, 0.0
      %vm1056 = vcmp.ge.f32.partialorder %v530, 0.0
      %vm1057 = vcmp.ge.f32.partialorder %v531, 0.0
      %vm1058 = vcmp.ge.f32.partialorder %v532, 0.0
      %vm1059 = vcmp.ge.f32.partialorder %v533, 0.0
      %v1060 = vmul.f32 %v502, 0.01
      %v1061 = vmul.f32 %v503, 0.01
      %v1062 = vmul.f32 %v504, 0.01
      %v1063 = vmul.f32 %v505, 0.01
      %v1064 = vmul.f32 %v506, 0.01
      %v1065 = vmul.f32 %v507, 0.01
      %v1066 = vmul.f32 %v508, 0.01
      %v1067 = vmul.f32 %v509, 0.01
      %v1068 = vmul.f32 %v510, 0.01
      %v1069 = vmul.f32 %v511, 0.01
      %v1070 = vmul.f32 %v512, 0.01
      %v1071 = vmul.f32 %v513, 0.01
      %v1072 = vmul.f32 %v514, 0.01
      %v1073 = vmul.f32 %v515, 0.01
      %v1074 = vmul.f32 %v516, 0.01
      %v1075 = vmul.f32 %v517, 0.01
      %v1076 = vmul.f32 %v518, 0.01
      %v1077 = vmul.f32 %v519, 0.01
      %v1078 = vmul.f32 %v520, 0.01
      %v1079 = vmul.f32 %v521, 0.01
      %v1080 = vmul.f32 %v522, 0.01
      %v1081 = vmul.f32 %v523, 0.01
      %v1082 = vmul.f32 %v524, 0.01
      %v1083 = vmul.f32 %v525, 0.01
      %v1084 = vmul.f32 %v526, 0.01
      %v1085 = vmul.f32 %v527, 0.01
      %v1086 = vmul.f32 %v528, 0.01
      %v1087 = vmul.f32 %v529, 0.01
      %v1088 = vmul.f32 %v530, 0.01
      %v1089 = vmul.f32 %v531, 0.01
      %v1090 = vmul.f32 %v532, 0.01
      %v1091 = vmul.f32 %v533, 0.01
      %v1092 = vsel %vm1028, %v502, %v1060
      %v1093 = vsel %vm1029, %v503, %v1061
      %v1094 = vsel %vm1030, %v504, %v1062
      %v1095 = vsel %vm1031, %v505, %v1063
      %v1096 = vsel %vm1032, %v506, %v1064
      %v1097 = vsel %vm1033, %v507, %v1065
      %v1098 = vsel %vm1034, %v508, %v1066
      %v1099 = vsel %vm1035, %v509, %v1067
      %v1100 = vsel %vm1036, %v510, %v1068
      %v1101 = vsel %vm1037, %v511, %v1069
      %v1102 = vsel %vm1038, %v512, %v1070
      %v1103 = vsel %vm1039, %v513, %v1071
      %v1104 = vsel %vm1040, %v514, %v1072
      %v1105 = vsel %vm1041, %v515, %v1073
      %v1106 = vsel %vm1042, %v516, %v1074
      %v1107 = vsel %vm1043, %v517, %v1075
      %v1108 = vsel %vm1044, %v518, %v1076
      %v1109 = vsel %vm1045, %v519, %v1077
      %v1110 = vsel %vm1046, %v520, %v1078
      %v1111 = vsel %vm1047, %v521, %v1079
      %v1112 = vsel %vm1048, %v522, %v1080
      %v1113 = vsel %vm1049, %v523, %v1081
      %v1114 = vsel %vm1050, %v524, %v1082
      %v1115 = vsel %vm1051, %v525, %v1083
      %v1116 = vsel %vm1052, %v526, %v1084
      %v1117 = vsel %vm1053, %v527, %v1085
      %v1118 = vsel %vm1054, %v528, %v1086
      %v1119 = vsel %vm1055, %v529, %v1087
      %v1120 = vsel %vm1056, %v530, %v1088
      %v1121 = vsel %vm1057, %v531, %v1089
      %v1122 = vsel %vm1058, %v532, %v1090
      %v1123 = vsel %vm1059, %v533, %v1091
      %v1124 = vld [vmem:[%s5] sm:$0xff]
      %v1125 = vld [vmem:[%s5 + $0x8] sm:$0xff]
      %v1126 = vld [vmem:[%s5 + $0x10] sm:$0xff]
      %v1127 = vld [vmem:[%s5 + $0x18] sm:$0xff]
      %v1128 = vld [vmem:[%s6] sm:$0xff]
      %v1129 = vld [vmem:[%s6 + $0x8] sm:$0xff]
      %v1130 = vld [vmem:[%s6 + $0x10] sm:$0xff]
      %v1131 = vld [vmem:[%s6 + $0x18] sm:$0xff]
      %vm1132 = vcmask 261120
      %v1134 = vsel %vm1132, %v1128, 0
      %v1137 = vsel %vm1132, %v1129, 0
      %v1140 = vsel %vm1132, %v1130, 0
      %v1143 = vsel %vm1132, %v1131, 0
      %1145 = vmatprep.subr.mxu0 %v1093
      %1146 = vmatpush1.msra.mxu0 %v1092
      %1147 = vmatprep.subr.mxu0 %v1101
      %1148 = vmatpush1.msra.mxu0 %v1100
      %1149 = vmatprep.subr.mxu0 %v1109
      %1150 = vmatpush1.msra.mxu0 %v1108
      %1151 = vmatprep.subr.mxu0 %v1117
      %1152 = vmatpush1.msra.mxu0 %v1116
      %1153 = vmatprep.subr.mxu0 0.0
      %1154 = vmatpush1.msra.mxu0 0.0
      %1155 = vmatprep.subr.mxu0 0.0
      %1156 = vmatpush1.msra.mxu0 0.0
      %1157 = vmatprep.subr.mxu0 0.0
      %1158 = vmatpush1.msra.mxu0 0.0
      %1159 = vmatprep.subr.mxu0 0.0
      %1160 = vmatpush1.msra.mxu0 0.0
      %1161 = vmatprep.subr.mxu0 0.0
      %1162 = vmatpush1.msra.mxu0 0.0
      %1163 = vmatprep.subr.mxu0 0.0
      %1164 = vmatpush1.msra.mxu0 0.0
      %1165 = vmatprep.subr.mxu0 0.0
      %1166 = vmatpush1.msra.mxu0 0.0
      %1167 = vmatprep.subr.mxu0 0.0
      %1168 = vmatpush1.msra.mxu0 0.0
      %1169 = vmatprep.subr.mxu0 0.0
      %1170 = vmatpush1.msra.mxu0 0.0
      %1171 = vmatprep.subr.mxu0 0.0
      %1172 = vmatpush1.msra.mxu0 0.0
      %1173 = vmatprep.subr.mxu0 0.0
      %1174 = vmatpush1.msra.mxu0 0.0
      %1175 = vmatprep.subr.mxu0 0.0
      %1176 = vmatpush1.msra.mxu0 0.0
      %1177 = vmatprep.subr.mxu0 0.0
      %1178 = vmatpush1.msra.mxu0 0.0
      %1179 = vmatprep.subr.mxu0 0.0
      %1180 = vmatpush1.msra.mxu0 0.0
      %1181 = vmatprep.subr.mxu0 0.0
      %1182 = vmatpush1.msra.mxu0 0.0
      %1183 = vmatprep.subr.mxu0 0.0
      %1184 = vmatpush1.msra.mxu0 0.0
      %1185 = vmatprep.subr.mxu0 0.0
      %1186 = vmatpush1.msra.mxu0 0.0
      %1187 = vmatprep.subr.mxu0 0.0
      %1188 = vmatpush1.msra.mxu0 0.0
      %1189 = vmatprep.subr.mxu0 0.0
      %1190 = vmatpush1.msra.mxu0 0.0
      %1191 = vmatprep.subr.mxu0 0.0
      %1192 = vmatpush1.msra.mxu0 0.0
      %1193 = vmatprep.subr.mxu0 0.0
      %1194 = vmatpush1.msra.mxu0 0.0
      %1195 = vmatprep.subr.mxu0 0.0
      %1196 = vmatpush1.msra.mxu0 0.0
      %1197 = vmatprep.subr.mxu0 0.0
      %1198 = vmatpush1.msra.mxu0 0.0
      %1199 = vmatprep.subr.mxu0 0.0
      %1200 = vmatpush1.msra.mxu0 0.0
      %1201 = vmatprep.subr.mxu0 0.0
      %1202 = vmatpush1.msra.mxu0 0.0
      %1203 = vmatprep.subr.mxu0 0.0
      %1204 = vmatpush1.msra.mxu0 0.0
      %1205 = vmatprep.subr.mxu0 0.0
      %1206 = vmatpush1.msra.mxu0 0.0
      %1207 = vmatprep.subr.mxu0 0.0
      %1208 = vmatpush1.msra.mxu0 0.0
      %1209 = vmatprep.mubr.f32.mxu0 0.0
      %1210 = vmatmul.mubr.f32.gmra.mrb[0].mxu0 %v1134
      %v1211 = vpop.f32.mrb[0].mxu0
      %v1212 = vadd.f32 0.0, %v1211
      %v1213 = vpop.f32.mrb[0].mxu0
      %v1214 = vadd.f32 0.0, %v1213
      %1215 = vmatprep.mubr.f32.mxu0 0.0
      %1216 = vmatmul.mubr.f32.gmra.mrb[0].mxu0 %v1137
      %v1217 = vpop.f32.mrb[0].mxu0
      %v1218 = vadd.f32 0.0, %v1217
      %v1219 = vpop.f32.mrb[0].mxu0
      %v1220 = vadd.f32 0.0, %v1219
      %1221 = vmatprep.mubr.f32.mxu0 0.0
      %1222 = vmatmul.mubr.f32.gmra.mrb[0].mxu0 %v1140
      %v1223 = vpop.f32.mrb[0].mxu0
      %v1224 = vadd.f32 0.0, %v1223
      %v1225 = vpop.f32.mrb[0].mxu0
      %v1226 = vadd.f32 0.0, %v1225
      %1227 = vmatprep.mubr.f32.mxu0 0.0
      %1228 = vmatmul.mubr.f32.gmra.mrb[0].mxu0 %v1143
      %v1229 = vpop.f32.mrb[0].mxu0
      %v1230 = vadd.f32 0.0, %v1229
      %v1231 = vpop.f32.mrb[0].mxu0
      %v1232 = vadd.f32 0.0, %v1231
      %1233 = vdwg.mxu0
      %1234 = vmatprep.subr.mxu0 %v1095
      %1235 = vmatpush1.msra.mxu0 %v1094
      %1236 = vmatprep.subr.mxu0 %v1103
      %1237 = vmatpush1.msra.mxu0 %v1102
      %1238 = vmatprep.subr.mxu0 %v1111
      %1239 = vmatpush1.msra.mxu0 %v1110
      %1240 = vmatprep.subr.mxu0 %v1119
      %1241 = vmatpush1.msra.mxu0 %v1118
      %1242 = vmatprep.subr.mxu0 0.0
      %1243 = vmatpush1.msra.mxu0 0.0
      %1244 = vmatprep.subr.mxu0 0.0
      %1245 = vmatpush1.msra.mxu0 0.0
      %1246 = vmatprep.subr.mxu0 0.0
      %1247 = vmatpush1.msra.mxu0 0.0
      %1248 = vmatprep.subr.mxu0 0.0
      %1249 = vmatpush1.msra.mxu0 0.0
      %1250 = vmatprep.subr.mxu0 0.0
      %1251 = vmatpush1.msra.mxu0 0.0
      %1252 = vmatprep.subr.mxu0 0.0
      %1253 = vmatpush1.msra.mxu0 0.0
      %1254 = vmatprep.subr.mxu0 0.0
      %1255 = vmatpush1.msra.mxu0 0.0
      %1256 = vmatprep.subr.mxu0 0.0
      %1257 = vmatpush1.msra.mxu0 0.0
      %1258 = vmatprep.subr.mxu0 0.0
      %1259 = vmatpush1.msra.mxu0 0.0
      %1260 = vmatprep.subr.mxu0 0.0
      %1261 = vmatpush1.msra.mxu0 0.0
      %1262 = vmatprep.subr.mxu0 0.0
      %1263 = vmatpush1.msra.mxu0 0.0
      %1264 = vmatprep.subr.mxu0 0.0
      %1265 = vmatpush1.msra.mxu0 0.0
      %1266 = vmatprep.subr.mxu0 0.0
      %1267 = vmatpush1.msra.mxu0 0.0
      %1268 = vmatprep.subr.mxu0 0.0
      %1269 = vmatpush1.msra.mxu0 0.0
      %1270 = vmatprep.subr.mxu0 0.0
      %1271 = vmatpush1.msra.mxu0 0.0
      %1272 = vmatprep.subr.mxu0 0.0
      %1273 = vmatpush1.msra.mxu0 0.0
      %1274 = vmatprep.subr.mxu0 0.0
      %1275 = vmatpush1.msra.mxu0 0.0
      %1276 = vmatprep.subr.mxu0 0.0
      %1277 = vmatpush1.msra.mxu0 0.0
      %1278 = vmatprep.subr.mxu0 0.0
      %1279 = vmatpush1.msra.mxu0 0.0
      %1280 = vmatprep.subr.mxu0 0.0
      %1281 = vmatpush1.msra.mxu0 0.0
      %1282 = vmatprep.subr.mxu0 0.0
      %1283 = vmatpush1.msra.mxu0 0.0
      %1284 = vmatprep.subr.mxu0 0.0
      %1285 = vmatpush1.msra.mxu0 0.0
      %1286 = vmatprep.subr.mxu0 0.0
      %1287 = vmatpush1.msra.mxu0 0.0
      %1288 = vmatprep.subr.mxu0 0.0
      %1289 = vmatpush1.msra.mxu0 0.0
      %1290 = vmatprep.subr.mxu0 0.0
      %1291 = vmatpush1.msra.mxu0 0.0
      %1292 = vmatprep.subr.mxu0 0.0
      %1293 = vmatpush1.msra.mxu0 0.0
      %1294 = vmatprep.subr.mxu0 0.0
      %1295 = vmatpush1.msra.mxu0 0.0
      %1296 = vmatprep.subr.mxu0 0.0
      %1297 = vmatpush1.msra.mxu0 0.0
      %1298 = vmatprep.mubr.f32.mxu0 0.0
      %1299 = vmatmul.mubr.f32.gmra.mrb[0].mxu0 %v1134
      %v1300 = vpop.f32.mrb[0].mxu0
      %v1301 = vadd.f32 0.0, %v1300
      %v1302 = vpop.f32.mrb[0].mxu0
      %v1303 = vadd.f32 0.0, %v1302
      %1304 = vmatprep.mubr.f32.mxu0 0.0
      %1305 = vmatmul.mubr.f32.gmra.mrb[0].mxu0 %v1137
      %v1306 = vpop.f32.mrb[0].mxu0
      %v1307 = vadd.f32 0.0, %v1306
      %v1308 = vpop.f32.mrb[0].mxu0
      %v1309 = vadd.f32 0.0, %v1308
      %1310 = vmatprep.mubr.f32.mxu0 0.0
      %1311 = vmatmul.mubr.f32.gmra.mrb[0].mxu0 %v1140
      %v1312 = vpop.f32.mrb[0].mxu0
      %v1313 = vadd.f32 0.0, %v1312
      %v1314 = vpop.f32.mrb[0].mxu0
      %v1315 = vadd.f32 0.0, %v1314
      %1316 = vmatprep.mubr.f32.mxu0 0.0
      %1317 = vmatmul.mubr.f32.gmra.mrb[0].mxu0 %v1143
      %v1318 = vpop.f32.mrb[0].mxu0
      %v1319 = vadd.f32 0.0, %v1318
      %v1320 = vpop.f32.mrb[0].mxu0
      %v1321 = vadd.f32 0.0, %v1320
      %1322 = vdwg.mxu0
      %1323 = vmatprep.subr.mxu0 %v1097
      %1324 = vmatpush1.msra.mxu0 %v1096
      %1325 = vmatprep.subr.mxu0 %v1105
      %1326 = vmatpush1.msra.mxu0 %v1104
      %1327 = vmatprep.subr.mxu0 %v1113
      %1328 = vmatpush1.msra.mxu0 %v1112
      %1329 = vmatprep.subr.mxu0 %v1121
      %1330 = vmatpush1.msra.mxu0 %v1120
      %1331 = vmatprep.subr.mxu0 0.0
      %1332 = vmatpush1.msra.mxu0 0.0
      %1333 = vmatprep.subr.mxu0 0.0
      %1334 = vmatpush1.msra.mxu0 0.0
      %1335 = vmatprep.subr.mxu0 0.0
      %1336 = vmatpush1.msra.mxu0 0.0
      %1337 = vmatprep.subr.mxu0 0.0
      %1338 = vmatpush1.msra.mxu0 0.0
      %1339 = vmatprep.subr.mxu0 0.0
      %1340 = vmatpush1.msra.mxu0 0.0
      %1341 = vmatprep.subr.mxu0 0.0
      %1342 = vmatpush1.msra.mxu0 0.0
      %1343 = vmatprep.subr.mxu0 0.0
      %1344 = vmatpush1.msra.mxu0 0.0
      %1345 = vmatprep.subr.mxu0 0.0
      %1346 = vmatpush1.msra.mxu0 0.0
      %1347 = vmatprep.subr.mxu0 0.0
      %1348 = vmatpush1.msra.mxu0 0.0
      %1349 = vmatprep.subr.mxu0 0.0
      %1350 = vmatpush1.msra.mxu0 0.0
      %1351 = vmatprep.subr.mxu0 0.0
      %1352 = vmatpush1.msra.mxu0 0.0
      %1353 = vmatprep.subr.mxu0 0.0
      %1354 = vmatpush1.msra.mxu0 0.0
      %1355 = vmatprep.subr.mxu0 0.0
      %1356 = vmatpush1.msra.mxu0 0.0
      %1357 = vmatprep.subr.mxu0 0.0
      %1358 = vmatpush1.msra.mxu0 0.0
      %1359 = vmatprep.subr.mxu0 0.0
      %1360 = vmatpush1.msra.mxu0 0.0
      %1361 = vmatprep.subr.mxu0 0.0
      %1362 = vmatpush1.msra.mxu0 0.0
      %1363 = vmatprep.subr.mxu0 0.0
      %1364 = vmatpush1.msra.mxu0 0.0
      %1365 = vmatprep.subr.mxu0 0.0
      %1366 = vmatpush1.msra.mxu0 0.0
      %1367 = vmatprep.subr.mxu0 0.0
      %1368 = vmatpush1.msra.mxu0 0.0
      %1369 = vmatprep.subr.mxu0 0.0
      %1370 = vmatpush1.msra.mxu0 0.0
      %1371 = vmatprep.subr.mxu0 0.0
      %1372 = vmatpush1.msra.mxu0 0.0
      %1373 = vmatprep.subr.mxu0 0.0
      %1374 = vmatpush1.msra.mxu0 0.0
      %1375 = vmatprep.subr.mxu0 0.0
      %1376 = vmatpush1.msra.mxu0 0.0
      %1377 = vmatprep.subr.mxu0 0.0
      %1378 = vmatpush1.msra.mxu0 0.0
      %1379 = vmatprep.subr.mxu0 0.0
      %1380 = vmatpush1.msra.mxu0 0.0
      %1381 = vmatprep.subr.mxu0 0.0
      %1382 = vmatpush1.msra.mxu0 0.0
      %1383 = vmatprep.subr.mxu0 0.0
      %1384 = vmatpush1.msra.mxu0 0.0
      %1385 = vmatprep.subr.mxu0 0.0
      %1386 = vmatpush1.msra.mxu0 0.0
      %1387 = vmatprep.mubr.f32.mxu0 0.0
      %1388 = vmatmul.mubr.f32.gmra.mrb[0].mxu0 %v1134
      %v1389 = vpop.f32.mrb[0].mxu0
      %v1390 = vadd.f32 0.0, %v1389
      %v1391 = vpop.f32.mrb[0].mxu0
      %v1392 = vadd.f32 0.0, %v1391
      %1393 = vmatprep.mubr.f32.mxu0 0.0
      %1394 = vmatmul.mubr.f32.gmra.mrb[0].mxu0 %v1137
      %v1395 = vpop.f32.mrb[0].mxu0
      %v1396 = vadd.f32 0.0, %v1395
      %v1397 = vpop.f32.mrb[0].mxu0
      %v1398 = vadd.f32 0.0, %v1397
      %1399 = vmatprep.mubr.f32.mxu0 0.0
      %1400 = vmatmul.mubr.f32.gmra.mrb[0].mxu0 %v1140
      %v1401 = vpop.f32.mrb[0].mxu0
      %v1402 = vadd.f32 0.0, %v1401
      %v1403 = vpop.f32.mrb[0].mxu0
      %v1404 = vadd.f32 0.0, %v1403
      %1405 = vmatprep.mubr.f32.mxu0 0.0
      %1406 = vmatmul.mubr.f32.gmra.mrb[0].mxu0 %v1143
      %v1407 = vpop.f32.mrb[0].mxu0
      %v1408 = vadd.f32 0.0, %v1407
      %v1409 = vpop.f32.mrb[0].mxu0
      %v1410 = vadd.f32 0.0, %v1409
      %1411 = vdwg.mxu0
      %1412 = vmatprep.subr.mxu0 %v1099
      %1413 = vmatpush1.msra.mxu0 %v1098
      %1414 = vmatprep.subr.mxu0 %v1107
      %1415 = vmatpush1.msra.mxu0 %v1106
      %1416 = vmatprep.subr.mxu0 %v1115
      %1417 = vmatpush1.msra.mxu0 %v1114
      %1418 = vmatprep.subr.mxu0 %v1123
      %1419 = vmatpush1.msra.mxu0 %v1122
      %1420 = vmatprep.subr.mxu0 0.0
      %1421 = vmatpush1.msra.mxu0 0.0
      %1422 = vmatprep.subr.mxu0 0.0
      %1423 = vmatpush1.msra.mxu0 0.0
      %1424 = vmatprep.subr.mxu0 0.0
      %1425 = vmatpush1.msra.mxu0 0.0
      %1426 = vmatprep.subr.mxu0 0.0
      %1427 = vmatpush1.msra.mxu0 0.0
      %1428 = vmatprep.subr.mxu0 0.0
      %1429 = vmatpush1.msra.mxu0 0.0
      %1430 = vmatprep.subr.mxu0 0.0
      %1431 = vmatpush1.msra.mxu0 0.0
      %1432 = vmatprep.subr.mxu0 0.0
      %1433 = vmatpush1.msra.mxu0 0.0
      %1434 = vmatprep.subr.mxu0 0.0
      %1435 = vmatpush1.msra.mxu0 0.0
      %1436 = vmatprep.subr.mxu0 0.0
      %1437 = vmatpush1.msra.mxu0 0.0
      %1438 = vmatprep.subr.mxu0 0.0
      %1439 = vmatpush1.msra.mxu0 0.0
      %1440 = vmatprep.subr.mxu0 0.0
      %1441 = vmatpush1.msra.mxu0 0.0
      %1442 = vmatprep.subr.mxu0 0.0
      %1443 = vmatpush1.msra.mxu0 0.0
      %1444 = vmatprep.subr.mxu0 0.0
      %1445 = vmatpush1.msra.mxu0 0.0
      %1446 = vmatprep.subr.mxu0 0.0
      %1447 = vmatpush1.msra.mxu0 0.0
      %1448 = vmatprep.subr.mxu0 0.0
      %1449 = vmatpush1.msra.mxu0 0.0
      %1450 = vmatprep.subr.mxu0 0.0
      %1451 = vmatpush1.msra.mxu0 0.0
      %1452 = vmatprep.subr.mxu0 0.0
      %1453 = vmatpush1.msra.mxu0 0.0
      %1454 = vmatprep.subr.mxu0 0.0
      %1455 = vmatpush1.msra.mxu0 0.0
      %1456 = vmatprep.subr.mxu0 0.0
      %1457 = vmatpush1.msra.mxu0 0.0
      %1458 = vmatprep.subr.mxu0 0.0
      %1459 = vmatpush1.msra.mxu0 0.0
      %1460 = vmatprep.subr.mxu0 0.0
      %1461 = vmatpush1.msra.mxu0 0.0
      %1462 = vmatprep.subr.mxu0 0.0
      %1463 = vmatpush1.msra.mxu0 0.0
      %1464 = vmatprep.subr.mxu0 0.0
      %1465 = vmatpush1.msra.mxu0 0.0
      %1466 = vmatprep.subr.mxu0 0.0
      %1467 = vmatpush1.msra.mxu0 0.0
      %1468 = vmatprep.subr.mxu0 0.0
      %1469 = vmatpush1.msra.mxu0 0.0
      %1470 = vmatprep.subr.mxu0 0.0
      %1471 = vmatpush1.msra.mxu0 0.0
      %1472 = vmatprep.subr.mxu0 0.0
      %1473 = vmatpush1.msra.mxu0 0.0
      %1474 = vmatprep.subr.mxu0 0.0
      %1475 = vmatpush1.msra.mxu0 0.0
      %1476 = vmatprep.mubr.f32.mxu0 0.0
      %1477 = vmatmul.mubr.f32.gmra.mrb[0].mxu0 %v1134
      %v1478 = vpop.f32.mrb[0].mxu0
      %v1479 = vadd.f32 0.0, %v1478
      %v1480 = vpop.f32.mrb[0].mxu0
      %v1481 = vadd.f32 0.0, %v1480
      %1482 = vmatprep.mubr.f32.mxu0 0.0
      %1483 = vmatmul.mubr.f32.gmra.mrb[0].mxu0 %v1137
      %v1484 = vpop.f32.mrb[0].mxu0
      %v1485 = vadd.f32 0.0, %v1484
      %v1486 = vpop.f32.mrb[0].mxu0
      %v1487 = vadd.f32 0.0, %v1486
      %1488 = vmatprep.mubr.f32.mxu0 0.0
      %1489 = vmatmul.mubr.f32.gmra.mrb[0].mxu0 %v1140
      %v1490 = vpop.f32.mrb[0].mxu0
      %v1491 = vadd.f32 0.0, %v1490
      %v1492 = vpop.f32.mrb[0].mxu0
      %v1493 = vadd.f32 0.0, %v1492
      %1494 = vmatprep.mubr.f32.mxu0 0.0
      %1495 = vmatmul.mubr.f32.gmra.mrb[0].mxu0 %v1143
      %v1496 = vpop.f32.mrb[0].mxu0
      %v1497 = vadd.f32 0.0, %v1496
      %v1498 = vpop.f32.mrb[0].mxu0
      %v1499 = vadd.f32 0.0, %v1498
      %1500 = vdwg.mxu0
      %v1502 = vsel %vm1132, %v1124, 0
      %v1505 = vsel %vm1132, %v1125, 0
      %v1508 = vsel %vm1132, %v1126, 0
      %v1511 = vsel %vm1132, %v1127, 0
      %1513 = vmatprep.subr.mxu0 %v997
      %1514 = vmatpush1.msra.mxu0 %v996
      %1515 = vmatprep.subr.mxu0 %v1005
      %1516 = vmatpush1.msra.mxu0 %v1004
      %1517 = vmatprep.subr.mxu0 %v1013
      %1518 = vmatpush1.msra.mxu0 %v1012
      %1519 = vmatprep.subr.mxu0 %v1021
      %1520 = vmatpush1.msra.mxu0 %v1020
      %1521 = vmatprep.subr.mxu0 0.0
      %1522 = vmatpush1.msra.mxu0 0.0
      %1523 = vmatprep.subr.mxu0 0.0
      %1524 = vmatpush1.msra.mxu0 0.0
      %1525 = vmatprep.subr.mxu0 0.0
      %1526 = vmatpush1.msra.mxu0 0.0
      %1527 = vmatprep.subr.mxu0 0.0
      %1528 = vmatpush1.msra.mxu0 0.0
      %1529 = vmatprep.subr.mxu0 0.0
      %1530 = vmatpush1.msra.mxu0 0.0
      %1531 = vmatprep.subr.mxu0 0.0
      %1532 = vmatpush1.msra.mxu0 0.0
      %1533 = vmatprep.subr.mxu0 0.0
      %1534 = vmatpush1.msra.mxu0 0.0
      %1535 = vmatprep.subr.mxu0 0.0
      %1536 = vmatpush1.msra.mxu0 0.0
      %1537 = vmatprep.subr.mxu0 0.0
      %1538 = vmatpush1.msra.mxu0 0.0
      %1539 = vmatprep.subr.mxu0 0.0
      %1540 = vmatpush1.msra.mxu0 0.0
      %1541 = vmatprep.subr.mxu0 0.0
      %1542 = vmatpush1.msra.mxu0 0.0
      %1543 = vmatprep.subr.mxu0 0.0
      %1544 = vmatpush1.msra.mxu0 0.0
      %1545 = vmatprep.subr.mxu0 0.0
      %1546 = vmatpush1.msra.mxu0 0.0
      %1547 = vmatprep.subr.mxu0 0.0
      %1548 = vmatpush1.msra.mxu0 0.0
      %1549 = vmatprep.subr.mxu0 0.0
      %1550 = vmatpush1.msra.mxu0 0.0
      %1551 = vmatprep.subr.mxu0 0.0
      %1552 = vmatpush1.msra.mxu0 0.0
      %1553 = vmatprep.subr.mxu0 0.0
      %1554 = vmatpush1.msra.mxu0 0.0
      %1555 = vmatprep.subr.mxu0 0.0
      %1556 = vmatpush1.msra.mxu0 0.0
      %1557 = vmatprep.subr.mxu0 0.0
      %1558 = vmatpush1.msra.mxu0 0.0
      %1559 = vmatprep.subr.mxu0 0.0
      %1560 = vmatpush1.msra.mxu0 0.0
      %1561 = vmatprep.subr.mxu0 0.0
      %1562 = vmatpush1.msra.mxu0 0.0
      %1563 = vmatprep.subr.mxu0 0.0
      %1564 = vmatpush1.msra.mxu0 0.0
      %1565 = vmatprep.subr.mxu0 0.0
      %1566 = vmatpush1.msra.mxu0 0.0
      %1567 = vmatprep.subr.mxu0 0.0
      %1568 = vmatpush1.msra.mxu0 0.0
      %1569 = vmatprep.subr.mxu0 0.0
      %1570 = vmatpush1.msra.mxu0 0.0
      %1571 = vmatprep.subr.mxu0 0.0
      %1572 = vmatpush1.msra.mxu0 0.0
      %1573 = vmatprep.subr.mxu0 0.0
      %1574 = vmatpush1.msra.mxu0 0.0
      %1575 = vmatprep.subr.mxu0 0.0
      %1576 = vmatpush1.msra.mxu0 0.0
      %1577 = vmatprep.mubr.f32.mxu0 0.0
      %1578 = vmatmul.mubr.f32.gmra.mrb[0].mxu0 %v1502
      %v1579 = vpop.f32.mrb[0].mxu0
      %v1580 = vadd.f32 %v1212, %v1579
      %v1581 = vpop.f32.mrb[0].mxu0
      %v1582 = vadd.f32 %v1214, %v1581
      %1583 = vmatprep.mubr.f32.mxu0 0.0
      %1584 = vmatmul.mubr.f32.gmra.mrb[0].mxu0 %v1505
      %v1585 = vpop.f32.mrb[0].mxu0
      %v1586 = vadd.f32 %v1218, %v1585
      %v1587 = vpop.f32.mrb[0].mxu0
      %v1588 = vadd.f32 %v1220, %v1587
      %1589 = vmatprep.mubr.f32.mxu0 0.0
      %1590 = vmatmul.mubr.f32.gmra.mrb[0].mxu0 %v1508
      %v1591 = vpop.f32.mrb[0].mxu0
      %v1592 = vadd.f32 %v1224, %v1591
      %v1593 = vpop.f32.mrb[0].mxu0
      %v1594 = vadd.f32 %v1226, %v1593
      %1595 = vmatprep.mubr.f32.mxu0 0.0
      %1596 = vmatmul.mubr.f32.gmra.mrb[0].mxu0 %v1511
      %v1597 = vpop.f32.mrb[0].mxu0
      %v1598 = vadd.f32 %v1230, %v1597
      %v1599 = vpop.f32.mrb[0].mxu0
      %v1600 = vadd.f32 %v1232, %v1599
      %1601 = vdwg.mxu0
      %1602 = vmatprep.subr.mxu0 %v999
      %1603 = vmatpush1.msra.mxu0 %v998
      %1604 = vmatprep.subr.mxu0 %v1007
      %1605 = vmatpush1.msra.mxu0 %v1006
      %1606 = vmatprep.subr.mxu0 %v1015
      %1607 = vmatpush1.msra.mxu0 %v1014
      %1608 = vmatprep.subr.mxu0 %v1023
      %1609 = vmatpush1.msra.mxu0 %v1022
      %1610 = vmatprep.subr.mxu0 0.0
      %1611 = vmatpush1.msra.mxu0 0.0
      %1612 = vmatprep.subr.mxu0 0.0
      %1613 = vmatpush1.msra.mxu0 0.0
      %1614 = vmatprep.subr.mxu0 0.0
      %1615 = vmatpush1.msra.mxu0 0.0
      %1616 = vmatprep.subr.mxu0 0.0
      %1617 = vmatpush1.msra.mxu0 0.0
      %1618 = vmatprep.subr.mxu0 0.0
      %1619 = vmatpush1.msra.mxu0 0.0
      %1620 = vmatprep.subr.mxu0 0.0
      %1621 = vmatpush1.msra.mxu0 0.0
      %1622 = vmatprep.subr.mxu0 0.0
      %1623 = vmatpush1.msra.mxu0 0.0
      %1624 = vmatprep.subr.mxu0 0.0
      %1625 = vmatpush1.msra.mxu0 0.0
      %1626 = vmatprep.subr.mxu0 0.0
      %1627 = vmatpush1.msra.mxu0 0.0
      %1628 = vmatprep.subr.mxu0 0.0
      %1629 = vmatpush1.msra.mxu0 0.0
      %1630 = vmatprep.subr.mxu0 0.0
      %1631 = vmatpush1.msra.mxu0 0.0
      %1632 = vmatprep.subr.mxu0 0.0
      %1633 = vmatpush1.msra.mxu0 0.0
      %1634 = vmatprep.subr.mxu0 0.0
      %1635 = vmatpush1.msra.mxu0 0.0
      %1636 = vmatprep.subr.mxu0 0.0
      %1637 = vmatpush1.msra.mxu0 0.0
      %1638 = vmatprep.subr.mxu0 0.0
      %1639 = vmatpush1.msra.mxu0 0.0
      %1640 = vmatprep.subr.mxu0 0.0
      %1641 = vmatpush1.msra.mxu0 0.0
      %1642 = vmatprep.subr.mxu0 0.0
      %1643 = vmatpush1.msra.mxu0 0.0
      %1644 = vmatprep.subr.mxu0 0.0
      %1645 = vmatpush1.msra.mxu0 0.0
      %1646 = vmatprep.subr.mxu0 0.0
      %1647 = vmatpush1.msra.mxu0 0.0
      %1648 = vmatprep.subr.mxu0 0.0
      %1649 = vmatpush1.msra.mxu0 0.0
      %1650 = vmatprep.subr.mxu0 0.0
      %1651 = vmatpush1.msra.mxu0 0.0
      %1652 = vmatprep.subr.mxu0 0.0
      %1653 = vmatpush1.msra.mxu0 0.0
      %1654 = vmatprep.subr.mxu0 0.0
      %1655 = vmatpush1.msra.mxu0 0.0
      %1656 = vmatprep.subr.mxu0 0.0
      %1657 = vmatpush1.msra.mxu0 0.0
      %1658 = vmatprep.subr.mxu0 0.0
      %1659 = vmatpush1.msra.mxu0 0.0
      %1660 = vmatprep.subr.mxu0 0.0
      %1661 = vmatpush1.msra.mxu0 0.0
      %1662 = vmatprep.subr.mxu0 0.0
      %1663 = vmatpush1.msra.mxu0 0.0
      %1664 = vmatprep.subr.mxu0 0.0
      %1665 = vmatpush1.msra.mxu0 0.0
      %1666 = vmatprep.mubr.f32.mxu0 0.0
      %1667 = vmatmul.mubr.f32.gmra.mrb[0].mxu0 %v1502
      %v1668 = vpop.f32.mrb[0].mxu0
      %v1669 = vadd.f32 %v1301, %v1668
      %v1670 = vpop.f32.mrb[0].mxu0
      %v1671 = vadd.f32 %v1303, %v1670
      %1672 = vmatprep.mubr.f32.mxu0 0.0
      %1673 = vmatmul.mubr.f32.gmra.mrb[0].mxu0 %v1505
      %v1674 = vpop.f32.mrb[0].mxu0
      %v1675 = vadd.f32 %v1307, %v1674
      %v1676 = vpop.f32.mrb[0].mxu0
      %v1677 = vadd.f32 %v1309, %v1676
      %1678 = vmatprep.mubr.f32.mxu0 0.0
      %1679 = vmatmul.mubr.f32.gmra.mrb[0].mxu0 %v1508
      %v1680 = vpop.f32.mrb[0].mxu0
      %v1681 = vadd.f32 %v1313, %v1680
      %v1682 = vpop.f32.mrb[0].mxu0
      %v1683 = vadd.f32 %v1315, %v1682
      %1684 = vmatprep.mubr.f32.mxu0 0.0
      %1685 = vmatmul.mubr.f32.gmra.mrb[0].mxu0 %v1511
      %v1686 = vpop.f32.mrb[0].mxu0
      %v1687 = vadd.f32 %v1319, %v1686
      %v1688 = vpop.f32.mrb[0].mxu0
      %v1689 = vadd.f32 %v1321, %v1688
      %1690 = vdwg.mxu0
      %1691 = vmatprep.subr.mxu0 %v1001
      %1692 = vmatpush1.msra.mxu0 %v1000
      %1693 = vmatprep.subr.mxu0 %v1009
      %1694 = vmatpush1.msra.mxu0 %v1008
      %1695 = vmatprep.subr.mxu0 %v1017
      %1696 = vmatpush1.msra.mxu0 %v1016
      %1697 = vmatprep.subr.mxu0 %v1025
      %1698 = vmatpush1.msra.mxu0 %v1024
      %1699 = vmatprep.subr.mxu0 0.0
      %1700 = vmatpush1.msra.mxu0 0.0
      %1701 = vmatprep.subr.mxu0 0.0
      %1702 = vmatpush1.msra.mxu0 0.0
      %1703 = vmatprep.subr.mxu0 0.0
      %1704 = vmatpush1.msra.mxu0 0.0
      %1705 = vmatprep.subr.mxu0 0.0
      %1706 = vmatpush1.msra.mxu0 0.0
      %1707 = vmatprep.subr.mxu0 0.0
      %1708 = vmatpush1.msra.mxu0 0.0
      %1709 = vmatprep.subr.mxu0 0.0
      %1710 = vmatpush1.msra.mxu0 0.0
      %1711 = vmatprep.subr.mxu0 0.0
      %1712 = vmatpush1.msra.mxu0 0.0
      %1713 = vmatprep.subr.mxu0 0.0
      %1714 = vmatpush1.msra.mxu0 0.0
      %1715 = vmatprep.subr.mxu0 0.0
      %1716 = vmatpush1.msra.mxu0 0.0
      %1717 = vmatprep.subr.mxu0 0.0
      %1718 = vmatpush1.msra.mxu0 0.0
      %1719 = vmatprep.subr.mxu0 0.0
      %1720 = vmatpush1.msra.mxu0 0.0
      %1721 = vmatprep.subr.mxu0 0.0
      %1722 = vmatpush1.msra.mxu0 0.0
      %1723 = vmatprep.subr.mxu0 0.0
      %1724 = vmatpush1.msra.mxu0 0.0
      %1725 = vmatprep.subr.mxu0 0.0
      %1726 = vmatpush1.msra.mxu0 0.0
      %1727 = vmatprep.subr.mxu0 0.0
      %1728 = vmatpush1.msra.mxu0 0.0
      %1729 = vmatprep.subr.mxu0 0.0
      %1730 = vmatpush1.msra.mxu0 0.0
      %1731 = vmatprep.subr.mxu0 0.0
      %1732 = vmatpush1.msra.mxu0 0.0
      %1733 = vmatprep.subr.mxu0 0.0
      %1734 = vmatpush1.msra.mxu0 0.0
      %1735 = vmatprep.subr.mxu0 0.0
      %1736 = vmatpush1.msra.mxu0 0.0
      %1737 = vmatprep.subr.mxu0 0.0
      %1738 = vmatpush1.msra.mxu0 0.0
      %1739 = vmatprep.subr.mxu0 0.0
      %1740 = vmatpush1.msra.mxu0 0.0
      %1741 = vmatprep.subr.mxu0 0.0
      %1742 = vmatpush1.msra.mxu0 0.0
      %1743 = vmatprep.subr.mxu0 0.0
      %1744 = vmatpush1.msra.mxu0 0.0
      %1745 = vmatprep.subr.mxu0 0.0
      %1746 = vmatpush1.msra.mxu0 0.0
      %1747 = vmatprep.subr.mxu0 0.0
      %1748 = vmatpush1.msra.mxu0 0.0
      %1749 = vmatprep.subr.mxu0 0.0
      %1750 = vmatpush1.msra.mxu0 0.0
      %1751 = vmatprep.subr.mxu0 0.0
      %1752 = vmatpush1.msra.mxu0 0.0
      %1753 = vmatprep.subr.mxu0 0.0
      %1754 = vmatpush1.msra.mxu0 0.0
      %1755 = vmatprep.mubr.f32.mxu0 0.0
      %1756 = vmatmul.mubr.f32.gmra.mrb[0].mxu0 %v1502
      %v1757 = vpop.f32.mrb[0].mxu0
      %v1758 = vadd.f32 %v1390, %v1757
      %v1759 = vpop.f32.mrb[0].mxu0
      %v1760 = vadd.f32 %v1392, %v1759
      %1761 = vmatprep.mubr.f32.mxu0 0.0
      %1762 = vmatmul.mubr.f32.gmra.mrb[0].mxu0 %v1505
      %v1763 = vpop.f32.mrb[0].mxu0
      %v1764 = vadd.f32 %v1396, %v1763
      %v1765 = vpop.f32.mrb[0].mxu0
      %v1766 = vadd.f32 %v1398, %v1765
      %1767 = vmatprep.mubr.f32.mxu0 0.0
      %1768 = vmatmul.mubr.f32.gmra.mrb[0].mxu0 %v1508
      %v1769 = vpop.f32.mrb[0].mxu0
      %v1770 = vadd.f32 %v1402, %v1769
      %v1771 = vpop.f32.mrb[0].mxu0
      %v1772 = vadd.f32 %v1404, %v1771
      %1773 = vmatprep.mubr.f32.mxu0 0.0
      %1774 = vmatmul.mubr.f32.gmra.mrb[0].mxu0 %v1511
      %v1775 = vpop.f32.mrb[0].mxu0
      %v1776 = vadd.f32 %v1408, %v1775
      %v1777 = vpop.f32.mrb[0].mxu0
      %v1778 = vadd.f32 %v1410, %v1777
      %1779 = vdwg.mxu0
      %1780 = vmatprep.subr.mxu0 %v1003
      %1781 = vmatpush1.msra.mxu0 %v1002
      %1782 = vmatprep.subr.mxu0 %v1011
      %1783 = vmatpush1.msra.mxu0 %v1010
      %1784 = vmatprep.subr.mxu0 %v1019
      %1785 = vmatpush1.msra.mxu0 %v1018
      %1786 = vmatprep.subr.mxu0 %v1027
      %1787 = vmatpush1.msra.mxu0 %v1026
      %1788 = vmatprep.subr.mxu0 0.0
      %1789 = vmatpush1.msra.mxu0 0.0
      %1790 = vmatprep.subr.mxu0 0.0
      %1791 = vmatpush1.msra.mxu0 0.0
      %1792 = vmatprep.subr.mxu0 0.0
      %1793 = vmatpush1.msra.mxu0 0.0
      %1794 = vmatprep.subr.mxu0 0.0
      %1795 = vmatpush1.msra.mxu0 0.0
      %1796 = vmatprep.subr.mxu0 0.0
      %1797 = vmatpush1.msra.mxu0 0.0
      %1798 = vmatprep.subr.mxu0 0.0
      %1799 = vmatpush1.msra.mxu0 0.0
      %1800 = vmatprep.subr.mxu0 0.0
      %1801 = vmatpush1.msra.mxu0 0.0
      %1802 = vmatprep.subr.mxu0 0.0
      %1803 = vmatpush1.msra.mxu0 0.0
      %1804 = vmatprep.subr.mxu0 0.0
      %1805 = vmatpush1.msra.mxu0 0.0
      %1806 = vmatprep.subr.mxu0 0.0
      %1807 = vmatpush1.msra.mxu0 0.0
      %1808 = vmatprep.subr.mxu0 0.0
      %1809 = vmatpush1.msra.mxu0 0.0
      %1810 = vmatprep.subr.mxu0 0.0
      %1811 = vmatpush1.msra.mxu0 0.0
      %1812 = vmatprep.subr.mxu0 0.0
      %1813 = vmatpush1.msra.mxu0 0.0
      %1814 = vmatprep.subr.mxu0 0.0
      %1815 = vmatpush1.msra.mxu0 0.0
      %1816 = vmatprep.subr.mxu0 0.0
      %1817 = vmatpush1.msra.mxu0 0.0
      %1818 = vmatprep.subr.mxu0 0.0
      %1819 = vmatpush1.msra.mxu0 0.0
      %1820 = vmatprep.subr.mxu0 0.0
      %1821 = vmatpush1.msra.mxu0 0.0
      %1822 = vmatprep.subr.mxu0 0.0
      %1823 = vmatpush1.msra.mxu0 0.0
      %1824 = vmatprep.subr.mxu0 0.0
      %1825 = vmatpush1.msra.mxu0 0.0
      %1826 = vmatprep.subr.mxu0 0.0
      %1827 = vmatpush1.msra.mxu0 0.0
      %1828 = vmatprep.subr.mxu0 0.0
      %1829 = vmatpush1.msra.mxu0 0.0
      %1830 = vmatprep.subr.mxu0 0.0
      %1831 = vmatpush1.msra.mxu0 0.0
      %1832 = vmatprep.subr.mxu0 0.0
      %1833 = vmatpush1.msra.mxu0 0.0
      %1834 = vmatprep.subr.mxu0 0.0
      %1835 = vmatpush1.msra.mxu0 0.0
      %1836 = vmatprep.subr.mxu0 0.0
      %1837 = vmatpush1.msra.mxu0 0.0
      %1838 = vmatprep.subr.mxu0 0.0
      %1839 = vmatpush1.msra.mxu0 0.0
      %1840 = vmatprep.subr.mxu0 0.0
      %1841 = vmatpush1.msra.mxu0 0.0
      %1842 = vmatprep.subr.mxu0 0.0
      %1843 = vmatpush1.msra.mxu0 0.0
      %1844 = vmatprep.mubr.f32.mxu0 0.0
      %1845 = vmatmul.mubr.f32.gmra.mrb[0].mxu0 %v1502
      %v1846 = vpop.f32.mrb[0].mxu0
      %v1847 = vadd.f32 %v1479, %v1846
      %v1848 = vpop.f32.mrb[0].mxu0
      %v1849 = vadd.f32 %v1481, %v1848
      %1850 = vmatprep.mubr.f32.mxu0 0.0
      %1851 = vmatmul.mubr.f32.gmra.mrb[0].mxu0 %v1505
      %v1852 = vpop.f32.mrb[0].mxu0
      %v1853 = vadd.f32 %v1485, %v1852
      %v1854 = vpop.f32.mrb[0].mxu0
      %v1855 = vadd.f32 %v1487, %v1854
      %1856 = vmatprep.mubr.f32.mxu0 0.0
      %1857 = vmatmul.mubr.f32.gmra.mrb[0].mxu0 %v1508
      %v1858 = vpop.f32.mrb[0].mxu0
      %v1859 = vadd.f32 %v1491, %v1858
      %v1860 = vpop.f32.mrb[0].mxu0
      %v1861 = vadd.f32 %v1493, %v1860
      %1862 = vmatprep.mubr.f32.mxu0 0.0
      %1863 = vmatmul.mubr.f32.gmra.mrb[0].mxu0 %v1511
      %v1864 = vpop.f32.mrb[0].mxu0
      %v1865 = vadd.f32 %v1497, %v1864
      %v1866 = vpop.f32.mrb[0].mxu0
      %v1867 = vadd.f32 %v1499, %v1866
      %1868 = vdwg.mxu0
      %vm1869 = vcmp.ge.f32.partialorder %v1580, 0.0
      %vm1870 = vcmp.ge.f32.partialorder %v1582, 0.0
      %vm1871 = vcmp.ge.f32.partialorder %v1669, 0.0
      %vm1872 = vcmp.ge.f32.partialorder %v1671, 0.0
      %vm1873 = vcmp.ge.f32.partialorder %v1758, 0.0
      %vm1874 = vcmp.ge.f32.partialorder %v1760, 0.0
      %vm1875 = vcmp.ge.f32.partialorder %v1847, 0.0
      %vm1876 = vcmp.ge.f32.partialorder %v1849, 0.0
      %vm1877 = vcmp.ge.f32.partialorder %v1586, 0.0
      %vm1878 = vcmp.ge.f32.partialorder %v1588, 0.0
      %vm1879 = vcmp.ge.f32.partialorder %v1675, 0.0
      %vm1880 = vcmp.ge.f32.partialorder %v1677, 0.0
      %vm1881 = vcmp.ge.f32.partialorder %v1764, 0.0
      %vm1882 = vcmp.ge.f32.partialorder %v1766, 0.0
      %vm1883 = vcmp.ge.f32.partialorder %v1853, 0.0
      %vm1884 = vcmp.ge.f32.partialorder %v1855, 0.0
      %vm1885 = vcmp.ge.f32.partialorder %v1592, 0.0
      %vm1886 = vcmp.ge.f32.partialorder %v1594, 0.0
      %vm1887 = vcmp.ge.f32.partialorder %v1681, 0.0
      %vm1888 = vcmp.ge.f32.partialorder %v1683, 0.0
      %vm1889 = vcmp.ge.f32.partialorder %v1770, 0.0
      %vm1890 = vcmp.ge.f32.partialorder %v1772, 0.0
      %vm1891 = vcmp.ge.f32.partialorder %v1859, 0.0
      %vm1892 = vcmp.ge.f32.partialorder %v1861, 0.0
      %vm1893 = vcmp.ge.f32.partialorder %v1598, 0.0
      %vm1894 = vcmp.ge.f32.partialorder %v1600, 0.0
      %vm1895 = vcmp.ge.f32.partialorder %v1687, 0.0
      %vm1896 = vcmp.ge.f32.partialorder %v1689, 0.0
      %vm1897 = vcmp.ge.f32.partialorder %v1776, 0.0
      %vm1898 = vcmp.ge.f32.partialorder %v1778, 0.0
      %vm1899 = vcmp.ge.f32.partialorder %v1865, 0.0
      %vm1900 = vcmp.ge.f32.partialorder %v1867, 0.0
      %v1901 = vmul.f32 %v1580, 0.01
      %v1902 = vmul.f32 %v1582, 0.01
      %v1903 = vmul.f32 %v1669, 0.01
      %v1904 = vmul.f32 %v1671, 0.01
      %v1905 = vmul.f32 %v1758, 0.01
      %v1906 = vmul.f32 %v1760, 0.01
      %v1907 = vmul.f32 %v1847, 0.01
      %v1908 = vmul.f32 %v1849, 0.01
      %v1909 = vmul.f32 %v1586, 0.01
      %v1910 = vmul.f32 %v1588, 0.01
      %v1911 = vmul.f32 %v1675, 0.01
      %v1912 = vmul.f32 %v1677, 0.01
      %v1913 = vmul.f32 %v1764, 0.01
      %v1914 = vmul.f32 %v1766, 0.01
      %v1915 = vmul.f32 %v1853, 0.01
      %v1916 = vmul.f32 %v1855, 0.01
      %v1917 = vmul.f32 %v1592, 0.01
      %v1918 = vmul.f32 %v1594, 0.01
      %v1919 = vmul.f32 %v1681, 0.01
      %v1920 = vmul.f32 %v1683, 0.01
      %v1921 = vmul.f32 %v1770, 0.01
      %v1922 = vmul.f32 %v1772, 0.01
      %v1923 = vmul.f32 %v1859, 0.01
      %v1924 = vmul.f32 %v1861, 0.01
      %v1925 = vmul.f32 %v1598, 0.01
      %v1926 = vmul.f32 %v1600, 0.01
      %v1927 = vmul.f32 %v1687, 0.01
      %v1928 = vmul.f32 %v1689, 0.01
      %v1929 = vmul.f32 %v1776, 0.01
      %v1930 = vmul.f32 %v1778, 0.01
      %v1931 = vmul.f32 %v1865, 0.01
      %v1932 = vmul.f32 %v1867, 0.01
      %v1933 = vsel %vm1869, %v1580, %v1901
      %v1934 = vsel %vm1870, %v1582, %v1902
      %v1935 = vsel %vm1871, %v1669, %v1903
      %v1936 = vsel %vm1872, %v1671, %v1904
      %v1937 = vsel %vm1873, %v1758, %v1905
      %v1938 = vsel %vm1874, %v1760, %v1906
      %v1939 = vsel %vm1875, %v1847, %v1907
      %v1940 = vsel %vm1876, %v1849, %v1908
      %v1941 = vsel %vm1877, %v1586, %v1909
      %v1942 = vsel %vm1878, %v1588, %v1910
      %v1943 = vsel %vm1879, %v1675, %v1911
      %v1944 = vsel %vm1880, %v1677, %v1912
      %v1945 = vsel %vm1881, %v1764, %v1913
      %v1946 = vsel %vm1882, %v1766, %v1914
      %v1947 = vsel %vm1883, %v1853, %v1915
      %v1948 = vsel %vm1884, %v1855, %v1916
      %v1949 = vsel %vm1885, %v1592, %v1917
      %v1950 = vsel %vm1886, %v1594, %v1918
      %v1951 = vsel %vm1887, %v1681, %v1919
      %v1952 = vsel %vm1888, %v1683, %v1920
      %v1953 = vsel %vm1889, %v1770, %v1921
      %v1954 = vsel %vm1890, %v1772, %v1922
      %v1955 = vsel %vm1891, %v1859, %v1923
      %v1956 = vsel %vm1892, %v1861, %v1924
      %v1957 = vsel %vm1893, %v1598, %v1925
      %v1958 = vsel %vm1894, %v1600, %v1926
      %v1959 = vsel %vm1895, %v1687, %v1927
      %v1960 = vsel %vm1896, %v1689, %v1928
      %v1961 = vsel %vm1897, %v1776, %v1929
      %v1962 = vsel %vm1898, %v1778, %v1930
      %v1963 = vsel %vm1899, %v1865, %v1931
      %v1964 = vsel %vm1900, %v1867, %v1932
      %v1965 = vld [vmem:[%s7] sm:$0xff]
      %v1966 = vld [vmem:[%s7 + $0x8] sm:$0xff]
      %v1968 = vsel %vm1132, %v1965, 0
      %v1971 = vsel %vm1132, %v1966, 0
      %1973 = vmatprep.subr.mxu0 %v1934
      %1974 = vmatpush1.msra.mxu0 %v1933
      %1975 = vmatprep.subr.mxu0 %v1942
      %1976 = vmatpush1.msra.mxu0 %v1941
      %1977 = vmatprep.subr.mxu0 %v1950
      %1978 = vmatpush1.msra.mxu0 %v1949
      %1979 = vmatprep.subr.mxu0 %v1958
      %1980 = vmatpush1.msra.mxu0 %v1957
      %1981 = vmatprep.subr.mxu0 0.0
      %1982 = vmatpush1.msra.mxu0 0.0
      %1983 = vmatprep.subr.mxu0 0.0
      %1984 = vmatpush1.msra.mxu0 0.0
      %1985 = vmatprep.subr.mxu0 0.0
      %1986 = vmatpush1.msra.mxu0 0.0
      %1987 = vmatprep.subr.mxu0 0.0
      %1988 = vmatpush1.msra.mxu0 0.0
      %1989 = vmatprep.subr.mxu0 0.0
      %1990 = vmatpush1.msra.mxu0 0.0
      %1991 = vmatprep.subr.mxu0 0.0
      %1992 = vmatpush1.msra.mxu0 0.0
      %1993 = vmatprep.subr.mxu0 0.0
      %1994 = vmatpush1.msra.mxu0 0.0
      %1995 = vmatprep.subr.mxu0 0.0
      %1996 = vmatpush1.msra.mxu0 0.0
      %1997 = vmatprep.subr.mxu0 0.0
      %1998 = vmatpush1.msra.mxu0 0.0
      %1999 = vmatprep.subr.mxu0 0.0
      %2000 = vmatpush1.msra.mxu0 0.0
      %2001 = vmatprep.subr.mxu0 0.0
      %2002 = vmatpush1.msra.mxu0 0.0
      %2003 = vmatprep.subr.mxu0 0.0
      %2004 = vmatpush1.msra.mxu0 0.0
      %2005 = vmatprep.subr.mxu0 0.0
      %2006 = vmatpush1.msra.mxu0 0.0
      %2007 = vmatprep.subr.mxu0 0.0
      %2008 = vmatpush1.msra.mxu0 0.0
      %2009 = vmatprep.subr.mxu0 0.0
      %2010 = vmatpush1.msra.mxu0 0.0
      %2011 = vmatprep.subr.mxu0 0.0
      %2012 = vmatpush1.msra.mxu0 0.0
      %2013 = vmatprep.subr.mxu0 0.0
      %2014 = vmatpush1.msra.mxu0 0.0
      %2015 = vmatprep.subr.mxu0 0.0
      %2016 = vmatpush1.msra.mxu0 0.0
      %2017 = vmatprep.subr.mxu0 0.0
      %2018 = vmatpush1.msra.mxu0 0.0
      %2019 = vmatprep.subr.mxu0 0.0
      %2020 = vmatpush1.msra.mxu0 0.0
      %2021 = vmatprep.subr.mxu0 0.0
      %2022 = vmatpush1.msra.mxu0 0.0
      %2023 = vmatprep.subr.mxu0 0.0
      %2024 = vmatpush1.msra.mxu0 0.0
      %2025 = vmatprep.subr.mxu0 0.0
      %2026 = vmatpush1.msra.mxu0 0.0
      %2027 = vmatprep.subr.mxu0 0.0
      %2028 = vmatpush1.msra.mxu0 0.0
      %2029 = vmatprep.subr.mxu0 0.0
      %2030 = vmatpush1.msra.mxu0 0.0
      %2031 = vmatprep.subr.mxu0 0.0
      %2032 = vmatpush1.msra.mxu0 0.0
      %2033 = vmatprep.subr.mxu0 0.0
      %2034 = vmatpush1.msra.mxu0 0.0
      %2035 = vmatprep.subr.mxu0 0.0
      %2036 = vmatpush1.msra.mxu0 0.0
      %2037 = vmatprep.mubr.f32.mxu0 0.0
      %2038 = vmatmul.mubr.f32.gmra.mrb[0].mxu0 %v1968
      %v2039 = vpop.f32.mrb[0].mxu0
      %v2040 = vadd.f32 0.0, %v2039
      %v2041 = vpop.f32.mrb[0].mxu0
      %v2042 = vadd.f32 0.0, %v2041
      %2043 = vmatprep.mubr.f32.mxu0 0.0
      %2044 = vmatmul.mubr.f32.gmra.mrb[0].mxu0 %v1971
      %v2045 = vpop.f32.mrb[0].mxu0
      %v2046 = vadd.f32 0.0, %v2045
      %v2047 = vpop.f32.mrb[0].mxu0
      %v2048 = vadd.f32 0.0, %v2047
      %2049 = vdwg.mxu0
      %2050 = vmatprep.subr.mxu0 %v1936
      %2051 = vmatpush1.msra.mxu0 %v1935
      %2052 = vmatprep.subr.mxu0 %v1944
      %2053 = vmatpush1.msra.mxu0 %v1943
      %2054 = vmatprep.subr.mxu0 %v1952
      %2055 = vmatpush1.msra.mxu0 %v1951
      %2056 = vmatprep.subr.mxu0 %v1960
      %2057 = vmatpush1.msra.mxu0 %v1959
      %2058 = vmatprep.subr.mxu0 0.0
      %2059 = vmatpush1.msra.mxu0 0.0
      %2060 = vmatprep.subr.mxu0 0.0
      %2061 = vmatpush1.msra.mxu0 0.0
      %2062 = vmatprep.subr.mxu0 0.0
      %2063 = vmatpush1.msra.mxu0 0.0
      %2064 = vmatprep.subr.mxu0 0.0
      %2065 = vmatpush1.msra.mxu0 0.0
      %2066 = vmatprep.subr.mxu0 0.0
      %2067 = vmatpush1.msra.mxu0 0.0
      %2068 = vmatprep.subr.mxu0 0.0
      %2069 = vmatpush1.msra.mxu0 0.0
      %2070 = vmatprep.subr.mxu0 0.0
      %2071 = vmatpush1.msra.mxu0 0.0
      %2072 = vmatprep.subr.mxu0 0.0
      %2073 = vmatpush1.msra.mxu0 0.0
      %2074 = vmatprep.subr.mxu0 0.0
      %2075 = vmatpush1.msra.mxu0 0.0
      %2076 = vmatprep.subr.mxu0 0.0
      %2077 = vmatpush1.msra.mxu0 0.0
      %2078 = vmatprep.subr.mxu0 0.0
      %2079 = vmatpush1.msra.mxu0 0.0
      %2080 = vmatprep.subr.mxu0 0.0
      %2081 = vmatpush1.msra.mxu0 0.0
      %2082 = vmatprep.subr.mxu0 0.0
      %2083 = vmatpush1.msra.mxu0 0.0
      %2084 = vmatprep.subr.mxu0 0.0
      %2085 = vmatpush1.msra.mxu0 0.0
      %2086 = vmatprep.subr.mxu0 0.0
      %2087 = vmatpush1.msra.mxu0 0.0
      %2088 = vmatprep.subr.mxu0 0.0
      %2089 = vmatpush1.msra.mxu0 0.0
      %2090 = vmatprep.subr.mxu0 0.0
      %2091 = vmatpush1.msra.mxu0 0.0
      %2092 = vmatprep.subr.mxu0 0.0
      %2093 = vmatpush1.msra.mxu0 0.0
      %2094 = vmatprep.subr.mxu0 0.0
      %2095 = vmatpush1.msra.mxu0 0.0
      %2096 = vmatprep.subr.mxu0 0.0
      %2097 = vmatpush1.msra.mxu0 0.0
      %2098 = vmatprep.subr.mxu0 0.0
      %2099 = vmatpush1.msra.mxu0 0.0
      %2100 = vmatprep.subr.mxu0 0.0
      %2101 = vmatpush1.msra.mxu0 0.0
      %2102 = vmatprep.subr.mxu0 0.0
      %2103 = vmatpush1.msra.mxu0 0.0
      %2104 = vmatprep.subr.mxu0 0.0
      %2105 = vmatpush1.msra.mxu0 0.0
      %2106 = vmatprep.subr.mxu0 0.0
      %2107 = vmatpush1.msra.mxu0 0.0
      %2108 = vmatprep.subr.mxu0 0.0
      %2109 = vmatpush1.msra.mxu0 0.0
      %2110 = vmatprep.subr.mxu0 0.0
      %2111 = vmatpush1.msra.mxu0 0.0
      %2112 = vmatprep.subr.mxu0 0.0
      %2113 = vmatpush1.msra.mxu0 0.0
      %2114 = vmatprep.mubr.f32.mxu0 0.0
      %2115 = vmatmul.mubr.f32.gmra.mrb[0].mxu0 %v1968
      %v2116 = vpop.f32.mrb[0].mxu0
      %v2117 = vadd.f32 0.0, %v2116
      %v2118 = vpop.f32.mrb[0].mxu0
      %v2119 = vadd.f32 0.0, %v2118
      %2120 = vmatprep.mubr.f32.mxu0 0.0
      %2121 = vmatmul.mubr.f32.gmra.mrb[0].mxu0 %v1971
      %v2122 = vpop.f32.mrb[0].mxu0
      %v2123 = vadd.f32 0.0, %v2122
      %v2124 = vpop.f32.mrb[0].mxu0
      %v2125 = vadd.f32 0.0, %v2124
      %2126 = vdwg.mxu0
      %2127 = vmatprep.subr.mxu0 %v1938
      %2128 = vmatpush1.msra.mxu0 %v1937
      %2129 = vmatprep.subr.mxu0 %v1946
      %2130 = vmatpush1.msra.mxu0 %v1945
      %2131 = vmatprep.subr.mxu0 %v1954
      %2132 = vmatpush1.msra.mxu0 %v1953
      %2133 = vmatprep.subr.mxu0 %v1962
      %2134 = vmatpush1.msra.mxu0 %v1961
      %2135 = vmatprep.subr.mxu0 0.0
      %2136 = vmatpush1.msra.mxu0 0.0
      %2137 = vmatprep.subr.mxu0 0.0
      %2138 = vmatpush1.msra.mxu0 0.0
      %2139 = vmatprep.subr.mxu0 0.0
      %2140 = vmatpush1.msra.mxu0 0.0
      %2141 = vmatprep.subr.mxu0 0.0
      %2142 = vmatpush1.msra.mxu0 0.0
      %2143 = vmatprep.subr.mxu0 0.0
      %2144 = vmatpush1.msra.mxu0 0.0
      %2145 = vmatprep.subr.mxu0 0.0
      %2146 = vmatpush1.msra.mxu0 0.0
      %2147 = vmatprep.subr.mxu0 0.0
      %2148 = vmatpush1.msra.mxu0 0.0
      %2149 = vmatprep.subr.mxu0 0.0
      %2150 = vmatpush1.msra.mxu0 0.0
      %2151 = vmatprep.subr.mxu0 0.0
      %2152 = vmatpush1.msra.mxu0 0.0
      %2153 = vmatprep.subr.mxu0 0.0
      %2154 = vmatpush1.msra.mxu0 0.0
      %2155 = vmatprep.subr.mxu0 0.0
      %2156 = vmatpush1.msra.mxu0 0.0
      %2157 = vmatprep.subr.mxu0 0.0
      %2158 = vmatpush1.msra.mxu0 0.0
      %2159 = vmatprep.subr.mxu0 0.0
      %2160 = vmatpush1.msra.mxu0 0.0
      %2161 = vmatprep.subr.mxu0 0.0
      %2162 = vmatpush1.msra.mxu0 0.0
      %2163 = vmatprep.subr.mxu0 0.0
      %2164 = vmatpush1.msra.mxu0 0.0
      %2165 = vmatprep.subr.mxu0 0.0
      %2166 = vmatpush1.msra.mxu0 0.0
      %2167 = vmatprep.subr.mxu0 0.0
      %2168 = vmatpush1.msra.mxu0 0.0
      %2169 = vmatprep.subr.mxu0 0.0
      %2170 = vmatpush1.msra.mxu0 0.0
      %2171 = vmatprep.subr.mxu0 0.0
      %2172 = vmatpush1.msra.mxu0 0.0
      %2173 = vmatprep.subr.mxu0 0.0
      %2174 = vmatpush1.msra.mxu0 0.0
      %2175 = vmatprep.subr.mxu0 0.0
      %2176 = vmatpush1.msra.mxu0 0.0
      %2177 = vmatprep.subr.mxu0 0.0
      %2178 = vmatpush1.msra.mxu0 0.0
      %2179 = vmatprep.subr.mxu0 0.0
      %2180 = vmatpush1.msra.mxu0 0.0
      %2181 = vmatprep.subr.mxu0 0.0
      %2182 = vmatpush1.msra.mxu0 0.0
      %2183 = vmatprep.subr.mxu0 0.0
      %2184 = vmatpush1.msra.mxu0 0.0
      %2185 = vmatprep.subr.mxu0 0.0
      %2186 = vmatpush1.msra.mxu0 0.0
      %2187 = vmatprep.subr.mxu0 0.0
      %2188 = vmatpush1.msra.mxu0 0.0
      %2189 = vmatprep.subr.mxu0 0.0
      %2190 = vmatpush1.msra.mxu0 0.0
      %2191 = vmatprep.mubr.f32.mxu0 0.0
      %2192 = vmatmul.mubr.f32.gmra.mrb[0].mxu0 %v1968
      %v2193 = vpop.f32.mrb[0].mxu0
      %v2194 = vadd.f32 0.0, %v2193
      %v2195 = vpop.f32.mrb[0].mxu0
      %v2196 = vadd.f32 0.0, %v2195
      %2197 = vmatprep.mubr.f32.mxu0 0.0
      %2198 = vmatmul.mubr.f32.gmra.mrb[0].mxu0 %v1971
      %v2199 = vpop.f32.mrb[0].mxu0
      %v2200 = vadd.f32 0.0, %v2199
      %v2201 = vpop.f32.mrb[0].mxu0
      %v2202 = vadd.f32 0.0, %v2201
      %2203 = vdwg.mxu0
      %2204 = vmatprep.subr.mxu0 %v1940
      %2205 = vmatpush1.msra.mxu0 %v1939
      %2206 = vmatprep.subr.mxu0 %v1948
      %2207 = vmatpush1.msra.mxu0 %v1947
      %2208 = vmatprep.subr.mxu0 %v1956
      %2209 = vmatpush1.msra.mxu0 %v1955
      %2210 = vmatprep.subr.mxu0 %v1964
      %2211 = vmatpush1.msra.mxu0 %v1963
      %2212 = vmatprep.subr.mxu0 0.0
      %2213 = vmatpush1.msra.mxu0 0.0
      %2214 = vmatprep.subr.mxu0 0.0
      %2215 = vmatpush1.msra.mxu0 0.0
      %2216 = vmatprep.subr.mxu0 0.0
      %2217 = vmatpush1.msra.mxu0 0.0
      %2218 = vmatprep.subr.mxu0 0.0
      %2219 = vmatpush1.msra.mxu0 0.0
      %2220 = vmatprep.subr.mxu0 0.0
      %2221 = vmatpush1.msra.mxu0 0.0
      %2222 = vmatprep.subr.mxu0 0.0
      %2223 = vmatpush1.msra.mxu0 0.0
      %2224 = vmatprep.subr.mxu0 0.0
      %2225 = vmatpush1.msra.mxu0 0.0
      %2226 = vmatprep.subr.mxu0 0.0
      %2227 = vmatpush1.msra.mxu0 0.0
      %2228 = vmatprep.subr.mxu0 0.0
      %2229 = vmatpush1.msra.mxu0 0.0
      %2230 = vmatprep.subr.mxu0 0.0
      %2231 = vmatpush1.msra.mxu0 0.0
      %2232 = vmatprep.subr.mxu0 0.0
      %2233 = vmatpush1.msra.mxu0 0.0
      %2234 = vmatprep.subr.mxu0 0.0
      %2235 = vmatpush1.msra.mxu0 0.0
      %2236 = vmatprep.subr.mxu0 0.0
      %2237 = vmatpush1.msra.mxu0 0.0
      %2238 = vmatprep.subr.mxu0 0.0
      %2239 = vmatpush1.msra.mxu0 0.0
      %2240 = vmatprep.subr.mxu0 0.0
      %2241 = vmatpush1.msra.mxu0 0.0
      %2242 = vmatprep.subr.mxu0 0.0
      %2243 = vmatpush1.msra.mxu0 0.0
      %2244 = vmatprep.subr.mxu0 0.0
      %2245 = vmatpush1.msra.mxu0 0.0
      %2246 = vmatprep.subr.mxu0 0.0
      %2247 = vmatpush1.msra.mxu0 0.0
      %2248 = vmatprep.subr.mxu0 0.0
      %2249 = vmatpush1.msra.mxu0 0.0
      %2250 = vmatprep.subr.mxu0 0.0
      %2251 = vmatpush1.msra.mxu0 0.0
      %2252 = vmatprep.subr.mxu0 0.0
      %2253 = vmatpush1.msra.mxu0 0.0
      %2254 = vmatprep.subr.mxu0 0.0
      %2255 = vmatpush1.msra.mxu0 0.0
      %2256 = vmatprep.subr.mxu0 0.0
      %2257 = vmatpush1.msra.mxu0 0.0
      %2258 = vmatprep.subr.mxu0 0.0
      %2259 = vmatpush1.msra.mxu0 0.0
      %2260 = vmatprep.subr.mxu0 0.0
      %2261 = vmatpush1.msra.mxu0 0.0
      %2262 = vmatprep.subr.mxu0 0.0
      %2263 = vmatpush1.msra.mxu0 0.0
      %2264 = vmatprep.subr.mxu0 0.0
      %2265 = vmatpush1.msra.mxu0 0.0
      %2266 = vmatprep.subr.mxu0 0.0
      %2267 = vmatpush1.msra.mxu0 0.0
      %2268 = vmatprep.mubr.f32.mxu0 0.0
      %2269 = vmatmul.mubr.f32.gmra.mrb[0].mxu0 %v1968
      %v2270 = vpop.f32.mrb[0].mxu0
      %v2271 = vadd.f32 0.0, %v2270
      %v2272 = vpop.f32.mrb[0].mxu0
      %v2273 = vadd.f32 0.0, %v2272
      %2274 = vmatprep.mubr.f32.mxu0 0.0
      %2275 = vmatmul.mubr.f32.gmra.mrb[0].mxu0 %v1971
      %v2276 = vpop.f32.mrb[0].mxu0
      %v2277 = vadd.f32 0.0, %v2276
      %v2278 = vpop.f32.mrb[0].mxu0
      %v2279 = vadd.f32 0.0, %v2278
      %2280 = vdwg.mxu0
      %vm2281 = vcmp.ge.f32.partialorder %v2040, 0.0
      %vm2282 = vcmp.ge.f32.partialorder %v2042, 0.0
      %vm2283 = vcmp.ge.f32.partialorder %v2117, 0.0
      %vm2284 = vcmp.ge.f32.partialorder %v2119, 0.0
      %vm2285 = vcmp.ge.f32.partialorder %v2194, 0.0
      %vm2286 = vcmp.ge.f32.partialorder %v2196, 0.0
      %vm2287 = vcmp.ge.f32.partialorder %v2271, 0.0
      %vm2288 = vcmp.ge.f32.partialorder %v2273, 0.0
      %vm2289 = vcmp.ge.f32.partialorder %v2046, 0.0
      %vm2290 = vcmp.ge.f32.partialorder %v2048, 0.0
      %vm2291 = vcmp.ge.f32.partialorder %v2123, 0.0
      %vm2292 = vcmp.ge.f32.partialorder %v2125, 0.0
      %vm2293 = vcmp.ge.f32.partialorder %v2200, 0.0
      %vm2294 = vcmp.ge.f32.partialorder %v2202, 0.0
      %vm2295 = vcmp.ge.f32.partialorder %v2277, 0.0
      %vm2296 = vcmp.ge.f32.partialorder %v2279, 0.0
      %v2297 = vmul.f32 %v2040, 0.01
      %v2298 = vmul.f32 %v2042, 0.01
      %v2299 = vmul.f32 %v2117, 0.01
      %v2300 = vmul.f32 %v2119, 0.01
      %v2301 = vmul.f32 %v2194, 0.01
      %v2302 = vmul.f32 %v2196, 0.01
      %v2303 = vmul.f32 %v2271, 0.01
      %v2304 = vmul.f32 %v2273, 0.01
      %v2305 = vmul.f32 %v2046, 0.01
      %v2306 = vmul.f32 %v2048, 0.01
      %v2307 = vmul.f32 %v2123, 0.01
      %v2308 = vmul.f32 %v2125, 0.01
      %v2309 = vmul.f32 %v2200, 0.01
      %v2310 = vmul.f32 %v2202, 0.01
      %v2311 = vmul.f32 %v2277, 0.01
      %v2312 = vmul.f32 %v2279, 0.01
      %v2313 = vsel %vm2281, %v2040, %v2297
      %v2314 = vsel %vm2282, %v2042, %v2298
      %v2315 = vsel %vm2283, %v2117, %v2299
      %v2316 = vsel %vm2284, %v2119, %v2300
      %v2317 = vsel %vm2285, %v2194, %v2301
      %v2318 = vsel %vm2286, %v2196, %v2302
      %v2319 = vsel %vm2287, %v2271, %v2303
      %v2320 = vsel %vm2288, %v2273, %v2304
      %v2321 = vsel %vm2289, %v2046, %v2305
      %v2322 = vsel %vm2290, %v2048, %v2306
      %v2323 = vsel %vm2291, %v2123, %v2307
      %v2324 = vsel %vm2292, %v2125, %v2308
      %v2325 = vsel %vm2293, %v2200, %v2309
      %v2326 = vsel %vm2294, %v2202, %v2310
      %v2327 = vsel %vm2295, %v2277, %v2311
      %v2328 = vsel %vm2296, %v2279, %v2312
      %v2329 = vld [vmem:[%s8] sm:$0xff]
      %v2330 = vld [vmem:[%s8 + $0x8] sm:$0xf]
      %vm2331 = vcmask 130048
      %v2333 = vsel %vm2331, %v2329, 0
      %v2336 = vsel %vm2331, %v2330, 0
      %2338 = vmatprep.subr.mxu0 %v2314
      %2339 = vmatpush1.msra.mxu0 %v2313
      %2340 = vmatprep.subr.mxu0 %v2322
      %2341 = vmatpush1.msra.mxu0 %v2321
      %2342 = vmatprep.subr.mxu0 0.0
      %2343 = vmatpush1.msra.mxu0 0.0
      %2344 = vmatprep.subr.mxu0 0.0
      %2345 = vmatpush1.msra.mxu0 0.0
      %2346 = vmatprep.subr.mxu0 0.0
      %2347 = vmatpush1.msra.mxu0 0.0
      %2348 = vmatprep.subr.mxu0 0.0
      %2349 = vmatpush1.msra.mxu0 0.0
      %2350 = vmatprep.subr.mxu0 0.0
      %2351 = vmatpush1.msra.mxu0 0.0
      %2352 = vmatprep.subr.mxu0 0.0
      %2353 = vmatpush1.msra.mxu0 0.0
      %2354 = vmatprep.subr.mxu0 0.0
      %2355 = vmatpush1.msra.mxu0 0.0
      %2356 = vmatprep.subr.mxu0 0.0
      %2357 = vmatpush1.msra.mxu0 0.0
      %2358 = vmatprep.subr.mxu0 0.0
      %2359 = vmatpush1.msra.mxu0 0.0
      %2360 = vmatprep.subr.mxu0 0.0
      %2361 = vmatpush1.msra.mxu0 0.0
      %2362 = vmatprep.subr.mxu0 0.0
      %2363 = vmatpush1.msra.mxu0 0.0
      %2364 = vmatprep.subr.mxu0 0.0
      %2365 = vmatpush1.msra.mxu0 0.0
      %2366 = vmatprep.subr.mxu0 0.0
      %2367 = vmatpush1.msra.mxu0 0.0
      %2368 = vmatprep.subr.mxu0 0.0
      %2369 = vmatpush1.msra.mxu0 0.0
      %2370 = vmatprep.subr.mxu0 0.0
      %2371 = vmatpush1.msra.mxu0 0.0
      %2372 = vmatprep.subr.mxu0 0.0
      %2373 = vmatpush1.msra.mxu0 0.0
      %2374 = vmatprep.subr.mxu0 0.0
      %2375 = vmatpush1.msra.mxu0 0.0
      %2376 = vmatprep.subr.mxu0 0.0
      %2377 = vmatpush1.msra.mxu0 0.0
      %2378 = vmatprep.subr.mxu0 0.0
      %2379 = vmatpush1.msra.mxu0 0.0
      %2380 = vmatprep.subr.mxu0 0.0
      %2381 = vmatpush1.msra.mxu0 0.0
      %2382 = vmatprep.subr.mxu0 0.0
      %2383 = vmatpush1.msra.mxu0 0.0
      %2384 = vmatprep.subr.mxu0 0.0
      %2385 = vmatpush1.msra.mxu0 0.0
      %2386 = vmatprep.subr.mxu0 0.0
      %2387 = vmatpush1.msra.mxu0 0.0
      %2388 = vmatprep.subr.mxu0 0.0
      %2389 = vmatpush1.msra.mxu0 0.0
      %2390 = vmatprep.subr.mxu0 0.0
      %2391 = vmatpush1.msra.mxu0 0.0
      %2392 = vmatprep.subr.mxu0 0.0
      %2393 = vmatpush1.msra.mxu0 0.0
      %2394 = vmatprep.subr.mxu0 0.0
      %2395 = vmatpush1.msra.mxu0 0.0
      %2396 = vmatprep.subr.mxu0 0.0
      %2397 = vmatpush1.msra.mxu0 0.0
      %2398 = vmatprep.subr.mxu0 0.0
      %2399 = vmatpush1.msra.mxu0 0.0
      %2400 = vmatprep.subr.mxu0 0.0
      %2401 = vmatpush1.msra.mxu0 0.0
      %2402 = vmatprep.mubr.f32.mxu0 0.0
      %2403 = vmatmul.mubr.f32.gmra.mrb[0].mxu0 %v2333
      %v2404 = vpop.f32.mrb[0].mxu0
      %v2405 = vadd.f32 0.0, %v2404
      %v2406 = vpop.f32.mrb[0].mxu0
      %v2407 = vadd.f32 0.0, %v2406
      %2408 = vmatprep.mubr.f32.mxu0 0.0
      %2409 = vmatmul.mubr.f32.gmra.mrb[0].mxu0 %v2336
      %v2410 = vpop.f32.mrb[0].mxu0
      %v2411 = vadd.f32 0.0, %v2410
      %v2412 = vpop.f32.mrb[0].mxu0
      %v2413 = vadd.f32 0.0, %v2412
      %2414 = vdwg.mxu0
      %2415 = vmatprep.subr.mxu0 %v2316
      %2416 = vmatpush1.msra.mxu0 %v2315
      %2417 = vmatprep.subr.mxu0 %v2324
      %2418 = vmatpush1.msra.mxu0 %v2323
      %2419 = vmatprep.subr.mxu0 0.0
      %2420 = vmatpush1.msra.mxu0 0.0
      %2421 = vmatprep.subr.mxu0 0.0
      %2422 = vmatpush1.msra.mxu0 0.0
      %2423 = vmatprep.subr.mxu0 0.0
      %2424 = vmatpush1.msra.mxu0 0.0
      %2425 = vmatprep.subr.mxu0 0.0
      %2426 = vmatpush1.msra.mxu0 0.0
      %2427 = vmatprep.subr.mxu0 0.0
      %2428 = vmatpush1.msra.mxu0 0.0
      %2429 = vmatprep.subr.mxu0 0.0
      %2430 = vmatpush1.msra.mxu0 0.0
      %2431 = vmatprep.subr.mxu0 0.0
      %2432 = vmatpush1.msra.mxu0 0.0
      %2433 = vmatprep.subr.mxu0 0.0
      %2434 = vmatpush1.msra.mxu0 0.0
      %2435 = vmatprep.subr.mxu0 0.0
      %2436 = vmatpush1.msra.mxu0 0.0
      %2437 = vmatprep.subr.mxu0 0.0
      %2438 = vmatpush1.msra.mxu0 0.0
      %2439 = vmatprep.subr.mxu0 0.0
      %2440 = vmatpush1.msra.mxu0 0.0
      %2441 = vmatprep.subr.mxu0 0.0
      %2442 = vmatpush1.msra.mxu0 0.0
      %2443 = vmatprep.subr.mxu0 0.0
      %2444 = vmatpush1.msra.mxu0 0.0
      %2445 = vmatprep.subr.mxu0 0.0
      %2446 = vmatpush1.msra.mxu0 0.0
      %2447 = vmatprep.subr.mxu0 0.0
      %2448 = vmatpush1.msra.mxu0 0.0
      %2449 = vmatprep.subr.mxu0 0.0
      %2450 = vmatpush1.msra.mxu0 0.0
      %2451 = vmatprep.subr.mxu0 0.0
      %2452 = vmatpush1.msra.mxu0 0.0
      %2453 = vmatprep.subr.mxu0 0.0
      %2454 = vmatpush1.msra.mxu0 0.0
      %2455 = vmatprep.subr.mxu0 0.0
      %2456 = vmatpush1.msra.mxu0 0.0
      %2457 = vmatprep.subr.mxu0 0.0
      %2458 = vmatpush1.msra.mxu0 0.0
      %2459 = vmatprep.subr.mxu0 0.0
      %2460 = vmatpush1.msra.mxu0 0.0
      %2461 = vmatprep.subr.mxu0 0.0
      %2462 = vmatpush1.msra.mxu0 0.0
      %2463 = vmatprep.subr.mxu0 0.0
      %2464 = vmatpush1.msra.mxu0 0.0
      %2465 = vmatprep.subr.mxu0 0.0
      %2466 = vmatpush1.msra.mxu0 0.0
      %2467 = vmatprep.subr.mxu0 0.0
      %2468 = vmatpush1.msra.mxu0 0.0
      %2469 = vmatprep.subr.mxu0 0.0
      %2470 = vmatpush1.msra.mxu0 0.0
      %2471 = vmatprep.subr.mxu0 0.0
      %2472 = vmatpush1.msra.mxu0 0.0
      %2473 = vmatprep.subr.mxu0 0.0
      %2474 = vmatpush1.msra.mxu0 0.0
      %2475 = vmatprep.subr.mxu0 0.0
      %2476 = vmatpush1.msra.mxu0 0.0
      %2477 = vmatprep.subr.mxu0 0.0
      %2478 = vmatpush1.msra.mxu0 0.0
      %2479 = vmatprep.mubr.f32.mxu0 0.0
      %2480 = vmatmul.mubr.f32.gmra.mrb[0].mxu0 %v2333
      %v2481 = vpop.f32.mrb[0].mxu0
      %v2482 = vadd.f32 0.0, %v2481
      %v2483 = vpop.f32.mrb[0].mxu0
      %v2484 = vadd.f32 0.0, %v2483
      %2485 = vmatprep.mubr.f32.mxu0 0.0
      %2486 = vmatmul.mubr.f32.gmra.mrb[0].mxu0 %v2336
      %v2487 = vpop.f32.mrb[0].mxu0
      %v2488 = vadd.f32 0.0, %v2487
      %v2489 = vpop.f32.mrb[0].mxu0
      %v2490 = vadd.f32 0.0, %v2489
      %2491 = vdwg.mxu0
      %2492 = vmatprep.subr.mxu0 %v2318
      %2493 = vmatpush1.msra.mxu0 %v2317
      %2494 = vmatprep.subr.mxu0 %v2326
      %2495 = vmatpush1.msra.mxu0 %v2325
      %2496 = vmatprep.subr.mxu0 0.0
      %2497 = vmatpush1.msra.mxu0 0.0
      %2498 = vmatprep.subr.mxu0 0.0
      %2499 = vmatpush1.msra.mxu0 0.0
      %2500 = vmatprep.subr.mxu0 0.0
      %2501 = vmatpush1.msra.mxu0 0.0
      %2502 = vmatprep.subr.mxu0 0.0
      %2503 = vmatpush1.msra.mxu0 0.0
      %2504 = vmatprep.subr.mxu0 0.0
      %2505 = vmatpush1.msra.mxu0 0.0
      %2506 = vmatprep.subr.mxu0 0.0
      %2507 = vmatpush1.msra.mxu0 0.0
      %2508 = vmatprep.subr.mxu0 0.0
      %2509 = vmatpush1.msra.mxu0 0.0
      %2510 = vmatprep.subr.mxu0 0.0
      %2511 = vmatpush1.msra.mxu0 0.0
      %2512 = vmatprep.subr.mxu0 0.0
      %2513 = vmatpush1.msra.mxu0 0.0
      %2514 = vmatprep.subr.mxu0 0.0
      %2515 = vmatpush1.msra.mxu0 0.0
      %2516 = vmatprep.subr.mxu0 0.0
      %2517 = vmatpush1.msra.mxu0 0.0
      %2518 = vmatprep.subr.mxu0 0.0
      %2519 = vmatpush1.msra.mxu0 0.0
      %2520 = vmatprep.subr.mxu0 0.0
      %2521 = vmatpush1.msra.mxu0 0.0
      %2522 = vmatprep.subr.mxu0 0.0
      %2523 = vmatpush1.msra.mxu0 0.0
      %2524 = vmatprep.subr.mxu0 0.0
      %2525 = vmatpush1.msra.mxu0 0.0
      %2526 = vmatprep.subr.mxu0 0.0
      %2527 = vmatpush1.msra.mxu0 0.0
      %2528 = vmatprep.subr.mxu0 0.0
      %2529 = vmatpush1.msra.mxu0 0.0
      %2530 = vmatprep.subr.mxu0 0.0
      %2531 = vmatpush1.msra.mxu0 0.0
      %2532 = vmatprep.subr.mxu0 0.0
      %2533 = vmatpush1.msra.mxu0 0.0
      %2534 = vmatprep.subr.mxu0 0.0
      %2535 = vmatpush1.msra.mxu0 0.0
      %2536 = vmatprep.subr.mxu0 0.0
      %2537 = vmatpush1.msra.mxu0 0.0
      %2538 = vmatprep.subr.mxu0 0.0
      %2539 = vmatpush1.msra.mxu0 0.0
      %2540 = vmatprep.subr.mxu0 0.0
      %2541 = vmatpush1.msra.mxu0 0.0
      %2542 = vmatprep.subr.mxu0 0.0
      %2543 = vmatpush1.msra.mxu0 0.0
      %2544 = vmatprep.subr.mxu0 0.0
      %2545 = vmatpush1.msra.mxu0 0.0
      %2546 = vmatprep.subr.mxu0 0.0
      %2547 = vmatpush1.msra.mxu0 0.0
      %2548 = vmatprep.subr.mxu0 0.0
      %2549 = vmatpush1.msra.mxu0 0.0
      %2550 = vmatprep.subr.mxu0 0.0
      %2551 = vmatpush1.msra.mxu0 0.0
      %2552 = vmatprep.subr.mxu0 0.0
      %2553 = vmatpush1.msra.mxu0 0.0
      %2554 = vmatprep.subr.mxu0 0.0
      %2555 = vmatpush1.msra.mxu0 0.0
      %2556 = vmatprep.mubr.f32.mxu0 0.0
      %2557 = vmatmul.mubr.f32.gmra.mrb[0].mxu0 %v2333
      %v2558 = vpop.f32.mrb[0].mxu0
      %v2559 = vadd.f32 0.0, %v2558
      %v2560 = vpop.f32.mrb[0].mxu0
      %v2561 = vadd.f32 0.0, %v2560
      %2562 = vmatprep.mubr.f32.mxu0 0.0
      %2563 = vmatmul.mubr.f32.gmra.mrb[0].mxu0 %v2336
      %v2564 = vpop.f32.mrb[0].mxu0
      %v2565 = vadd.f32 0.0, %v2564
      %v2566 = vpop.f32.mrb[0].mxu0
      %v2567 = vadd.f32 0.0, %v2566
      %2568 = vdwg.mxu0
      %2569 = vmatprep.subr.mxu0 %v2320
      %2570 = vmatpush1.msra.mxu0 %v2319
      %2571 = vmatprep.subr.mxu0 %v2328
      %2572 = vmatpush1.msra.mxu0 %v2327
      %2573 = vmatprep.subr.mxu0 0.0
      %2574 = vmatpush1.msra.mxu0 0.0
      %2575 = vmatprep.subr.mxu0 0.0
      %2576 = vmatpush1.msra.mxu0 0.0
      %2577 = vmatprep.subr.mxu0 0.0
      %2578 = vmatpush1.msra.mxu0 0.0
      %2579 = vmatprep.subr.mxu0 0.0
      %2580 = vmatpush1.msra.mxu0 0.0
      %2581 = vmatprep.subr.mxu0 0.0
      %2582 = vmatpush1.msra.mxu0 0.0
      %2583 = vmatprep.subr.mxu0 0.0
      %2584 = vmatpush1.msra.mxu0 0.0
      %2585 = vmatprep.subr.mxu0 0.0
      %2586 = vmatpush1.msra.mxu0 0.0
      %2587 = vmatprep.subr.mxu0 0.0
      %2588 = vmatpush1.msra.mxu0 0.0
      %2589 = vmatprep.subr.mxu0 0.0
      %2590 = vmatpush1.msra.mxu0 0.0
      %2591 = vmatprep.subr.mxu0 0.0
      %2592 = vmatpush1.msra.mxu0 0.0
      %2593 = vmatprep.subr.mxu0 0.0
      %2594 = vmatpush1.msra.mxu0 0.0
      %2595 = vmatprep.subr.mxu0 0.0
      %2596 = vmatpush1.msra.mxu0 0.0
      %2597 = vmatprep.subr.mxu0 0.0
      %2598 = vmatpush1.msra.mxu0 0.0
      %2599 = vmatprep.subr.mxu0 0.0
      %2600 = vmatpush1.msra.mxu0 0.0
      %2601 = vmatprep.subr.mxu0 0.0
      %2602 = vmatpush1.msra.mxu0 0.0
      %2603 = vmatprep.subr.mxu0 0.0
      %2604 = vmatpush1.msra.mxu0 0.0
      %2605 = vmatprep.subr.mxu0 0.0
      %2606 = vmatpush1.msra.mxu0 0.0
      %2607 = vmatprep.subr.mxu0 0.0
      %2608 = vmatpush1.msra.mxu0 0.0
      %2609 = vmatprep.subr.mxu0 0.0
      %2610 = vmatpush1.msra.mxu0 0.0
      %2611 = vmatprep.subr.mxu0 0.0
      %2612 = vmatpush1.msra.mxu0 0.0
      %2613 = vmatprep.subr.mxu0 0.0
      %2614 = vmatpush1.msra.mxu0 0.0
      %2615 = vmatprep.subr.mxu0 0.0
      %2616 = vmatpush1.msra.mxu0 0.0
      %2617 = vmatprep.subr.mxu0 0.0
      %2618 = vmatpush1.msra.mxu0 0.0
      %2619 = vmatprep.subr.mxu0 0.0
      %2620 = vmatpush1.msra.mxu0 0.0
      %2621 = vmatprep.subr.mxu0 0.0
      %2622 = vmatpush1.msra.mxu0 0.0
      %2623 = vmatprep.subr.mxu0 0.0
      %2624 = vmatpush1.msra.mxu0 0.0
      %2625 = vmatprep.subr.mxu0 0.0
      %2626 = vmatpush1.msra.mxu0 0.0
      %2627 = vmatprep.subr.mxu0 0.0
      %2628 = vmatpush1.msra.mxu0 0.0
      %2629 = vmatprep.subr.mxu0 0.0
      %2630 = vmatpush1.msra.mxu0 0.0
      %2631 = vmatprep.subr.mxu0 0.0
      %2632 = vmatpush1.msra.mxu0 0.0
      %2633 = vmatprep.mubr.f32.mxu0 0.0
      %2634 = vmatmul.mubr.f32.gmra.mrb[0].mxu0 %v2333
      %v2635 = vpop.f32.mrb[0].mxu0
      %v2636 = vadd.f32 0.0, %v2635
      %v2637 = vpop.f32.mrb[0].mxu0
      %v2638 = vadd.f32 0.0, %v2637
      %2639 = vmatprep.mubr.f32.mxu0 0.0
      %2640 = vmatmul.mubr.f32.gmra.mrb[0].mxu0 %v2336
      %v2641 = vpop.f32.mrb[0].mxu0
      %v2642 = vadd.f32 0.0, %v2641
      %v2643 = vpop.f32.mrb[0].mxu0
      %v2644 = vadd.f32 0.0, %v2643
      %2645 = vdwg.mxu0
      %v2646 = vld [vmem:[%s467] sm:$0x77]
      %v2647 = vld [vmem:[%s467 + $0x8] sm:$0x77]
      %v2648 = vld [vmem:[%s467 + $0x10] sm:$0x77]
      %v2649 = vld [vmem:[%s467 + $0x18] sm:$0x77]
      %v2650 = vld [vmem:[%s487] sm:$0xff]
      %v2651 = vld [vmem:[%s487 + $0x8] sm:$0xff]
      %v2652 = vld [vmem:[%s487 + $0x10] sm:$0xff]
      %v2653 = vld [vmem:[%s487 + $0x18] sm:$0xff]
      %v2654 = vld [vmem:[%s487 + $0x20] sm:$0xff]
      %v2655 = vld [vmem:[%s487 + $0x28] sm:$0xff]
      %v2656 = vld [vmem:[%s487 + $0x30] sm:$0xff]
      %v2657 = vld [vmem:[%s487 + $0x38] sm:$0xff]
      %v2658 = vld [vmem:[%s487 + $0x40] sm:$0xff]
      %v2659 = vld [vmem:[%s487 + $0x48] sm:$0xff]
      %v2660 = vld [vmem:[%s487 + $0x50] sm:$0xff]
      %v2661 = vld [vmem:[%s487 + $0x58] sm:$0xff]
      %v2662 = vld [vmem:[%s487 + $0x60] sm:$0xff]
      %v2663 = vld [vmem:[%s487 + $0x68] sm:$0xff]
      %v2664 = vld [vmem:[%s487 + $0x70] sm:$0xff]
      %v2665 = vld [vmem:[%s487 + $0x78] sm:$0xff]
      %v2666 = vld [vmem:[%s487 + $0x80] sm:$0xff]
      %v2667 = vld [vmem:[%s487 + $0x88] sm:$0xff]
      %v2668 = vld [vmem:[%s487 + $0x90] sm:$0xff]
      %v2669 = vld [vmem:[%s487 + $0x98] sm:$0xff]
      %v2670 = vld [vmem:[%s487 + $0xa0] sm:$0xff]
      %v2671 = vld [vmem:[%s487 + $0xa8] sm:$0xff]
      %v2672 = vld [vmem:[%s487 + $0xb0] sm:$0xff]
      %v2673 = vld [vmem:[%s487 + $0xb8] sm:$0xff]
      %v2674 = vld [vmem:[%s487 + $0xc0] sm:$0xff]
      %v2675 = vld [vmem:[%s487 + $0xc8] sm:$0xff]
      %v2676 = vld [vmem:[%s487 + $0xd0] sm:$0xff]
      %v2677 = vld [vmem:[%s487 + $0xd8] sm:$0xff]
      %v2678 = vld [vmem:[%s487 + $0xe0] sm:$0xff]
      %v2679 = vld [vmem:[%s487 + $0xe8] sm:$0xff]
      %v2680 = vld [vmem:[%s487 + $0xf0] sm:$0xff]
      %v2681 = vld [vmem:[%s487 + $0xf8] sm:$0xff]
      %v2686 = vcombine.high %v2646, %v2646
      %v2687 = vcombine.high %v2647, %v2647
      %v2688 = vcombine.high %v2648, %v2648
      %v2689 = vcombine.high %v2649, %v2649
      %v2690 = vsel %vm559, %v2646, 0
      %v2692 = vsel %vm559, %v2686, 0
      %v2694 = vsel %vm559, %v2647, 0
      %v2696 = vsel %vm559, %v2687, 0
      %v2698 = vsel %vm559, %v2648, 0
      %v2700 = vsel %vm559, %v2688, 0
      %v2702 = vsel %vm559, %v2649, 0
      %v2704 = vsel %vm559, %v2689, 0
      %2706 = vmatprep.subr.mxu0 %v2692
      %2707 = vmatpush1.msra.mxu0 %v2690
      %2708 = vmatprep.subr.mxu0 0.0
      %2709 = vmatpush1.msra.mxu0 0.0
      %2710 = vmatprep.subr.mxu0 0.0
      %2711 = vmatpush1.msra.mxu0 0.0
      %2712 = vmatprep.subr.mxu0 0.0
      %2713 = vmatpush1.msra.mxu0 0.0
      %2714 = vmatprep.subr.mxu0 0.0
      %2715 = vmatpush1.msra.mxu0 0.0
      %2716 = vmatprep.subr.mxu0 0.0
      %2717 = vmatpush1.msra.mxu0 0.0
      %2718 = vmatprep.subr.mxu0 0.0
      %2719 = vmatpush1.msra.mxu0 0.0
      %2720 = vmatprep.subr.mxu0 0.0
      %2721 = vmatpush1.msra.mxu0 0.0
      %2722 = vmatprep.subr.mxu0 0.0
      %2723 = vmatpush1.msra.mxu0 0.0
      %2724 = vmatprep.subr.mxu0 0.0
      %2725 = vmatpush1.msra.mxu0 0.0
      %2726 = vmatprep.subr.mxu0 0.0
      %2727 = vmatpush1.msra.mxu0 0.0
      %2728 = vmatprep.subr.mxu0 0.0
      %2729 = vmatpush1.msra.mxu0 0.0
      %2730 = vmatprep.subr.mxu0 0.0
      %2731 = vmatpush1.msra.mxu0 0.0
      %2732 = vmatprep.subr.mxu0 0.0
      %2733 = vmatpush1.msra.mxu0 0.0
      %2734 = vmatprep.subr.mxu0 0.0
      %2735 = vmatpush1.msra.mxu0 0.0
      %2736 = vmatprep.subr.mxu0 0.0
      %2737 = vmatpush1.msra.mxu0 0.0
      %2738 = vmatprep.subr.mxu0 0.0
      %2739 = vmatpush1.msra.mxu0 0.0
      %2740 = vmatprep.subr.mxu0 0.0
      %2741 = vmatpush1.msra.mxu0 0.0
      %2742 = vmatprep.subr.mxu0 0.0
      %2743 = vmatpush1.msra.mxu0 0.0
      %2744 = vmatprep.subr.mxu0 0.0
      %2745 = vmatpush1.msra.mxu0 0.0
      %2746 = vmatprep.subr.mxu0 0.0
      %2747 = vmatpush1.msra.mxu0 0.0
      %2748 = vmatprep.subr.mxu0 0.0
      %2749 = vmatpush1.msra.mxu0 0.0
      %2750 = vmatprep.subr.mxu0 0.0
      %2751 = vmatpush1.msra.mxu0 0.0
      %2752 = vmatprep.subr.mxu0 0.0
      %2753 = vmatpush1.msra.mxu0 0.0
      %2754 = vmatprep.subr.mxu0 0.0
      %2755 = vmatpush1.msra.mxu0 0.0
      %2756 = vmatprep.subr.mxu0 0.0
      %2757 = vmatpush1.msra.mxu0 0.0
      %2758 = vmatprep.subr.mxu0 0.0
      %2759 = vmatpush1.msra.mxu0 0.0
      %2760 = vmatprep.subr.mxu0 0.0
      %2761 = vmatpush1.msra.mxu0 0.0
      %2762 = vmatprep.subr.mxu0 0.0
      %2763 = vmatpush1.msra.mxu0 0.0
      %2764 = vmatprep.subr.mxu0 0.0
      %2765 = vmatpush1.msra.mxu0 0.0
      %2766 = vmatprep.subr.mxu0 0.0
      %2767 = vmatpush1.msra.mxu0 0.0
      %2768 = vmatprep.subr.mxu0 0.0
      %2769 = vmatpush1.msra.mxu0 0.0
      %2770 = vmatprep.mubr.f32.mxu0 0.0
      %2771 = vmatmul.mubr.f32.gmra.mrb[0].mxu0 %v548
      %v2772 = vpop.f32.mrb[0].mxu0
      %v2773 = vadd.f32 0.0, %v2772
      %v2774 = vpop.f32.mrb[0].mxu0
      %v2775 = vadd.f32 0.0, %v2774
      %2776 = vmatprep.mubr.f32.mxu0 0.0
      %2777 = vmatmul.mubr.f32.gmra.mrb[0].mxu0 %v551
      %v2778 = vpop.f32.mrb[0].mxu0
      %v2779 = vadd.f32 0.0, %v2778
      %v2780 = vpop.f32.mrb[0].mxu0
      %v2781 = vadd.f32 0.0, %v2780
      %2782 = vmatprep.mubr.f32.mxu0 0.0
      %2783 = vmatmul.mubr.f32.gmra.mrb[0].mxu0 %v554
      %v2784 = vpop.f32.mrb[0].mxu0
      %v2785 = vadd.f32 0.0, %v2784
      %v2786 = vpop.f32.mrb[0].mxu0
      %v2787 = vadd.f32 0.0, %v2786
      %2788 = vmatprep.mubr.f32.mxu0 0.0
      %2789 = vmatmul.mubr.f32.gmra.mrb[0].mxu0 %v557
      %v2790 = vpop.f32.mrb[0].mxu0
      %v2791 = vadd.f32 0.0, %v2790
      %v2792 = vpop.f32.mrb[0].mxu0
      %v2793 = vadd.f32 0.0, %v2792
      %2794 = vdwg.mxu0
      %2795 = vmatprep.subr.mxu0 %v2696
      %2796 = vmatpush1.msra.mxu0 %v2694
      %2797 = vmatprep.subr.mxu0 0.0
      %2798 = vmatpush1.msra.mxu0 0.0
      %2799 = vmatprep.subr.mxu0 0.0
      %2800 = vmatpush1.msra.mxu0 0.0
      %2801 = vmatprep.subr.mxu0 0.0
      %2802 = vmatpush1.msra.mxu0 0.0
      %2803 = vmatprep.subr.mxu0 0.0
      %2804 = vmatpush1.msra.mxu0 0.0
      %2805 = vmatprep.subr.mxu0 0.0
      %2806 = vmatpush1.msra.mxu0 0.0
      %2807 = vmatprep.subr.mxu0 0.0
      %2808 = vmatpush1.msra.mxu0 0.0
      %2809 = vmatprep.subr.mxu0 0.0
      %2810 = vmatpush1.msra.mxu0 0.0
      %2811 = vmatprep.subr.mxu0 0.0
      %2812 = vmatpush1.msra.mxu0 0.0
      %2813 = vmatprep.subr.mxu0 0.0
      %2814 = vmatpush1.msra.mxu0 0.0
      %2815 = vmatprep.subr.mxu0 0.0
      %2816 = vmatpush1.msra.mxu0 0.0
      %2817 = vmatprep.subr.mxu0 0.0
      %2818 = vmatpush1.msra.mxu0 0.0
      %2819 = vmatprep.subr.mxu0 0.0
      %2820 = vmatpush1.msra.mxu0 0.0
      %2821 = vmatprep.subr.mxu0 0.0
      %2822 = vmatpush1.msra.mxu0 0.0
      %2823 = vmatprep.subr.mxu0 0.0
      %2824 = vmatpush1.msra.mxu0 0.0
      %2825 = vmatprep.subr.mxu0 0.0
      %2826 = vmatpush1.msra.mxu0 0.0
      %2827 = vmatprep.subr.mxu0 0.0
      %2828 = vmatpush1.msra.mxu0 0.0
      %2829 = vmatprep.subr.mxu0 0.0
      %2830 = vmatpush1.msra.mxu0 0.0
      %2831 = vmatprep.subr.mxu0 0.0
      %2832 = vmatpush1.msra.mxu0 0.0
      %2833 = vmatprep.subr.mxu0 0.0
      %2834 = vmatpush1.msra.mxu0 0.0
      %2835 = vmatprep.subr.mxu0 0.0
      %2836 = vmatpush1.msra.mxu0 0.0
      %2837 = vmatprep.subr.mxu0 0.0
      %2838 = vmatpush1.msra.mxu0 0.0
      %2839 = vmatprep.subr.mxu0 0.0
      %2840 = vmatpush1.msra.mxu0 0.0
      %2841 = vmatprep.subr.mxu0 0.0
      %2842 = vmatpush1.msra.mxu0 0.0
      %2843 = vmatprep.subr.mxu0 0.0
      %2844 = vmatpush1.msra.mxu0 0.0
      %2845 = vmatprep.subr.mxu0 0.0
      %2846 = vmatpush1.msra.mxu0 0.0
      %2847 = vmatprep.subr.mxu0 0.0
      %2848 = vmatpush1.msra.mxu0 0.0
      %2849 = vmatprep.subr.mxu0 0.0
      %2850 = vmatpush1.msra.mxu0 0.0
      %2851 = vmatprep.subr.mxu0 0.0
      %2852 = vmatpush1.msra.mxu0 0.0
      %2853 = vmatprep.subr.mxu0 0.0
      %2854 = vmatpush1.msra.mxu0 0.0
      %2855 = vmatprep.subr.mxu0 0.0
      %2856 = vmatpush1.msra.mxu0 0.0
      %2857 = vmatprep.subr.mxu0 0.0
      %2858 = vmatpush1.msra.mxu0 0.0
      %2859 = vmatprep.mubr.f32.mxu0 0.0
      %2860 = vmatmul.mubr.f32.gmra.mrb[0].mxu0 %v548
      %v2861 = vpop.f32.mrb[0].mxu0
      %v2862 = vadd.f32 0.0, %v2861
      %v2863 = vpop.f32.mrb[0].mxu0
      %v2864 = vadd.f32 0.0, %v2863
      %2865 = vmatprep.mubr.f32.mxu0 0.0
      %2866 = vmatmul.mubr.f32.gmra.mrb[0].mxu0 %v551
      %v2867 = vpop.f32.mrb[0].mxu0
      %v2868 = vadd.f32 0.0, %v2867
      %v2869 = vpop.f32.mrb[0].mxu0
      %v2870 = vadd.f32 0.0, %v2869
      %2871 = vmatprep.mubr.f32.mxu0 0.0
      %2872 = vmatmul.mubr.f32.gmra.mrb[0].mxu0 %v554
      %v2873 = vpop.f32.mrb[0].mxu0
      %v2874 = vadd.f32 0.0, %v2873
      %v2875 = vpop.f32.mrb[0].mxu0
      %v2876 = vadd.f32 0.0, %v2875
      %2877 = vmatprep.mubr.f32.mxu0 0.0
      %2878 = vmatmul.mubr.f32.gmra.mrb[0].mxu0 %v557
      %v2879 = vpop.f32.mrb[0].mxu0
      %v2880 = vadd.f32 0.0, %v2879
      %v2881 = vpop.f32.mrb[0].mxu0
      %v2882 = vadd.f32 0.0, %v2881
      %2883 = vdwg.mxu0
      %2884 = vmatprep.subr.mxu0 %v2700
      %2885 = vmatpush1.msra.mxu0 %v2698
      %2886 = vmatprep.subr.mxu0 0.0
      %2887 = vmatpush1.msra.mxu0 0.0
      %2888 = vmatprep.subr.mxu0 0.0
      %2889 = vmatpush1.msra.mxu0 0.0
      %2890 = vmatprep.subr.mxu0 0.0
      %2891 = vmatpush1.msra.mxu0 0.0
      %2892 = vmatprep.subr.mxu0 0.0
      %2893 = vmatpush1.msra.mxu0 0.0
      %2894 = vmatprep.subr.mxu0 0.0
      %2895 = vmatpush1.msra.mxu0 0.0
      %2896 = vmatprep.subr.mxu0 0.0
      %2897 = vmatpush1.msra.mxu0 0.0
      %2898 = vmatprep.subr.mxu0 0.0
      %2899 = vmatpush1.msra.mxu0 0.0
      %2900 = vmatprep.subr.mxu0 0.0
      %2901 = vmatpush1.msra.mxu0 0.0
      %2902 = vmatprep.subr.mxu0 0.0
      %2903 = vmatpush1.msra.mxu0 0.0
      %2904 = vmatprep.subr.mxu0 0.0
      %2905 = vmatpush1.msra.mxu0 0.0
      %2906 = vmatprep.subr.mxu0 0.0
      %2907 = vmatpush1.msra.mxu0 0.0
      %2908 = vmatprep.subr.mxu0 0.0
      %2909 = vmatpush1.msra.mxu0 0.0
      %2910 = vmatprep.subr.mxu0 0.0
      %2911 = vmatpush1.msra.mxu0 0.0
      %2912 = vmatprep.subr.mxu0 0.0
      %2913 = vmatpush1.msra.mxu0 0.0
      %2914 = vmatprep.subr.mxu0 0.0
      %2915 = vmatpush1.msra.mxu0 0.0
      %2916 = vmatprep.subr.mxu0 0.0
      %2917 = vmatpush1.msra.mxu0 0.0
      %2918 = vmatprep.subr.mxu0 0.0
      %2919 = vmatpush1.msra.mxu0 0.0
      %2920 = vmatprep.subr.mxu0 0.0
      %2921 = vmatpush1.msra.mxu0 0.0
      %2922 = vmatprep.subr.mxu0 0.0
      %2923 = vmatpush1.msra.mxu0 0.0
      %2924 = vmatprep.subr.mxu0 0.0
      %2925 = vmatpush1.msra.mxu0 0.0
      %2926 = vmatprep.subr.mxu0 0.0
      %2927 = vmatpush1.msra.mxu0 0.0
      %2928 = vmatprep.subr.mxu0 0.0
      %2929 = vmatpush1.msra.mxu0 0.0
      %2930 = vmatprep.subr.mxu0 0.0
      %2931 = vmatpush1.msra.mxu0 0.0
      %2932 = vmatprep.subr.mxu0 0.0
      %2933 = vmatpush1.msra.mxu0 0.0
      %2934 = vmatprep.subr.mxu0 0.0
      %2935 = vmatpush1.msra.mxu0 0.0
      %2936 = vmatprep.subr.mxu0 0.0
      %2937 = vmatpush1.msra.mxu0 0.0
      %2938 = vmatprep.subr.mxu0 0.0
      %2939 = vmatpush1.msra.mxu0 0.0
      %2940 = vmatprep.subr.mxu0 0.0
      %2941 = vmatpush1.msra.mxu0 0.0
      %2942 = vmatprep.subr.mxu0 0.0
      %2943 = vmatpush1.msra.mxu0 0.0
      %2944 = vmatprep.subr.mxu0 0.0
      %2945 = vmatpush1.msra.mxu0 0.0
      %2946 = vmatprep.subr.mxu0 0.0
      %2947 = vmatpush1.msra.mxu0 0.0
      %2948 = vmatprep.mubr.f32.mxu0 0.0
      %2949 = vmatmul.mubr.f32.gmra.mrb[0].mxu0 %v548
      %v2950 = vpop.f32.mrb[0].mxu0
      %v2951 = vadd.f32 0.0, %v2950
      %v2952 = vpop.f32.mrb[0].mxu0
      %v2953 = vadd.f32 0.0, %v2952
      %2954 = vmatprep.mubr.f32.mxu0 0.0
      %2955 = vmatmul.mubr.f32.gmra.mrb[0].mxu0 %v551
      %v2956 = vpop.f32.mrb[0].mxu0
      %v2957 = vadd.f32 0.0, %v2956
      %v2958 = vpop.f32.mrb[0].mxu0
      %v2959 = vadd.f32 0.0, %v2958
      %2960 = vmatprep.mubr.f32.mxu0 0.0
      %2961 = vmatmul.mubr.f32.gmra.mrb[0].mxu0 %v554
      %v2962 = vpop.f32.mrb[0].mxu0
      %v2963 = vadd.f32 0.0, %v2962
      %v2964 = vpop.f32.mrb[0].mxu0
      %v2965 = vadd.f32 0.0, %v2964
      %2966 = vmatprep.mubr.f32.mxu0 0.0
      %2967 = vmatmul.mubr.f32.gmra.mrb[0].mxu0 %v557
      %v2968 = vpop.f32.mrb[0].mxu0
      %v2969 = vadd.f32 0.0, %v2968
      %v2970 = vpop.f32.mrb[0].mxu0
      %v2971 = vadd.f32 0.0, %v2970
      %2972 = vdwg.mxu0
      %2973 = vmatprep.subr.mxu0 %v2704
      %2974 = vmatpush1.msra.mxu0 %v2702
      %2975 = vmatprep.subr.mxu0 0.0
      %2976 = vmatpush1.msra.mxu0 0.0
      %2977 = vmatprep.subr.mxu0 0.0
      %2978 = vmatpush1.msra.mxu0 0.0
      %2979 = vmatprep.subr.mxu0 0.0
      %2980 = vmatpush1.msra.mxu0 0.0
      %2981 = vmatprep.subr.mxu0 0.0
      %2982 = vmatpush1.msra.mxu0 0.0
      %2983 = vmatprep.subr.mxu0 0.0
      %2984 = vmatpush1.msra.mxu0 0.0
      %2985 = vmatprep.subr.mxu0 0.0
      %2986 = vmatpush1.msra.mxu0 0.0
      %2987 = vmatprep.subr.mxu0 0.0
      %2988 = vmatpush1.msra.mxu0 0.0
      %2989 = vmatprep.subr.mxu0 0.0
      %2990 = vmatpush1.msra.mxu0 0.0
      %2991 = vmatprep.subr.mxu0 0.0
      %2992 = vmatpush1.msra.mxu0 0.0
      %2993 = vmatprep.subr.mxu0 0.0
      %2994 = vmatpush1.msra.mxu0 0.0
      %2995 = vmatprep.subr.mxu0 0.0
      %2996 = vmatpush1.msra.mxu0 0.0
      %2997 = vmatprep.subr.mxu0 0.0
      %2998 = vmatpush1.msra.mxu0 0.0
      %2999 = vmatprep.subr.mxu0 0.0
      %3000 = vmatpush1.msra.mxu0 0.0
      %3001 = vmatprep.subr.mxu0 0.0
      %3002 = vmatpush1.msra.mxu0 0.0
      %3003 = vmatprep.subr.mxu0 0.0
      %3004 = vmatpush1.msra.mxu0 0.0
      %3005 = vmatprep.subr.mxu0 0.0
      %3006 = vmatpush1.msra.mxu0 0.0
      %3007 = vmatprep.subr.mxu0 0.0
      %3008 = vmatpush1.msra.mxu0 0.0
      %3009 = vmatprep.subr.mxu0 0.0
      %3010 = vmatpush1.msra.mxu0 0.0
      %3011 = vmatprep.subr.mxu0 0.0
      %3012 = vmatpush1.msra.mxu0 0.0
      %3013 = vmatprep.subr.mxu0 0.0
      %3014 = vmatpush1.msra.mxu0 0.0
      %3015 = vmatprep.subr.mxu0 0.0
      %3016 = vmatpush1.msra.mxu0 0.0
      %3017 = vmatprep.subr.mxu0 0.0
      %3018 = vmatpush1.msra.mxu0 0.0
      %3019 = vmatprep.subr.mxu0 0.0
      %3020 = vmatpush1.msra.mxu0 0.0
      %3021 = vmatprep.subr.mxu0 0.0
      %3022 = vmatpush1.msra.mxu0 0.0
      %3023 = vmatprep.subr.mxu0 0.0
      %3024 = vmatpush1.msra.mxu0 0.0
      %3025 = vmatprep.subr.mxu0 0.0
      %3026 = vmatpush1.msra.mxu0 0.0
      %3027 = vmatprep.subr.mxu0 0.0
      %3028 = vmatpush1.msra.mxu0 0.0
      %3029 = vmatprep.subr.mxu0 0.0
      %3030 = vmatpush1.msra.mxu0 0.0
      %3031 = vmatprep.subr.mxu0 0.0
      %3032 = vmatpush1.msra.mxu0 0.0
      %3033 = vmatprep.subr.mxu0 0.0
      %3034 = vmatpush1.msra.mxu0 0.0
      %3035 = vmatprep.subr.mxu0 0.0
      %3036 = vmatpush1.msra.mxu0 0.0
      %3037 = vmatprep.mubr.f32.mxu0 0.0
      %3038 = vmatmul.mubr.f32.gmra.mrb[0].mxu0 %v548
      %v3039 = vpop.f32.mrb[0].mxu0
      %v3040 = vadd.f32 0.0, %v3039
      %v3041 = vpop.f32.mrb[0].mxu0
      %v3042 = vadd.f32 0.0, %v3041
      %3043 = vmatprep.mubr.f32.mxu0 0.0
      %3044 = vmatmul.mubr.f32.gmra.mrb[0].mxu0 %v551
      %v3045 = vpop.f32.mrb[0].mxu0
      %v3046 = vadd.f32 0.0, %v3045
      %v3047 = vpop.f32.mrb[0].mxu0
      %v3048 = vadd.f32 0.0, %v3047
      %3049 = vmatprep.mubr.f32.mxu0 0.0
      %3050 = vmatmul.mubr.f32.gmra.mrb[0].mxu0 %v554
      %v3051 = vpop.f32.mrb[0].mxu0
      %v3052 = vadd.f32 0.0, %v3051
      %v3053 = vpop.f32.mrb[0].mxu0
      %v3054 = vadd.f32 0.0, %v3053
      %3055 = vmatprep.mubr.f32.mxu0 0.0
      %3056 = vmatmul.mubr.f32.gmra.mrb[0].mxu0 %v557
      %v3057 = vpop.f32.mrb[0].mxu0
      %v3058 = vadd.f32 0.0, %v3057
      %v3059 = vpop.f32.mrb[0].mxu0
      %v3060 = vadd.f32 0.0, %v3059
      %3061 = vdwg.mxu0
      %vm3062 = vcmp.ge.f32.partialorder %v2773, 0.0
      %vm3063 = vcmp.ge.f32.partialorder %v2775, 0.0
      %vm3064 = vcmp.ge.f32.partialorder %v2862, 0.0
      %vm3065 = vcmp.ge.f32.partialorder %v2864, 0.0
      %vm3066 = vcmp.ge.f32.partialorder %v2951, 0.0
      %vm3067 = vcmp.ge.f32.partialorder %v2953, 0.0
      %vm3068 = vcmp.ge.f32.partialorder %v3040, 0.0
      %vm3069 = vcmp.ge.f32.partialorder %v3042, 0.0
      %vm3070 = vcmp.ge.f32.partialorder %v2779, 0.0
      %vm3071 = vcmp.ge.f32.partialorder %v2781, 0.0
      %vm3072 = vcmp.ge.f32.partialorder %v2868, 0.0
      %vm3073 = vcmp.ge.f32.partialorder %v2870, 0.0
      %vm3074 = vcmp.ge.f32.partialorder %v2957, 0.0
      %vm3075 = vcmp.ge.f32.partialorder %v2959, 0.0
      %vm3076 = vcmp.ge.f32.partialorder %v3046, 0.0
      %vm3077 = vcmp.ge.f32.partialorder %v3048, 0.0
      %vm3078 = vcmp.ge.f32.partialorder %v2785, 0.0
      %vm3079 = vcmp.ge.f32.partialorder %v2787, 0.0
      %vm3080 = vcmp.ge.f32.partialorder %v2874, 0.0
      %vm3081 = vcmp.ge.f32.partialorder %v2876, 0.0
      %vm3082 = vcmp.ge.f32.partialorder %v2963, 0.0
      %vm3083 = vcmp.ge.f32.partialorder %v2965, 0.0
      %vm3084 = vcmp.ge.f32.partialorder %v3052, 0.0
      %vm3085 = vcmp.ge.f32.partialorder %v3054, 0.0
      %vm3086 = vcmp.ge.f32.partialorder %v2791, 0.0
      %vm3087 = vcmp.ge.f32.partialorder %v2793, 0.0
      %vm3088 = vcmp.ge.f32.partialorder %v2880, 0.0
      %vm3089 = vcmp.ge.f32.partialorder %v2882, 0.0
      %vm3090 = vcmp.ge.f32.partialorder %v2969, 0.0
      %vm3091 = vcmp.ge.f32.partialorder %v2971, 0.0
      %vm3092 = vcmp.ge.f32.partialorder %v3058, 0.0
      %vm3093 = vcmp.ge.f32.partialorder %v3060, 0.0
      %v3094 = vmul.f32 %v2773, 0.01
      %v3095 = vmul.f32 %v2775, 0.01
      %v3096 = vmul.f32 %v2862, 0.01
      %v3097 = vmul.f32 %v2864, 0.01
      %v3098 = vmul.f32 %v2951, 0.01
      %v3099 = vmul.f32 %v2953, 0.01
      %v3100 = vmul.f32 %v3040, 0.01
      %v3101 = vmul.f32 %v3042, 0.01
      %v3102 = vmul.f32 %v2779, 0.01
      %v3103 = vmul.f32 %v2781, 0.01
      %v3104 = vmul.f32 %v2868, 0.01
      %v3105 = vmul.f32 %v2870, 0.01
      %v3106 = vmul.f32 %v2957, 0.01
      %v3107 = vmul.f32 %v2959, 0.01
      %v3108 = vmul.f32 %v3046, 0.01
      %v3109 = vmul.f32 %v3048, 0.01
      %v3110 = vmul.f32 %v2785, 0.01
      %v3111 = vmul.f32 %v2787, 0.01
      %v3112 = vmul.f32 %v2874, 0.01
      %v3113 = vmul.f32 %v2876, 0.01
      %v3114 = vmul.f32 %v2963, 0.01
      %v3115 = vmul.f32 %v2965, 0.01
      %v3116 = vmul.f32 %v3052, 0.01
      %v3117 = vmul.f32 %v3054, 0.01
      %v3118 = vmul.f32 %v2791, 0.01
      %v3119 = vmul.f32 %v2793, 0.01
      %v3120 = vmul.f32 %v2880, 0.01
      %v3121 = vmul.f32 %v2882, 0.01
      %v3122 = vmul.f32 %v2969, 0.01
      %v3123 = vmul.f32 %v2971, 0.01
      %v3124 = vmul.f32 %v3058, 0.01
      %v3125 = vmul.f32 %v3060, 0.01
      %v3126 = vsel %vm3062, %v2773, %v3094
      %v3127 = vsel %vm3063, %v2775, %v3095
      %v3128 = vsel %vm3064, %v2862, %v3096
      %v3129 = vsel %vm3065, %v2864, %v3097
      %v3130 = vsel %vm3066, %v2951, %v3098
      %v3131 = vsel %vm3067, %v2953, %v3099
      %v3132 = vsel %vm3068, %v3040, %v3100
      %v3133 = vsel %vm3069, %v3042, %v3101
      %v3134 = vsel %vm3070, %v2779, %v3102
      %v3135 = vsel %vm3071, %v2781, %v3103
      %v3136 = vsel %vm3072, %v2868, %v3104
      %v3137 = vsel %vm3073, %v2870, %v3105
      %v3138 = vsel %vm3074, %v2957, %v3106
      %v3139 = vsel %vm3075, %v2959, %v3107
      %v3140 = vsel %vm3076, %v3046, %v3108
      %v3141 = vsel %vm3077, %v3048, %v3109
      %v3142 = vsel %vm3078, %v2785, %v3110
      %v3143 = vsel %vm3079, %v2787, %v3111
      %v3144 = vsel %vm3080, %v2874, %v3112
      %v3145 = vsel %vm3081, %v2876, %v3113
      %v3146 = vsel %vm3082, %v2963, %v3114
      %v3147 = vsel %vm3083, %v2965, %v3115
      %v3148 = vsel %vm3084, %v3052, %v3116
      %v3149 = vsel %vm3085, %v3054, %v3117
      %v3150 = vsel %vm3086, %v2791, %v3118
      %v3151 = vsel %vm3087, %v2793, %v3119
      %v3152 = vsel %vm3088, %v2880, %v3120
      %v3153 = vsel %vm3089, %v2882, %v3121
      %v3154 = vsel %vm3090, %v2969, %v3122
      %v3155 = vsel %vm3091, %v2971, %v3123
      %v3156 = vsel %vm3092, %v3058, %v3124
      %v3157 = vsel %vm3093, %v3060, %v3125
      %vm3158 = vcmp.ge.f32.partialorder %v2650, 0.0
      %vm3159 = vcmp.ge.f32.partialorder %v2651, 0.0
      %vm3160 = vcmp.ge.f32.partialorder %v2652, 0.0
      %vm3161 = vcmp.ge.f32.partialorder %v2653, 0.0
      %vm3162 = vcmp.ge.f32.partialorder %v2654, 0.0
      %vm3163 = vcmp.ge.f32.partialorder %v2655, 0.0
      %vm3164 = vcmp.ge.f32.partialorder %v2656, 0.0
      %vm3165 = vcmp.ge.f32.partialorder %v2657, 0.0
      %vm3166 = vcmp.ge.f32.partialorder %v2658, 0.0
      %vm3167 = vcmp.ge.f32.partialorder %v2659, 0.0
      %vm3168 = vcmp.ge.f32.partialorder %v2660, 0.0
      %vm3169 = vcmp.ge.f32.partialorder %v2661, 0.0
      %vm3170 = vcmp.ge.f32.partialorder %v2662, 0.0
      %vm3171 = vcmp.ge.f32.partialorder %v2663, 0.0
      %vm3172 = vcmp.ge.f32.partialorder %v2664, 0.0
      %vm3173 = vcmp.ge.f32.partialorder %v2665, 0.0
      %vm3174 = vcmp.ge.f32.partialorder %v2666, 0.0
      %vm3175 = vcmp.ge.f32.partialorder %v2667, 0.0
      %vm3176 = vcmp.ge.f32.partialorder %v2668, 0.0
      %vm3177 = vcmp.ge.f32.partialorder %v2669, 0.0
      %vm3178 = vcmp.ge.f32.partialorder %v2670, 0.0
      %vm3179 = vcmp.ge.f32.partialorder %v2671, 0.0
      %vm3180 = vcmp.ge.f32.partialorder %v2672, 0.0
      %vm3181 = vcmp.ge.f32.partialorder %v2673, 0.0
      %vm3182 = vcmp.ge.f32.partialorder %v2674, 0.0
      %vm3183 = vcmp.ge.f32.partialorder %v2675, 0.0
      %vm3184 = vcmp.ge.f32.partialorder %v2676, 0.0
      %vm3185 = vcmp.ge.f32.partialorder %v2677, 0.0
      %vm3186 = vcmp.ge.f32.partialorder %v2678, 0.0
      %vm3187 = vcmp.ge.f32.partialorder %v2679, 0.0
      %vm3188 = vcmp.ge.f32.partialorder %v2680, 0.0
      %vm3189 = vcmp.ge.f32.partialorder %v2681, 0.0
      %v3190 = vmul.f32 %v2650, 0.01
      %v3191 = vmul.f32 %v2651, 0.01
      %v3192 = vmul.f32 %v2652, 0.01
      %v3193 = vmul.f32 %v2653, 0.01
      %v3194 = vmul.f32 %v2654, 0.01
      %v3195 = vmul.f32 %v2655, 0.01
      %v3196 = vmul.f32 %v2656, 0.01
      %v3197 = vmul.f32 %v2657, 0.01
      %v3198 = vmul.f32 %v2658, 0.01
      %v3199 = vmul.f32 %v2659, 0.01
      %v3200 = vmul.f32 %v2660, 0.01
      %v3201 = vmul.f32 %v2661, 0.01
      %v3202 = vmul.f32 %v2662, 0.01
      %v3203 = vmul.f32 %v2663, 0.01
      %v3204 = vmul.f32 %v2664, 0.01
      %v3205 = vmul.f32 %v2665, 0.01
      %v3206 = vmul.f32 %v2666, 0.01
      %v3207 = vmul.f32 %v2667, 0.01
      %v3208 = vmul.f32 %v2668, 0.01
      %v3209 = vmul.f32 %v2669, 0.01
      %v3210 = vmul.f32 %v2670, 0.01
      %v3211 = vmul.f32 %v2671, 0.01
      %v3212 = vmul.f32 %v2672, 0.01
      %v3213 = vmul.f32 %v2673, 0.01
      %v3214 = vmul.f32 %v2674, 0.01
      %v3215 = vmul.f32 %v2675, 0.01
      %v3216 = vmul.f32 %v2676, 0.01
      %v3217 = vmul.f32 %v2677, 0.01
      %v3218 = vmul.f32 %v2678, 0.01
      %v3219 = vmul.f32 %v2679, 0.01
      %v3220 = vmul.f32 %v2680, 0.01
      %v3221 = vmul.f32 %v2681, 0.01
      %v3222 = vsel %vm3158, %v2650, %v3190
      %v3223 = vsel %vm3159, %v2651, %v3191
      %v3224 = vsel %vm3160, %v2652, %v3192
      %v3225 = vsel %vm3161, %v2653, %v3193
      %v3226 = vsel %vm3162, %v2654, %v3194
      %v3227 = vsel %vm3163, %v2655, %v3195
      %v3228 = vsel %vm3164, %v2656, %v3196
      %v3229 = vsel %vm3165, %v2657, %v3197
      %v3230 = vsel %vm3166, %v2658, %v3198
      %v3231 = vsel %vm3167, %v2659, %v3199
      %v3232 = vsel %vm3168, %v2660, %v3200
      %v3233 = vsel %vm3169, %v2661, %v3201
      %v3234 = vsel %vm3170, %v2662, %v3202
      %v3235 = vsel %vm3171, %v2663, %v3203
      %v3236 = vsel %vm3172, %v2664, %v3204
      %v3237 = vsel %vm3173, %v2665, %v3205
      %v3238 = vsel %vm3174, %v2666, %v3206
      %v3239 = vsel %vm3175, %v2667, %v3207
      %v3240 = vsel %vm3176, %v2668, %v3208
      %v3241 = vsel %vm3177, %v2669, %v3209
      %v3242 = vsel %vm3178, %v2670, %v3210
      %v3243 = vsel %vm3179, %v2671, %v3211
      %v3244 = vsel %vm3180, %v2672, %v3212
      %v3245 = vsel %vm3181, %v2673, %v3213
      %v3246 = vsel %vm3182, %v2674, %v3214
      %v3247 = vsel %vm3183, %v2675, %v3215
      %v3248 = vsel %vm3184, %v2676, %v3216
      %v3249 = vsel %vm3185, %v2677, %v3217
      %v3250 = vsel %vm3186, %v2678, %v3218
      %v3251 = vsel %vm3187, %v2679, %v3219
      %v3252 = vsel %vm3188, %v2680, %v3220
      %v3253 = vsel %vm3189, %v2681, %v3221
      %3254 = vmatprep.subr.mxu0 %v3223
      %3255 = vmatpush1.msra.mxu0 %v3222
      %3256 = vmatprep.subr.mxu0 %v3231
      %3257 = vmatpush1.msra.mxu0 %v3230
      %3258 = vmatprep.subr.mxu0 %v3239
      %3259 = vmatpush1.msra.mxu0 %v3238
      %3260 = vmatprep.subr.mxu0 %v3247
      %3261 = vmatpush1.msra.mxu0 %v3246
      %3262 = vmatprep.subr.mxu0 0.0
      %3263 = vmatpush1.msra.mxu0 0.0
      %3264 = vmatprep.subr.mxu0 0.0
      %3265 = vmatpush1.msra.mxu0 0.0
      %3266 = vmatprep.subr.mxu0 0.0
      %3267 = vmatpush1.msra.mxu0 0.0
      %3268 = vmatprep.subr.mxu0 0.0
      %3269 = vmatpush1.msra.mxu0 0.0
      %3270 = vmatprep.subr.mxu0 0.0
      %3271 = vmatpush1.msra.mxu0 0.0
      %3272 = vmatprep.subr.mxu0 0.0
      %3273 = vmatpush1.msra.mxu0 0.0
      %3274 = vmatprep.subr.mxu0 0.0
      %3275 = vmatpush1.msra.mxu0 0.0
      %3276 = vmatprep.subr.mxu0 0.0
      %3277 = vmatpush1.msra.mxu0 0.0
      %3278 = vmatprep.subr.mxu0 0.0
      %3279 = vmatpush1.msra.mxu0 0.0
      %3280 = vmatprep.subr.mxu0 0.0
      %3281 = vmatpush1.msra.mxu0 0.0
      %3282 = vmatprep.subr.mxu0 0.0
      %3283 = vmatpush1.msra.mxu0 0.0
      %3284 = vmatprep.subr.mxu0 0.0
      %3285 = vmatpush1.msra.mxu0 0.0
      %3286 = vmatprep.subr.mxu0 0.0
      %3287 = vmatpush1.msra.mxu0 0.0
      %3288 = vmatprep.subr.mxu0 0.0
      %3289 = vmatpush1.msra.mxu0 0.0
      %3290 = vmatprep.subr.mxu0 0.0
      %3291 = vmatpush1.msra.mxu0 0.0
      %3292 = vmatprep.subr.mxu0 0.0
      %3293 = vmatpush1.msra.mxu0 0.0
      %3294 = vmatprep.subr.mxu0 0.0
      %3295 = vmatpush1.msra.mxu0 0.0
      %3296 = vmatprep.subr.mxu0 0.0
      %3297 = vmatpush1.msra.mxu0 0.0
      %3298 = vmatprep.subr.mxu0 0.0
      %3299 = vmatpush1.msra.mxu0 0.0
      %3300 = vmatprep.subr.mxu0 0.0
      %3301 = vmatpush1.msra.mxu0 0.0
      %3302 = vmatprep.subr.mxu0 0.0
      %3303 = vmatpush1.msra.mxu0 0.0
      %3304 = vmatprep.subr.mxu0 0.0
      %3305 = vmatpush1.msra.mxu0 0.0
      %3306 = vmatprep.subr.mxu0 0.0
      %3307 = vmatpush1.msra.mxu0 0.0
      %3308 = vmatprep.subr.mxu0 0.0
      %3309 = vmatpush1.msra.mxu0 0.0
      %3310 = vmatprep.subr.mxu0 0.0
      %3311 = vmatpush1.msra.mxu0 0.0
      %3312 = vmatprep.subr.mxu0 0.0
      %3313 = vmatpush1.msra.mxu0 0.0
      %3314 = vmatprep.subr.mxu0 0.0
      %3315 = vmatpush1.msra.mxu0 0.0
      %3316 = vmatprep.subr.mxu0 0.0
      %3317 = vmatpush1.msra.mxu0 0.0
      %3318 = vmatprep.mubr.f32.mxu0 0.0
      %3319 = vmatmul.mubr.f32.gmra.mrb[0].mxu0 %v1134
      %v3320 = vpop.f32.mrb[0].mxu0
      %v3321 = vadd.f32 0.0, %v3320
      %v3322 = vpop.f32.mrb[0].mxu0
      %v3323 = vadd.f32 0.0, %v3322
      %3324 = vmatprep.mubr.f32.mxu0 0.0
      %3325 = vmatmul.mubr.f32.gmra.mrb[0].mxu0 %v1137
      %v3326 = vpop.f32.mrb[0].mxu0
      %v3327 = vadd.f32 0.0, %v3326
      %v3328 = vpop.f32.mrb[0].mxu0
      %v3329 = vadd.f32 0.0, %v3328
      %3330 = vmatprep.mubr.f32.mxu0 0.0
      %3331 = vmatmul.mubr.f32.gmra.mrb[0].mxu0 %v1140
      %v3332 = vpop.f32.mrb[0].mxu0
      %v3333 = vadd.f32 0.0, %v3332
      %v3334 = vpop.f32.mrb[0].mxu0
      %v3335 = vadd.f32 0.0, %v3334
      %3336 = vmatprep.mubr.f32.mxu0 0.0
      %3337 = vmatmul.mubr.f32.gmra.mrb[0].mxu0 %v1143
      %v3338 = vpop.f32.mrb[0].mxu0
      %v3339 = vadd.f32 0.0, %v3338
      %v3340 = vpop.f32.mrb[0].mxu0
      %v3341 = vadd.f32 0.0, %v3340
      %3342 = vdwg.mxu0
      %3343 = vmatprep.subr.mxu0 %v3225
      %3344 = vmatpush1.msra.mxu0 %v3224
      %3345 = vmatprep.subr.mxu0 %v3233
      %3346 = vmatpush1.msra.mxu0 %v3232
      %3347 = vmatprep.subr.mxu0 %v3241
      %3348 = vmatpush1.msra.mxu0 %v3240
      %3349 = vmatprep.subr.mxu0 %v3249
      %3350 = vmatpush1.msra.mxu0 %v3248
      %3351 = vmatprep.subr.mxu0 0.0
      %3352 = vmatpush1.msra.mxu0 0.0
      %3353 = vmatprep.subr.mxu0 0.0
      %3354 = vmatpush1.msra.mxu0 0.0
      %3355 = vmatprep.subr.mxu0 0.0
      %3356 = vmatpush1.msra.mxu0 0.0
      %3357 = vmatprep.subr.mxu0 0.0
      %3358 = vmatpush1.msra.mxu0 0.0
      %3359 = vmatprep.subr.mxu0 0.0
      %3360 = vmatpush1.msra.mxu0 0.0
      %3361 = vmatprep.subr.mxu0 0.0
      %3362 = vmatpush1.msra.mxu0 0.0
      %3363 = vmatprep.subr.mxu0 0.0
      %3364 = vmatpush1.msra.mxu0 0.0
      %3365 = vmatprep.subr.mxu0 0.0
      %3366 = vmatpush1.msra.mxu0 0.0
      %3367 = vmatprep.subr.mxu0 0.0
      %3368 = vmatpush1.msra.mxu0 0.0
      %3369 = vmatprep.subr.mxu0 0.0
      %3370 = vmatpush1.msra.mxu0 0.0
      %3371 = vmatprep.subr.mxu0 0.0
      %3372 = vmatpush1.msra.mxu0 0.0
      %3373 = vmatprep.subr.mxu0 0.0
      %3374 = vmatpush1.msra.mxu0 0.0
      %3375 = vmatprep.subr.mxu0 0.0
      %3376 = vmatpush1.msra.mxu0 0.0
      %3377 = vmatprep.subr.mxu0 0.0
      %3378 = vmatpush1.msra.mxu0 0.0
      %3379 = vmatprep.subr.mxu0 0.0
      %3380 = vmatpush1.msra.mxu0 0.0
      %3381 = vmatprep.subr.mxu0 0.0
      %3382 = vmatpush1.msra.mxu0 0.0
      %3383 = vmatprep.subr.mxu0 0.0
      %3384 = vmatpush1.msra.mxu0 0.0
      %3385 = vmatprep.subr.mxu0 0.0
      %3386 = vmatpush1.msra.mxu0 0.0
      %3387 = vmatprep.subr.mxu0 0.0
      %3388 = vmatpush1.msra.mxu0 0.0
      %3389 = vmatprep.subr.mxu0 0.0
      %3390 = vmatpush1.msra.mxu0 0.0
      %3391 = vmatprep.subr.mxu0 0.0
      %3392 = vmatpush1.msra.mxu0 0.0
      %3393 = vmatprep.subr.mxu0 0.0
      %3394 = vmatpush1.msra.mxu0 0.0
      %3395 = vmatprep.subr.mxu0 0.0
      %3396 = vmatpush1.msra.mxu0 0.0
      %3397 = vmatprep.subr.mxu0 0.0
      %3398 = vmatpush1.msra.mxu0 0.0
      %3399 = vmatprep.subr.mxu0 0.0
      %3400 = vmatpush1.msra.mxu0 0.0
      %3401 = vmatprep.subr.mxu0 0.0
      %3402 = vmatpush1.msra.mxu0 0.0
      %3403 = vmatprep.subr.mxu0 0.0
      %3404 = vmatpush1.msra.mxu0 0.0
      %3405 = vmatprep.subr.mxu0 0.0
      %3406 = vmatpush1.msra.mxu0 0.0
      %3407 = vmatprep.mubr.f32.mxu0 0.0
      %3408 = vmatmul.mubr.f32.gmra.mrb[0].mxu0 %v1134
      %v3409 = vpop.f32.mrb[0].mxu0
      %v3410 = vadd.f32 0.0, %v3409
      %v3411 = vpop.f32.mrb[0].mxu0
      %v3412 = vadd.f32 0.0, %v3411
      %3413 = vmatprep.mubr.f32.mxu0 0.0
      %3414 = vmatmul.mubr.f32.gmra.mrb[0].mxu0 %v1137
      %v3415 = vpop.f32.mrb[0].mxu0
      %v3416 = vadd.f32 0.0, %v3415
      %v3417 = vpop.f32.mrb[0].mxu0
      %v3418 = vadd.f32 0.0, %v3417
      %3419 = vmatprep.mubr.f32.mxu0 0.0
      %3420 = vmatmul.mubr.f32.gmra.mrb[0].mxu0 %v1140
      %v3421 = vpop.f32.mrb[0].mxu0
      %v3422 = vadd.f32 0.0, %v3421
      %v3423 = vpop.f32.mrb[0].mxu0
      %v3424 = vadd.f32 0.0, %v3423
      %3425 = vmatprep.mubr.f32.mxu0 0.0
      %3426 = vmatmul.mubr.f32.gmra.mrb[0].mxu0 %v1143
      %v3427 = vpop.f32.mrb[0].mxu0
      %v3428 = vadd.f32 0.0, %v3427
      %v3429 = vpop.f32.mrb[0].mxu0
      %v3430 = vadd.f32 0.0, %v3429
      %3431 = vdwg.mxu0
      %3432 = vmatprep.subr.mxu0 %v3227
      %3433 = vmatpush1.msra.mxu0 %v3226
      %3434 = vmatprep.subr.mxu0 %v3235
      %3435 = vmatpush1.msra.mxu0 %v3234
      %3436 = vmatprep.subr.mxu0 %v3243
      %3437 = vmatpush1.msra.mxu0 %v3242
      %3438 = vmatprep.subr.mxu0 %v3251
      %3439 = vmatpush1.msra.mxu0 %v3250
      %3440 = vmatprep.subr.mxu0 0.0
      %3441 = vmatpush1.msra.mxu0 0.0
      %3442 = vmatprep.subr.mxu0 0.0
      %3443 = vmatpush1.msra.mxu0 0.0
      %3444 = vmatprep.subr.mxu0 0.0
      %3445 = vmatpush1.msra.mxu0 0.0
      %3446 = vmatprep.subr.mxu0 0.0
      %3447 = vmatpush1.msra.mxu0 0.0
      %3448 = vmatprep.subr.mxu0 0.0
      %3449 = vmatpush1.msra.mxu0 0.0
      %3450 = vmatprep.subr.mxu0 0.0
      %3451 = vmatpush1.msra.mxu0 0.0
      %3452 = vmatprep.subr.mxu0 0.0
      %3453 = vmatpush1.msra.mxu0 0.0
      %3454 = vmatprep.subr.mxu0 0.0
      %3455 = vmatpush1.msra.mxu0 0.0
      %3456 = vmatprep.subr.mxu0 0.0
      %3457 = vmatpush1.msra.mxu0 0.0
      %3458 = vmatprep.subr.mxu0 0.0
      %3459 = vmatpush1.msra.mxu0 0.0
      %3460 = vmatprep.subr.mxu0 0.0
      %3461 = vmatpush1.msra.mxu0 0.0
      %3462 = vmatprep.subr.mxu0 0.0
      %3463 = vmatpush1.msra.mxu0 0.0
      %3464 = vmatprep.subr.mxu0 0.0
      %3465 = vmatpush1.msra.mxu0 0.0
      %3466 = vmatprep.subr.mxu0 0.0
      %3467 = vmatpush1.msra.mxu0 0.0
      %3468 = vmatprep.subr.mxu0 0.0
      %3469 = vmatpush1.msra.mxu0 0.0
      %3470 = vmatprep.subr.mxu0 0.0
      %3471 = vmatpush1.msra.mxu0 0.0
      %3472 = vmatprep.subr.mxu0 0.0
      %3473 = vmatpush1.msra.mxu0 0.0
      %3474 = vmatprep.subr.mxu0 0.0
      %3475 = vmatpush1.msra.mxu0 0.0
      %3476 = vmatprep.subr.mxu0 0.0
      %3477 = vmatpush1.msra.mxu0 0.0
      %3478 = vmatprep.subr.mxu0 0.0
      %3479 = vmatpush1.msra.mxu0 0.0
      %3480 = vmatprep.subr.mxu0 0.0
      %3481 = vmatpush1.msra.mxu0 0.0
      %3482 = vmatprep.subr.mxu0 0.0
      %3483 = vmatpush1.msra.mxu0 0.0
      %3484 = vmatprep.subr.mxu0 0.0
      %3485 = vmatpush1.msra.mxu0 0.0
      %3486 = vmatprep.subr.mxu0 0.0
      %3487 = vmatpush1.msra.mxu0 0.0
      %3488 = vmatprep.subr.mxu0 0.0
      %3489 = vmatpush1.msra.mxu0 0.0
      %3490 = vmatprep.subr.mxu0 0.0
      %3491 = vmatpush1.msra.mxu0 0.0
      %3492 = vmatprep.subr.mxu0 0.0
      %3493 = vmatpush1.msra.mxu0 0.0
      %3494 = vmatprep.subr.mxu0 0.0
      %3495 = vmatpush1.msra.mxu0 0.0
      %3496 = vmatprep.mubr.f32.mxu0 0.0
      %3497 = vmatmul.mubr.f32.gmra.mrb[0].mxu0 %v1134
      %v3498 = vpop.f32.mrb[0].mxu0
      %v3499 = vadd.f32 0.0, %v3498
      %v3500 = vpop.f32.mrb[0].mxu0
      %v3501 = vadd.f32 0.0, %v3500
      %3502 = vmatprep.mubr.f32.mxu0 0.0
      %3503 = vmatmul.mubr.f32.gmra.mrb[0].mxu0 %v1137
      %v3504 = vpop.f32.mrb[0].mxu0
      %v3505 = vadd.f32 0.0, %v3504
      %v3506 = vpop.f32.mrb[0].mxu0
      %v3507 = vadd.f32 0.0, %v3506
      %3508 = vmatprep.mubr.f32.mxu0 0.0
      %3509 = vmatmul.mubr.f32.gmra.mrb[0].mxu0 %v1140
      %v3510 = vpop.f32.mrb[0].mxu0
      %v3511 = vadd.f32 0.0, %v3510
      %v3512 = vpop.f32.mrb[0].mxu0
      %v3513 = vadd.f32 0.0, %v3512
      %3514 = vmatprep.mubr.f32.mxu0 0.0
      %3515 = vmatmul.mubr.f32.gmra.mrb[0].mxu0 %v1143
      %v3516 = vpop.f32.mrb[0].mxu0
      %v3517 = vadd.f32 0.0, %v3516
      %v3518 = vpop.f32.mrb[0].mxu0
      %v3519 = vadd.f32 0.0, %v3518
      %3520 = vdwg.mxu0
      %3521 = vmatprep.subr.mxu0 %v3229
      %3522 = vmatpush1.msra.mxu0 %v3228
      %3523 = vmatprep.subr.mxu0 %v3237
      %3524 = vmatpush1.msra.mxu0 %v3236
      %3525 = vmatprep.subr.mxu0 %v3245
      %3526 = vmatpush1.msra.mxu0 %v3244
      %3527 = vmatprep.subr.mxu0 %v3253
      %3528 = vmatpush1.msra.mxu0 %v3252
      %3529 = vmatprep.subr.mxu0 0.0
      %3530 = vmatpush1.msra.mxu0 0.0
      %3531 = vmatprep.subr.mxu0 0.0
      %3532 = vmatpush1.msra.mxu0 0.0
      %3533 = vmatprep.subr.mxu0 0.0
      %3534 = vmatpush1.msra.mxu0 0.0
      %3535 = vmatprep.subr.mxu0 0.0
      %3536 = vmatpush1.msra.mxu0 0.0
      %3537 = vmatprep.subr.mxu0 0.0
      %3538 = vmatpush1.msra.mxu0 0.0
      %3539 = vmatprep.subr.mxu0 0.0
      %3540 = vmatpush1.msra.mxu0 0.0
      %3541 = vmatprep.subr.mxu0 0.0
      %3542 = vmatpush1.msra.mxu0 0.0
      %3543 = vmatprep.subr.mxu0 0.0
      %3544 = vmatpush1.msra.mxu0 0.0
      %3545 = vmatprep.subr.mxu0 0.0
      %3546 = vmatpush1.msra.mxu0 0.0
      %3547 = vmatprep.subr.mxu0 0.0
      %3548 = vmatpush1.msra.mxu0 0.0
      %3549 = vmatprep.subr.mxu0 0.0
      %3550 = vmatpush1.msra.mxu0 0.0
      %3551 = vmatprep.subr.mxu0 0.0
      %3552 = vmatpush1.msra.mxu0 0.0
      %3553 = vmatprep.subr.mxu0 0.0
      %3554 = vmatpush1.msra.mxu0 0.0
      %3555 = vmatprep.subr.mxu0 0.0
      %3556 = vmatpush1.msra.mxu0 0.0
      %3557 = vmatprep.subr.mxu0 0.0
      %3558 = vmatpush1.msra.mxu0 0.0
      %3559 = vmatprep.subr.mxu0 0.0
      %3560 = vmatpush1.msra.mxu0 0.0
      %3561 = vmatprep.subr.mxu0 0.0
      %3562 = vmatpush1.msra.mxu0 0.0
      %3563 = vmatprep.subr.mxu0 0.0
      %3564 = vmatpush1.msra.mxu0 0.0
      %3565 = vmatprep.subr.mxu0 0.0
      %3566 = vmatpush1.msra.mxu0 0.0
      %3567 = vmatprep.subr.mxu0 0.0
      %3568 = vmatpush1.msra.mxu0 0.0
      %3569 = vmatprep.subr.mxu0 0.0
      %3570 = vmatpush1.msra.mxu0 0.0
      %3571 = vmatprep.subr.mxu0 0.0
      %3572 = vmatpush1.msra.mxu0 0.0
      %3573 = vmatprep.subr.mxu0 0.0
      %3574 = vmatpush1.msra.mxu0 0.0
      %3575 = vmatprep.subr.mxu0 0.0
      %3576 = vmatpush1.msra.mxu0 0.0
      %3577 = vmatprep.subr.mxu0 0.0
      %3578 = vmatpush1.msra.mxu0 0.0
      %3579 = vmatprep.subr.mxu0 0.0
      %3580 = vmatpush1.msra.mxu0 0.0
      %3581 = vmatprep.subr.mxu0 0.0
      %3582 = vmatpush1.msra.mxu0 0.0
      %3583 = vmatprep.subr.mxu0 0.0
      %3584 = vmatpush1.msra.mxu0 0.0
      %3585 = vmatprep.mubr.f32.mxu0 0.0
      %3586 = vmatmul.mubr.f32.gmra.mrb[0].mxu0 %v1134
      %v3587 = vpop.f32.mrb[0].mxu0
      %v3588 = vadd.f32 0.0, %v3587
      %v3589 = vpop.f32.mrb[0].mxu0
      %v3590 = vadd.f32 0.0, %v3589
      %3591 = vmatprep.mubr.f32.mxu0 0.0
      %3592 = vmatmul.mubr.f32.gmra.mrb[0].mxu0 %v1137
      %v3593 = vpop.f32.mrb[0].mxu0
      %v3594 = vadd.f32 0.0, %v3593
      %v3595 = vpop.f32.mrb[0].mxu0
      %v3596 = vadd.f32 0.0, %v3595
      %3597 = vmatprep.mubr.f32.mxu0 0.0
      %3598 = vmatmul.mubr.f32.gmra.mrb[0].mxu0 %v1140
      %v3599 = vpop.f32.mrb[0].mxu0
      %v3600 = vadd.f32 0.0, %v3599
      %v3601 = vpop.f32.mrb[0].mxu0
      %v3602 = vadd.f32 0.0, %v3601
      %3603 = vmatprep.mubr.f32.mxu0 0.0
      %3604 = vmatmul.mubr.f32.gmra.mrb[0].mxu0 %v1143
      %v3605 = vpop.f32.mrb[0].mxu0
      %v3606 = vadd.f32 0.0, %v3605
      %v3607 = vpop.f32.mrb[0].mxu0
      %v3608 = vadd.f32 0.0, %v3607
      %3609 = vdwg.mxu0
      %3610 = vmatprep.subr.mxu0 %v3127
      %3611 = vmatpush1.msra.mxu0 %v3126
      %3612 = vmatprep.subr.mxu0 %v3135
      %3613 = vmatpush1.msra.mxu0 %v3134
      %3614 = vmatprep.subr.mxu0 %v3143
      %3615 = vmatpush1.msra.mxu0 %v3142
      %3616 = vmatprep.subr.mxu0 %v3151
      %3617 = vmatpush1.msra.mxu0 %v3150
      %3618 = vmatprep.subr.mxu0 0.0
      %3619 = vmatpush1.msra.mxu0 0.0
      %3620 = vmatprep.subr.mxu0 0.0
      %3621 = vmatpush1.msra.mxu0 0.0
      %3622 = vmatprep.subr.mxu0 0.0
      %3623 = vmatpush1.msra.mxu0 0.0
      %3624 = vmatprep.subr.mxu0 0.0
      %3625 = vmatpush1.msra.mxu0 0.0
      %3626 = vmatprep.subr.mxu0 0.0
      %3627 = vmatpush1.msra.mxu0 0.0
      %3628 = vmatprep.subr.mxu0 0.0
      %3629 = vmatpush1.msra.mxu0 0.0
      %3630 = vmatprep.subr.mxu0 0.0
      %3631 = vmatpush1.msra.mxu0 0.0
      %3632 = vmatprep.subr.mxu0 0.0
      %3633 = vmatpush1.msra.mxu0 0.0
      %3634 = vmatprep.subr.mxu0 0.0
      %3635 = vmatpush1.msra.mxu0 0.0
      %3636 = vmatprep.subr.mxu0 0.0
      %3637 = vmatpush1.msra.mxu0 0.0
      %3638 = vmatprep.subr.mxu0 0.0
      %3639 = vmatpush1.msra.mxu0 0.0
      %3640 = vmatprep.subr.mxu0 0.0
      %3641 = vmatpush1.msra.mxu0 0.0
      %3642 = vmatprep.subr.mxu0 0.0
      %3643 = vmatpush1.msra.mxu0 0.0
      %3644 = vmatprep.subr.mxu0 0.0
      %3645 = vmatpush1.msra.mxu0 0.0
      %3646 = vmatprep.subr.mxu0 0.0
      %3647 = vmatpush1.msra.mxu0 0.0
      %3648 = vmatprep.subr.mxu0 0.0
      %3649 = vmatpush1.msra.mxu0 0.0
      %3650 = vmatprep.subr.mxu0 0.0
      %3651 = vmatpush1.msra.mxu0 0.0
      %3652 = vmatprep.subr.mxu0 0.0
      %3653 = vmatpush1.msra.mxu0 0.0
      %3654 = vmatprep.subr.mxu0 0.0
      %3655 = vmatpush1.msra.mxu0 0.0
      %3656 = vmatprep.subr.mxu0 0.0
      %3657 = vmatpush1.msra.mxu0 0.0
      %3658 = vmatprep.subr.mxu0 0.0
      %3659 = vmatpush1.msra.mxu0 0.0
      %3660 = vmatprep.subr.mxu0 0.0
      %3661 = vmatpush1.msra.mxu0 0.0
      %3662 = vmatprep.subr.mxu0 0.0
      %3663 = vmatpush1.msra.mxu0 0.0
      %3664 = vmatprep.subr.mxu0 0.0
      %3665 = vmatpush1.msra.mxu0 0.0
      %3666 = vmatprep.subr.mxu0 0.0
      %3667 = vmatpush1.msra.mxu0 0.0
      %3668 = vmatprep.subr.mxu0 0.0
      %3669 = vmatpush1.msra.mxu0 0.0
      %3670 = vmatprep.subr.mxu0 0.0
      %3671 = vmatpush1.msra.mxu0 0.0
      %3672 = vmatprep.subr.mxu0 0.0
      %3673 = vmatpush1.msra.mxu0 0.0
      %3674 = vmatprep.mubr.f32.mxu0 0.0
      %3675 = vmatmul.mubr.f32.gmra.mrb[0].mxu0 %v1502
      %v3676 = vpop.f32.mrb[0].mxu0
      %v3677 = vadd.f32 %v3321, %v3676
      %v3678 = vpop.f32.mrb[0].mxu0
      %v3679 = vadd.f32 %v3323, %v3678
      %3680 = vmatprep.mubr.f32.mxu0 0.0
      %3681 = vmatmul.mubr.f32.gmra.mrb[0].mxu0 %v1505
      %v3682 = vpop.f32.mrb[0].mxu0
      %v3683 = vadd.f32 %v3327, %v3682
      %v3684 = vpop.f32.mrb[0].mxu0
      %v3685 = vadd.f32 %v3329, %v3684
      %3686 = vmatprep.mubr.f32.mxu0 0.0
      %3687 = vmatmul.mubr.f32.gmra.mrb[0].mxu0 %v1508
      %v3688 = vpop.f32.mrb[0].mxu0
      %v3689 = vadd.f32 %v3333, %v3688
      %v3690 = vpop.f32.mrb[0].mxu0
      %v3691 = vadd.f32 %v3335, %v3690
      %3692 = vmatprep.mubr.f32.mxu0 0.0
      %3693 = vmatmul.mubr.f32.gmra.mrb[0].mxu0 %v1511
      %v3694 = vpop.f32.mrb[0].mxu0
      %v3695 = vadd.f32 %v3339, %v3694
      %v3696 = vpop.f32.mrb[0].mxu0
      %v3697 = vadd.f32 %v3341, %v3696
      %3698 = vdwg.mxu0
      %3699 = vmatprep.subr.mxu0 %v3129
      %3700 = vmatpush1.msra.mxu0 %v3128
      %3701 = vmatprep.subr.mxu0 %v3137
      %3702 = vmatpush1.msra.mxu0 %v3136
      %3703 = vmatprep.subr.mxu0 %v3145
      %3704 = vmatpush1.msra.mxu0 %v3144
      %3705 = vmatprep.subr.mxu0 %v3153
      %3706 = vmatpush1.msra.mxu0 %v3152
      %3707 = vmatprep.subr.mxu0 0.0
      %3708 = vmatpush1.msra.mxu0 0.0
      %3709 = vmatprep.subr.mxu0 0.0
      %3710 = vmatpush1.msra.mxu0 0.0
      %3711 = vmatprep.subr.mxu0 0.0
      %3712 = vmatpush1.msra.mxu0 0.0
      %3713 = vmatprep.subr.mxu0 0.0
      %3714 = vmatpush1.msra.mxu0 0.0
      %3715 = vmatprep.subr.mxu0 0.0
      %3716 = vmatpush1.msra.mxu0 0.0
      %3717 = vmatprep.subr.mxu0 0.0
      %3718 = vmatpush1.msra.mxu0 0.0
      %3719 = vmatprep.subr.mxu0 0.0
      %3720 = vmatpush1.msra.mxu0 0.0
      %3721 = vmatprep.subr.mxu0 0.0
      %3722 = vmatpush1.msra.mxu0 0.0
      %3723 = vmatprep.subr.mxu0 0.0
      %3724 = vmatpush1.msra.mxu0 0.0
      %3725 = vmatprep.subr.mxu0 0.0
      %3726 = vmatpush1.msra.mxu0 0.0
      %3727 = vmatprep.subr.mxu0 0.0
      %3728 = vmatpush1.msra.mxu0 0.0
      %3729 = vmatprep.subr.mxu0 0.0
      %3730 = vmatpush1.msra.mxu0 0.0
      %3731 = vmatprep.subr.mxu0 0.0
      %3732 = vmatpush1.msra.mxu0 0.0
      %3733 = vmatprep.subr.mxu0 0.0
      %3734 = vmatpush1.msra.mxu0 0.0
      %3735 = vmatprep.subr.mxu0 0.0
      %3736 = vmatpush1.msra.mxu0 0.0
      %3737 = vmatprep.subr.mxu0 0.0
      %3738 = vmatpush1.msra.mxu0 0.0
      %3739 = vmatprep.subr.mxu0 0.0
      %3740 = vmatpush1.msra.mxu0 0.0
      %3741 = vmatprep.subr.mxu0 0.0
      %3742 = vmatpush1.msra.mxu0 0.0
      %3743 = vmatprep.subr.mxu0 0.0
      %3744 = vmatpush1.msra.mxu0 0.0
      %3745 = vmatprep.subr.mxu0 0.0
      %3746 = vmatpush1.msra.mxu0 0.0
      %3747 = vmatprep.subr.mxu0 0.0
      %3748 = vmatpush1.msra.mxu0 0.0
      %3749 = vmatprep.subr.mxu0 0.0
      %3750 = vmatpush1.msra.mxu0 0.0
      %3751 = vmatprep.subr.mxu0 0.0
      %3752 = vmatpush1.msra.mxu0 0.0
      %3753 = vmatprep.subr.mxu0 0.0
      %3754 = vmatpush1.msra.mxu0 0.0
      %3755 = vmatprep.subr.mxu0 0.0
      %3756 = vmatpush1.msra.mxu0 0.0
      %3757 = vmatprep.subr.mxu0 0.0
      %3758 = vmatpush1.msra.mxu0 0.0
      %3759 = vmatprep.subr.mxu0 0.0
      %3760 = vmatpush1.msra.mxu0 0.0
      %3761 = vmatprep.subr.mxu0 0.0
      %3762 = vmatpush1.msra.mxu0 0.0
      %3763 = vmatprep.mubr.f32.mxu0 0.0
      %3764 = vmatmul.mubr.f32.gmra.mrb[0].mxu0 %v1502
      %v3765 = vpop.f32.mrb[0].mxu0
      %v3766 = vadd.f32 %v3410, %v3765
      %v3767 = vpop.f32.mrb[0].mxu0
      %v3768 = vadd.f32 %v3412, %v3767
      %3769 = vmatprep.mubr.f32.mxu0 0.0
      %3770 = vmatmul.mubr.f32.gmra.mrb[0].mxu0 %v1505
      %v3771 = vpop.f32.mrb[0].mxu0
      %v3772 = vadd.f32 %v3416, %v3771
      %v3773 = vpop.f32.mrb[0].mxu0
      %v3774 = vadd.f32 %v3418, %v3773
      %3775 = vmatprep.mubr.f32.mxu0 0.0
      %3776 = vmatmul.mubr.f32.gmra.mrb[0].mxu0 %v1508
      %v3777 = vpop.f32.mrb[0].mxu0
      %v3778 = vadd.f32 %v3422, %v3777
      %v3779 = vpop.f32.mrb[0].mxu0
      %v3780 = vadd.f32 %v3424, %v3779
      %3781 = vmatprep.mubr.f32.mxu0 0.0
      %3782 = vmatmul.mubr.f32.gmra.mrb[0].mxu0 %v1511
      %v3783 = vpop.f32.mrb[0].mxu0
      %v3784 = vadd.f32 %v3428, %v3783
      %v3785 = vpop.f32.mrb[0].mxu0
      %v3786 = vadd.f32 %v3430, %v3785
      %3787 = vdwg.mxu0
      %3788 = vmatprep.subr.mxu0 %v3131
      %3789 = vmatpush1.msra.mxu0 %v3130
      %3790 = vmatprep.subr.mxu0 %v3139
      %3791 = vmatpush1.msra.mxu0 %v3138
      %3792 = vmatprep.subr.mxu0 %v3147
      %3793 = vmatpush1.msra.mxu0 %v3146
      %3794 = vmatprep.subr.mxu0 %v3155
      %3795 = vmatpush1.msra.mxu0 %v3154
      %3796 = vmatprep.subr.mxu0 0.0
      %3797 = vmatpush1.msra.mxu0 0.0
      %3798 = vmatprep.subr.mxu0 0.0
      %3799 = vmatpush1.msra.mxu0 0.0
      %3800 = vmatprep.subr.mxu0 0.0
      %3801 = vmatpush1.msra.mxu0 0.0
      %3802 = vmatprep.subr.mxu0 0.0
      %3803 = vmatpush1.msra.mxu0 0.0
      %3804 = vmatprep.subr.mxu0 0.0
      %3805 = vmatpush1.msra.mxu0 0.0
      %3806 = vmatprep.subr.mxu0 0.0
      %3807 = vmatpush1.msra.mxu0 0.0
      %3808 = vmatprep.subr.mxu0 0.0
      %3809 = vmatpush1.msra.mxu0 0.0
      %3810 = vmatprep.subr.mxu0 0.0
      %3811 = vmatpush1.msra.mxu0 0.0
      %3812 = vmatprep.subr.mxu0 0.0
      %3813 = vmatpush1.msra.mxu0 0.0
      %3814 = vmatprep.subr.mxu0 0.0
      %3815 = vmatpush1.msra.mxu0 0.0
      %3816 = vmatprep.subr.mxu0 0.0
      %3817 = vmatpush1.msra.mxu0 0.0
      %3818 = vmatprep.subr.mxu0 0.0
      %3819 = vmatpush1.msra.mxu0 0.0
      %3820 = vmatprep.subr.mxu0 0.0
      %3821 = vmatpush1.msra.mxu0 0.0
      %3822 = vmatprep.subr.mxu0 0.0
      %3823 = vmatpush1.msra.mxu0 0.0
      %3824 = vmatprep.subr.mxu0 0.0
      %3825 = vmatpush1.msra.mxu0 0.0
      %3826 = vmatprep.subr.mxu0 0.0
      %3827 = vmatpush1.msra.mxu0 0.0
      %3828 = vmatprep.subr.mxu0 0.0
      %3829 = vmatpush1.msra.mxu0 0.0
      %3830 = vmatprep.subr.mxu0 0.0
      %3831 = vmatpush1.msra.mxu0 0.0
      %3832 = vmatprep.subr.mxu0 0.0
      %3833 = vmatpush1.msra.mxu0 0.0
      %3834 = vmatprep.subr.mxu0 0.0
      %3835 = vmatpush1.msra.mxu0 0.0
      %3836 = vmatprep.subr.mxu0 0.0
      %3837 = vmatpush1.msra.mxu0 0.0
      %3838 = vmatprep.subr.mxu0 0.0
      %3839 = vmatpush1.msra.mxu0 0.0
      %3840 = vmatprep.subr.mxu0 0.0
      %3841 = vmatpush1.msra.mxu0 0.0
      %3842 = vmatprep.subr.mxu0 0.0
      %3843 = vmatpush1.msra.mxu0 0.0
      %3844 = vmatprep.subr.mxu0 0.0
      %3845 = vmatpush1.msra.mxu0 0.0
      %3846 = vmatprep.subr.mxu0 0.0
      %3847 = vmatpush1.msra.mxu0 0.0
      %3848 = vmatprep.subr.mxu0 0.0
      %3849 = vmatpush1.msra.mxu0 0.0
      %3850 = vmatprep.subr.mxu0 0.0
      %3851 = vmatpush1.msra.mxu0 0.0
      %3852 = vmatprep.mubr.f32.mxu0 0.0
      %3853 = vmatmul.mubr.f32.gmra.mrb[0].mxu0 %v1502
      %v3854 = vpop.f32.mrb[0].mxu0
      %v3855 = vadd.f32 %v3499, %v3854
      %v3856 = vpop.f32.mrb[0].mxu0
      %v3857 = vadd.f32 %v3501, %v3856
      %3858 = vmatprep.mubr.f32.mxu0 0.0
      %3859 = vmatmul.mubr.f32.gmra.mrb[0].mxu0 %v1505
      %v3860 = vpop.f32.mrb[0].mxu0
      %v3861 = vadd.f32 %v3505, %v3860
      %v3862 = vpop.f32.mrb[0].mxu0
      %v3863 = vadd.f32 %v3507, %v3862
      %3864 = vmatprep.mubr.f32.mxu0 0.0
      %3865 = vmatmul.mubr.f32.gmra.mrb[0].mxu0 %v1508
      %v3866 = vpop.f32.mrb[0].mxu0
      %v3867 = vadd.f32 %v3511, %v3866
      %v3868 = vpop.f32.mrb[0].mxu0
      %v3869 = vadd.f32 %v3513, %v3868
      %3870 = vmatprep.mubr.f32.mxu0 0.0
      %3871 = vmatmul.mubr.f32.gmra.mrb[0].mxu0 %v1511
      %v3872 = vpop.f32.mrb[0].mxu0
      %v3873 = vadd.f32 %v3517, %v3872
      %v3874 = vpop.f32.mrb[0].mxu0
      %v3875 = vadd.f32 %v3519, %v3874
      %3876 = vdwg.mxu0
      %3877 = vmatprep.subr.mxu0 %v3133
      %3878 = vmatpush1.msra.mxu0 %v3132
      %3879 = vmatprep.subr.mxu0 %v3141
      %3880 = vmatpush1.msra.mxu0 %v3140
      %3881 = vmatprep.subr.mxu0 %v3149
      %3882 = vmatpush1.msra.mxu0 %v3148
      %3883 = vmatprep.subr.mxu0 %v3157
      %3884 = vmatpush1.msra.mxu0 %v3156
      %3885 = vmatprep.subr.mxu0 0.0
      %3886 = vmatpush1.msra.mxu0 0.0
      %3887 = vmatprep.subr.mxu0 0.0
      %3888 = vmatpush1.msra.mxu0 0.0
      %3889 = vmatprep.subr.mxu0 0.0
      %3890 = vmatpush1.msra.mxu0 0.0
      %3891 = vmatprep.subr.mxu0 0.0
      %3892 = vmatpush1.msra.mxu0 0.0
      %3893 = vmatprep.subr.mxu0 0.0
      %3894 = vmatpush1.msra.mxu0 0.0
      %3895 = vmatprep.subr.mxu0 0.0
      %3896 = vmatpush1.msra.mxu0 0.0
      %3897 = vmatprep.subr.mxu0 0.0
      %3898 = vmatpush1.msra.mxu0 0.0
      %3899 = vmatprep.subr.mxu0 0.0
      %3900 = vmatpush1.msra.mxu0 0.0
      %3901 = vmatprep.subr.mxu0 0.0
      %3902 = vmatpush1.msra.mxu0 0.0
      %3903 = vmatprep.subr.mxu0 0.0
      %3904 = vmatpush1.msra.mxu0 0.0
      %3905 = vmatprep.subr.mxu0 0.0
      %3906 = vmatpush1.msra.mxu0 0.0
      %3907 = vmatprep.subr.mxu0 0.0
      %3908 = vmatpush1.msra.mxu0 0.0
      %3909 = vmatprep.subr.mxu0 0.0
      %3910 = vmatpush1.msra.mxu0 0.0
      %3911 = vmatprep.subr.mxu0 0.0
      %3912 = vmatpush1.msra.mxu0 0.0
      %3913 = vmatprep.subr.mxu0 0.0
      %3914 = vmatpush1.msra.mxu0 0.0
      %3915 = vmatprep.subr.mxu0 0.0
      %3916 = vmatpush1.msra.mxu0 0.0
      %3917 = vmatprep.subr.mxu0 0.0
      %3918 = vmatpush1.msra.mxu0 0.0
      %3919 = vmatprep.subr.mxu0 0.0
      %3920 = vmatpush1.msra.mxu0 0.0
      %3921 = vmatprep.subr.mxu0 0.0
      %3922 = vmatpush1.msra.mxu0 0.0
      %3923 = vmatprep.subr.mxu0 0.0
      %3924 = vmatpush1.msra.mxu0 0.0
      %3925 = vmatprep.subr.mxu0 0.0
      %3926 = vmatpush1.msra.mxu0 0.0
      %3927 = vmatprep.subr.mxu0 0.0
      %3928 = vmatpush1.msra.mxu0 0.0
      %3929 = vmatprep.subr.mxu0 0.0
      %3930 = vmatpush1.msra.mxu0 0.0
      %3931 = vmatprep.subr.mxu0 0.0
      %3932 = vmatpush1.msra.mxu0 0.0
      %3933 = vmatprep.subr.mxu0 0.0
      %3934 = vmatpush1.msra.mxu0 0.0
      %3935 = vmatprep.subr.mxu0 0.0
      %3936 = vmatpush1.msra.mxu0 0.0
      %3937 = vmatprep.subr.mxu0 0.0
      %3938 = vmatpush1.msra.mxu0 0.0
      %3939 = vmatprep.subr.mxu0 0.0
      %3940 = vmatpush1.msra.mxu0 0.0
      %3941 = vmatprep.mubr.f32.mxu0 0.0
      %3942 = vmatmul.mubr.f32.gmra.mrb[0].mxu0 %v1502
      %v3943 = vpop.f32.mrb[0].mxu0
      %v3944 = vadd.f32 %v3588, %v3943
      %v3945 = vpop.f32.mrb[0].mxu0
      %v3946 = vadd.f32 %v3590, %v3945
      %3947 = vmatprep.mubr.f32.mxu0 0.0
      %3948 = vmatmul.mubr.f32.gmra.mrb[0].mxu0 %v1505
      %v3949 = vpop.f32.mrb[0].mxu0
      %v3950 = vadd.f32 %v3594, %v3949
      %v3951 = vpop.f32.mrb[0].mxu0
      %v3952 = vadd.f32 %v3596, %v3951
      %3953 = vmatprep.mubr.f32.mxu0 0.0
      %3954 = vmatmul.mubr.f32.gmra.mrb[0].mxu0 %v1508
      %v3955 = vpop.f32.mrb[0].mxu0
      %v3956 = vadd.f32 %v3600, %v3955
      %v3957 = vpop.f32.mrb[0].mxu0
      %v3958 = vadd.f32 %v3602, %v3957
      %3959 = vmatprep.mubr.f32.mxu0 0.0
      %3960 = vmatmul.mubr.f32.gmra.mrb[0].mxu0 %v1511
      %v3961 = vpop.f32.mrb[0].mxu0
      %v3962 = vadd.f32 %v3606, %v3961
      %v3963 = vpop.f32.mrb[0].mxu0
      %v3964 = vadd.f32 %v3608, %v3963
      %3965 = vdwg.mxu0
      %vm3966 = vcmp.ge.f32.partialorder %v3677, 0.0
      %vm3967 = vcmp.ge.f32.partialorder %v3679, 0.0
      %vm3968 = vcmp.ge.f32.partialorder %v3766, 0.0
      %vm3969 = vcmp.ge.f32.partialorder %v3768, 0.0
      %vm3970 = vcmp.ge.f32.partialorder %v3855, 0.0
      %vm3971 = vcmp.ge.f32.partialorder %v3857, 0.0
      %vm3972 = vcmp.ge.f32.partialorder %v3944, 0.0
      %vm3973 = vcmp.ge.f32.partialorder %v3946, 0.0
      %vm3974 = vcmp.ge.f32.partialorder %v3683, 0.0
      %vm3975 = vcmp.ge.f32.partialorder %v3685, 0.0
      %vm3976 = vcmp.ge.f32.partialorder %v3772, 0.0
      %vm3977 = vcmp.ge.f32.partialorder %v3774, 0.0
      %vm3978 = vcmp.ge.f32.partialorder %v3861, 0.0
      %vm3979 = vcmp.ge.f32.partialorder %v3863, 0.0
      %vm3980 = vcmp.ge.f32.partialorder %v3950, 0.0
      %vm3981 = vcmp.ge.f32.partialorder %v3952, 0.0
      %vm3982 = vcmp.ge.f32.partialorder %v3689, 0.0
      %vm3983 = vcmp.ge.f32.partialorder %v3691, 0.0
      %vm3984 = vcmp.ge.f32.partialorder %v3778, 0.0
      %vm3985 = vcmp.ge.f32.partialorder %v3780, 0.0
      %vm3986 = vcmp.ge.f32.partialorder %v3867, 0.0
      %vm3987 = vcmp.ge.f32.partialorder %v3869, 0.0
      %vm3988 = vcmp.ge.f32.partialorder %v3956, 0.0
      %vm3989 = vcmp.ge.f32.partialorder %v3958, 0.0
      %vm3990 = vcmp.ge.f32.partialorder %v3695, 0.0
      %vm3991 = vcmp.ge.f32.partialorder %v3697, 0.0
      %vm3992 = vcmp.ge.f32.partialorder %v3784, 0.0
      %vm3993 = vcmp.ge.f32.partialorder %v3786, 0.0
      %vm3994 = vcmp.ge.f32.partialorder %v3873, 0.0
      %vm3995 = vcmp.ge.f32.partialorder %v3875, 0.0
      %vm3996 = vcmp.ge.f32.partialorder %v3962, 0.0
      %vm3997 = vcmp.ge.f32.partialorder %v3964, 0.0
      %v3998 = vmul.f32 %v3677, 0.01
      %v3999 = vmul.f32 %v3679, 0.01
      %v4000 = vmul.f32 %v3766, 0.01
      %v4001 = vmul.f32 %v3768, 0.01
      %v4002 = vmul.f32 %v3855, 0.01
      %v4003 = vmul.f32 %v3857, 0.01
      %v4004 = vmul.f32 %v3944, 0.01
      %v4005 = vmul.f32 %v3946, 0.01
      %v4006 = vmul.f32 %v3683, 0.01
      %v4007 = vmul.f32 %v3685, 0.01
      %v4008 = vmul.f32 %v3772, 0.01
      %v4009 = vmul.f32 %v3774, 0.01
      %v4010 = vmul.f32 %v3861, 0.01
      %v4011 = vmul.f32 %v3863, 0.01
      %v4012 = vmul.f32 %v3950, 0.01
      %v4013 = vmul.f32 %v3952, 0.01
      %v4014 = vmul.f32 %v3689, 0.01
      %v4015 = vmul.f32 %v3691, 0.01
      %v4016 = vmul.f32 %v3778, 0.01
      %v4017 = vmul.f32 %v3780, 0.01
      %v4018 = vmul.f32 %v3867, 0.01
      %v4019 = vmul.f32 %v3869, 0.01
      %v4020 = vmul.f32 %v3956, 0.01
      %v4021 = vmul.f32 %v3958, 0.01
      %v4022 = vmul.f32 %v3695, 0.01
      %v4023 = vmul.f32 %v3697, 0.01
      %v4024 = vmul.f32 %v3784, 0.01
      %v4025 = vmul.f32 %v3786, 0.01
      %v4026 = vmul.f32 %v3873, 0.01
      %v4027 = vmul.f32 %v3875, 0.01
      %v4028 = vmul.f32 %v3962, 0.01
      %v4029 = vmul.f32 %v3964, 0.01
      %v4030 = vsel %vm3966, %v3677, %v3998
      %v4031 = vsel %vm3967, %v3679, %v3999
      %v4032 = vsel %vm3968, %v3766, %v4000
      %v4033 = vsel %vm3969, %v3768, %v4001
      %v4034 = vsel %vm3970, %v3855, %v4002
      %v4035 = vsel %vm3971, %v3857, %v4003
      %v4036 = vsel %vm3972, %v3944, %v4004
      %v4037 = vsel %vm3973, %v3946, %v4005
      %v4038 = vsel %vm3974, %v3683, %v4006
      %v4039 = vsel %vm3975, %v3685, %v4007
      %v4040 = vsel %vm3976, %v3772, %v4008
      %v4041 = vsel %vm3977, %v3774, %v4009
      %v4042 = vsel %vm3978, %v3861, %v4010
      %v4043 = vsel %vm3979, %v3863, %v4011
      %v4044 = vsel %vm3980, %v3950, %v4012
      %v4045 = vsel %vm3981, %v3952, %v4013
      %v4046 = vsel %vm3982, %v3689, %v4014
      %v4047 = vsel %vm3983, %v3691, %v4015
      %v4048 = vsel %vm3984, %v3778, %v4016
      %v4049 = vsel %vm3985, %v3780, %v4017
      %v4050 = vsel %vm3986, %v3867, %v4018
      %v4051 = vsel %vm3987, %v3869, %v4019
      %v4052 = vsel %vm3988, %v3956, %v4020
      %v4053 = vsel %vm3989, %v3958, %v4021
      %v4054 = vsel %vm3990, %v3695, %v4022
      %v4055 = vsel %vm3991, %v3697, %v4023
      %v4056 = vsel %vm3992, %v3784, %v4024
      %v4057 = vsel %vm3993, %v3786, %v4025
      %v4058 = vsel %vm3994, %v3873, %v4026
      %v4059 = vsel %vm3995, %v3875, %v4027
      %v4060 = vsel %vm3996, %v3962, %v4028
      %v4061 = vsel %vm3997, %v3964, %v4029
      %4062 = vmatprep.subr.mxu0 %v4031
      %4063 = vmatpush1.msra.mxu0 %v4030
      %4064 = vmatprep.subr.mxu0 %v4039
      %4065 = vmatpush1.msra.mxu0 %v4038
      %4066 = vmatprep.subr.mxu0 %v4047
      %4067 = vmatpush1.msra.mxu0 %v4046
      %4068 = vmatprep.subr.mxu0 %v4055
      %4069 = vmatpush1.msra.mxu0 %v4054
      %4070 = vmatprep.subr.mxu0 0.0
      %4071 = vmatpush1.msra.mxu0 0.0
      %4072 = vmatprep.subr.mxu0 0.0
      %4073 = vmatpush1.msra.mxu0 0.0
      %4074 = vmatprep.subr.mxu0 0.0
      %4075 = vmatpush1.msra.mxu0 0.0
      %4076 = vmatprep.subr.mxu0 0.0
      %4077 = vmatpush1.msra.mxu0 0.0
      %4078 = vmatprep.subr.mxu0 0.0
      %4079 = vmatpush1.msra.mxu0 0.0
      %4080 = vmatprep.subr.mxu0 0.0
      %4081 = vmatpush1.msra.mxu0 0.0
      %4082 = vmatprep.subr.mxu0 0.0
      %4083 = vmatpush1.msra.mxu0 0.0
      %4084 = vmatprep.subr.mxu0 0.0
      %4085 = vmatpush1.msra.mxu0 0.0
      %4086 = vmatprep.subr.mxu0 0.0
      %4087 = vmatpush1.msra.mxu0 0.0
      %4088 = vmatprep.subr.mxu0 0.0
      %4089 = vmatpush1.msra.mxu0 0.0
      %4090 = vmatprep.subr.mxu0 0.0
      %4091 = vmatpush1.msra.mxu0 0.0
      %4092 = vmatprep.subr.mxu0 0.0
      %4093 = vmatpush1.msra.mxu0 0.0
      %4094 = vmatprep.subr.mxu0 0.0
      %4095 = vmatpush1.msra.mxu0 0.0
      %4096 = vmatprep.subr.mxu0 0.0
      %4097 = vmatpush1.msra.mxu0 0.0
      %4098 = vmatprep.subr.mxu0 0.0
      %4099 = vmatpush1.msra.mxu0 0.0
      %4100 = vmatprep.subr.mxu0 0.0
      %4101 = vmatpush1.msra.mxu0 0.0
      %4102 = vmatprep.subr.mxu0 0.0
      %4103 = vmatpush1.msra.mxu0 0.0
      %4104 = vmatprep.subr.mxu0 0.0
      %4105 = vmatpush1.msra.mxu0 0.0
      %4106 = vmatprep.subr.mxu0 0.0
      %4107 = vmatpush1.msra.mxu0 0.0
      %4108 = vmatprep.subr.mxu0 0.0
      %4109 = vmatpush1.msra.mxu0 0.0
      %4110 = vmatprep.subr.mxu0 0.0
      %4111 = vmatpush1.msra.mxu0 0.0
      %4112 = vmatprep.subr.mxu0 0.0
      %4113 = vmatpush1.msra.mxu0 0.0
      %4114 = vmatprep.subr.mxu0 0.0
      %4115 = vmatpush1.msra.mxu0 0.0
      %4116 = vmatprep.subr.mxu0 0.0
      %4117 = vmatpush1.msra.mxu0 0.0
      %4118 = vmatprep.subr.mxu0 0.0
      %4119 = vmatpush1.msra.mxu0 0.0
      %4120 = vmatprep.subr.mxu0 0.0
      %4121 = vmatpush1.msra.mxu0 0.0
      %4122 = vmatprep.subr.mxu0 0.0
      %4123 = vmatpush1.msra.mxu0 0.0
      %4124 = vmatprep.subr.mxu0 0.0
      %4125 = vmatpush1.msra.mxu0 0.0
      %4126 = vmatprep.mubr.f32.mxu0 0.0
      %4127 = vmatmul.mubr.f32.gmra.mrb[0].mxu0 %v1968
      %v4128 = vpop.f32.mrb[0].mxu0
      %v4129 = vadd.f32 0.0, %v4128
      %v4130 = vpop.f32.mrb[0].mxu0
      %v4131 = vadd.f32 0.0, %v4130
      %4132 = vmatprep.mubr.f32.mxu0 0.0
      %4133 = vmatmul.mubr.f32.gmra.mrb[0].mxu0 %v1971
      %v4134 = vpop.f32.mrb[0].mxu0
      %v4135 = vadd.f32 0.0, %v4134
      %v4136 = vpop.f32.mrb[0].mxu0
      %v4137 = vadd.f32 0.0, %v4136
      %4138 = vdwg.mxu0
      %4139 = vmatprep.subr.mxu0 %v4033
      %4140 = vmatpush1.msra.mxu0 %v4032
      %4141 = vmatprep.subr.mxu0 %v4041
      %4142 = vmatpush1.msra.mxu0 %v4040
      %4143 = vmatprep.subr.mxu0 %v4049
      %4144 = vmatpush1.msra.mxu0 %v4048
      %4145 = vmatprep.subr.mxu0 %v4057
      %4146 = vmatpush1.msra.mxu0 %v4056
      %4147 = vmatprep.subr.mxu0 0.0
      %4148 = vmatpush1.msra.mxu0 0.0
      %4149 = vmatprep.subr.mxu0 0.0
      %4150 = vmatpush1.msra.mxu0 0.0
      %4151 = vmatprep.subr.mxu0 0.0
      %4152 = vmatpush1.msra.mxu0 0.0
      %4153 = vmatprep.subr.mxu0 0.0
      %4154 = vmatpush1.msra.mxu0 0.0
      %4155 = vmatprep.subr.mxu0 0.0
      %4156 = vmatpush1.msra.mxu0 0.0
      %4157 = vmatprep.subr.mxu0 0.0
      %4158 = vmatpush1.msra.mxu0 0.0
      %4159 = vmatprep.subr.mxu0 0.0
      %4160 = vmatpush1.msra.mxu0 0.0
      %4161 = vmatprep.subr.mxu0 0.0
      %4162 = vmatpush1.msra.mxu0 0.0
      %4163 = vmatprep.subr.mxu0 0.0
      %4164 = vmatpush1.msra.mxu0 0.0
      %4165 = vmatprep.subr.mxu0 0.0
      %4166 = vmatpush1.msra.mxu0 0.0
      %4167 = vmatprep.subr.mxu0 0.0
      %4168 = vmatpush1.msra.mxu0 0.0
      %4169 = vmatprep.subr.mxu0 0.0
      %4170 = vmatpush1.msra.mxu0 0.0
      %4171 = vmatprep.subr.mxu0 0.0
      %4172 = vmatpush1.msra.mxu0 0.0
      %4173 = vmatprep.subr.mxu0 0.0
      %4174 = vmatpush1.msra.mxu0 0.0
      %4175 = vmatprep.subr.mxu0 0.0
      %4176 = vmatpush1.msra.mxu0 0.0
      %4177 = vmatprep.subr.mxu0 0.0
      %4178 = vmatpush1.msra.mxu0 0.0
      %4179 = vmatprep.subr.mxu0 0.0
      %4180 = vmatpush1.msra.mxu0 0.0
      %4181 = vmatprep.subr.mxu0 0.0
      %4182 = vmatpush1.msra.mxu0 0.0
      %4183 = vmatprep.subr.mxu0 0.0
      %4184 = vmatpush1.msra.mxu0 0.0
      %4185 = vmatprep.subr.mxu0 0.0
      %4186 = vmatpush1.msra.mxu0 0.0
      %4187 = vmatprep.subr.mxu0 0.0
      %4188 = vmatpush1.msra.mxu0 0.0
      %4189 = vmatprep.subr.mxu0 0.0
      %4190 = vmatpush1.msra.mxu0 0.0
      %4191 = vmatprep.subr.mxu0 0.0
      %4192 = vmatpush1.msra.mxu0 0.0
      %4193 = vmatprep.subr.mxu0 0.0
      %4194 = vmatpush1.msra.mxu0 0.0
      %4195 = vmatprep.subr.mxu0 0.0
      %4196 = vmatpush1.msra.mxu0 0.0
      %4197 = vmatprep.subr.mxu0 0.0
      %4198 = vmatpush1.msra.mxu0 0.0
      %4199 = vmatprep.subr.mxu0 0.0
      %4200 = vmatpush1.msra.mxu0 0.0
      %4201 = vmatprep.subr.mxu0 0.0
      %4202 = vmatpush1.msra.mxu0 0.0
      %4203 = vmatprep.mubr.f32.mxu0 0.0
      %4204 = vmatmul.mubr.f32.gmra.mrb[0].mxu0 %v1968
      %v4205 = vpop.f32.mrb[0].mxu0
      %v4206 = vadd.f32 0.0, %v4205
      %v4207 = vpop.f32.mrb[0].mxu0
      %v4208 = vadd.f32 0.0, %v4207
      %4209 = vmatprep.mubr.f32.mxu0 0.0
      %4210 = vmatmul.mubr.f32.gmra.mrb[0].mxu0 %v1971
      %v4211 = vpop.f32.mrb[0].mxu0
      %v4212 = vadd.f32 0.0, %v4211
      %v4213 = vpop.f32.mrb[0].mxu0
      %v4214 = vadd.f32 0.0, %v4213
      %4215 = vdwg.mxu0
      %4216 = vmatprep.subr.mxu0 %v4035
      %4217 = vmatpush1.msra.mxu0 %v4034
      %4218 = vmatprep.subr.mxu0 %v4043
      %4219 = vmatpush1.msra.mxu0 %v4042
      %4220 = vmatprep.subr.mxu0 %v4051
      %4221 = vmatpush1.msra.mxu0 %v4050
      %4222 = vmatprep.subr.mxu0 %v4059
      %4223 = vmatpush1.msra.mxu0 %v4058
      %4224 = vmatprep.subr.mxu0 0.0
      %4225 = vmatpush1.msra.mxu0 0.0
      %4226 = vmatprep.subr.mxu0 0.0
      %4227 = vmatpush1.msra.mxu0 0.0
      %4228 = vmatprep.subr.mxu0 0.0
      %4229 = vmatpush1.msra.mxu0 0.0
      %4230 = vmatprep.subr.mxu0 0.0
      %4231 = vmatpush1.msra.mxu0 0.0
      %4232 = vmatprep.subr.mxu0 0.0
      %4233 = vmatpush1.msra.mxu0 0.0
      %4234 = vmatprep.subr.mxu0 0.0
      %4235 = vmatpush1.msra.mxu0 0.0
      %4236 = vmatprep.subr.mxu0 0.0
      %4237 = vmatpush1.msra.mxu0 0.0
      %4238 = vmatprep.subr.mxu0 0.0
      %4239 = vmatpush1.msra.mxu0 0.0
      %4240 = vmatprep.subr.mxu0 0.0
      %4241 = vmatpush1.msra.mxu0 0.0
      %4242 = vmatprep.subr.mxu0 0.0
      %4243 = vmatpush1.msra.mxu0 0.0
      %4244 = vmatprep.subr.mxu0 0.0
      %4245 = vmatpush1.msra.mxu0 0.0
      %4246 = vmatprep.subr.mxu0 0.0
      %4247 = vmatpush1.msra.mxu0 0.0
      %4248 = vmatprep.subr.mxu0 0.0
      %4249 = vmatpush1.msra.mxu0 0.0
      %4250 = vmatprep.subr.mxu0 0.0
      %4251 = vmatpush1.msra.mxu0 0.0
      %4252 = vmatprep.subr.mxu0 0.0
      %4253 = vmatpush1.msra.mxu0 0.0
      %4254 = vmatprep.subr.mxu0 0.0
      %4255 = vmatpush1.msra.mxu0 0.0
      %4256 = vmatprep.subr.mxu0 0.0
      %4257 = vmatpush1.msra.mxu0 0.0
      %4258 = vmatprep.subr.mxu0 0.0
      %4259 = vmatpush1.msra.mxu0 0.0
      %4260 = vmatprep.subr.mxu0 0.0
      %4261 = vmatpush1.msra.mxu0 0.0
      %4262 = vmatprep.subr.mxu0 0.0
      %4263 = vmatpush1.msra.mxu0 0.0
      %4264 = vmatprep.subr.mxu0 0.0
      %4265 = vmatpush1.msra.mxu0 0.0
      %4266 = vmatprep.subr.mxu0 0.0
      %4267 = vmatpush1.msra.mxu0 0.0
      %4268 = vmatprep.subr.mxu0 0.0
      %4269 = vmatpush1.msra.mxu0 0.0
      %4270 = vmatprep.subr.mxu0 0.0
      %4271 = vmatpush1.msra.mxu0 0.0
      %4272 = vmatprep.subr.mxu0 0.0
      %4273 = vmatpush1.msra.mxu0 0.0
      %4274 = vmatprep.subr.mxu0 0.0
      %4275 = vmatpush1.msra.mxu0 0.0
      %4276 = vmatprep.subr.mxu0 0.0
      %4277 = vmatpush1.msra.mxu0 0.0
      %4278 = vmatprep.subr.mxu0 0.0
      %4279 = vmatpush1.msra.mxu0 0.0
      %4280 = vmatprep.mubr.f32.mxu0 0.0
      %4281 = vmatmul.mubr.f32.gmra.mrb[0].mxu0 %v1968
      %v4282 = vpop.f32.mrb[0].mxu0
      %v4283 = vadd.f32 0.0, %v4282
      %v4284 = vpop.f32.mrb[0].mxu0
      %v4285 = vadd.f32 0.0, %v4284
      %4286 = vmatprep.mubr.f32.mxu0 0.0
      %4287 = vmatmul.mubr.f32.gmra.mrb[0].mxu0 %v1971
      %v4288 = vpop.f32.mrb[0].mxu0
      %v4289 = vadd.f32 0.0, %v4288
      %v4290 = vpop.f32.mrb[0].mxu0
      %v4291 = vadd.f32 0.0, %v4290
      %4292 = vdwg.mxu0
      %4293 = vmatprep.subr.mxu0 %v4037
      %4294 = vmatpush1.msra.mxu0 %v4036
      %4295 = vmatprep.subr.mxu0 %v4045
      %4296 = vmatpush1.msra.mxu0 %v4044
      %4297 = vmatprep.subr.mxu0 %v4053
      %4298 = vmatpush1.msra.mxu0 %v4052
      %4299 = vmatprep.subr.mxu0 %v4061
      %4300 = vmatpush1.msra.mxu0 %v4060
      %4301 = vmatprep.subr.mxu0 0.0
      %4302 = vmatpush1.msra.mxu0 0.0
      %4303 = vmatprep.subr.mxu0 0.0
      %4304 = vmatpush1.msra.mxu0 0.0
      %4305 = vmatprep.subr.mxu0 0.0
      %4306 = vmatpush1.msra.mxu0 0.0
      %4307 = vmatprep.subr.mxu0 0.0
      %4308 = vmatpush1.msra.mxu0 0.0
      %4309 = vmatprep.subr.mxu0 0.0
      %4310 = vmatpush1.msra.mxu0 0.0
      %4311 = vmatprep.subr.mxu0 0.0
      %4312 = vmatpush1.msra.mxu0 0.0
      %4313 = vmatprep.subr.mxu0 0.0
      %4314 = vmatpush1.msra.mxu0 0.0
      %4315 = vmatprep.subr.mxu0 0.0
      %4316 = vmatpush1.msra.mxu0 0.0
      %4317 = vmatprep.subr.mxu0 0.0
      %4318 = vmatpush1.msra.mxu0 0.0
      %4319 = vmatprep.subr.mxu0 0.0
      %4320 = vmatpush1.msra.mxu0 0.0
      %4321 = vmatprep.subr.mxu0 0.0
      %4322 = vmatpush1.msra.mxu0 0.0
      %4323 = vmatprep.subr.mxu0 0.0
      %4324 = vmatpush1.msra.mxu0 0.0
      %4325 = vmatprep.subr.mxu0 0.0
      %4326 = vmatpush1.msra.mxu0 0.0
      %4327 = vmatprep.subr.mxu0 0.0
      %4328 = vmatpush1.msra.mxu0 0.0
      %4329 = vmatprep.subr.mxu0 0.0
      %4330 = vmatpush1.msra.mxu0 0.0
      %4331 = vmatprep.subr.mxu0 0.0
      %4332 = vmatpush1.msra.mxu0 0.0
      %4333 = vmatprep.subr.mxu0 0.0
      %4334 = vmatpush1.msra.mxu0 0.0
      %4335 = vmatprep.subr.mxu0 0.0
      %4336 = vmatpush1.msra.mxu0 0.0
      %4337 = vmatprep.subr.mxu0 0.0
      %4338 = vmatpush1.msra.mxu0 0.0
      %4339 = vmatprep.subr.mxu0 0.0
      %4340 = vmatpush1.msra.mxu0 0.0
      %4341 = vmatprep.subr.mxu0 0.0
      %4342 = vmatpush1.msra.mxu0 0.0
      %4343 = vmatprep.subr.mxu0 0.0
      %4344 = vmatpush1.msra.mxu0 0.0
      %4345 = vmatprep.subr.mxu0 0.0
      %4346 = vmatpush1.msra.mxu0 0.0
      %4347 = vmatprep.subr.mxu0 0.0
      %4348 = vmatpush1.msra.mxu0 0.0
      %4349 = vmatprep.subr.mxu0 0.0
      %4350 = vmatpush1.msra.mxu0 0.0
      %4351 = vmatprep.subr.mxu0 0.0
      %4352 = vmatpush1.msra.mxu0 0.0
      %4353 = vmatprep.subr.mxu0 0.0
      %4354 = vmatpush1.msra.mxu0 0.0
      %4355 = vmatprep.subr.mxu0 0.0
      %4356 = vmatpush1.msra.mxu0 0.0
      %4357 = vmatprep.mubr.f32.mxu0 0.0
      %4358 = vmatmul.mubr.f32.gmra.mrb[0].mxu0 %v1968
      %v4359 = vpop.f32.mrb[0].mxu0
      %v4360 = vadd.f32 0.0, %v4359
      %v4361 = vpop.f32.mrb[0].mxu0
      %v4362 = vadd.f32 0.0, %v4361
      %4363 = vmatprep.mubr.f32.mxu0 0.0
      %4364 = vmatmul.mubr.f32.gmra.mrb[0].mxu0 %v1971
      %v4365 = vpop.f32.mrb[0].mxu0
      %v4366 = vadd.f32 0.0, %v4365
      %v4367 = vpop.f32.mrb[0].mxu0
      %v4368 = vadd.f32 0.0, %v4367
      %4369 = vdwg.mxu0
      %vm4370 = vcmp.ge.f32.partialorder %v4129, 0.0
      %vm4371 = vcmp.ge.f32.partialorder %v4131, 0.0
      %vm4372 = vcmp.ge.f32.partialorder %v4206, 0.0
      %vm4373 = vcmp.ge.f32.partialorder %v4208, 0.0
      %vm4374 = vcmp.ge.f32.partialorder %v4283, 0.0
      %vm4375 = vcmp.ge.f32.partialorder %v4285, 0.0
      %vm4376 = vcmp.ge.f32.partialorder %v4360, 0.0
      %vm4377 = vcmp.ge.f32.partialorder %v4362, 0.0
      %vm4378 = vcmp.ge.f32.partialorder %v4135, 0.0
      %vm4379 = vcmp.ge.f32.partialorder %v4137, 0.0
      %vm4380 = vcmp.ge.f32.partialorder %v4212, 0.0
      %vm4381 = vcmp.ge.f32.partialorder %v4214, 0.0
      %vm4382 = vcmp.ge.f32.partialorder %v4289, 0.0
      %vm4383 = vcmp.ge.f32.partialorder %v4291, 0.0
      %vm4384 = vcmp.ge.f32.partialorder %v4366, 0.0
      %vm4385 = vcmp.ge.f32.partialorder %v4368, 0.0
      %v4386 = vmul.f32 %v4129, 0.01
      %v4387 = vmul.f32 %v4131, 0.01
      %v4388 = vmul.f32 %v4206, 0.01
      %v4389 = vmul.f32 %v4208, 0.01
      %v4390 = vmul.f32 %v4283, 0.01
      %v4391 = vmul.f32 %v4285, 0.01
      %v4392 = vmul.f32 %v4360, 0.01
      %v4393 = vmul.f32 %v4362, 0.01
      %v4394 = vmul.f32 %v4135, 0.01
      %v4395 = vmul.f32 %v4137, 0.01
      %v4396 = vmul.f32 %v4212, 0.01
      %v4397 = vmul.f32 %v4214, 0.01
      %v4398 = vmul.f32 %v4289, 0.01
      %v4399 = vmul.f32 %v4291, 0.01
      %v4400 = vmul.f32 %v4366, 0.01
      %v4401 = vmul.f32 %v4368, 0.01
      %v4402 = vsel %vm4370, %v4129, %v4386
      %v4403 = vsel %vm4371, %v4131, %v4387
      %v4404 = vsel %vm4372, %v4206, %v4388
      %v4405 = vsel %vm4373, %v4208, %v4389
      %v4406 = vsel %vm4374, %v4283, %v4390
      %v4407 = vsel %vm4375, %v4285, %v4391
      %v4408 = vsel %vm4376, %v4360, %v4392
      %v4409 = vsel %vm4377, %v4362, %v4393
      %v4410 = vsel %vm4378, %v4135, %v4394
      %v4411 = vsel %vm4379, %v4137, %v4395
      %v4412 = vsel %vm4380, %v4212, %v4396
      %v4413 = vsel %vm4381, %v4214, %v4397
      %v4414 = vsel %vm4382, %v4289, %v4398
      %v4415 = vsel %vm4383, %v4291, %v4399
      %v4416 = vsel %vm4384, %v4366, %v4400
      %v4417 = vsel %vm4385, %v4368, %v4401
      %4418 = vmatprep.subr.mxu0 %v4403
      %4419 = vmatpush1.msra.mxu0 %v4402
      %4420 = vmatprep.subr.mxu0 %v4411
      %4421 = vmatpush1.msra.mxu0 %v4410
      %4422 = vmatprep.subr.mxu0 0.0
      %4423 = vmatpush1.msra.mxu0 0.0
      %4424 = vmatprep.subr.mxu0 0.0
      %4425 = vmatpush1.msra.mxu0 0.0
      %4426 = vmatprep.subr.mxu0 0.0
      %4427 = vmatpush1.msra.mxu0 0.0
      %4428 = vmatprep.subr.mxu0 0.0
      %4429 = vmatpush1.msra.mxu0 0.0
      %4430 = vmatprep.subr.mxu0 0.0
      %4431 = vmatpush1.msra.mxu0 0.0
      %4432 = vmatprep.subr.mxu0 0.0
      %4433 = vmatpush1.msra.mxu0 0.0
      %4434 = vmatprep.subr.mxu0 0.0
      %4435 = vmatpush1.msra.mxu0 0.0
      %4436 = vmatprep.subr.mxu0 0.0
      %4437 = vmatpush1.msra.mxu0 0.0
      %4438 = vmatprep.subr.mxu0 0.0
      %4439 = vmatpush1.msra.mxu0 0.0
      %4440 = vmatprep.subr.mxu0 0.0
      %4441 = vmatpush1.msra.mxu0 0.0
      %4442 = vmatprep.subr.mxu0 0.0
      %4443 = vmatpush1.msra.mxu0 0.0
      %4444 = vmatprep.subr.mxu0 0.0
      %4445 = vmatpush1.msra.mxu0 0.0
      %4446 = vmatprep.subr.mxu0 0.0
      %4447 = vmatpush1.msra.mxu0 0.0
      %4448 = vmatprep.subr.mxu0 0.0
      %4449 = vmatpush1.msra.mxu0 0.0
      %4450 = vmatprep.subr.mxu0 0.0
      %4451 = vmatpush1.msra.mxu0 0.0
      %4452 = vmatprep.subr.mxu0 0.0
      %4453 = vmatpush1.msra.mxu0 0.0
      %4454 = vmatprep.subr.mxu0 0.0
      %4455 = vmatpush1.msra.mxu0 0.0
      %4456 = vmatprep.subr.mxu0 0.0
      %4457 = vmatpush1.msra.mxu0 0.0
      %4458 = vmatprep.subr.mxu0 0.0
      %4459 = vmatpush1.msra.mxu0 0.0
      %4460 = vmatprep.subr.mxu0 0.0
      %4461 = vmatpush1.msra.mxu0 0.0
      %4462 = vmatprep.subr.mxu0 0.0
      %4463 = vmatpush1.msra.mxu0 0.0
      %4464 = vmatprep.subr.mxu0 0.0
      %4465 = vmatpush1.msra.mxu0 0.0
      %4466 = vmatprep.subr.mxu0 0.0
      %4467 = vmatpush1.msra.mxu0 0.0
      %4468 = vmatprep.subr.mxu0 0.0
      %4469 = vmatpush1.msra.mxu0 0.0
      %4470 = vmatprep.subr.mxu0 0.0
      %4471 = vmatpush1.msra.mxu0 0.0
      %4472 = vmatprep.subr.mxu0 0.0
      %4473 = vmatpush1.msra.mxu0 0.0
      %4474 = vmatprep.subr.mxu0 0.0
      %4475 = vmatpush1.msra.mxu0 0.0
      %4476 = vmatprep.subr.mxu0 0.0
      %4477 = vmatpush1.msra.mxu0 0.0
      %4478 = vmatprep.subr.mxu0 0.0
      %4479 = vmatpush1.msra.mxu0 0.0
      %4480 = vmatprep.subr.mxu0 0.0
      %4481 = vmatpush1.msra.mxu0 0.0
      %4482 = vmatprep.mubr.f32.mxu0 0.0
      %4483 = vmatmul.mubr.f32.gmra.mrb[0].mxu0 %v2333
      %v4484 = vpop.f32.mrb[0].mxu0
      %v4485 = vadd.f32 0.0, %v4484
      %v4486 = vpop.f32.mrb[0].mxu0
      %v4487 = vadd.f32 0.0, %v4486
      %4488 = vmatprep.mubr.f32.mxu0 0.0
      %4489 = vmatmul.mubr.f32.gmra.mrb[0].mxu0 %v2336
      %v4490 = vpop.f32.mrb[0].mxu0
      %v4491 = vadd.f32 0.0, %v4490
      %v4492 = vpop.f32.mrb[0].mxu0
      %v4493 = vadd.f32 0.0, %v4492
      %4494 = vdwg.mxu0
      %4495 = vmatprep.subr.mxu0 %v4405
      %4496 = vmatpush1.msra.mxu0 %v4404
      %4497 = vmatprep.subr.mxu0 %v4413
      %4498 = vmatpush1.msra.mxu0 %v4412
      %4499 = vmatprep.subr.mxu0 0.0
      %4500 = vmatpush1.msra.mxu0 0.0
      %4501 = vmatprep.subr.mxu0 0.0
      %4502 = vmatpush1.msra.mxu0 0.0
      %4503 = vmatprep.subr.mxu0 0.0
      %4504 = vmatpush1.msra.mxu0 0.0
      %4505 = vmatprep.subr.mxu0 0.0
      %4506 = vmatpush1.msra.mxu0 0.0
      %4507 = vmatprep.subr.mxu0 0.0
      %4508 = vmatpush1.msra.mxu0 0.0
      %4509 = vmatprep.subr.mxu0 0.0
      %4510 = vmatpush1.msra.mxu0 0.0
      %4511 = vmatprep.subr.mxu0 0.0
      %4512 = vmatpush1.msra.mxu0 0.0
      %4513 = vmatprep.subr.mxu0 0.0
      %4514 = vmatpush1.msra.mxu0 0.0
      %4515 = vmatprep.subr.mxu0 0.0
      %4516 = vmatpush1.msra.mxu0 0.0
      %4517 = vmatprep.subr.mxu0 0.0
      %4518 = vmatpush1.msra.mxu0 0.0
      %4519 = vmatprep.subr.mxu0 0.0
      %4520 = vmatpush1.msra.mxu0 0.0
      %4521 = vmatprep.subr.mxu0 0.0
      %4522 = vmatpush1.msra.mxu0 0.0
      %4523 = vmatprep.subr.mxu0 0.0
      %4524 = vmatpush1.msra.mxu0 0.0
      %4525 = vmatprep.subr.mxu0 0.0
      %4526 = vmatpush1.msra.mxu0 0.0
      %4527 = vmatprep.subr.mxu0 0.0
      %4528 = vmatpush1.msra.mxu0 0.0
      %4529 = vmatprep.subr.mxu0 0.0
      %4530 = vmatpush1.msra.mxu0 0.0
      %4531 = vmatprep.subr.mxu0 0.0
      %4532 = vmatpush1.msra.mxu0 0.0
      %4533 = vmatprep.subr.mxu0 0.0
      %4534 = vmatpush1.msra.mxu0 0.0
      %4535 = vmatprep.subr.mxu0 0.0
      %4536 = vmatpush1.msra.mxu0 0.0
      %4537 = vmatprep.subr.mxu0 0.0
      %4538 = vmatpush1.msra.mxu0 0.0
      %4539 = vmatprep.subr.mxu0 0.0
      %4540 = vmatpush1.msra.mxu0 0.0
      %4541 = vmatprep.subr.mxu0 0.0
      %4542 = vmatpush1.msra.mxu0 0.0
      %4543 = vmatprep.subr.mxu0 0.0
      %4544 = vmatpush1.msra.mxu0 0.0
      %4545 = vmatprep.subr.mxu0 0.0
      %4546 = vmatpush1.msra.mxu0 0.0
      %4547 = vmatprep.subr.mxu0 0.0
      %4548 = vmatpush1.msra.mxu0 0.0
      %4549 = vmatprep.subr.mxu0 0.0
      %4550 = vmatpush1.msra.mxu0 0.0
      %4551 = vmatprep.subr.mxu0 0.0
      %4552 = vmatpush1.msra.mxu0 0.0
      %4553 = vmatprep.subr.mxu0 0.0
      %4554 = vmatpush1.msra.mxu0 0.0
      %4555 = vmatprep.subr.mxu0 0.0
      %4556 = vmatpush1.msra.mxu0 0.0
      %4557 = vmatprep.subr.mxu0 0.0
      %4558 = vmatpush1.msra.mxu0 0.0
      %4559 = vmatprep.mubr.f32.mxu0 0.0
      %4560 = vmatmul.mubr.f32.gmra.mrb[0].mxu0 %v2333
      %v4561 = vpop.f32.mrb[0].mxu0
      %v4562 = vadd.f32 0.0, %v4561
      %v4563 = vpop.f32.mrb[0].mxu0
      %v4564 = vadd.f32 0.0, %v4563
      %4565 = vmatprep.mubr.f32.mxu0 0.0
      %4566 = vmatmul.mubr.f32.gmra.mrb[0].mxu0 %v2336
      %v4567 = vpop.f32.mrb[0].mxu0
      %v4568 = vadd.f32 0.0, %v4567
      %v4569 = vpop.f32.mrb[0].mxu0
      %v4570 = vadd.f32 0.0, %v4569
      %4571 = vdwg.mxu0
      %4572 = vmatprep.subr.mxu0 %v4407
      %4573 = vmatpush1.msra.mxu0 %v4406
      %4574 = vmatprep.subr.mxu0 %v4415
      %4575 = vmatpush1.msra.mxu0 %v4414
      %4576 = vmatprep.subr.mxu0 0.0
      %4577 = vmatpush1.msra.mxu0 0.0
      %4578 = vmatprep.subr.mxu0 0.0
      %4579 = vmatpush1.msra.mxu0 0.0
      %4580 = vmatprep.subr.mxu0 0.0
      %4581 = vmatpush1.msra.mxu0 0.0
      %4582 = vmatprep.subr.mxu0 0.0
      %4583 = vmatpush1.msra.mxu0 0.0
      %4584 = vmatprep.subr.mxu0 0.0
      %4585 = vmatpush1.msra.mxu0 0.0
      %4586 = vmatprep.subr.mxu0 0.0
      %4587 = vmatpush1.msra.mxu0 0.0
      %4588 = vmatprep.subr.mxu0 0.0
      %4589 = vmatpush1.msra.mxu0 0.0
      %4590 = vmatprep.subr.mxu0 0.0
      %4591 = vmatpush1.msra.mxu0 0.0
      %4592 = vmatprep.subr.mxu0 0.0
      %4593 = vmatpush1.msra.mxu0 0.0
      %4594 = vmatprep.subr.mxu0 0.0
      %4595 = vmatpush1.msra.mxu0 0.0
      %4596 = vmatprep.subr.mxu0 0.0
      %4597 = vmatpush1.msra.mxu0 0.0
      %4598 = vmatprep.subr.mxu0 0.0
      %4599 = vmatpush1.msra.mxu0 0.0
      %4600 = vmatprep.subr.mxu0 0.0
      %4601 = vmatpush1.msra.mxu0 0.0
      %4602 = vmatprep.subr.mxu0 0.0
      %4603 = vmatpush1.msra.mxu0 0.0
      %4604 = vmatprep.subr.mxu0 0.0
      %4605 = vmatpush1.msra.mxu0 0.0
      %4606 = vmatprep.subr.mxu0 0.0
      %4607 = vmatpush1.msra.mxu0 0.0
      %4608 = vmatprep.subr.mxu0 0.0
      %4609 = vmatpush1.msra.mxu0 0.0
      %4610 = vmatprep.subr.mxu0 0.0
      %4611 = vmatpush1.msra.mxu0 0.0
      %4612 = vmatprep.subr.mxu0 0.0
      %4613 = vmatpush1.msra.mxu0 0.0
      %4614 = vmatprep.subr.mxu0 0.0
      %4615 = vmatpush1.msra.mxu0 0.0
      %4616 = vmatprep.subr.mxu0 0.0
      %4617 = vmatpush1.msra.mxu0 0.0
      %4618 = vmatprep.subr.mxu0 0.0
      %4619 = vmatpush1.msra.mxu0 0.0
      %4620 = vmatprep.subr.mxu0 0.0
      %4621 = vmatpush1.msra.mxu0 0.0
      %4622 = vmatprep.subr.mxu0 0.0
      %4623 = vmatpush1.msra.mxu0 0.0
      %4624 = vmatprep.subr.mxu0 0.0
      %4625 = vmatpush1.msra.mxu0 0.0
      %4626 = vmatprep.subr.mxu0 0.0
      %4627 = vmatpush1.msra.mxu0 0.0
      %4628 = vmatprep.subr.mxu0 0.0
      %4629 = vmatpush1.msra.mxu0 0.0
      %4630 = vmatprep.subr.mxu0 0.0
      %4631 = vmatpush1.msra.mxu0 0.0
      %4632 = vmatprep.subr.mxu0 0.0
      %4633 = vmatpush1.msra.mxu0 0.0
      %4634 = vmatprep.subr.mxu0 0.0
      %4635 = vmatpush1.msra.mxu0 0.0
      %4636 = vmatprep.mubr.f32.mxu0 0.0
      %4637 = vmatmul.mubr.f32.gmra.mrb[0].mxu0 %v2333
      %v4638 = vpop.f32.mrb[0].mxu0
      %v4639 = vadd.f32 0.0, %v4638
      %v4640 = vpop.f32.mrb[0].mxu0
      %v4641 = vadd.f32 0.0, %v4640
      %4642 = vmatprep.mubr.f32.mxu0 0.0
      %4643 = vmatmul.mubr.f32.gmra.mrb[0].mxu0 %v2336
      %v4644 = vpop.f32.mrb[0].mxu0
      %v4645 = vadd.f32 0.0, %v4644
      %v4646 = vpop.f32.mrb[0].mxu0
      %v4647 = vadd.f32 0.0, %v4646
      %4648 = vdwg.mxu0
      %4649 = vmatprep.subr.mxu0 %v4409
      %4650 = vmatpush1.msra.mxu0 %v4408
      %4651 = vmatprep.subr.mxu0 %v4417
      %4652 = vmatpush1.msra.mxu0 %v4416
      %4653 = vmatprep.subr.mxu0 0.0
      %4654 = vmatpush1.msra.mxu0 0.0
      %4655 = vmatprep.subr.mxu0 0.0
      %4656 = vmatpush1.msra.mxu0 0.0
      %4657 = vmatprep.subr.mxu0 0.0
      %4658 = vmatpush1.msra.mxu0 0.0
      %4659 = vmatprep.subr.mxu0 0.0
      %4660 = vmatpush1.msra.mxu0 0.0
      %4661 = vmatprep.subr.mxu0 0.0
      %4662 = vmatpush1.msra.mxu0 0.0
      %4663 = vmatprep.subr.mxu0 0.0
      %4664 = vmatpush1.msra.mxu0 0.0
      %4665 = vmatprep.subr.mxu0 0.0
      %4666 = vmatpush1.msra.mxu0 0.0
      %4667 = vmatprep.subr.mxu0 0.0
      %4668 = vmatpush1.msra.mxu0 0.0
      %4669 = vmatprep.subr.mxu0 0.0
      %4670 = vmatpush1.msra.mxu0 0.0
      %4671 = vmatprep.subr.mxu0 0.0
      %4672 = vmatpush1.msra.mxu0 0.0
      %4673 = vmatprep.subr.mxu0 0.0
      %4674 = vmatpush1.msra.mxu0 0.0
      %4675 = vmatprep.subr.mxu0 0.0
      %4676 = vmatpush1.msra.mxu0 0.0
      %4677 = vmatprep.subr.mxu0 0.0
      %4678 = vmatpush1.msra.mxu0 0.0
      %4679 = vmatprep.subr.mxu0 0.0
      %4680 = vmatpush1.msra.mxu0 0.0
      %4681 = vmatprep.subr.mxu0 0.0
      %4682 = vmatpush1.msra.mxu0 0.0
      %4683 = vmatprep.subr.mxu0 0.0
      %4684 = vmatpush1.msra.mxu0 0.0
      %4685 = vmatprep.subr.mxu0 0.0
      %4686 = vmatpush1.msra.mxu0 0.0
      %4687 = vmatprep.subr.mxu0 0.0
      %4688 = vmatpush1.msra.mxu0 0.0
      %4689 = vmatprep.subr.mxu0 0.0
      %4690 = vmatpush1.msra.mxu0 0.0
      %4691 = vmatprep.subr.mxu0 0.0
      %4692 = vmatpush1.msra.mxu0 0.0
      %4693 = vmatprep.subr.mxu0 0.0
      %4694 = vmatpush1.msra.mxu0 0.0
      %4695 = vmatprep.subr.mxu0 0.0
      %4696 = vmatpush1.msra.mxu0 0.0
      %4697 = vmatprep.subr.mxu0 0.0
      %4698 = vmatpush1.msra.mxu0 0.0
      %4699 = vmatprep.subr.mxu0 0.0
      %4700 = vmatpush1.msra.mxu0 0.0
      %4701 = vmatprep.subr.mxu0 0.0
      %4702 = vmatpush1.msra.mxu0 0.0
      %4703 = vmatprep.subr.mxu0 0.0
      %4704 = vmatpush1.msra.mxu0 0.0
      %4705 = vmatprep.subr.mxu0 0.0
      %4706 = vmatpush1.msra.mxu0 0.0
      %4707 = vmatprep.subr.mxu0 0.0
      %4708 = vmatpush1.msra.mxu0 0.0
      %4709 = vmatprep.subr.mxu0 0.0
      %4710 = vmatpush1.msra.mxu0 0.0
      %4711 = vmatprep.subr.mxu0 0.0
      %4712 = vmatpush1.msra.mxu0 0.0
      %4713 = vmatprep.mubr.f32.mxu0 0.0
      %4714 = vmatmul.mubr.f32.gmra.mrb[0].mxu0 %v2333
      %v4715 = vpop.f32.mrb[0].mxu0
      %v4716 = vadd.f32 0.0, %v4715
      %v4717 = vpop.f32.mrb[0].mxu0
      %v4718 = vadd.f32 0.0, %v4717
      %4719 = vmatprep.mubr.f32.mxu0 0.0
      %4720 = vmatmul.mubr.f32.gmra.mrb[0].mxu0 %v2336
      %v4721 = vpop.f32.mrb[0].mxu0
      %v4722 = vadd.f32 0.0, %v4721
      %v4723 = vpop.f32.mrb[0].mxu0
      %v4724 = vadd.f32 0.0, %v4723
      %4725 = vdwg.mxu0
      %v4726 = vsub.f32 %v2405, %v4485
      %v4727 = vsub.f32 %v2407, %v4487
      %v4728 = vsub.f32 %v2482, %v4562
      %v4729 = vsub.f32 %v2484, %v4564
      %v4730 = vsub.f32 %v2559, %v4639
      %v4731 = vsub.f32 %v2561, %v4641
      %v4732 = vsub.f32 %v2636, %v4716
      %v4733 = vsub.f32 %v2638, %v4718
      %v4734 = vsub.f32 %v2411, %v4491
      %v4735 = vsub.f32 %v2413, %v4493
      %v4736 = vsub.f32 %v2488, %v4568
      %v4737 = vsub.f32 %v2490, %v4570
      %v4738 = vsub.f32 %v2565, %v4645
      %v4739 = vsub.f32 %v2567, %v4647
      %v4740 = vsub.f32 %v2642, %v4722
      %v4741 = vsub.f32 %v2644, %v4724
      %v4742 = vand.u32 2147483647, %v4726
      %v4743 = vand.u32 2147483647, %v4727
      %v4744 = vand.u32 2147483647, %v4728
      %v4745 = vand.u32 2147483647, %v4729
      %v4746 = vand.u32 2147483647, %v4730
      %v4747 = vand.u32 2147483647, %v4731
      %v4748 = vand.u32 2147483647, %v4732
      %v4749 = vand.u32 2147483647, %v4733
      %v4750 = vand.u32 2147483647, %v4734
      %v4751 = vand.u32 2147483647, %v4735
      %v4752 = vand.u32 2147483647, %v4736
      %v4753 = vand.u32 2147483647, %v4737
      %v4754 = vand.u32 2147483647, %v4738
      %v4755 = vand.u32 2147483647, %v4739
      %v4756 = vand.u32 2147483647, %v4740
      %v4757 = vand.u32 2147483647, %v4741
      %v4758 = vld [vmem:[%s9] sm:$0xff]
      %v4759 = vld [vmem:[%s9 + $0x8] sm:$0xf]
      %vm4760 = vcmask 97280
      %v4762 = vsel %vm4760, %v4758, 0
      %v4765 = vsel %vm4760, %v4759, 0
      %vm4767 = vcmask 1043456
      %v4769 = vsel %vm4767, %v4750, 0
      %v4772 = vsel %vm4767, %v4751, 0
      %v4775 = vsel %vm4767, %v4752, 0
      %v4778 = vsel %vm4767, %v4753, 0
      %v4781 = vsel %vm4767, %v4754, 0
      %v4784 = vsel %vm4767, %v4755, 0
      %v4787 = vsel %vm4767, %v4756, 0
      %v4790 = vsel %vm4767, %v4757, 0
      %4792 = vmatprep.subr.mxu0 %v4743
      %4793 = vmatpush1.msra.mxu0 %v4742
      %4794 = vmatprep.subr.mxu0 %v4772
      %4795 = vmatpush1.msra.mxu0 %v4769
      %4796 = vmatprep.subr.mxu0 0.0
      %4797 = vmatpush1.msra.mxu0 0.0
      %4798 = vmatprep.subr.mxu0 0.0
      %4799 = vmatpush1.msra.mxu0 0.0
      %4800 = vmatprep.subr.mxu0 0.0
      %4801 = vmatpush1.msra.mxu0 0.0
      %4802 = vmatprep.subr.mxu0 0.0
      %4803 = vmatpush1.msra.mxu0 0.0
      %4804 = vmatprep.subr.mxu0 0.0
      %4805 = vmatpush1.msra.mxu0 0.0
      %4806 = vmatprep.subr.mxu0 0.0
      %4807 = vmatpush1.msra.mxu0 0.0
      %4808 = vmatprep.subr.mxu0 0.0
      %4809 = vmatpush1.msra.mxu0 0.0
      %4810 = vmatprep.subr.mxu0 0.0
      %4811 = vmatpush1.msra.mxu0 0.0
      %4812 = vmatprep.subr.mxu0 0.0
      %4813 = vmatpush1.msra.mxu0 0.0
      %4814 = vmatprep.subr.mxu0 0.0
      %4815 = vmatpush1.msra.mxu0 0.0
      %4816 = vmatprep.subr.mxu0 0.0
      %4817 = vmatpush1.msra.mxu0 0.0
      %4818 = vmatprep.subr.mxu0 0.0
      %4819 = vmatpush1.msra.mxu0 0.0
      %4820 = vmatprep.subr.mxu0 0.0
      %4821 = vmatpush1.msra.mxu0 0.0
      %4822 = vmatprep.subr.mxu0 0.0
      %4823 = vmatpush1.msra.mxu0 0.0
      %4824 = vmatprep.subr.mxu0 0.0
      %4825 = vmatpush1.msra.mxu0 0.0
      %4826 = vmatprep.subr.mxu0 0.0
      %4827 = vmatpush1.msra.mxu0 0.0
      %4828 = vmatprep.subr.mxu0 0.0
      %4829 = vmatpush1.msra.mxu0 0.0
      %4830 = vmatprep.subr.mxu0 0.0
      %4831 = vmatpush1.msra.mxu0 0.0
      %4832 = vmatprep.subr.mxu0 0.0
      %4833 = vmatpush1.msra.mxu0 0.0
      %4834 = vmatprep.subr.mxu0 0.0
      %4835 = vmatpush1.msra.mxu0 0.0
      %4836 = vmatprep.subr.mxu0 0.0
      %4837 = vmatpush1.msra.mxu0 0.0
      %4838 = vmatprep.subr.mxu0 0.0
      %4839 = vmatpush1.msra.mxu0 0.0
      %4840 = vmatprep.subr.mxu0 0.0
      %4841 = vmatpush1.msra.mxu0 0.0
      %4842 = vmatprep.subr.mxu0 0.0
      %4843 = vmatpush1.msra.mxu0 0.0
      %4844 = vmatprep.subr.mxu0 0.0
      %4845 = vmatpush1.msra.mxu0 0.0
      %4846 = vmatprep.subr.mxu0 0.0
      %4847 = vmatpush1.msra.mxu0 0.0
      %4848 = vmatprep.subr.mxu0 0.0
      %4849 = vmatpush1.msra.mxu0 0.0
      %4850 = vmatprep.subr.mxu0 0.0
      %4851 = vmatpush1.msra.mxu0 0.0
      %4852 = vmatprep.subr.mxu0 0.0
      %4853 = vmatpush1.msra.mxu0 0.0
      %4854 = vmatprep.subr.mxu0 0.0
      %4855 = vmatpush1.msra.mxu0 0.0
      %4856 = vmatprep.mubr.f32.mxu0 0.0
      %4857 = vmatmul.mubr.f32.gmra.mrb[0].mxu0 %v4762
      %v4858 = vpop.f32.mrb[0].mxu0
      %v4859 = vadd.f32 0.0, %v4858
      %v4860 = vpop.f32.mrb[0].mxu0
      %v4861 = vadd.f32 0.0, %v4860
      %4862 = vmatprep.mubr.f32.mxu0 0.0
      %4863 = vmatmul.mubr.f32.gmra.mrb[0].mxu0 %v4765
      %v4864 = vpop.f32.mrb[0].mxu0
      %v4865 = vadd.f32 0.0, %v4864
      %v4866 = vpop.f32.mrb[0].mxu0
      %v4867 = vadd.f32 0.0, %v4866
      %4868 = vdwg.mxu0
      %4869 = vmatprep.subr.mxu0 %v4745
      %4870 = vmatpush1.msra.mxu0 %v4744
      %4871 = vmatprep.subr.mxu0 %v4778
      %4872 = vmatpush1.msra.mxu0 %v4775
      %4873 = vmatprep.subr.mxu0 0.0
      %4874 = vmatpush1.msra.mxu0 0.0
      %4875 = vmatprep.subr.mxu0 0.0
      %4876 = vmatpush1.msra.mxu0 0.0
      %4877 = vmatprep.subr.mxu0 0.0
      %4878 = vmatpush1.msra.mxu0 0.0
      %4879 = vmatprep.subr.mxu0 0.0
      %4880 = vmatpush1.msra.mxu0 0.0
      %4881 = vmatprep.subr.mxu0 0.0
      %4882 = vmatpush1.msra.mxu0 0.0
      %4883 = vmatprep.subr.mxu0 0.0
      %4884 = vmatpush1.msra.mxu0 0.0
      %4885 = vmatprep.subr.mxu0 0.0
      %4886 = vmatpush1.msra.mxu0 0.0
      %4887 = vmatprep.subr.mxu0 0.0
      %4888 = vmatpush1.msra.mxu0 0.0
      %4889 = vmatprep.subr.mxu0 0.0
      %4890 = vmatpush1.msra.mxu0 0.0
      %4891 = vmatprep.subr.mxu0 0.0
      %4892 = vmatpush1.msra.mxu0 0.0
      %4893 = vmatprep.subr.mxu0 0.0
      %4894 = vmatpush1.msra.mxu0 0.0
      %4895 = vmatprep.subr.mxu0 0.0
      %4896 = vmatpush1.msra.mxu0 0.0
      %4897 = vmatprep.subr.mxu0 0.0
      %4898 = vmatpush1.msra.mxu0 0.0
      %4899 = vmatprep.subr.mxu0 0.0
      %4900 = vmatpush1.msra.mxu0 0.0
      %4901 = vmatprep.subr.mxu0 0.0
      %4902 = vmatpush1.msra.mxu0 0.0
      %4903 = vmatprep.subr.mxu0 0.0
      %4904 = vmatpush1.msra.mxu0 0.0
      %4905 = vmatprep.subr.mxu0 0.0
      %4906 = vmatpush1.msra.mxu0 0.0
      %4907 = vmatprep.subr.mxu0 0.0
      %4908 = vmatpush1.msra.mxu0 0.0
      %4909 = vmatprep.subr.mxu0 0.0
      %4910 = vmatpush1.msra.mxu0 0.0
      %4911 = vmatprep.subr.mxu0 0.0
      %4912 = vmatpush1.msra.mxu0 0.0
      %4913 = vmatprep.subr.mxu0 0.0
      %4914 = vmatpush1.msra.mxu0 0.0
      %4915 = vmatprep.subr.mxu0 0.0
      %4916 = vmatpush1.msra.mxu0 0.0
      %4917 = vmatprep.subr.mxu0 0.0
      %4918 = vmatpush1.msra.mxu0 0.0
      %4919 = vmatprep.subr.mxu0 0.0
      %4920 = vmatpush1.msra.mxu0 0.0
      %4921 = vmatprep.subr.mxu0 0.0
      %4922 = vmatpush1.msra.mxu0 0.0
      %4923 = vmatprep.subr.mxu0 0.0
      %4924 = vmatpush1.msra.mxu0 0.0
      %4925 = vmatprep.subr.mxu0 0.0
      %4926 = vmatpush1.msra.mxu0 0.0
      %4927 = vmatprep.subr.mxu0 0.0
      %4928 = vmatpush1.msra.mxu0 0.0
      %4929 = vmatprep.subr.mxu0 0.0
      %4930 = vmatpush1.msra.mxu0 0.0
      %4931 = vmatprep.subr.mxu0 0.0
      %4932 = vmatpush1.msra.mxu0 0.0
      %4933 = vmatprep.mubr.f32.mxu0 0.0
      %4934 = vmatmul.mubr.f32.gmra.mrb[0].mxu0 %v4762
      %v4935 = vpop.f32.mrb[0].mxu0
      %v4936 = vadd.f32 0.0, %v4935
      %v4937 = vpop.f32.mrb[0].mxu0
      %v4938 = vadd.f32 0.0, %v4937
      %4939 = vmatprep.mubr.f32.mxu0 0.0
      %4940 = vmatmul.mubr.f32.gmra.mrb[0].mxu0 %v4765
      %v4941 = vpop.f32.mrb[0].mxu0
      %v4942 = vadd.f32 0.0, %v4941
      %v4943 = vpop.f32.mrb[0].mxu0
      %v4944 = vadd.f32 0.0, %v4943
      %4945 = vdwg.mxu0
      %4946 = vmatprep.subr.mxu0 %v4747
      %4947 = vmatpush1.msra.mxu0 %v4746
      %4948 = vmatprep.subr.mxu0 %v4784
      %4949 = vmatpush1.msra.mxu0 %v4781
      %4950 = vmatprep.subr.mxu0 0.0
      %4951 = vmatpush1.msra.mxu0 0.0
      %4952 = vmatprep.subr.mxu0 0.0
      %4953 = vmatpush1.msra.mxu0 0.0
      %4954 = vmatprep.subr.mxu0 0.0
      %4955 = vmatpush1.msra.mxu0 0.0
      %4956 = vmatprep.subr.mxu0 0.0
      %4957 = vmatpush1.msra.mxu0 0.0
      %4958 = vmatprep.subr.mxu0 0.0
      %4959 = vmatpush1.msra.mxu0 0.0
      %4960 = vmatprep.subr.mxu0 0.0
      %4961 = vmatpush1.msra.mxu0 0.0
      %4962 = vmatprep.subr.mxu0 0.0
      %4963 = vmatpush1.msra.mxu0 0.0
      %4964 = vmatprep.subr.mxu0 0.0
      %4965 = vmatpush1.msra.mxu0 0.0
      %4966 = vmatprep.subr.mxu0 0.0
      %4967 = vmatpush1.msra.mxu0 0.0
      %4968 = vmatprep.subr.mxu0 0.0
      %4969 = vmatpush1.msra.mxu0 0.0
      %4970 = vmatprep.subr.mxu0 0.0
      %4971 = vmatpush1.msra.mxu0 0.0
      %4972 = vmatprep.subr.mxu0 0.0
      %4973 = vmatpush1.msra.mxu0 0.0
      %4974 = vmatprep.subr.mxu0 0.0
      %4975 = vmatpush1.msra.mxu0 0.0
      %4976 = vmatprep.subr.mxu0 0.0
      %4977 = vmatpush1.msra.mxu0 0.0
      %4978 = vmatprep.subr.mxu0 0.0
      %4979 = vmatpush1.msra.mxu0 0.0
      %4980 = vmatprep.subr.mxu0 0.0
      %4981 = vmatpush1.msra.mxu0 0.0
      %4982 = vmatprep.subr.mxu0 0.0
      %4983 = vmatpush1.msra.mxu0 0.0
      %4984 = vmatprep.subr.mxu0 0.0
      %4985 = vmatpush1.msra.mxu0 0.0
      %4986 = vmatprep.subr.mxu0 0.0
      %4987 = vmatpush1.msra.mxu0 0.0
      %4988 = vmatprep.subr.mxu0 0.0
      %4989 = vmatpush1.msra.mxu0 0.0
      %4990 = vmatprep.subr.mxu0 0.0
      %4991 = vmatpush1.msra.mxu0 0.0
      %4992 = vmatprep.subr.mxu0 0.0
      %4993 = vmatpush1.msra.mxu0 0.0
      %4994 = vmatprep.subr.mxu0 0.0
      %4995 = vmatpush1.msra.mxu0 0.0
      %4996 = vmatprep.subr.mxu0 0.0
      %4997 = vmatpush1.msra.mxu0 0.0
      %4998 = vmatprep.subr.mxu0 0.0
      %4999 = vmatpush1.msra.mxu0 0.0
      %5000 = vmatprep.subr.mxu0 0.0
      %5001 = vmatpush1.msra.mxu0 0.0
      %5002 = vmatprep.subr.mxu0 0.0
      %5003 = vmatpush1.msra.mxu0 0.0
      %5004 = vmatprep.subr.mxu0 0.0
      %5005 = vmatpush1.msra.mxu0 0.0
      %5006 = vmatprep.subr.mxu0 0.0
      %5007 = vmatpush1.msra.mxu0 0.0
      %5008 = vmatprep.subr.mxu0 0.0
      %5009 = vmatpush1.msra.mxu0 0.0
      %5010 = vmatprep.mubr.f32.mxu0 0.0
      %5011 = vmatmul.mubr.f32.gmra.mrb[0].mxu0 %v4762
      %v5012 = vpop.f32.mrb[0].mxu0
      %v5013 = vadd.f32 0.0, %v5012
      %v5014 = vpop.f32.mrb[0].mxu0
      %v5015 = vadd.f32 0.0, %v5014
      %5016 = vmatprep.mubr.f32.mxu0 0.0
      %5017 = vmatmul.mubr.f32.gmra.mrb[0].mxu0 %v4765
      %v5018 = vpop.f32.mrb[0].mxu0
      %v5019 = vadd.f32 0.0, %v5018
      %v5020 = vpop.f32.mrb[0].mxu0
      %v5021 = vadd.f32 0.0, %v5020
      %5022 = vdwg.mxu0
      %5023 = vmatprep.subr.mxu0 %v4749
      %5024 = vmatpush1.msra.mxu0 %v4748
      %5025 = vmatprep.subr.mxu0 %v4790
      %5026 = vmatpush1.msra.mxu0 %v4787
      %5027 = vmatprep.subr.mxu0 0.0
      %5028 = vmatpush1.msra.mxu0 0.0
      %5029 = vmatprep.subr.mxu0 0.0
      %5030 = vmatpush1.msra.mxu0 0.0
      %5031 = vmatprep.subr.mxu0 0.0
      %5032 = vmatpush1.msra.mxu0 0.0
      %5033 = vmatprep.subr.mxu0 0.0
      %5034 = vmatpush1.msra.mxu0 0.0
      %5035 = vmatprep.subr.mxu0 0.0
      %5036 = vmatpush1.msra.mxu0 0.0
      %5037 = vmatprep.subr.mxu0 0.0
      %5038 = vmatpush1.msra.mxu0 0.0
      %5039 = vmatprep.subr.mxu0 0.0
      %5040 = vmatpush1.msra.mxu0 0.0
      %5041 = vmatprep.subr.mxu0 0.0
      %5042 = vmatpush1.msra.mxu0 0.0
      %5043 = vmatprep.subr.mxu0 0.0
      %5044 = vmatpush1.msra.mxu0 0.0
      %5045 = vmatprep.subr.mxu0 0.0
      %5046 = vmatpush1.msra.mxu0 0.0
      %5047 = vmatprep.subr.mxu0 0.0
      %5048 = vmatpush1.msra.mxu0 0.0
      %5049 = vmatprep.subr.mxu0 0.0
      %5050 = vmatpush1.msra.mxu0 0.0
      %5051 = vmatprep.subr.mxu0 0.0
      %5052 = vmatpush1.msra.mxu0 0.0
      %5053 = vmatprep.subr.mxu0 0.0
      %5054 = vmatpush1.msra.mxu0 0.0
      %5055 = vmatprep.subr.mxu0 0.0
      %5056 = vmatpush1.msra.mxu0 0.0
      %5057 = vmatprep.subr.mxu0 0.0
      %5058 = vmatpush1.msra.mxu0 0.0
      %5059 = vmatprep.subr.mxu0 0.0
      %5060 = vmatpush1.msra.mxu0 0.0
      %5061 = vmatprep.subr.mxu0 0.0
      %5062 = vmatpush1.msra.mxu0 0.0
      %5063 = vmatprep.subr.mxu0 0.0
      %5064 = vmatpush1.msra.mxu0 0.0
      %5065 = vmatprep.subr.mxu0 0.0
      %5066 = vmatpush1.msra.mxu0 0.0
      %5067 = vmatprep.subr.mxu0 0.0
      %5068 = vmatpush1.msra.mxu0 0.0
      %5069 = vmatprep.subr.mxu0 0.0
      %5070 = vmatpush1.msra.mxu0 0.0
      %5071 = vmatprep.subr.mxu0 0.0
      %5072 = vmatpush1.msra.mxu0 0.0
      %5073 = vmatprep.subr.mxu0 0.0
      %5074 = vmatpush1.msra.mxu0 0.0
      %5075 = vmatprep.subr.mxu0 0.0
      %5076 = vmatpush1.msra.mxu0 0.0
      %5077 = vmatprep.subr.mxu0 0.0
      %5078 = vmatpush1.msra.mxu0 0.0
      %5079 = vmatprep.subr.mxu0 0.0
      %5080 = vmatpush1.msra.mxu0 0.0
      %5081 = vmatprep.subr.mxu0 0.0
      %5082 = vmatpush1.msra.mxu0 0.0
      %5083 = vmatprep.subr.mxu0 0.0
      %5084 = vmatpush1.msra.mxu0 0.0
      %5085 = vmatprep.subr.mxu0 0.0
      %5086 = vmatpush1.msra.mxu0 0.0
      %5087 = vmatprep.mubr.f32.mxu0 0.0
      %5088 = vmatmul.mubr.f32.gmra.mrb[0].mxu0 %v4762
      %v5089 = vpop.f32.mrb[0].mxu0
      %v5090 = vadd.f32 0.0, %v5089
      %v5091 = vpop.f32.mrb[0].mxu0
      %v5092 = vadd.f32 0.0, %v5091
      %5093 = vmatprep.mubr.f32.mxu0 0.0
      %5094 = vmatmul.mubr.f32.gmra.mrb[0].mxu0 %v4765
      %v5095 = vpop.f32.mrb[0].mxu0
      %v5096 = vadd.f32 0.0, %v5095
      %v5097 = vpop.f32.mrb[0].mxu0
      %v5098 = vadd.f32 0.0, %v5097
      %5099 = vdwg.mxu0
      %v5100 = vmul.f32 %v4742, %v4859
      %v5101 = vmul.f32 %v4743, %v4861
      %v5102 = vmul.f32 %v4744, %v4936
      %v5103 = vmul.f32 %v4745, %v4938
      %v5104 = vmul.f32 %v4746, %v5013
      %v5105 = vmul.f32 %v4747, %v5015
      %v5106 = vmul.f32 %v4748, %v5090
      %v5107 = vmul.f32 %v4749, %v5092
      %v5108 = vmul.f32 %v4750, %v4865
      %v5109 = vmul.f32 %v4751, %v4867
      %v5110 = vmul.f32 %v4752, %v4942
      %v5111 = vmul.f32 %v4753, %v4944
      %v5112 = vmul.f32 %v4754, %v5019
      %v5113 = vmul.f32 %v4755, %v5021
      %v5114 = vmul.f32 %v4756, %v5096
      %v5115 = vmul.f32 %v4757, %v5098
      %v5116 = vsel %vm4767, %v5108, 0.0
      %v5117 = vadd.f32 %v5100, %v5116
      %v5118 = vrot.slane %v5117, 4
      %v5119 = vadd.f32 %v5117, %v5118
      %v5120 = vrot.slane %v5119, 2
      %v5121 = vadd.f32 %v5119, %v5120
      %v5122 = vrot.slane %v5121, 1
      %v5123 = vadd.f32 %v5121, %v5122
      %v5124 = vsel %vm4767, %v5109, 0.0
      %v5125 = vadd.f32 %v5101, %v5124
      %v5126 = vrot.slane %v5125, 4
      %v5127 = vadd.f32 %v5125, %v5126
      %v5128 = vrot.slane %v5127, 2
      %v5129 = vadd.f32 %v5127, %v5128
      %v5130 = vrot.slane %v5129, 1
      %v5131 = vadd.f32 %v5129, %v5130
      %v5132 = vsel %vm4767, %v5110, 0.0
      %v5133 = vadd.f32 %v5102, %v5132
      %v5134 = vrot.slane %v5133, 4
      %v5135 = vadd.f32 %v5133, %v5134
      %v5136 = vrot.slane %v5135, 2
      %v5137 = vadd.f32 %v5135, %v5136
      %v5138 = vrot.slane %v5137, 1
      %v5139 = vadd.f32 %v5137, %v5138
      %v5140 = vsel %vm4767, %v5111, 0.0
      %v5141 = vadd.f32 %v5103, %v5140
      %v5142 = vrot.slane %v5141, 4
      %v5143 = vadd.f32 %v5141, %v5142
      %v5144 = vrot.slane %v5143, 2
      %v5145 = vadd.f32 %v5143, %v5144
      %v5146 = vrot.slane %v5145, 1
      %v5147 = vadd.f32 %v5145, %v5146
      %v5148 = vsel %vm4767, %v5112, 0.0
      %v5149 = vadd.f32 %v5104, %v5148
      %v5150 = vrot.slane %v5149, 4
      %v5151 = vadd.f32 %v5149, %v5150
      %v5152 = vrot.slane %v5151, 2
      %v5153 = vadd.f32 %v5151, %v5152
      %v5154 = vrot.slane %v5153, 1
      %v5155 = vadd.f32 %v5153, %v5154
      %v5156 = vsel %vm4767, %v5113, 0.0
      %v5157 = vadd.f32 %v5105, %v5156
      %v5158 = vrot.slane %v5157, 4
      %v5159 = vadd.f32 %v5157, %v5158
      %v5160 = vrot.slane %v5159, 2
      %v5161 = vadd.f32 %v5159, %v5160
      %v5162 = vrot.slane %v5161, 1
      %v5163 = vadd.f32 %v5161, %v5162
      %v5164 = vsel %vm4767, %v5114, 0.0
      %v5165 = vadd.f32 %v5106, %v5164
      %v5166 = vrot.slane %v5165, 4
      %v5167 = vadd.f32 %v5165, %v5166
      %v5168 = vrot.slane %v5167, 2
      %v5169 = vadd.f32 %v5167, %v5168
      %v5170 = vrot.slane %v5169, 1
      %v5171 = vadd.f32 %v5169, %v5170
      %v5172 = vsel %vm4767, %v5115, 0.0
      %v5173 = vadd.f32 %v5107, %v5172
      %v5174 = vrot.slane %v5173, 4
      %v5175 = vadd.f32 %v5173, %v5174
      %v5176 = vrot.slane %v5175, 2
      %v5177 = vadd.f32 %v5175, %v5176
      %v5178 = vrot.slane %v5177, 1
      %v5179 = vadd.f32 %v5177, %v5178
      %v5180 = vadd.f32 %v5123, 1e-08
      %v5181 = vadd.f32 %v5131, 1e-08
      %v5182 = vadd.f32 %v5139, 1e-08
      %v5183 = vadd.f32 %v5147, 1e-08
      %v5184 = vadd.f32 %v5155, 1e-08
      %v5185 = vadd.f32 %v5163, 1e-08
      %v5186 = vadd.f32 %v5171, 1e-08
      %v5187 = vadd.f32 %v5179, 1e-08
      %v5188 = vrsqrt.pop %v5180
      %v5189 = vmul.f32 %v5180, %v5188
      %vm5190 = vcmp.eq.f32.partialorder %v5180, inf
      %v5191 = vsel %vm5190, %v5180, %v5189
      %vm5192 = vcmp.eq.f32.partialorder %v5180, 0.0
      %v5193 = vand.u32 %v5180, 2147483648
      %v5194 = vsel %vm5192, %v5193, %v5191
      %v5195 = vrsqrt.pop %v5181
      %v5196 = vmul.f32 %v5181, %v5195
      %vm5197 = vcmp.eq.f32.partialorder %v5181, inf
      %v5198 = vsel %vm5197, %v5181, %v5196
      %vm5199 = vcmp.eq.f32.partialorder %v5181, 0.0
      %v5200 = vand.u32 %v5181, 2147483648
      %v5201 = vsel %vm5199, %v5200, %v5198
      %v5202 = vrsqrt.pop %v5182
      %v5203 = vmul.f32 %v5182, %v5202
      %vm5204 = vcmp.eq.f32.partialorder %v5182, inf
      %v5205 = vsel %vm5204, %v5182, %v5203
      %vm5206 = vcmp.eq.f32.partialorder %v5182, 0.0
      %v5207 = vand.u32 %v5182, 2147483648
      %v5208 = vsel %vm5206, %v5207, %v5205
      %v5209 = vrsqrt.pop %v5183
      %v5210 = vmul.f32 %v5183, %v5209
      %vm5211 = vcmp.eq.f32.partialorder %v5183, inf
      %v5212 = vsel %vm5211, %v5183, %v5210
      %vm5213 = vcmp.eq.f32.partialorder %v5183, 0.0
      %v5214 = vand.u32 %v5183, 2147483648
      %v5215 = vsel %vm5213, %v5214, %v5212
      %v5216 = vrsqrt.pop %v5184
      %v5217 = vmul.f32 %v5184, %v5216
      %vm5218 = vcmp.eq.f32.partialorder %v5184, inf
      %v5219 = vsel %vm5218, %v5184, %v5217
      %vm5220 = vcmp.eq.f32.partialorder %v5184, 0.0
      %v5221 = vand.u32 %v5184, 2147483648
      %v5222 = vsel %vm5220, %v5221, %v5219
      %v5223 = vrsqrt.pop %v5185
      %v5224 = vmul.f32 %v5185, %v5223
      %vm5225 = vcmp.eq.f32.partialorder %v5185, inf
      %v5226 = vsel %vm5225, %v5185, %v5224
      %vm5227 = vcmp.eq.f32.partialorder %v5185, 0.0
      %v5228 = vand.u32 %v5185, 2147483648
      %v5229 = vsel %vm5227, %v5228, %v5226
      %v5230 = vrsqrt.pop %v5186
      %v5231 = vmul.f32 %v5186, %v5230
      %vm5232 = vcmp.eq.f32.partialorder %v5186, inf
      %v5233 = vsel %vm5232, %v5186, %v5231
      %vm5234 = vcmp.eq.f32.partialorder %v5186, 0.0
      %v5235 = vand.u32 %v5186, 2147483648
      %v5236 = vsel %vm5234, %v5235, %v5233
      %v5237 = vrsqrt.pop %v5187
      %v5238 = vmul.f32 %v5187, %v5237
      %vm5239 = vcmp.eq.f32.partialorder %v5187, inf
      %v5240 = vsel %vm5239, %v5187, %v5238
      %vm5241 = vcmp.eq.f32.partialorder %v5187, 0.0
      %v5242 = vand.u32 %v5187, 2147483648
      %v5243 = vsel %vm5241, %v5242, %v5240
      %v5244 = vlaneseq
      %v5245 = vand.u32 %v5244, 127
      %v5246 = vadd.s32 %v5245, 128
      %v5247 = vadd.s32 %v5245, 256
      %v5248 = vadd.s32 %v5245, 384
      %v5249 = vadd.s32 %v5245, 512
      %v5250 = vadd.s32 %v5245, 640
      %v5251 = vadd.s32 %v5245, 768
      %v5252 = vadd.s32 %v5245, 896
      %s5253 = smul.u32 %s26, 1024
      %s5254 = ssub.s32 1024, %s5253
      %v5255 = vstv %s5254
      %vm5256 = vcmp.lt.s32.totalorder %v5245, %v5255
      %vm5257 = vcmp.lt.s32.totalorder %v5246, %v5255
      %vm5258 = vcmp.lt.s32.totalorder %v5247, %v5255
      %vm5259 = vcmp.lt.s32.totalorder %v5248, %v5255
      %vm5260 = vcmp.lt.s32.totalorder %v5249, %v5255
      %vm5261 = vcmp.lt.s32.totalorder %v5250, %v5255
      %vm5262 = vcmp.lt.s32.totalorder %v5251, %v5255
      %vm5263 = vcmp.lt.s32.totalorder %v5252, %v5255
      %v5264 = vld [vmem:[#allocation2] sm:$0x1]
      %v5265 = vsel %vm5256, %v5194, 0.0
      %v5266 = vsel %vm5257, %v5201, 0.0
      %v5267 = vsel %vm5258, %v5208, 0.0
      %v5268 = vsel %vm5259, %v5215, 0.0
      %v5269 = vsel %vm5260, %v5222, 0.0
      %v5270 = vsel %vm5261, %v5229, 0.0
      %v5271 = vsel %vm5262, %v5236, 0.0
      %v5272 = vsel %vm5263, %v5243, 0.0
      %v5273 = vadd.f32 %v5265, %v5266
      %v5274 = vadd.f32 %v5273, %v5267
      %v5275 = vadd.f32 %v5274, %v5268
      %v5276 = vadd.f32 %v5275, %v5269
      %v5277 = vadd.f32 %v5276, %v5270
      %v5278 = vadd.f32 %v5277, %v5271
      %v5279 = vadd.f32 %v5278, %v5272
      %5280 = vadd.xlane.f32.xlu0 %v5279
      %v5281 = vpop.xlane.xlu0 %5280
      %v5282 = vadd.f32 %v5264, %v5281
      %vm5283 = vcmask 0
      %5284 = vst.msk [vmem:[#allocation2] sm:$0x1] %vm5283, %v5282
      // Predicated region
      $region65: #{cdnet_loss.5} parent=59 // pred_check
        %p5285 = pneg %p492
      $region66: #{cdnet_loss.5} parent=59 // pred_check_branch
        %5287 = sbr.rel (%p5285) target = $region68
      $region67: #{cdnet_loss.5} parent=59 // pred_region
        %v5288 = vld [vmem:[#allocation2] sm:$0x1]
        %5289 = vst.msk [vmem:[%s491] sm:$0x1] %vm5283, %v5288
      $region68: #{cdnet_loss.5} parent=59 // pred_fallthru
        _
      %p5290 = scmp.lt.s32.totalorder %s25, 1
      %s5291 = scalar_select %p5290, %s25, 1
      %s5292 = scalar_lea.vmem %s10, %s5291
      // Predicated region
      $region69: #{cdnet_loss.5} parent=59 // pred_check
        %p5293 = pneg %p289
      $region70: #{cdnet_loss.5} parent=59 // pred_check_branch
        %5295 = sbr.rel (%p5293) target = $region72
      $region71: #{cdnet_loss.5} parent=59 // pred_region
        _
      $region72: #{cdnet_loss.5} parent=59 // pred_fallthru
        _
    $region60: #{cdnet_loss.5} parent=5 // pred_fallthru
      _
    %p5296 = scmp.le.s32.totalorder 2, %s16
    // Predicated region
    $region73: #{cdnet_loss.5} parent=5 // pred_check
      %p5297 = pneg %p5296
    $region74: #{cdnet_loss.5} parent=5 // pred_check_branch
      %5299 = sbr.rel (%p5297) target = $region76
    $region75: #{cdnet_loss.5} parent=5 // pred_region
      %s5300 = ssub.s32 %s16, 2
      // Predicated region
      $region77: #{cdnet_loss.5} parent=75 // pred_check
        %p5301 = pneg %p295
      $region78: #{cdnet_loss.5} parent=75 // pred_check_branch
        %5303 = sbr.rel (%p5301) target = $region80
      $region79: #{cdnet_loss.5} parent=75 // pred_region
        %p5304 = scmp.lt.s32.totalorder %s27, 1
        %s5305 = scalar_select %p5304, %s27, 1
        %s5306 = scalar_lea.vmem %s10, %s5305
      $region80: #{cdnet_loss.5} parent=75 // pred_fallthru
        _
    $region76: #{cdnet_loss.5} parent=5 // pred_fallthru
      _
  $region6: #{cdnet_loss.5} parent=0 // loop_footer
    %s20 = sadd.s32 1, %s16
  $region7: #{cdnet_loss.5} parent=0 // loop_footer_branch
    %15 = sbr.rel target = $region3
  $region8: #{cdnet_loss.5} parent=0 // loop_exit
    _

</llo_original>
